<compile_context>
chip_gen: v7x
topology: tpu7x:2x2x1
jax: 0.10.0
libtpu: 0.0.40
codegen_flags: <defaults>
</compile_context>

<pallas_src>
import math
import functools

import jax
import jax.numpy as jnp
from jax.experimental import pallas as pl
from jax.experimental.pallas import tpu as pltpu

# ---------------------------------------------------------------- config ----
D_MODEL = 32
NHEAD = 8
HEAD_DIM = D_MODEL // NHEAD
DIM_FF = 64
NUM_CLASSES = 4          # use_focal=True -> class_logits has num_classes outputs
DIM_DYNAMIC = 16
POOLER_RES = 2
S2 = POOLER_RES * POOLER_RES
NUM_CLS = 1
NUM_REG = 3
WATERSHED = 1
CONFIDENCE_THR = 0.30
LOW_CONFIDENCE_THR = 0.05
BBOX_WEIGHTS = (2.0, 2.0, 1.0, 1.0)
_DEFAULT_SCALE_CLAMP = math.log(100000.0 / 16)
LN_EPS = 1e-5
P = D_MODEL * DIM_DYNAMIC          # size of one DynamicConv parameter block


# ------------------------------------------------------------- helpers ------
def _layer_norm(x, g, b):
    mu = jnp.mean(x, axis=-1, keepdims=True)
    var = jnp.mean((x - mu) ** 2, axis=-1, keepdims=True)
    return (x - mu) * jax.lax.rsqrt(var + LN_EPS) * g + b


def _linear(x, w, b=None):
    # PyTorch semantics: y = x @ w.T (+ b), w is (out_features, in_features)
    y = jax.lax.dot_general(x, w, (((x.ndim - 1,), (1,)), ((), ())),
                            preferred_element_type=jnp.float32)
    if b is not None:
        y = y + b
    return y


def _vmem_specs(n):
    return [pl.BlockSpec(memory_space=pltpu.MemorySpace.VMEM) for _ in range(n)]


def _vmem_spec():
    return pl.BlockSpec(memory_space=pltpu.MemorySpace.VMEM)


# ------------------- kernel A: self-attn + norm1 + DynamicConv param proj ---
def _attn_dyn_kernel(pro_ref, qw_ref, qb_ref, kw_ref, kb_ref, vw_ref, vb_ref,
                     wor_ref, ob_ref, n1g_ref, n1b_ref, dynw_ref, dynb_ref,
                     pro1_ref, dyn_ref, *, nhead, head_dim):
    N, L, D = pro_ref.shape
    scale = 1.0 / math.sqrt(head_dim)
    q_w, q_b = qw_ref[...], qb_ref[...]          # (H, hd, D), (H, 1, hd)
    k_w, k_b = kw_ref[...], kb_ref[...]
    v_w, v_b = vw_ref[...], vb_ref[...]
    w_out_r = wor_ref[...]                        # (H, D, hd)
    b_out = ob_ref[...]                           # (1, D)
    g1, be1 = n1g_ref[...], n1b_ref[...]
    dyn_w, dyn_b = dynw_ref[...], dynb_ref[...]   # (2P, D), (1, 2P)

    for n in range(N):                            # N is tiny (2): static unroll
        x = pro_ref[n].astype(jnp.float32)        # (L, D)
        xb = jnp.broadcast_to(x[None], (nhead, L, D))      # (H, L, D)
        # per-head projections, batched over heads (single bmm per projection)
        q = jnp.einsum('hld,hed->hle', xb, q_w,
                       preferred_element_type=jnp.float32) + q_b   # (H, L, hd)
        k = jnp.einsum('hld,hed->hle', xb, k_w,
                       preferred_element_type=jnp.float32) + k_b
        v = jnp.einsum('hld,hed->hle', xb, v_w,
                       preferred_element_type=jnp.float32) + v_b
        s = jnp.einsum('hqe,hke->hqk', q, k,
                       preferred_element_type=jnp.float32) * scale  # (H, L, L)
        m = jnp.max(s, axis=-1, keepdims=True)
        pr = jnp.exp(s - m)
        pr = pr / jnp.sum(pr, axis=-1, keepdims=True)
        o = jnp.einsum('hqk,hke->hqe', pr, v,
                       preferred_element_type=jnp.float32)          # (H, L, hd)
        # output projection folded per head, then summed over heads
        proj = jnp.einsum('hqe,hde->hqd', o, w_out_r,
                          preferred_element_type=jnp.float32)       # (H, L, D)
        attn_out = jnp.sum(proj, axis=0) + b_out                    # (L, D)
        # residual + norm1   (dropout1 = identity in eval)
        pro1 = _layer_norm(x + attn_out, g1, be1)                   # (L, D)
        # DynamicConv parameter projection (kept in the same kernel)
        dyn = _linear(pro1, dyn_w, dyn_b)                           # (L, 2P)
        pro1_ref[n * L:(n + 1) * L, :] = pro1
        dyn_ref[n * L:(n + 1) * L, :] = dyn


def attn_norm1_dyn(pro, p):
    N, L, D = pro.shape
    M = N * L
    args = (pro, p['q_w'], p['q_b'], p['k_w'], p['k_b'], p['v_w'], p['v_b'],
            p['attn_w_out_r'], p['attn_b_out'], p['norm1_g'], p['norm1_b'],
            p['dyn_w'], p['dyn_b'])
    cost = pl.CostEstimate(flops=1_250_000, transcendentals=N * NHEAD * L * L,
                           bytes_accessed=250_000)
    return pl.pallas_call(
        functools.partial(_attn_dyn_kernel, nhead=NHEAD, head_dim=HEAD_DIM),
        in_specs=_vmem_specs(len(args)),
        out_specs=(_vmem_spec(), _vmem_spec()),
        out_shape=(jax.ShapeDtypeStruct((M, D), jnp.float32),
                   jax.ShapeDtypeStruct((M, 2 * P), jnp.float32)),
        cost_estimate=cost,
    )(*args)


# ------- kernel B: DynamicConv + norm2 + FFN + norm3 + towers + heads -------
def _dynconv_ffn_predict_kernel(pro_ref, roi_ref, p1_ref, p2_ref, boxes_ref,
                                dc1g_ref, dc1b_ref, dc2g_ref, dc2b_ref,
                                outw_ref, outb_ref, dc3g_ref, dc3b_ref,
                                n2g_ref, n2b_ref, l1w_ref, l1b_ref,
                                l2w_ref, l2b_ref, n3g_ref, n3b_ref,
                                clsw_ref, clsg_ref, clsb_ref,
                                regw_ref, regg_ref, regb_ref,
                                clw_ref, clb_ref, bdw_ref, bdb_ref,
                                obj_ref, head_ref,
                                *, num_cls, num_reg, bbox_weights, scale_clamp):
    pro = pro_ref[...]                            # (M, D)  (post norm1)
    roi = roi_ref[...]                            # (M, S2, D)
    p1 = p1_ref[...]                              # (M, D, E)
    p2 = p2_ref[...]                              # (M, E, D)
    M, s2, D = roi.shape

    # DynamicConv: torch.bmm(features, param1) -> LN -> ReLU
    f = jax.lax.dot_general(roi, p1, (((2,), (1,)), ((0,), (0,))),
                            preferred_element_type=jnp.float32)     # (M,S2,E)
    f = jnp.maximum(_layer_norm(f, dc1g_ref[...], dc1b_ref[...]), 0.0)
    # torch.bmm(features, param2) -> LN -> ReLU
    f = jax.lax.dot_general(f, p2, (((2,), (1,)), ((0,), (0,))),
                            preferred_element_type=jnp.float32)     # (M,S2,D)
    f = jnp.maximum(_layer_norm(f, dc2g_ref[...], dc2b_ref[...]), 0.0)
    # out_layer(flatten(1)): concat spatial slices along lanes (order s*D+d),
    # single lane-dense K = S2*D contraction against the original weight.
    f_flat = jnp.concatenate([f[:, s, :] for s in range(s2)], axis=-1)  # (M,S2*D)
    pro2 = _linear(f_flat, outw_ref[...], outb_ref[...])                # (M, D)
    pro2 = jnp.maximum(_layer_norm(pro2, dc3g_ref[...], dc3b_ref[...]), 0.0)

    # residual + norm2   (dropout2 = identity)
    x = _layer_norm(pro + pro2, n2g_ref[...], n2b_ref[...])
    # FFN: linear2(dropout(relu(linear1(x))))  (dropout = identity)
    ff = jnp.maximum(_linear(x, l1w_ref[...], l1b_ref[...]), 0.0)
    ff = _linear(ff, l2w_ref[...], l2b_ref[...])
    # residual + norm3   (dropout3 = identity)
    obj = _layer_norm(x + ff, n3g_ref[...], n3b_ref[...])
    obj_ref[...] = obj

    # cls / reg towers
    cls_w, cls_g, cls_b = clsw_ref[...], clsg_ref[...], clsb_ref[...]
    reg_w, reg_g, reg_b = regw_ref[...], regg_ref[...], regb_ref[...]
    cls_f = obj
    for i in range(num_cls):
        cls_f = jnp.maximum(
            _layer_norm(_linear(cls_f, cls_w[i]), cls_g[i:i + 1], cls_b[i:i + 1]), 0.0)
    reg_f = obj
    for i in range(num_reg):
        reg_f = jnp.maximum(
            _layer_norm(_linear(reg_f, reg_w[i]), reg_g[i:i + 1], reg_b[i:i + 1]), 0.0)
    logits = _linear(cls_f, clw_ref[...], clb_ref[...])             # (M, C)
    deltas = _linear(reg_f, bdw_ref[...], bdb_ref[...])             # (M, 4)

    # apply_deltas (dx, dy, dw, dh) -> xyxy
    boxes = boxes_ref[...].astype(deltas.dtype)                     # (M, 4)
    widths = boxes[:, 2:3] - boxes[:, 0:1]
    heights = boxes[:, 3:4] - boxes[:, 1:2]
    ctr_x = boxes[:, 0:1] + 0.5 * widths
    ctr_y = boxes[:, 1:2] + 0.5 * heights
    wx, wy, ww, wh = bbox_weights
    dx = deltas[:, 0:1] / wx
    dy = deltas[:, 1:2] / wy
    dw = jnp.minimum(deltas[:, 2:3] / ww, scale_clamp)
    dh = jnp.minimum(deltas[:, 3:4] / wh, scale_clamp)
    pcx = dx * widths + ctr_x
    pcy = dy * heights + ctr_y
    pw = jnp.exp(dw) * widths
    ph = jnp.exp(dh) * heights
    x1 = pcx - 0.5 * pw
    y1 = pcy - 0.5 * ph
    x2 = pcx + 0.5 * pw
    y2 = pcy + 0.5 * ph
    col = jax.lax.broadcasted_iota(jnp.int32, deltas.shape, 1)
    pred = jnp.where(col == 0, x1,
                     jnp.where(col == 1, y1,
                               jnp.where(col == 2, x2, y2)))

    # single combined output slab: [class_logits | pred_boxes]
    C = logits.shape[1]
    head_ref[:, :C] = logits
    head_ref[:, C:] = pred


def dynconv_ffn_predict(pro1_flat, roi_msd, p1, p2, boxes_flat, p):
    M, D = pro1_flat.shape
    args = (pro1_flat, roi_msd, p1, p2, boxes_flat,
            p['dc_n1_g'], p['dc_n1_b'], p['dc_n2_g'], p['dc_n2_b'],
            p['dc_out_w'], p['dc_out_b'], p['dc_n3_g'], p['dc_n3_b'],
            p['norm2_g'], p['norm2_b'], p['lin1_w'], p['lin1_b'],
            p['lin2_w'], p['lin2_b'], p['norm3_g'], p['norm3_b'],
            p['cls_w'], p['cls_g'], p['cls_b'],
            p['reg_w'], p['reg_g'], p['reg_b'],
            p['cl_w'], p['cl_b'], p['bd_w'], p['bd_b'])
    cost = pl.CostEstimate(flops=700_000, transcendentals=2 * M + 10,
                           bytes_accessed=140_000)
    return pl.pallas_call(
        functools.partial(_dynconv_ffn_predict_kernel,
                          num_cls=NUM_CLS, num_reg=NUM_REG,
                          bbox_weights=BBOX_WEIGHTS,
                          scale_clamp=_DEFAULT_SCALE_CLAMP),
        in_specs=_vmem_specs(len(args)),
        out_specs=(_vmem_spec(), _vmem_spec()),
        out_shape=(jax.ShapeDtypeStruct((M, D), jnp.float32),
                   jax.ShapeDtypeStruct((M, NUM_CLASSES + 4), jnp.float32)),
        cost_estimate=cost,
    )(*args)


# ------------------------------------------------------------- forward ------
def rcnn_head_forward(params, roi_features, container):
    bboxes = container['bboxes']                    # (N, nr, 4)
    pro_features = container['pro_features']        # (N, nr, D)
    level = container['lid']
    N, nr, D = pro_features.shape
    M = N * nr

    # --- kernel A: self-attention + residual + norm1 + dyn param projection
    pro1_flat, dyn_params = attn_norm1_dyn(pro_features.astype(jnp.float32),
                                           params)          # (M,D), (M,2P)

    # free glue: lane-aligned slice + contiguous reshapes (PyTorch .view order)
    p1 = dyn_params[:, :P].reshape(M, D, DIM_DYNAMIC)        # (M, D, E)
    p2 = dyn_params[:, P:].reshape(M, DIM_DYNAMIC, D)        # (M, E, D)

    # roi: pooler-native (M, D, S, S) -> (M, S2, D) used by DynamicConv
    roi_msd = jnp.transpose(roi_features.reshape(M, D, S2), (0, 2, 1))

    # --- kernel B: DynamicConv + FFN + towers + heads + apply_deltas ---
    obj_flat, head = dynconv_ffn_predict(
        pro1_flat, roi_msd, p1, p2,
        bboxes.reshape(M, 4).astype(jnp.float32), params)

    class_logits = head[:, :NUM_CLASSES].reshape(N, nr, NUM_CLASSES)
    pred_bboxes = head[:, NUM_CLASSES:].reshape(N, nr, 4)
    obj_features = obj_flat.reshape(1, M, D)

    # --- masks (cheap elementwise glue) ---
    cur_all_mask = jnp.ones((N, nr, 1), jnp.float32)
    mask = jnp.ones((N, nr, 1), jnp.float32)
    next_mask = jnp.ones((N, nr, 1), jnp.float32)
    gather_mask = jnp.zeros((N, nr, 1), jnp.float32)
    alive_mask = jnp.zeros((N, nr, 1), jnp.float32)
    if level >= WATERSHED - 1:
        cls_score = jnp.max(jax.nn.sigmoid(class_logits), axis=-1, keepdims=True)
        alive_mask = (cls_score >= CONFIDENCE_THR).astype(jnp.float32)
        gather_mask = alive_mask
        next_mask = (1.0 - alive_mask) * (cls_score >= LOW_CONFIDENCE_THR).astype(jnp.float32)

    container = dict(container)
    container.update({
        'class_logits': class_logits,
        'bboxes': pred_bboxes,
        'pro_features': obj_features,
        'cur_all_mask': cur_all_mask,
        'mask': mask,
        'next_mask': next_mask,
        'gather_mask': gather_mask,
        'alive_mask': alive_mask,
    })
    return container


# -------------------------------------------------------------- params ------
def init_params(key):
    keys = iter(jax.random.split(key, 16))

    def w(shape, scale=0.02):
        return scale * jax.random.normal(next(keys), shape, dtype=jnp.float32)

    D, F, C, E, H, hd = D_MODEL, DIM_FF, NUM_CLASSES, DIM_DYNAMIC, NHEAD, HEAD_DIM

    # PyTorch-layout raw weights
    attn_w_in = w((3 * D, D))            # nn.MultiheadAttention in_proj_weight
    attn_b_in = jnp.zeros((3 * D,), jnp.float32)
    attn_w_out = w((D, D))               # out_proj.weight
    dc_out_w = w((D, S2 * D))            # DynamicConv out_layer.weight

    p = {
        # attention weights pre-split per head (pure layout prep, done once)
        'q_w': attn_w_in[:D].reshape(H, hd, D),
        'k_w': attn_w_in[D:2 * D].reshape(H, hd, D),
        'v_w': attn_w_in[2 * D:].reshape(H, hd, D),
        'q_b': attn_b_in[:D].reshape(H, hd)[:, None, :],
        'k_b': attn_b_in[D:2 * D].reshape(H, hd)[:, None, :],
        'v_b': attn_b_in[2 * D:].reshape(H, hd)[:, None, :],
        # out_proj reshaped to (H, D, hd): w_out_r[h, d, e] = w_out[d, h*hd+e]
        'attn_w_out_r': jnp.transpose(attn_w_out.reshape(D, H, hd), (1, 0, 2)),
        'attn_b_out': jnp.zeros((1, D), jnp.float32),
        'norm1_g': jnp.ones((1, D), jnp.float32), 'norm1_b': jnp.zeros((1, D), jnp.float32),
        # DynamicConv (inst_interact)
        'dyn_w': w((2 * P, D)), 'dyn_b': jnp.zeros((1, 2 * P), jnp.float32),
        'dc_n1_g': jnp.ones((1, E), jnp.float32), 'dc_n1_b': jnp.zeros((1, E), jnp.float32),
        'dc_n2_g': jnp.ones((1, D), jnp.float32), 'dc_n2_b': jnp.zeros((1, D), jnp.float32),
        'dc_out_w': dc_out_w, 'dc_out_b': jnp.zeros((1, D), jnp.float32),
        'dc_n3_g': jnp.ones((1, D), jnp.float32), 'dc_n3_b': jnp.zeros((1, D), jnp.float32),
        # norm2 / FFN / norm3
        'norm2_g': jnp.ones((1, D), jnp.float32), 'norm2_b': jnp.zeros((1, D), jnp.float32),
        'lin1_w': w((F, D)), 'lin1_b': jnp.zeros((1, F), jnp.float32),
        'lin2_w': w((D, F)), 'lin2_b': jnp.zeros((1, D), jnp.float32),
        'norm3_g': jnp.ones((1, D), jnp.float32), 'norm3_b': jnp.zeros((1, D), jnp.float32),
        # cls / reg towers (Linear(no bias) + LayerNorm + ReLU)
        'cls_w': w((NUM_CLS, D, D)),
        'cls_g': jnp.ones((NUM_CLS, D), jnp.float32), 'cls_b': jnp.zeros((NUM_CLS, D), jnp.float32),
        'reg_w': w((NUM_REG, D, D)),
        'reg_g': jnp.ones((NUM_REG, D), jnp.float32), 'reg_b': jnp.zeros((NUM_REG, D), jnp.float32),
        # heads
        'cl_w': w((C, D)), 'cl_b': jnp.zeros((1, C), jnp.float32),
        'bd_w': w((4, D)), 'bd_b': jnp.zeros((1, 4), jnp.float32),
    }
    return p


# ---------------------------------------------------------------- main ------
if __name__ == "__main__":
    key = jax.random.PRNGKey(0)
    kp, kd = jax.random.split(key)
    params = init_params(kp)

    N, NR = 2, 8
    k1, k2, k3, k4 = jax.random.split(kd, 4)
    xy = jax.random.uniform(k1, (N, NR, 2), minval=0.0, maxval=32.0)
    wh = jax.random.uniform(k2, (N, NR, 2), minval=4.0, maxval=16.0)
    bboxes = jnp.concatenate([xy, xy + wh], axis=-1)                     # (N, NR, 4) xyxy
    pro_features = 0.1 * jax.random.normal(k3, (N, NR, D_MODEL), jnp.float32)
    # TODO(synk): stand-in for pooler(features, Boxes) output (ROIAlign).
    roi_features = 0.1 * jax.random.normal(
        k4, (N * NR, D_MODEL, POOLER_RES, POOLER_RES), jnp.float32)

    container = {'bboxes': bboxes, 'pro_features': pro_features, 'lid': 1}
    out = rcnn_head_forward(params, roi_features, container)
    jax.tree_util.tree_map(jax.block_until_ready, out)

    assert out['class_logits'].shape == (N, NR, NUM_CLASSES)
    assert out['bboxes'].shape == (N, NR, 4)
    assert out['pro_features'].shape == (1, N * NR, D_MODEL)
    print("KERNEL_OK")
</pallas_src>

<mosaic_0001>
module attributes {stable_mosaic.version = 11 : i64} {
  func.func @_attn_dyn_kernel(%arg0: memref<2x8x32xf32, #tpu.memory_space<vmem>>, %arg1: memref<8x4x32xf32, #tpu.memory_space<vmem>>, %arg2: memref<8x1x4xf32, #tpu.memory_space<vmem>>, %arg3: memref<8x4x32xf32, #tpu.memory_space<vmem>>, %arg4: memref<8x1x4xf32, #tpu.memory_space<vmem>>, %arg5: memref<8x4x32xf32, #tpu.memory_space<vmem>>, %arg6: memref<8x1x4xf32, #tpu.memory_space<vmem>>, %arg7: memref<8x32x4xf32, #tpu.memory_space<vmem>>, %arg8: memref<1x32xf32, #tpu.memory_space<vmem>>, %arg9: memref<1x32xf32, #tpu.memory_space<vmem>>, %arg10: memref<1x32xf32, #tpu.memory_space<vmem>>, %arg11: memref<1024x32xf32, #tpu.memory_space<vmem>>, %arg12: memref<1x1024xf32, #tpu.memory_space<vmem>>, %arg13: memref<16x32xf32, #tpu.memory_space<vmem>>, %arg14: memref<16x1024xf32, #tpu.memory_space<vmem>>) attributes {dimension_semantics = [], scalar_prefetch = 0 : i64, scratch_operands = 0 : i64, tpu.core_type = #tpu.core_type<tc>} {
    %c0 = arith.constant 0 : index
    %c0_0 = arith.constant 0 : index
    %c0_1 = arith.constant 0 : index
    %0 = vector.load %arg1[%c0, %c0_0, %c0_1] : memref<8x4x32xf32, #tpu.memory_space<vmem>>, vector<8x4x32xf32>
    %c0_2 = arith.constant 0 : index
    %c0_3 = arith.constant 0 : index
    %c0_4 = arith.constant 0 : index
    %1 = vector.load %arg2[%c0_2, %c0_3, %c0_4] : memref<8x1x4xf32, #tpu.memory_space<vmem>>, vector<8x1x4xf32>
    %c0_5 = arith.constant 0 : index
    %c0_6 = arith.constant 0 : index
    %c0_7 = arith.constant 0 : index
    %2 = vector.load %arg3[%c0_5, %c0_6, %c0_7] : memref<8x4x32xf32, #tpu.memory_space<vmem>>, vector<8x4x32xf32>
    %c0_8 = arith.constant 0 : index
    %c0_9 = arith.constant 0 : index
    %c0_10 = arith.constant 0 : index
    %3 = vector.load %arg4[%c0_8, %c0_9, %c0_10] : memref<8x1x4xf32, #tpu.memory_space<vmem>>, vector<8x1x4xf32>
    %c0_11 = arith.constant 0 : index
    %c0_12 = arith.constant 0 : index
    %c0_13 = arith.constant 0 : index
    %4 = vector.load %arg5[%c0_11, %c0_12, %c0_13] : memref<8x4x32xf32, #tpu.memory_space<vmem>>, vector<8x4x32xf32>
    %c0_14 = arith.constant 0 : index
    %c0_15 = arith.constant 0 : index
    %c0_16 = arith.constant 0 : index
    %5 = vector.load %arg6[%c0_14, %c0_15, %c0_16] : memref<8x1x4xf32, #tpu.memory_space<vmem>>, vector<8x1x4xf32>
    %c0_17 = arith.constant 0 : index
    %c0_18 = arith.constant 0 : index
    %c0_19 = arith.constant 0 : index
    %6 = vector.load %arg7[%c0_17, %c0_18, %c0_19] : memref<8x32x4xf32, #tpu.memory_space<vmem>>, vector<8x32x4xf32>
    %c0_20 = arith.constant 0 : index
    %c0_21 = arith.constant 0 : index
    %7 = vector.load %arg8[%c0_20, %c0_21] : memref<1x32xf32, #tpu.memory_space<vmem>>, vector<1x32xf32>
    %c0_22 = arith.constant 0 : index
    %c0_23 = arith.constant 0 : index
    %8 = vector.load %arg9[%c0_22, %c0_23] : memref<1x32xf32, #tpu.memory_space<vmem>>, vector<1x32xf32>
    %c0_24 = arith.constant 0 : index
    %c0_25 = arith.constant 0 : index
    %9 = vector.load %arg10[%c0_24, %c0_25] : memref<1x32xf32, #tpu.memory_space<vmem>>, vector<1x32xf32>
    %c0_26 = arith.constant 0 : index
    %c0_27 = arith.constant 0 : index
    %10 = vector.load %arg11[%c0_26, %c0_27] : memref<1024x32xf32, #tpu.memory_space<vmem>>, vector<1024x32xf32>
    %c0_28 = arith.constant 0 : index
    %c0_29 = arith.constant 0 : index
    %11 = vector.load %arg12[%c0_28, %c0_29] : memref<1x1024xf32, #tpu.memory_space<vmem>>, vector<1x1024xf32>
    %c0_30 = arith.constant 0 : index
    %c0_31 = arith.constant 0 : index
    %c0_32 = arith.constant 0 : index
    %12 = vector.load %arg0[%c0_30, %c0_31, %c0_32] : memref<2x8x32xf32, #tpu.memory_space<vmem>>, vector<1x8x32xf32>
    %13 = vector.shape_cast %12 : vector<1x8x32xf32> to vector<8x32xf32>
    %14 = vector.shape_cast %13 : vector<8x32xf32> to vector<1x8x32xf32>
    %15 = vector.shape_cast %14 : vector<1x8x32xf32> to vector<1x8x32xf32>
    %16 = vector.broadcast %15 : vector<1x8x32xf32> to vector<8x8x32xf32>
    "tpu.trace_start"() <{level = 10 : i32, message = "hld,hed->hle"}> : () -> ()
    %cst = arith.constant dense<0.000000e+00> : vector<8x8x4xf32>
    %17 = tpu.matmul %16, %0, %cst {dimension_numbers = #tpu.dot_dimension_numbers<[2], [2], [1], [1], [0, 0, 0, 1, 1, 1], [0], [0]>} : vector<8x8x32xf32>, vector<8x4x32xf32>, vector<8x8x4xf32> -> vector<8x8x4xf32>
    "tpu.trace_stop"() : () -> ()
    %18 = vector.broadcast %1 : vector<8x1x4xf32> to vector<8x8x4xf32>
    %19 = arith.addf %17, %18 : vector<8x8x4xf32>
    "tpu.trace_start"() <{level = 10 : i32, message = "hld,hed->hle"}> : () -> ()
    %cst_33 = arith.constant dense<0.000000e+00> : vector<8x8x4xf32>
    %20 = tpu.matmul %16, %2, %cst_33 {dimension_numbers = #tpu.dot_dimension_numbers<[2], [2], [1], [1], [0, 0, 0, 1, 1, 1], [0], [0]>} : vector<8x8x32xf32>, vector<8x4x32xf32>, vector<8x8x4xf32> -> vector<8x8x4xf32>
    "tpu.trace_stop"() : () -> ()
    %21 = vector.broadcast %3 : vector<8x1x4xf32> to vector<8x8x4xf32>
    %22 = arith.addf %20, %21 : vector<8x8x4xf32>
    "tpu.trace_start"() <{level = 10 : i32, message = "hld,hed->hle"}> : () -> ()
    %cst_34 = arith.constant dense<0.000000e+00> : vector<8x8x4xf32>
    %23 = tpu.matmul %16, %4, %cst_34 {dimension_numbers = #tpu.dot_dimension_numbers<[2], [2], [1], [1], [0, 0, 0, 1, 1, 1], [0], [0]>} : vector<8x8x32xf32>, vector<8x4x32xf32>, vector<8x8x4xf32> -> vector<8x8x4xf32>
    "tpu.trace_stop"() : () -> ()
    %24 = vector.broadcast %5 : vector<8x1x4xf32> to vector<8x8x4xf32>
    %25 = arith.addf %23, %24 : vector<8x8x4xf32>
    "tpu.trace_start"() <{level = 10 : i32, message = "hqe,hke->hqk"}> : () -> ()
    %cst_35 = arith.constant dense<0.000000e+00> : vector<8x8x8xf32>
    %26 = tpu.matmul %19, %22, %cst_35 {dimension_numbers = #tpu.dot_dimension_numbers<[2], [2], [1], [1], [0, 0, 0, 1, 1, 1], [0], [0]>} : vector<8x8x4xf32>, vector<8x8x4xf32>, vector<8x8x8xf32> -> vector<8x8x8xf32>
    "tpu.trace_stop"() : () -> ()
    %cst_36 = arith.constant 5.000000e-01 : f32
    %27 = vector.broadcast %cst_36 : f32 to vector<8x8x8xf32>
    %28 = arith.mulf %26, %27 : vector<8x8x8xf32>
    %cst_37 = arith.constant dense<0xFF800000> : vector<8x8xf32>
    %29 = vector.multi_reduction <maximumf>, %28, %cst_37 [2] : vector<8x8x8xf32> to vector<8x8xf32>
    %30 = vector.shape_cast %29 : vector<8x8xf32> to vector<8x8x1xf32>
    %31 = vector.broadcast %30 : vector<8x8x1xf32> to vector<8x8x8xf32>
    %32 = arith.subf %28, %31 : vector<8x8x8xf32>
    %33 = math.exp %32 : vector<8x8x8xf32>
    %cst_38 = arith.constant dense<0.000000e+00> : vector<8x8xf32>
    %34 = vector.multi_reduction <add>, %33, %cst_38 [2] : vector<8x8x8xf32> to vector<8x8xf32>
    %35 = vector.shape_cast %34 : vector<8x8xf32> to vector<8x8x1xf32>
    %36 = vector.broadcast %35 : vector<8x8x1xf32> to vector<8x8x8xf32>
    %37 = arith.divf %33, %36 : vector<8x8x8xf32>
    "tpu.trace_start"() <{level = 10 : i32, message = "hqk,hke->hqe"}> : () -> ()
    %cst_39 = arith.constant dense<0.000000e+00> : vector<8x8x4xf32>
    %38 = tpu.matmul %37, %25, %cst_39 {dimension_numbers = #tpu.dot_dimension_numbers<[2], [1], [1], [2], [0, 0, 0, 1, 1, 2], [0], [0]>} : vector<8x8x8xf32>, vector<8x8x4xf32>, vector<8x8x4xf32> -> vector<8x8x4xf32>
    "tpu.trace_stop"() : () -> ()
    "tpu.trace_start"() <{level = 10 : i32, message = "hqe,hde->hqd"}> : () -> ()
    %cst_40 = arith.constant dense<0.000000e+00> : vector<8x8x32xf32>
    %39 = tpu.matmul %38, %6, %cst_40 {dimension_numbers = #tpu.dot_dimension_numbers<[2], [2], [1], [1], [0, 0, 0, 1, 1, 1], [0], [0]>} : vector<8x8x4xf32>, vector<8x32x4xf32>, vector<8x8x32xf32> -> vector<8x8x32xf32>
    "tpu.trace_stop"() : () -> ()
    %cst_41 = arith.constant dense<0.000000e+00> : vector<8x32xf32>
    %40 = vector.multi_reduction <add>, %39, %cst_41 [0] : vector<8x8x32xf32> to vector<8x32xf32>
    %41 = vector.broadcast %7 : vector<1x32xf32> to vector<8x32xf32>
    %42 = arith.addf %40, %41 : vector<8x32xf32>
    %43 = arith.addf %13, %42 : vector<8x32xf32>
    %cst_42 = arith.constant dense<0.000000e+00> : vector<8xf32>
    %44 = vector.multi_reduction <add>, %43, %cst_42 [1] : vector<8x32xf32> to vector<8xf32>
    %45 = vector.shape_cast %44 : vector<8xf32> to vector<8x1xf32>
    %cst_43 = arith.constant 3.200000e+01 : f32
    %46 = vector.broadcast %cst_43 : f32 to vector<8x1xf32>
    %47 = arith.divf %45, %46 : vector<8x1xf32>
    %48 = vector.broadcast %47 : vector<8x1xf32> to vector<8x32xf32>
    %49 = arith.subf %43, %48 : vector<8x32xf32>
    %50 = arith.mulf %49, %49 : vector<8x32xf32>
    %cst_44 = arith.constant dense<0.000000e+00> : vector<8xf32>
    %51 = vector.multi_reduction <add>, %50, %cst_44 [1] : vector<8x32xf32> to vector<8xf32>
    %52 = vector.shape_cast %51 : vector<8xf32> to vector<8x1xf32>
    %cst_45 = arith.constant 3.200000e+01 : f32
    %53 = vector.broadcast %cst_45 : f32 to vector<8x1xf32>
    %54 = arith.divf %52, %53 : vector<8x1xf32>
    %55 = vector.broadcast %47 : vector<8x1xf32> to vector<8x32xf32>
    %56 = arith.subf %43, %55 : vector<8x32xf32>
    %cst_46 = arith.constant 9.99999974E-6 : f32
    %57 = vector.broadcast %cst_46 : f32 to vector<8x1xf32>
    %58 = arith.addf %54, %57 : vector<8x1xf32>
    %59 = math.rsqrt %58 : vector<8x1xf32>
    %60 = vector.broadcast %59 : vector<8x1xf32> to vector<8x32xf32>
    %61 = arith.mulf %56, %60 : vector<8x32xf32>
    %62 = vector.broadcast %8 : vector<1x32xf32> to vector<8x32xf32>
    %63 = arith.mulf %61, %62 : vector<8x32xf32>
    %64 = vector.broadcast %9 : vector<1x32xf32> to vector<8x32xf32>
    %65 = arith.addf %63, %64 : vector<8x32xf32>
    %cst_47 = arith.constant dense<0.000000e+00> : vector<8x1024xf32>
    %66 = tpu.matmul %65, %10, %cst_47 {dimension_numbers = #tpu.dot_dimension_numbers<[1], [1], [0], [0], [0, 0, 1, 0], [], []>} : vector<8x32xf32>, vector<1024x32xf32>, vector<8x1024xf32> -> vector<8x1024xf32>
    %67 = vector.broadcast %11 : vector<1x1024xf32> to vector<8x1024xf32>
    %68 = arith.addf %66, %67 : vector<8x1024xf32>
    %c0_48 = arith.constant 0 : index
    %c0_49 = arith.constant 0 : index
    %69 = vector.load %arg13[%c0_48, %c0_49] : memref<16x32xf32, #tpu.memory_space<vmem>>, vector<8x32xf32>
    tpu.vector_store %arg13[%c0_48, %c0_49], %65 {strides = array<i32>} : memref<16x32xf32, #tpu.memory_space<vmem>>, vector<8x32xf32>,
    %c0_50 = arith.constant 0 : index
    %c0_51 = arith.constant 0 : index
    %70 = vector.load %arg14[%c0_50, %c0_51] : memref<16x1024xf32, #tpu.memory_space<vmem>>, vector<8x1024xf32>
    tpu.vector_store %arg14[%c0_50, %c0_51], %68 {strides = array<i32>} : memref<16x1024xf32, #tpu.memory_space<vmem>>, vector<8x1024xf32>,
    %c1 = arith.constant 1 : index
    %c0_52 = arith.constant 0 : index
    %c0_53 = arith.constant 0 : index
    %71 = vector.load %arg0[%c1, %c0_52, %c0_53] : memref<2x8x32xf32, #tpu.memory_space<vmem>>, vector<1x8x32xf32>
    %72 = vector.shape_cast %71 : vector<1x8x32xf32> to vector<8x32xf32>
    %73 = vector.shape_cast %72 : vector<8x32xf32> to vector<1x8x32xf32>
    %74 = vector.shape_cast %73 : vector<1x8x32xf32> to vector<1x8x32xf32>
    %75 = vector.broadcast %74 : vector<1x8x32xf32> to vector<8x8x32xf32>
    "tpu.trace_start"() <{level = 10 : i32, message = "hld,hed->hle"}> : () -> ()
    %cst_54 = arith.constant dense<0.000000e+00> : vector<8x8x4xf32>
    %76 = tpu.matmul %75, %0, %cst_54 {dimension_numbers = #tpu.dot_dimension_numbers<[2], [2], [1], [1], [0, 0, 0, 1, 1, 1], [0], [0]>} : vector<8x8x32xf32>, vector<8x4x32xf32>, vector<8x8x4xf32> -> vector<8x8x4xf32>
    "tpu.trace_stop"() : () -> ()
    %77 = vector.broadcast %1 : vector<8x1x4xf32> to vector<8x8x4xf32>
    %78 = arith.addf %76, %77 : vector<8x8x4xf32>
    "tpu.trace_start"() <{level = 10 : i32, message = "hld,hed->hle"}> : () -> ()
    %cst_55 = arith.constant dense<0.000000e+00> : vector<8x8x4xf32>
    %79 = tpu.matmul %75, %2, %cst_55 {dimension_numbers = #tpu.dot_dimension_numbers<[2], [2], [1], [1], [0, 0, 0, 1, 1, 1], [0], [0]>} : vector<8x8x32xf32>, vector<8x4x32xf32>, vector<8x8x4xf32> -> vector<8x8x4xf32>
    "tpu.trace_stop"() : () -> ()
    %80 = vector.broadcast %3 : vector<8x1x4xf32> to vector<8x8x4xf32>
    %81 = arith.addf %79, %80 : vector<8x8x4xf32>
    "tpu.trace_start"() <{level = 10 : i32, message = "hld,hed->hle"}> : () -> ()
    %cst_56 = arith.constant dense<0.000000e+00> : vector<8x8x4xf32>
    %82 = tpu.matmul %75, %4, %cst_56 {dimension_numbers = #tpu.dot_dimension_numbers<[2], [2], [1], [1], [0, 0, 0, 1, 1, 1], [0], [0]>} : vector<8x8x32xf32>, vector<8x4x32xf32>, vector<8x8x4xf32> -> vector<8x8x4xf32>
    "tpu.trace_stop"() : () -> ()
    %83 = vector.broadcast %5 : vector<8x1x4xf32> to vector<8x8x4xf32>
    %84 = arith.addf %82, %83 : vector<8x8x4xf32>
    "tpu.trace_start"() <{level = 10 : i32, message = "hqe,hke->hqk"}> : () -> ()
    %cst_57 = arith.constant dense<0.000000e+00> : vector<8x8x8xf32>
    %85 = tpu.matmul %78, %81, %cst_57 {dimension_numbers = #tpu.dot_dimension_numbers<[2], [2], [1], [1], [0, 0, 0, 1, 1, 1], [0], [0]>} : vector<8x8x4xf32>, vector<8x8x4xf32>, vector<8x8x8xf32> -> vector<8x8x8xf32>
    "tpu.trace_stop"() : () -> ()
    %cst_58 = arith.constant 5.000000e-01 : f32
    %86 = vector.broadcast %cst_58 : f32 to vector<8x8x8xf32>
    %87 = arith.mulf %85, %86 : vector<8x8x8xf32>
    %cst_59 = arith.constant dense<0xFF800000> : vector<8x8xf32>
    %88 = vector.multi_reduction <maximumf>, %87, %cst_59 [2] : vector<8x8x8xf32> to vector<8x8xf32>
    %89 = vector.shape_cast %88 : vector<8x8xf32> to vector<8x8x1xf32>
    %90 = vector.broadcast %89 : vector<8x8x1xf32> to vector<8x8x8xf32>
    %91 = arith.subf %87, %90 : vector<8x8x8xf32>
    %92 = math.exp %91 : vector<8x8x8xf32>
    %cst_60 = arith.constant dense<0.000000e+00> : vector<8x8xf32>
    %93 = vector.multi_reduction <add>, %92, %cst_60 [2] : vector<8x8x8xf32> to vector<8x8xf32>
    %94 = vector.shape_cast %93 : vector<8x8xf32> to vector<8x8x1xf32>
    %95 = vector.broadcast %94 : vector<8x8x1xf32> to vector<8x8x8xf32>
    %96 = arith.divf %92, %95 : vector<8x8x8xf32>
    "tpu.trace_start"() <{level = 10 : i32, message = "hqk,hke->hqe"}> : () -> ()
    %cst_61 = arith.constant dense<0.000000e+00> : vector<8x8x4xf32>
    %97 = tpu.matmul %96, %84, %cst_61 {dimension_numbers = #tpu.dot_dimension_numbers<[2], [1], [1], [2], [0, 0, 0, 1, 1, 2], [0], [0]>} : vector<8x8x8xf32>, vector<8x8x4xf32>, vector<8x8x4xf32> -> vector<8x8x4xf32>
    "tpu.trace_stop"() : () -> ()
    "tpu.trace_start"() <{level = 10 : i32, message = "hqe,hde->hqd"}> : () -> ()
    %cst_62 = arith.constant dense<0.000000e+00> : vector<8x8x32xf32>
    %98 = tpu.matmul %97, %6, %cst_62 {dimension_numbers = #tpu.dot_dimension_numbers<[2], [2], [1], [1], [0, 0, 0, 1, 1, 1], [0], [0]>} : vector<8x8x4xf32>, vector<8x32x4xf32>, vector<8x8x32xf32> -> vector<8x8x32xf32>
    "tpu.trace_stop"() : () -> ()
    %cst_63 = arith.constant dense<0.000000e+00> : vector<8x32xf32>
    %99 = vector.multi_reduction <add>, %98, %cst_63 [0] : vector<8x8x32xf32> to vector<8x32xf32>
    %100 = vector.broadcast %7 : vector<1x32xf32> to vector<8x32xf32>
    %101 = arith.addf %99, %100 : vector<8x32xf32>
    %102 = arith.addf %72, %101 : vector<8x32xf32>
    %cst_64 = arith.constant dense<0.000000e+00> : vector<8xf32>
    %103 = vector.multi_reduction <add>, %102, %cst_64 [1] : vector<8x32xf32> to vector<8xf32>
    %104 = vector.shape_cast %103 : vector<8xf32> to vector<8x1xf32>
    %cst_65 = arith.constant 3.200000e+01 : f32
    %105 = vector.broadcast %cst_65 : f32 to vector<8x1xf32>
    %106 = arith.divf %104, %105 : vector<8x1xf32>
    %107 = vector.broadcast %106 : vector<8x1xf32> to vector<8x32xf32>
    %108 = arith.subf %102, %107 : vector<8x32xf32>
    %109 = arith.mulf %108, %108 : vector<8x32xf32>
    %cst_66 = arith.constant dense<0.000000e+00> : vector<8xf32>
    %110 = vector.multi_reduction <add>, %109, %cst_66 [1] : vector<8x32xf32> to vector<8xf32>
    %111 = vector.shape_cast %110 : vector<8xf32> to vector<8x1xf32>
    %cst_67 = arith.constant 3.200000e+01 : f32
    %112 = vector.broadcast %cst_67 : f32 to vector<8x1xf32>
    %113 = arith.divf %111, %112 : vector<8x1xf32>
    %114 = vector.broadcast %106 : vector<8x1xf32> to vector<8x32xf32>
    %115 = arith.subf %102, %114 : vector<8x32xf32>
    %cst_68 = arith.constant 9.99999974E-6 : f32
    %116 = vector.broadcast %cst_68 : f32 to vector<8x1xf32>
    %117 = arith.addf %113, %116 : vector<8x1xf32>
    %118 = math.rsqrt %117 : vector<8x1xf32>
    %119 = vector.broadcast %118 : vector<8x1xf32> to vector<8x32xf32>
    %120 = arith.mulf %115, %119 : vector<8x32xf32>
    %121 = vector.broadcast %8 : vector<1x32xf32> to vector<8x32xf32>
    %122 = arith.mulf %120, %121 : vector<8x32xf32>
    %123 = vector.broadcast %9 : vector<1x32xf32> to vector<8x32xf32>
    %124 = arith.addf %122, %123 : vector<8x32xf32>
    %cst_69 = arith.constant dense<0.000000e+00> : vector<8x1024xf32>
    %125 = tpu.matmul %124, %10, %cst_69 {dimension_numbers = #tpu.dot_dimension_numbers<[1], [1], [0], [0], [0, 0, 1, 0], [], []>} : vector<8x32xf32>, vector<1024x32xf32>, vector<8x1024xf32> -> vector<8x1024xf32>
    %126 = vector.broadcast %11 : vector<1x1024xf32> to vector<8x1024xf32>
    %127 = arith.addf %125, %126 : vector<8x1024xf32>
    %c8 = arith.constant 8 : index
    %c0_70 = arith.constant 0 : index
    %128 = vector.load %arg13[%c8, %c0_70] : memref<16x32xf32, #tpu.memory_space<vmem>>, vector<8x32xf32>
    tpu.vector_store %arg13[%c8, %c0_70], %124 {strides = array<i32>} : memref<16x32xf32, #tpu.memory_space<vmem>>, vector<8x32xf32>,
    %c8_71 = arith.constant 8 : index
    %c0_72 = arith.constant 0 : index
    %129 = vector.load %arg14[%c8_71, %c0_72] : memref<16x1024xf32, #tpu.memory_space<vmem>>, vector<8x1024xf32>
    tpu.vector_store %arg14[%c8_71, %c0_72], %127 {strides = array<i32>} : memref<16x1024xf32, #tpu.memory_space<vmem>>, vector<8x1024xf32>,
    return
  }
}

</mosaic_0001>

<llo_original>
// kernel: tpu_custom_call.1
$region0: #{tpu_custom_call.1}
  #allocation0 [shape = 'u32[]', space=smem, size = 0x4, offset = 0x4, fixed_abs, tag = 'smem constant byte address 0x4 - core index']
  #allocation1 [shape = 'u32[144,128]{1,0:T(1,128)}', space=vmem, size = 0x12000, scoped, tag = 'internal scratch']
  %s0 = inlined_call_operand.vmem [shape: f32[2,8,32], index: 0, kind: input, shape index: {}]
  %s1 = inlined_call_operand.vmem [shape: f32[8,4,32], index: 1, kind: input, shape index: {}]
  %s2 = inlined_call_operand.vmem [shape: f32[8,1,4], index: 2, kind: input, shape index: {}]
  %s3 = inlined_call_operand.vmem [shape: f32[8,4,32], index: 3, kind: input, shape index: {}]
  %s4 = inlined_call_operand.vmem [shape: f32[8,1,4], index: 4, kind: input, shape index: {}]
  %s5 = inlined_call_operand.vmem [shape: f32[8,4,32], index: 5, kind: input, shape index: {}]
  %s6 = inlined_call_operand.vmem [shape: f32[8,1,4], index: 6, kind: input, shape index: {}]
  %s7 = inlined_call_operand.vmem [shape: f32[8,32,4], index: 7, kind: input, shape index: {}]
  %s8 = inlined_call_operand.vmem [shape: f32[1,32], index: 8, kind: input, shape index: {}]
  %s9 = inlined_call_operand.vmem [shape: f32[1,32], index: 9, kind: input, shape index: {}]
  %s10 = inlined_call_operand.vmem [shape: f32[1,32], index: 10, kind: input, shape index: {}]
  %s11 = inlined_call_operand.vmem [shape: f32[1024,32], index: 11, kind: input, shape index: {}]
  %s12 = inlined_call_operand.vmem [shape: f32[1,1024], index: 12, kind: input, shape index: {}]
  %s13 = inlined_call_operand.hbm [shape: f32[16,32], index: 13, kind: output, shape index: {0}]
  %s14 = inlined_call_operand.hbm [shape: f32[16,1024], index: 14, kind: output, shape index: {1}]
  %15 = xla_tuple %s13, %s14
  %s16 = sld [smem:[#allocation0]]
  $region70: #{tpu_custom_call.1} parent=0
    _
  %s18 = ssub.s32 1, %s16
  %s19 = scalar_select 0, %s18, %s16
  $region1: #{tpu_custom_call.1} parent=0
    #allocation2 [shape = 'u8[8192]{0}', space=vmem, size = 0x2000, scoped, tag = 'output window, operand 0, single buffered']
    #allocation3 [shape = 's32[1]{0}', space=sflag, size = 0x4, scoped, tag = 'scoped memory for tpu_custom_call.1']
    #allocation4 [shape = 'u8[65536]{0}', space=vmem, size = 0x10000, scoped, tag = 'output window, operand 1, single buffered']
    #allocation5 [shape = 's32[1]{0}', space=sflag, size = 0x4, scoped, tag = 'scoped memory for tpu_custom_call.1']
    %20 = vsyncpa [#allocation3], 0
    %21 = vsyncpa [#allocation5], 0
    // Predicated region
    $region2: #{tpu_custom_call.1} parent=1 // pred_check
      _
    $region3: #{tpu_custom_call.1} parent=1 // pred_check_branch
      %23 = sbr.rel (0) target = $region5
    $region4: #{tpu_custom_call.1} parent=1 // pred_region
      _
    $region5: #{tpu_custom_call.1} parent=1 // pred_fallthru
      _
    // Predicated region
    $region6: #{tpu_custom_call.1} parent=1 // pred_check
      _
    $region7: #{tpu_custom_call.1} parent=1 // pred_check_branch
      %25 = sbr.rel (0) target = $region9
    $region8: #{tpu_custom_call.1} parent=1 // pred_region
      _
    $region9: #{tpu_custom_call.1} parent=1 // pred_fallthru
      _
    // Predicated region
    $region10: #{tpu_custom_call.1} parent=1 // pred_check
      _
    $region11: #{tpu_custom_call.1} parent=1 // pred_check_branch
      %27 = sbr.rel (0) target = $region13
    $region12: #{tpu_custom_call.1} parent=1 // pred_region
      _
    $region13: #{tpu_custom_call.1} parent=1 // pred_fallthru
      _
    // Predicated region
    $region14: #{tpu_custom_call.1} parent=1 // pred_check
      _
    $region15: #{tpu_custom_call.1} parent=1 // pred_check_branch
      %29 = sbr.rel (0) target = $region17
    $region16: #{tpu_custom_call.1} parent=1 // pred_region
      _
    $region17: #{tpu_custom_call.1} parent=1 // pred_fallthru
      _
    // Predicated region
    $region18: #{tpu_custom_call.1} parent=1 // pred_check
      _
    $region19: #{tpu_custom_call.1} parent=1 // pred_check_branch
      %31 = sbr.rel (0) target = $region21
    $region20: #{tpu_custom_call.1} parent=1 // pred_region
      _
    $region21: #{tpu_custom_call.1} parent=1 // pred_fallthru
      _
    // Predicated region
    $region22: #{tpu_custom_call.1} parent=1 // pred_check
      _
    $region23: #{tpu_custom_call.1} parent=1 // pred_check_branch
      %33 = sbr.rel (0) target = $region25
    $region24: #{tpu_custom_call.1} parent=1 // pred_region
      _
    $region25: #{tpu_custom_call.1} parent=1 // pred_fallthru
      _
    // Predicated region
    $region26: #{tpu_custom_call.1} parent=1 // pred_check
      _
    $region27: #{tpu_custom_call.1} parent=1 // pred_check_branch
      %35 = sbr.rel (0) target = $region29
    $region28: #{tpu_custom_call.1} parent=1 // pred_region
      _
    $region29: #{tpu_custom_call.1} parent=1 // pred_fallthru
      _
    // Predicated region
    $region30: #{tpu_custom_call.1} parent=1 // pred_check
      _
    $region31: #{tpu_custom_call.1} parent=1 // pred_check_branch
      %37 = sbr.rel (0) target = $region33
    $region32: #{tpu_custom_call.1} parent=1 // pred_region
      _
    $region33: #{tpu_custom_call.1} parent=1 // pred_fallthru
      _
    // Predicated region
    $region34: #{tpu_custom_call.1} parent=1 // pred_check
      _
    $region35: #{tpu_custom_call.1} parent=1 // pred_check_branch
      %39 = sbr.rel (0) target = $region37
    $region36: #{tpu_custom_call.1} parent=1 // pred_region
      _
    $region37: #{tpu_custom_call.1} parent=1 // pred_fallthru
      _
    // Predicated region
    $region38: #{tpu_custom_call.1} parent=1 // pred_check
      _
    $region39: #{tpu_custom_call.1} parent=1 // pred_check_branch
      %41 = sbr.rel (0) target = $region41
    $region40: #{tpu_custom_call.1} parent=1 // pred_region
      _
    $region41: #{tpu_custom_call.1} parent=1 // pred_fallthru
      _
    // Predicated region
    $region42: #{tpu_custom_call.1} parent=1 // pred_check
      _
    $region43: #{tpu_custom_call.1} parent=1 // pred_check_branch
      %43 = sbr.rel (0) target = $region45
    $region44: #{tpu_custom_call.1} parent=1 // pred_region
      _
    $region45: #{tpu_custom_call.1} parent=1 // pred_fallthru
      _
    // Predicated region
    $region46: #{tpu_custom_call.1} parent=1 // pred_check
      _
    $region47: #{tpu_custom_call.1} parent=1 // pred_check_branch
      %45 = sbr.rel (0) target = $region49
    $region48: #{tpu_custom_call.1} parent=1 // pred_region
      _
    $region49: #{tpu_custom_call.1} parent=1 // pred_fallthru
      _
    // Predicated region
    $region50: #{tpu_custom_call.1} parent=1 // pred_check
      _
    $region51: #{tpu_custom_call.1} parent=1 // pred_check_branch
      %47 = sbr.rel (0) target = $region53
    $region52: #{tpu_custom_call.1} parent=1 // pred_region
      _
    $region53: #{tpu_custom_call.1} parent=1 // pred_fallthru
      _
    %v48 = vld [vmem:[%s1] sm:$0xf]
    %v49 = vld [vmem:[%s1 + $0x4] sm:$0xf]
    %v50 = vld [vmem:[%s1 + $0x8] sm:$0xf]
    %v51 = vld [vmem:[%s1 + $0xc] sm:$0xf]
    %v52 = vld [vmem:[%s1 + $0x10] sm:$0xf]
    %v53 = vld [vmem:[%s1 + $0x14] sm:$0xf]
    %v54 = vld [vmem:[%s1 + $0x18] sm:$0xf]
    %v55 = vld [vmem:[%s1 + $0x1c] sm:$0xf]
    %v56 = vld [vmem:[%s2] sm:$0x1]
    %v57 = vld [vmem:[%s2 + $0x1] sm:$0x1]
    %v58 = vld [vmem:[%s2 + $0x2] sm:$0x1]
    %v59 = vld [vmem:[%s2 + $0x3] sm:$0x1]
    %v60 = vld [vmem:[%s2 + $0x4] sm:$0x1]
    %v61 = vld [vmem:[%s2 + $0x5] sm:$0x1]
    %v62 = vld [vmem:[%s2 + $0x6] sm:$0x1]
    %v63 = vld [vmem:[%s2 + $0x7] sm:$0x1]
    %v64 = vld [vmem:[%s3] sm:$0xf]
    %v65 = vld [vmem:[%s3 + $0x4] sm:$0xf]
    %v66 = vld [vmem:[%s3 + $0x8] sm:$0xf]
    %v67 = vld [vmem:[%s3 + $0xc] sm:$0xf]
    %v68 = vld [vmem:[%s3 + $0x10] sm:$0xf]
    %v69 = vld [vmem:[%s3 + $0x14] sm:$0xf]
    %v70 = vld [vmem:[%s3 + $0x18] sm:$0xf]
    %v71 = vld [vmem:[%s3 + $0x1c] sm:$0xf]
    %v72 = vld [vmem:[%s4] sm:$0x1]
    %v73 = vld [vmem:[%s4 + $0x1] sm:$0x1]
    %v74 = vld [vmem:[%s4 + $0x2] sm:$0x1]
    %v75 = vld [vmem:[%s4 + $0x3] sm:$0x1]
    %v76 = vld [vmem:[%s4 + $0x4] sm:$0x1]
    %v77 = vld [vmem:[%s4 + $0x5] sm:$0x1]
    %v78 = vld [vmem:[%s4 + $0x6] sm:$0x1]
    %v79 = vld [vmem:[%s4 + $0x7] sm:$0x1]
    %v80 = vld [vmem:[%s5] sm:$0xf]
    %v81 = vld [vmem:[%s5 + $0x4] sm:$0xf]
    %v82 = vld [vmem:[%s5 + $0x8] sm:$0xf]
    %v83 = vld [vmem:[%s5 + $0xc] sm:$0xf]
    %v84 = vld [vmem:[%s5 + $0x10] sm:$0xf]
    %v85 = vld [vmem:[%s5 + $0x14] sm:$0xf]
    %v86 = vld [vmem:[%s5 + $0x18] sm:$0xf]
    %v87 = vld [vmem:[%s5 + $0x1c] sm:$0xf]
    %v88 = vld [vmem:[%s6] sm:$0x1]
    %v89 = vld [vmem:[%s6 + $0x1] sm:$0x1]
    %v90 = vld [vmem:[%s6 + $0x2] sm:$0x1]
    %v91 = vld [vmem:[%s6 + $0x3] sm:$0x1]
    %v92 = vld [vmem:[%s6 + $0x4] sm:$0x1]
    %v93 = vld [vmem:[%s6 + $0x5] sm:$0x1]
    %v94 = vld [vmem:[%s6 + $0x6] sm:$0x1]
    %v95 = vld [vmem:[%s6 + $0x7] sm:$0x1]
    %v96 = vld [vmem:[%s7] sm:$0xff]
    %v97 = vld [vmem:[%s7 + $0x8] sm:$0xff]
    %v98 = vld [vmem:[%s7 + $0x10] sm:$0xff]
    %v99 = vld [vmem:[%s7 + $0x18] sm:$0xff]
    %v100 = vld [vmem:[%s7 + $0x20] sm:$0xff]
    %v101 = vld [vmem:[%s7 + $0x28] sm:$0xff]
    %v102 = vld [vmem:[%s7 + $0x30] sm:$0xff]
    %v103 = vld [vmem:[%s7 + $0x38] sm:$0xff]
    %v104 = vld [vmem:[%s7 + $0x40] sm:$0xff]
    %v105 = vld [vmem:[%s7 + $0x48] sm:$0xff]
    %v106 = vld [vmem:[%s7 + $0x50] sm:$0xff]
    %v107 = vld [vmem:[%s7 + $0x58] sm:$0xff]
    %v108 = vld [vmem:[%s7 + $0x60] sm:$0xff]
    %v109 = vld [vmem:[%s7 + $0x68] sm:$0xff]
    %v110 = vld [vmem:[%s7 + $0x70] sm:$0xff]
    %v111 = vld [vmem:[%s7 + $0x78] sm:$0xff]
    %v112 = vld [vmem:[%s7 + $0x80] sm:$0xff]
    %v113 = vld [vmem:[%s7 + $0x88] sm:$0xff]
    %v114 = vld [vmem:[%s7 + $0x90] sm:$0xff]
    %v115 = vld [vmem:[%s7 + $0x98] sm:$0xff]
    %v116 = vld [vmem:[%s7 + $0xa0] sm:$0xff]
    %v117 = vld [vmem:[%s7 + $0xa8] sm:$0xff]
    %v118 = vld [vmem:[%s7 + $0xb0] sm:$0xff]
    %v119 = vld [vmem:[%s7 + $0xb8] sm:$0xff]
    %v120 = vld [vmem:[%s7 + $0xc0] sm:$0xff]
    %v121 = vld [vmem:[%s7 + $0xc8] sm:$0xff]
    %v122 = vld [vmem:[%s7 + $0xd0] sm:$0xff]
    %v123 = vld [vmem:[%s7 + $0xd8] sm:$0xff]
    %v124 = vld [vmem:[%s7 + $0xe0] sm:$0xff]
    %v125 = vld [vmem:[%s7 + $0xe8] sm:$0xff]
    %v126 = vld [vmem:[%s7 + $0xf0] sm:$0xff]
    %v127 = vld [vmem:[%s7 + $0xf8] sm:$0xff]
    %v128 = vld [vmem:[%s8] sm:$0x1]
    %v129 = vld [vmem:[%s9] sm:$0x1]
    %v130 = vld [vmem:[%s10] sm:$0x1]
    %v131 = vld [vmem:[%s11] sm:$0xff]
    %v132 = vld [vmem:[%s11 + $0x8] sm:$0xff]
    %v133 = vld [vmem:[%s11 + $0x10] sm:$0xff]
    %v134 = vld [vmem:[%s11 + $0x18] sm:$0xff]
    %v135 = vld [vmem:[%s11 + $0x20] sm:$0xff]
    %v136 = vld [vmem:[%s11 + $0x28] sm:$0xff]
    %v137 = vld [vmem:[%s11 + $0x30] sm:$0xff]
    %v138 = vld [vmem:[%s11 + $0x38] sm:$0xff]
    %v139 = vld [vmem:[%s11 + $0x40] sm:$0xff]
    %v140 = vld [vmem:[%s11 + $0x48] sm:$0xff]
    %v141 = vld [vmem:[%s11 + $0x50] sm:$0xff]
    %v142 = vld [vmem:[%s11 + $0x58] sm:$0xff]
    %v143 = vld [vmem:[%s11 + $0x60] sm:$0xff]
    %v144 = vld [vmem:[%s11 + $0x68] sm:$0xff]
    %v145 = vld [vmem:[%s11 + $0x70] sm:$0xff]
    %v146 = vld [vmem:[%s11 + $0x78] sm:$0xff]
    %v147 = vld [vmem:[%s11 + $0x80] sm:$0xff]
    %v148 = vld [vmem:[%s11 + $0x88] sm:$0xff]
    %v149 = vld [vmem:[%s11 + $0x90] sm:$0xff]
    %v150 = vld [vmem:[%s11 + $0x98] sm:$0xff]
    %v151 = vld [vmem:[%s11 + $0xa0] sm:$0xff]
    %v152 = vld [vmem:[%s11 + $0xa8] sm:$0xff]
    %v153 = vld [vmem:[%s11 + $0xb0] sm:$0xff]
    %v154 = vld [vmem:[%s11 + $0xb8] sm:$0xff]
    %v155 = vld [vmem:[%s11 + $0xc0] sm:$0xff]
    %v156 = vld [vmem:[%s11 + $0xc8] sm:$0xff]
    %v157 = vld [vmem:[%s11 + $0xd0] sm:$0xff]
    %v158 = vld [vmem:[%s11 + $0xd8] sm:$0xff]
    %v159 = vld [vmem:[%s11 + $0xe0] sm:$0xff]
    %v160 = vld [vmem:[%s11 + $0xe8] sm:$0xff]
    %v161 = vld [vmem:[%s11 + $0xf0] sm:$0xff]
    %v162 = vld [vmem:[%s11 + $0xf8] sm:$0xff]
    %v163 = vld [vmem:[%s11 + $0x100] sm:$0xff]
    %v164 = vld [vmem:[%s11 + $0x108] sm:$0xff]
    %v165 = vld [vmem:[%s11 + $0x110] sm:$0xff]
    %v166 = vld [vmem:[%s11 + $0x118] sm:$0xff]
    %v167 = vld [vmem:[%s11 + $0x120] sm:$0xff]
    %v168 = vld [vmem:[%s11 + $0x128] sm:$0xff]
    %v169 = vld [vmem:[%s11 + $0x130] sm:$0xff]
    %v170 = vld [vmem:[%s11 + $0x138] sm:$0xff]
    %v171 = vld [vmem:[%s11 + $0x140] sm:$0xff]
    %v172 = vld [vmem:[%s11 + $0x148] sm:$0xff]
    %v173 = vld [vmem:[%s11 + $0x150] sm:$0xff]
    %v174 = vld [vmem:[%s11 + $0x158] sm:$0xff]
    %v175 = vld [vmem:[%s11 + $0x160] sm:$0xff]
    %v176 = vld [vmem:[%s11 + $0x168] sm:$0xff]
    %v177 = vld [vmem:[%s11 + $0x170] sm:$0xff]
    %v178 = vld [vmem:[%s11 + $0x178] sm:$0xff]
    %v179 = vld [vmem:[%s11 + $0x180] sm:$0xff]
    %v180 = vld [vmem:[%s11 + $0x188] sm:$0xff]
    %v181 = vld [vmem:[%s11 + $0x190] sm:$0xff]
    %v182 = vld [vmem:[%s11 + $0x198] sm:$0xff]
    %v183 = vld [vmem:[%s11 + $0x1a0] sm:$0xff]
    %v184 = vld [vmem:[%s11 + $0x1a8] sm:$0xff]
    %v185 = vld [vmem:[%s11 + $0x1b0] sm:$0xff]
    %v186 = vld [vmem:[%s11 + $0x1b8] sm:$0xff]
    %v187 = vld [vmem:[%s11 + $0x1c0] sm:$0xff]
    %v188 = vld [vmem:[%s11 + $0x1c8] sm:$0xff]
    %v189 = vld [vmem:[%s11 + $0x1d0] sm:$0xff]
    %v190 = vld [vmem:[%s11 + $0x1d8] sm:$0xff]
    %v191 = vld [vmem:[%s11 + $0x1e0] sm:$0xff]
    %v192 = vld [vmem:[%s11 + $0x1e8] sm:$0xff]
    %v193 = vld [vmem:[%s11 + $0x1f0] sm:$0xff]
    %v194 = vld [vmem:[%s11 + $0x1f8] sm:$0xff]
    %v195 = vld [vmem:[%s11 + $0x200] sm:$0xff]
    %v196 = vld [vmem:[%s11 + $0x208] sm:$0xff]
    %v197 = vld [vmem:[%s11 + $0x210] sm:$0xff]
    %v198 = vld [vmem:[%s11 + $0x218] sm:$0xff]
    %v199 = vld [vmem:[%s11 + $0x220] sm:$0xff]
    %v200 = vld [vmem:[%s11 + $0x228] sm:$0xff]
    %v201 = vld [vmem:[%s11 + $0x230] sm:$0xff]
    %v202 = vld [vmem:[%s11 + $0x238] sm:$0xff]
    %v203 = vld [vmem:[%s11 + $0x240] sm:$0xff]
    %v204 = vld [vmem:[%s11 + $0x248] sm:$0xff]
    %v205 = vld [vmem:[%s11 + $0x250] sm:$0xff]
    %v206 = vld [vmem:[%s11 + $0x258] sm:$0xff]
    %v207 = vld [vmem:[%s11 + $0x260] sm:$0xff]
    %v208 = vld [vmem:[%s11 + $0x268] sm:$0xff]
    %v209 = vld [vmem:[%s11 + $0x270] sm:$0xff]
    %v210 = vld [vmem:[%s11 + $0x278] sm:$0xff]
    %v211 = vld [vmem:[%s11 + $0x280] sm:$0xff]
    %v212 = vld [vmem:[%s11 + $0x288] sm:$0xff]
    %v213 = vld [vmem:[%s11 + $0x290] sm:$0xff]
    %v214 = vld [vmem:[%s11 + $0x298] sm:$0xff]
    %v215 = vld [vmem:[%s11 + $0x2a0] sm:$0xff]
    %v216 = vld [vmem:[%s11 + $0x2a8] sm:$0xff]
    %v217 = vld [vmem:[%s11 + $0x2b0] sm:$0xff]
    %v218 = vld [vmem:[%s11 + $0x2b8] sm:$0xff]
    %v219 = vld [vmem:[%s11 + $0x2c0] sm:$0xff]
    %v220 = vld [vmem:[%s11 + $0x2c8] sm:$0xff]
    %v221 = vld [vmem:[%s11 + $0x2d0] sm:$0xff]
    %v222 = vld [vmem:[%s11 + $0x2d8] sm:$0xff]
    %v223 = vld [vmem:[%s11 + $0x2e0] sm:$0xff]
    %v224 = vld [vmem:[%s11 + $0x2e8] sm:$0xff]
    %v225 = vld [vmem:[%s11 + $0x2f0] sm:$0xff]
    %v226 = vld [vmem:[%s11 + $0x2f8] sm:$0xff]
    %v227 = vld [vmem:[%s11 + $0x300] sm:$0xff]
    %v228 = vld [vmem:[%s11 + $0x308] sm:$0xff]
    %v229 = vld [vmem:[%s11 + $0x310] sm:$0xff]
    %v230 = vld [vmem:[%s11 + $0x318] sm:$0xff]
    %v231 = vld [vmem:[%s11 + $0x320] sm:$0xff]
    %v232 = vld [vmem:[%s11 + $0x328] sm:$0xff]
    %v233 = vld [vmem:[%s11 + $0x330] sm:$0xff]
    %v234 = vld [vmem:[%s11 + $0x338] sm:$0xff]
    %v235 = vld [vmem:[%s11 + $0x340] sm:$0xff]
    %v236 = vld [vmem:[%s11 + $0x348] sm:$0xff]
    %v237 = vld [vmem:[%s11 + $0x350] sm:$0xff]
    %v238 = vld [vmem:[%s11 + $0x358] sm:$0xff]
    %v239 = vld [vmem:[%s11 + $0x360] sm:$0xff]
    %v240 = vld [vmem:[%s11 + $0x368] sm:$0xff]
    %v241 = vld [vmem:[%s11 + $0x370] sm:$0xff]
    %v242 = vld [vmem:[%s11 + $0x378] sm:$0xff]
    %v243 = vld [vmem:[%s11 + $0x380] sm:$0xff]
    %v244 = vld [vmem:[%s11 + $0x388] sm:$0xff]
    %v245 = vld [vmem:[%s11 + $0x390] sm:$0xff]
    %v246 = vld [vmem:[%s11 + $0x398] sm:$0xff]
    %v247 = vld [vmem:[%s11 + $0x3a0] sm:$0xff]
    %v248 = vld [vmem:[%s11 + $0x3a8] sm:$0xff]
    %v249 = vld [vmem:[%s11 + $0x3b0] sm:$0xff]
    %v250 = vld [vmem:[%s11 + $0x3b8] sm:$0xff]
    %v251 = vld [vmem:[%s11 + $0x3c0] sm:$0xff]
    %v252 = vld [vmem:[%s11 + $0x3c8] sm:$0xff]
    %v253 = vld [vmem:[%s11 + $0x3d0] sm:$0xff]
    %v254 = vld [vmem:[%s11 + $0x3d8] sm:$0xff]
    %v255 = vld [vmem:[%s11 + $0x3e0] sm:$0xff]
    %v256 = vld [vmem:[%s11 + $0x3e8] sm:$0xff]
    %v257 = vld [vmem:[%s11 + $0x3f0] sm:$0xff]
    %v258 = vld [vmem:[%s11 + $0x3f8] sm:$0xff]
    %v259 = vld [vmem:[%s12] sm:$0xff]
    %v260 = vld [vmem:[%s0] sm:$0xff]
    %v269 = vlaneseq
    %v270 = vshrl.u32 %v269, 7
    %v271 = vsub.s32 0, %v270
    %v272 = vrot.slane %v56, %v271
    %v273 = vlaneseq
    %v274 = vshrl.u32 %v273, 7
    %v275 = vsub.s32 0, %v274
    %v276 = vrot.slane %v57, %v275
    %v277 = vlaneseq
    %v278 = vshrl.u32 %v277, 7
    %v279 = vsub.s32 0, %v278
    %v280 = vrot.slane %v58, %v279
    %v281 = vlaneseq
    %v282 = vshrl.u32 %v281, 7
    %v283 = vsub.s32 0, %v282
    %v284 = vrot.slane %v59, %v283
    %v285 = vlaneseq
    %v286 = vshrl.u32 %v285, 7
    %v287 = vsub.s32 0, %v286
    %v288 = vrot.slane %v60, %v287
    %v289 = vlaneseq
    %v290 = vshrl.u32 %v289, 7
    %v291 = vsub.s32 0, %v290
    %v292 = vrot.slane %v61, %v291
    %v293 = vlaneseq
    %v294 = vshrl.u32 %v293, 7
    %v295 = vsub.s32 0, %v294
    %v296 = vrot.slane %v62, %v295
    %v297 = vlaneseq
    %v298 = vshrl.u32 %v297, 7
    %v299 = vsub.s32 0, %v298
    %v300 = vrot.slane %v63, %v299
    %vm309 = vcmask 261120
    %v311 = vsel %vm309, %v260, 0
    %v314 = vsel %vm309, %v48, 0
    %316 = vmatprep.subr.mxu0 0.0
    %317 = vmatpush1.xpose.msra.mxu0 %v314
    %318 = vmatprep.subr.mxu0 0.0
    %319 = vmatpush1.xpose.msra.mxu0 0.0
    %320 = vmatprep.subr.mxu0 0.0
    %321 = vmatpush1.xpose.msra.mxu0 0.0
    %322 = vmatprep.subr.mxu0 0.0
    %323 = vmatpush1.xpose.msra.mxu0 0.0
    %324 = vmatprep.subr.mxu0 0.0
    %325 = vmatpush1.xpose.msra.mxu0 0.0
    %326 = vmatprep.subr.mxu0 0.0
    %327 = vmatpush1.xpose.msra.mxu0 0.0
    %328 = vmatprep.subr.mxu0 0.0
    %329 = vmatpush1.xpose.msra.mxu0 0.0
    %330 = vmatprep.subr.mxu0 0.0
    %331 = vmatpush1.xpose.msra.mxu0 0.0
    %332 = vmatprep.subr.mxu0 0.0
    %333 = vmatpush1.xpose.msra.mxu0 0.0
    %334 = vmatprep.subr.mxu0 0.0
    %335 = vmatpush1.xpose.msra.mxu0 0.0
    %336 = vmatprep.subr.mxu0 0.0
    %337 = vmatpush1.xpose.msra.mxu0 0.0
    %338 = vmatprep.subr.mxu0 0.0
    %339 = vmatpush1.xpose.msra.mxu0 0.0
    %340 = vmatprep.subr.mxu0 0.0
    %341 = vmatpush1.xpose.msra.mxu0 0.0
    %342 = vmatprep.subr.mxu0 0.0
    %343 = vmatpush1.xpose.msra.mxu0 0.0
    %344 = vmatprep.subr.mxu0 0.0
    %345 = vmatpush1.xpose.msra.mxu0 0.0
    %346 = vmatprep.subr.mxu0 0.0
    %347 = vmatpush1.xpose.msra.mxu0 0.0
    %348 = vmatprep.subr.mxu0 0.0
    %349 = vmatpush1.xpose.msra.mxu0 0.0
    %350 = vmatprep.subr.mxu0 0.0
    %351 = vmatpush1.xpose.msra.mxu0 0.0
    %352 = vmatprep.subr.mxu0 0.0
    %353 = vmatpush1.xpose.msra.mxu0 0.0
    %354 = vmatprep.subr.mxu0 0.0
    %355 = vmatpush1.xpose.msra.mxu0 0.0
    %356 = vmatprep.subr.mxu0 0.0
    %357 = vmatpush1.xpose.msra.mxu0 0.0
    %358 = vmatprep.subr.mxu0 0.0
    %359 = vmatpush1.xpose.msra.mxu0 0.0
    %360 = vmatprep.subr.mxu0 0.0
    %361 = vmatpush1.xpose.msra.mxu0 0.0
    %362 = vmatprep.subr.mxu0 0.0
    %363 = vmatpush1.xpose.msra.mxu0 0.0
    %364 = vmatprep.subr.mxu0 0.0
    %365 = vmatpush1.xpose.msra.mxu0 0.0
    %366 = vmatprep.subr.mxu0 0.0
    %367 = vmatpush1.xpose.msra.mxu0 0.0
    %368 = vmatprep.subr.mxu0 0.0
    %369 = vmatpush1.xpose.msra.mxu0 0.0
    %370 = vmatprep.subr.mxu0 0.0
    %371 = vmatpush1.xpose.msra.mxu0 0.0
    %372 = vmatprep.subr.mxu0 0.0
    %373 = vmatpush1.xpose.msra.mxu0 0.0
    %374 = vmatprep.subr.mxu0 0.0
    %375 = vmatpush1.xpose.msra.mxu0 0.0
    %376 = vmatprep.subr.mxu0 0.0
    %377 = vmatpush1.xpose.msra.mxu0 0.0
    %378 = vmatprep.subr.mxu0 0.0
    %379 = vmatpush1.xpose.msra.mxu0 0.0
    %380 = vmatprep.mubr.f32.mxu0 0.0
    %381 = vmatmul.mubr.f32.gmra.mrb[0].mxu0 %v311
    %v382 = vpop.f32.mrb[0].mxu0
    %v383 = vadd.f32 %v272, %v382
    %v384 = vpop.f32.mrb[0].mxu0
    %385 = vdwg.mxu0
    %v387 = vsel %vm309, %v49, 0
    %389 = vmatprep.subr.mxu0 0.0
    %390 = vmatpush1.xpose.msra.mxu0 %v387
    %391 = vmatprep.subr.mxu0 0.0
    %392 = vmatpush1.xpose.msra.mxu0 0.0
    %393 = vmatprep.subr.mxu0 0.0
    %394 = vmatpush1.xpose.msra.mxu0 0.0
    %395 = vmatprep.subr.mxu0 0.0
    %396 = vmatpush1.xpose.msra.mxu0 0.0
    %397 = vmatprep.subr.mxu0 0.0
    %398 = vmatpush1.xpose.msra.mxu0 0.0
    %399 = vmatprep.subr.mxu0 0.0
    %400 = vmatpush1.xpose.msra.mxu0 0.0
    %401 = vmatprep.subr.mxu0 0.0
    %402 = vmatpush1.xpose.msra.mxu0 0.0
    %403 = vmatprep.subr.mxu0 0.0
    %404 = vmatpush1.xpose.msra.mxu0 0.0
    %405 = vmatprep.subr.mxu0 0.0
    %406 = vmatpush1.xpose.msra.mxu0 0.0
    %407 = vmatprep.subr.mxu0 0.0
    %408 = vmatpush1.xpose.msra.mxu0 0.0
    %409 = vmatprep.subr.mxu0 0.0
    %410 = vmatpush1.xpose.msra.mxu0 0.0
    %411 = vmatprep.subr.mxu0 0.0
    %412 = vmatpush1.xpose.msra.mxu0 0.0
    %413 = vmatprep.subr.mxu0 0.0
    %414 = vmatpush1.xpose.msra.mxu0 0.0
    %415 = vmatprep.subr.mxu0 0.0
    %416 = vmatpush1.xpose.msra.mxu0 0.0
    %417 = vmatprep.subr.mxu0 0.0
    %418 = vmatpush1.xpose.msra.mxu0 0.0
    %419 = vmatprep.subr.mxu0 0.0
    %420 = vmatpush1.xpose.msra.mxu0 0.0
    %421 = vmatprep.subr.mxu0 0.0
    %422 = vmatpush1.xpose.msra.mxu0 0.0
    %423 = vmatprep.subr.mxu0 0.0
    %424 = vmatpush1.xpose.msra.mxu0 0.0
    %425 = vmatprep.subr.mxu0 0.0
    %426 = vmatpush1.xpose.msra.mxu0 0.0
    %427 = vmatprep.subr.mxu0 0.0
    %428 = vmatpush1.xpose.msra.mxu0 0.0
    %429 = vmatprep.subr.mxu0 0.0
    %430 = vmatpush1.xpose.msra.mxu0 0.0
    %431 = vmatprep.subr.mxu0 0.0
    %432 = vmatpush1.xpose.msra.mxu0 0.0
    %433 = vmatprep.subr.mxu0 0.0
    %434 = vmatpush1.xpose.msra.mxu0 0.0
    %435 = vmatprep.subr.mxu0 0.0
    %436 = vmatpush1.xpose.msra.mxu0 0.0
    %437 = vmatprep.subr.mxu0 0.0
    %438 = vmatpush1.xpose.msra.mxu0 0.0
    %439 = vmatprep.subr.mxu0 0.0
    %440 = vmatpush1.xpose.msra.mxu0 0.0
    %441 = vmatprep.subr.mxu0 0.0
    %442 = vmatpush1.xpose.msra.mxu0 0.0
    %443 = vmatprep.subr.mxu0 0.0
    %444 = vmatpush1.xpose.msra.mxu0 0.0
    %445 = vmatprep.subr.mxu0 0.0
    %446 = vmatpush1.xpose.msra.mxu0 0.0
    %447 = vmatprep.subr.mxu0 0.0
    %448 = vmatpush1.xpose.msra.mxu0 0.0
    %449 = vmatprep.subr.mxu0 0.0
    %450 = vmatpush1.xpose.msra.mxu0 0.0
    %451 = vmatprep.subr.mxu0 0.0
    %452 = vmatpush1.xpose.msra.mxu0 0.0
    %453 = vmatprep.mubr.f32.mxu0 0.0
    %454 = vmatmul.mubr.f32.gmra.mrb[0].mxu0 %v311
    %v455 = vpop.f32.mrb[0].mxu0
    %v456 = vadd.f32 %v276, %v455
    %v457 = vpop.f32.mrb[0].mxu0
    %458 = vdwg.mxu0
    %v460 = vsel %vm309, %v50, 0
    %462 = vmatprep.subr.mxu0 0.0
    %463 = vmatpush1.xpose.msra.mxu0 %v460
    %464 = vmatprep.subr.mxu0 0.0
    %465 = vmatpush1.xpose.msra.mxu0 0.0
    %466 = vmatprep.subr.mxu0 0.0
    %467 = vmatpush1.xpose.msra.mxu0 0.0
    %468 = vmatprep.subr.mxu0 0.0
    %469 = vmatpush1.xpose.msra.mxu0 0.0
    %470 = vmatprep.subr.mxu0 0.0
    %471 = vmatpush1.xpose.msra.mxu0 0.0
    %472 = vmatprep.subr.mxu0 0.0
    %473 = vmatpush1.xpose.msra.mxu0 0.0
    %474 = vmatprep.subr.mxu0 0.0
    %475 = vmatpush1.xpose.msra.mxu0 0.0
    %476 = vmatprep.subr.mxu0 0.0
    %477 = vmatpush1.xpose.msra.mxu0 0.0
    %478 = vmatprep.subr.mxu0 0.0
    %479 = vmatpush1.xpose.msra.mxu0 0.0
    %480 = vmatprep.subr.mxu0 0.0
    %481 = vmatpush1.xpose.msra.mxu0 0.0
    %482 = vmatprep.subr.mxu0 0.0
    %483 = vmatpush1.xpose.msra.mxu0 0.0
    %484 = vmatprep.subr.mxu0 0.0
    %485 = vmatpush1.xpose.msra.mxu0 0.0
    %486 = vmatprep.subr.mxu0 0.0
    %487 = vmatpush1.xpose.msra.mxu0 0.0
    %488 = vmatprep.subr.mxu0 0.0
    %489 = vmatpush1.xpose.msra.mxu0 0.0
    %490 = vmatprep.subr.mxu0 0.0
    %491 = vmatpush1.xpose.msra.mxu0 0.0
    %492 = vmatprep.subr.mxu0 0.0
    %493 = vmatpush1.xpose.msra.mxu0 0.0
    %494 = vmatprep.subr.mxu0 0.0
    %495 = vmatpush1.xpose.msra.mxu0 0.0
    %496 = vmatprep.subr.mxu0 0.0
    %497 = vmatpush1.xpose.msra.mxu0 0.0
    %498 = vmatprep.subr.mxu0 0.0
    %499 = vmatpush1.xpose.msra.mxu0 0.0
    %500 = vmatprep.subr.mxu0 0.0
    %501 = vmatpush1.xpose.msra.mxu0 0.0
    %502 = vmatprep.subr.mxu0 0.0
    %503 = vmatpush1.xpose.msra.mxu0 0.0
    %504 = vmatprep.subr.mxu0 0.0
    %505 = vmatpush1.xpose.msra.mxu0 0.0
    %506 = vmatprep.subr.mxu0 0.0
    %507 = vmatpush1.xpose.msra.mxu0 0.0
    %508 = vmatprep.subr.mxu0 0.0
    %509 = vmatpush1.xpose.msra.mxu0 0.0
    %510 = vmatprep.subr.mxu0 0.0
    %511 = vmatpush1.xpose.msra.mxu0 0.0
    %512 = vmatprep.subr.mxu0 0.0
    %513 = vmatpush1.xpose.msra.mxu0 0.0
    %514 = vmatprep.subr.mxu0 0.0
    %515 = vmatpush1.xpose.msra.mxu0 0.0
    %516 = vmatprep.subr.mxu0 0.0
    %517 = vmatpush1.xpose.msra.mxu0 0.0
    %518 = vmatprep.subr.mxu0 0.0
    %519 = vmatpush1.xpose.msra.mxu0 0.0
    %520 = vmatprep.subr.mxu0 0.0
    %521 = vmatpush1.xpose.msra.mxu0 0.0
    %522 = vmatprep.subr.mxu0 0.0
    %523 = vmatpush1.xpose.msra.mxu0 0.0
    %524 = vmatprep.subr.mxu0 0.0
    %525 = vmatpush1.xpose.msra.mxu0 0.0
    %526 = vmatprep.mubr.f32.mxu0 0.0
    %527 = vmatmul.mubr.f32.gmra.mrb[0].mxu0 %v311
    %v528 = vpop.f32.mrb[0].mxu0
    %v529 = vadd.f32 %v280, %v528
    %v530 = vpop.f32.mrb[0].mxu0
    %531 = vdwg.mxu0
    %v533 = vsel %vm309, %v51, 0
    %535 = vmatprep.subr.mxu0 0.0
    %536 = vmatpush1.xpose.msra.mxu0 %v533
    %537 = vmatprep.subr.mxu0 0.0
    %538 = vmatpush1.xpose.msra.mxu0 0.0
    %539 = vmatprep.subr.mxu0 0.0
    %540 = vmatpush1.xpose.msra.mxu0 0.0
    %541 = vmatprep.subr.mxu0 0.0
    %542 = vmatpush1.xpose.msra.mxu0 0.0
    %543 = vmatprep.subr.mxu0 0.0
    %544 = vmatpush1.xpose.msra.mxu0 0.0
    %545 = vmatprep.subr.mxu0 0.0
    %546 = vmatpush1.xpose.msra.mxu0 0.0
    %547 = vmatprep.subr.mxu0 0.0
    %548 = vmatpush1.xpose.msra.mxu0 0.0
    %549 = vmatprep.subr.mxu0 0.0
    %550 = vmatpush1.xpose.msra.mxu0 0.0
    %551 = vmatprep.subr.mxu0 0.0
    %552 = vmatpush1.xpose.msra.mxu0 0.0
    %553 = vmatprep.subr.mxu0 0.0
    %554 = vmatpush1.xpose.msra.mxu0 0.0
    %555 = vmatprep.subr.mxu0 0.0
    %556 = vmatpush1.xpose.msra.mxu0 0.0
    %557 = vmatprep.subr.mxu0 0.0
    %558 = vmatpush1.xpose.msra.mxu0 0.0
    %559 = vmatprep.subr.mxu0 0.0
    %560 = vmatpush1.xpose.msra.mxu0 0.0
    %561 = vmatprep.subr.mxu0 0.0
    %562 = vmatpush1.xpose.msra.mxu0 0.0
    %563 = vmatprep.subr.mxu0 0.0
    %564 = vmatpush1.xpose.msra.mxu0 0.0
    %565 = vmatprep.subr.mxu0 0.0
    %566 = vmatpush1.xpose.msra.mxu0 0.0
    %567 = vmatprep.subr.mxu0 0.0
    %568 = vmatpush1.xpose.msra.mxu0 0.0
    %569 = vmatprep.subr.mxu0 0.0
    %570 = vmatpush1.xpose.msra.mxu0 0.0
    %571 = vmatprep.subr.mxu0 0.0
    %572 = vmatpush1.xpose.msra.mxu0 0.0
    %573 = vmatprep.subr.mxu0 0.0
    %574 = vmatpush1.xpose.msra.mxu0 0.0
    %575 = vmatprep.subr.mxu0 0.0
    %576 = vmatpush1.xpose.msra.mxu0 0.0
    %577 = vmatprep.subr.mxu0 0.0
    %578 = vmatpush1.xpose.msra.mxu0 0.0
    %579 = vmatprep.subr.mxu0 0.0
    %580 = vmatpush1.xpose.msra.mxu0 0.0
    %581 = vmatprep.subr.mxu0 0.0
    %582 = vmatpush1.xpose.msra.mxu0 0.0
    %583 = vmatprep.subr.mxu0 0.0
    %584 = vmatpush1.xpose.msra.mxu0 0.0
    %585 = vmatprep.subr.mxu0 0.0
    %586 = vmatpush1.xpose.msra.mxu0 0.0
    %587 = vmatprep.subr.mxu0 0.0
    %588 = vmatpush1.xpose.msra.mxu0 0.0
    %589 = vmatprep.subr.mxu0 0.0
    %590 = vmatpush1.xpose.msra.mxu0 0.0
    %591 = vmatprep.subr.mxu0 0.0
    %592 = vmatpush1.xpose.msra.mxu0 0.0
    %593 = vmatprep.subr.mxu0 0.0
    %594 = vmatpush1.xpose.msra.mxu0 0.0
    %595 = vmatprep.subr.mxu0 0.0
    %596 = vmatpush1.xpose.msra.mxu0 0.0
    %597 = vmatprep.subr.mxu0 0.0
    %598 = vmatpush1.xpose.msra.mxu0 0.0
    %599 = vmatprep.mubr.f32.mxu0 0.0
    %600 = vmatmul.mubr.f32.gmra.mrb[0].mxu0 %v311
    %v601 = vpop.f32.mrb[0].mxu0
    %v602 = vadd.f32 %v284, %v601
    %v603 = vpop.f32.mrb[0].mxu0
    %604 = vdwg.mxu0
    %v606 = vsel %vm309, %v52, 0
    %608 = vmatprep.subr.mxu0 0.0
    %609 = vmatpush1.xpose.msra.mxu0 %v606
    %610 = vmatprep.subr.mxu0 0.0
    %611 = vmatpush1.xpose.msra.mxu0 0.0
    %612 = vmatprep.subr.mxu0 0.0
    %613 = vmatpush1.xpose.msra.mxu0 0.0
    %614 = vmatprep.subr.mxu0 0.0
    %615 = vmatpush1.xpose.msra.mxu0 0.0
    %616 = vmatprep.subr.mxu0 0.0
    %617 = vmatpush1.xpose.msra.mxu0 0.0
    %618 = vmatprep.subr.mxu0 0.0
    %619 = vmatpush1.xpose.msra.mxu0 0.0
    %620 = vmatprep.subr.mxu0 0.0
    %621 = vmatpush1.xpose.msra.mxu0 0.0
    %622 = vmatprep.subr.mxu0 0.0
    %623 = vmatpush1.xpose.msra.mxu0 0.0
    %624 = vmatprep.subr.mxu0 0.0
    %625 = vmatpush1.xpose.msra.mxu0 0.0
    %626 = vmatprep.subr.mxu0 0.0
    %627 = vmatpush1.xpose.msra.mxu0 0.0
    %628 = vmatprep.subr.mxu0 0.0
    %629 = vmatpush1.xpose.msra.mxu0 0.0
    %630 = vmatprep.subr.mxu0 0.0
    %631 = vmatpush1.xpose.msra.mxu0 0.0
    %632 = vmatprep.subr.mxu0 0.0
    %633 = vmatpush1.xpose.msra.mxu0 0.0
    %634 = vmatprep.subr.mxu0 0.0
    %635 = vmatpush1.xpose.msra.mxu0 0.0
    %636 = vmatprep.subr.mxu0 0.0
    %637 = vmatpush1.xpose.msra.mxu0 0.0
    %638 = vmatprep.subr.mxu0 0.0
    %639 = vmatpush1.xpose.msra.mxu0 0.0
    %640 = vmatprep.subr.mxu0 0.0
    %641 = vmatpush1.xpose.msra.mxu0 0.0
    %642 = vmatprep.subr.mxu0 0.0
    %643 = vmatpush1.xpose.msra.mxu0 0.0
    %644 = vmatprep.subr.mxu0 0.0
    %645 = vmatpush1.xpose.msra.mxu0 0.0
    %646 = vmatprep.subr.mxu0 0.0
    %647 = vmatpush1.xpose.msra.mxu0 0.0
    %648 = vmatprep.subr.mxu0 0.0
    %649 = vmatpush1.xpose.msra.mxu0 0.0
    %650 = vmatprep.subr.mxu0 0.0
    %651 = vmatpush1.xpose.msra.mxu0 0.0
    %652 = vmatprep.subr.mxu0 0.0
    %653 = vmatpush1.xpose.msra.mxu0 0.0
    %654 = vmatprep.subr.mxu0 0.0
    %655 = vmatpush1.xpose.msra.mxu0 0.0
    %656 = vmatprep.subr.mxu0 0.0
    %657 = vmatpush1.xpose.msra.mxu0 0.0
    %658 = vmatprep.subr.mxu0 0.0
    %659 = vmatpush1.xpose.msra.mxu0 0.0
    %660 = vmatprep.subr.mxu0 0.0
    %661 = vmatpush1.xpose.msra.mxu0 0.0
    %662 = vmatprep.subr.mxu0 0.0
    %663 = vmatpush1.xpose.msra.mxu0 0.0
    %664 = vmatprep.subr.mxu0 0.0
    %665 = vmatpush1.xpose.msra.mxu0 0.0
    %666 = vmatprep.subr.mxu0 0.0
    %667 = vmatpush1.xpose.msra.mxu0 0.0
    %668 = vmatprep.subr.mxu0 0.0
    %669 = vmatpush1.xpose.msra.mxu0 0.0
    %670 = vmatprep.subr.mxu0 0.0
    %671 = vmatpush1.xpose.msra.mxu0 0.0
    %672 = vmatprep.mubr.f32.mxu0 0.0
    %673 = vmatmul.mubr.f32.gmra.mrb[0].mxu0 %v311
    %v674 = vpop.f32.mrb[0].mxu0
    %v675 = vadd.f32 %v288, %v674
    %v676 = vpop.f32.mrb[0].mxu0
    %677 = vdwg.mxu0
    %v679 = vsel %vm309, %v53, 0
    %681 = vmatprep.subr.mxu0 0.0
    %682 = vmatpush1.xpose.msra.mxu0 %v679
    %683 = vmatprep.subr.mxu0 0.0
    %684 = vmatpush1.xpose.msra.mxu0 0.0
    %685 = vmatprep.subr.mxu0 0.0
    %686 = vmatpush1.xpose.msra.mxu0 0.0
    %687 = vmatprep.subr.mxu0 0.0
    %688 = vmatpush1.xpose.msra.mxu0 0.0
    %689 = vmatprep.subr.mxu0 0.0
    %690 = vmatpush1.xpose.msra.mxu0 0.0
    %691 = vmatprep.subr.mxu0 0.0
    %692 = vmatpush1.xpose.msra.mxu0 0.0
    %693 = vmatprep.subr.mxu0 0.0
    %694 = vmatpush1.xpose.msra.mxu0 0.0
    %695 = vmatprep.subr.mxu0 0.0
    %696 = vmatpush1.xpose.msra.mxu0 0.0
    %697 = vmatprep.subr.mxu0 0.0
    %698 = vmatpush1.xpose.msra.mxu0 0.0
    %699 = vmatprep.subr.mxu0 0.0
    %700 = vmatpush1.xpose.msra.mxu0 0.0
    %701 = vmatprep.subr.mxu0 0.0
    %702 = vmatpush1.xpose.msra.mxu0 0.0
    %703 = vmatprep.subr.mxu0 0.0
    %704 = vmatpush1.xpose.msra.mxu0 0.0
    %705 = vmatprep.subr.mxu0 0.0
    %706 = vmatpush1.xpose.msra.mxu0 0.0
    %707 = vmatprep.subr.mxu0 0.0
    %708 = vmatpush1.xpose.msra.mxu0 0.0
    %709 = vmatprep.subr.mxu0 0.0
    %710 = vmatpush1.xpose.msra.mxu0 0.0
    %711 = vmatprep.subr.mxu0 0.0
    %712 = vmatpush1.xpose.msra.mxu0 0.0
    %713 = vmatprep.subr.mxu0 0.0
    %714 = vmatpush1.xpose.msra.mxu0 0.0
    %715 = vmatprep.subr.mxu0 0.0
    %716 = vmatpush1.xpose.msra.mxu0 0.0
    %717 = vmatprep.subr.mxu0 0.0
    %718 = vmatpush1.xpose.msra.mxu0 0.0
    %719 = vmatprep.subr.mxu0 0.0
    %720 = vmatpush1.xpose.msra.mxu0 0.0
    %721 = vmatprep.subr.mxu0 0.0
    %722 = vmatpush1.xpose.msra.mxu0 0.0
    %723 = vmatprep.subr.mxu0 0.0
    %724 = vmatpush1.xpose.msra.mxu0 0.0
    %725 = vmatprep.subr.mxu0 0.0
    %726 = vmatpush1.xpose.msra.mxu0 0.0
    %727 = vmatprep.subr.mxu0 0.0
    %728 = vmatpush1.xpose.msra.mxu0 0.0
    %729 = vmatprep.subr.mxu0 0.0
    %730 = vmatpush1.xpose.msra.mxu0 0.0
    %731 = vmatprep.subr.mxu0 0.0
    %732 = vmatpush1.xpose.msra.mxu0 0.0
    %733 = vmatprep.subr.mxu0 0.0
    %734 = vmatpush1.xpose.msra.mxu0 0.0
    %735 = vmatprep.subr.mxu0 0.0
    %736 = vmatpush1.xpose.msra.mxu0 0.0
    %737 = vmatprep.subr.mxu0 0.0
    %738 = vmatpush1.xpose.msra.mxu0 0.0
    %739 = vmatprep.subr.mxu0 0.0
    %740 = vmatpush1.xpose.msra.mxu0 0.0
    %741 = vmatprep.subr.mxu0 0.0
    %742 = vmatpush1.xpose.msra.mxu0 0.0
    %743 = vmatprep.subr.mxu0 0.0
    %744 = vmatpush1.xpose.msra.mxu0 0.0
    %745 = vmatprep.mubr.f32.mxu0 0.0
    %746 = vmatmul.mubr.f32.gmra.mrb[0].mxu0 %v311
    %v747 = vpop.f32.mrb[0].mxu0
    %v748 = vadd.f32 %v292, %v747
    %v749 = vpop.f32.mrb[0].mxu0
    %750 = vdwg.mxu0
    %v752 = vsel %vm309, %v54, 0
    %754 = vmatprep.subr.mxu0 0.0
    %755 = vmatpush1.xpose.msra.mxu0 %v752
    %756 = vmatprep.subr.mxu0 0.0
    %757 = vmatpush1.xpose.msra.mxu0 0.0
    %758 = vmatprep.subr.mxu0 0.0
    %759 = vmatpush1.xpose.msra.mxu0 0.0
    %760 = vmatprep.subr.mxu0 0.0
    %761 = vmatpush1.xpose.msra.mxu0 0.0
    %762 = vmatprep.subr.mxu0 0.0
    %763 = vmatpush1.xpose.msra.mxu0 0.0
    %764 = vmatprep.subr.mxu0 0.0
    %765 = vmatpush1.xpose.msra.mxu0 0.0
    %766 = vmatprep.subr.mxu0 0.0
    %767 = vmatpush1.xpose.msra.mxu0 0.0
    %768 = vmatprep.subr.mxu0 0.0
    %769 = vmatpush1.xpose.msra.mxu0 0.0
    %770 = vmatprep.subr.mxu0 0.0
    %771 = vmatpush1.xpose.msra.mxu0 0.0
    %772 = vmatprep.subr.mxu0 0.0
    %773 = vmatpush1.xpose.msra.mxu0 0.0
    %774 = vmatprep.subr.mxu0 0.0
    %775 = vmatpush1.xpose.msra.mxu0 0.0
    %776 = vmatprep.subr.mxu0 0.0
    %777 = vmatpush1.xpose.msra.mxu0 0.0
    %778 = vmatprep.subr.mxu0 0.0
    %779 = vmatpush1.xpose.msra.mxu0 0.0
    %780 = vmatprep.subr.mxu0 0.0
    %781 = vmatpush1.xpose.msra.mxu0 0.0
    %782 = vmatprep.subr.mxu0 0.0
    %783 = vmatpush1.xpose.msra.mxu0 0.0
    %784 = vmatprep.subr.mxu0 0.0
    %785 = vmatpush1.xpose.msra.mxu0 0.0
    %786 = vmatprep.subr.mxu0 0.0
    %787 = vmatpush1.xpose.msra.mxu0 0.0
    %788 = vmatprep.subr.mxu0 0.0
    %789 = vmatpush1.xpose.msra.mxu0 0.0
    %790 = vmatprep.subr.mxu0 0.0
    %791 = vmatpush1.xpose.msra.mxu0 0.0
    %792 = vmatprep.subr.mxu0 0.0
    %793 = vmatpush1.xpose.msra.mxu0 0.0
    %794 = vmatprep.subr.mxu0 0.0
    %795 = vmatpush1.xpose.msra.mxu0 0.0
    %796 = vmatprep.subr.mxu0 0.0
    %797 = vmatpush1.xpose.msra.mxu0 0.0
    %798 = vmatprep.subr.mxu0 0.0
    %799 = vmatpush1.xpose.msra.mxu0 0.0
    %800 = vmatprep.subr.mxu0 0.0
    %801 = vmatpush1.xpose.msra.mxu0 0.0
    %802 = vmatprep.subr.mxu0 0.0
    %803 = vmatpush1.xpose.msra.mxu0 0.0
    %804 = vmatprep.subr.mxu0 0.0
    %805 = vmatpush1.xpose.msra.mxu0 0.0
    %806 = vmatprep.subr.mxu0 0.0
    %807 = vmatpush1.xpose.msra.mxu0 0.0
    %808 = vmatprep.subr.mxu0 0.0
    %809 = vmatpush1.xpose.msra.mxu0 0.0
    %810 = vmatprep.subr.mxu0 0.0
    %811 = vmatpush1.xpose.msra.mxu0 0.0
    %812 = vmatprep.subr.mxu0 0.0
    %813 = vmatpush1.xpose.msra.mxu0 0.0
    %814 = vmatprep.subr.mxu0 0.0
    %815 = vmatpush1.xpose.msra.mxu0 0.0
    %816 = vmatprep.subr.mxu0 0.0
    %817 = vmatpush1.xpose.msra.mxu0 0.0
    %818 = vmatprep.mubr.f32.mxu0 0.0
    %819 = vmatmul.mubr.f32.gmra.mrb[0].mxu0 %v311
    %v820 = vpop.f32.mrb[0].mxu0
    %v821 = vadd.f32 %v296, %v820
    %v822 = vpop.f32.mrb[0].mxu0
    %823 = vdwg.mxu0
    %v825 = vsel %vm309, %v55, 0
    %827 = vmatprep.subr.mxu0 0.0
    %828 = vmatpush1.xpose.msra.mxu0 %v825
    %829 = vmatprep.subr.mxu0 0.0
    %830 = vmatpush1.xpose.msra.mxu0 0.0
    %831 = vmatprep.subr.mxu0 0.0
    %832 = vmatpush1.xpose.msra.mxu0 0.0
    %833 = vmatprep.subr.mxu0 0.0
    %834 = vmatpush1.xpose.msra.mxu0 0.0
    %835 = vmatprep.subr.mxu0 0.0
    %836 = vmatpush1.xpose.msra.mxu0 0.0
    %837 = vmatprep.subr.mxu0 0.0
    %838 = vmatpush1.xpose.msra.mxu0 0.0
    %839 = vmatprep.subr.mxu0 0.0
    %840 = vmatpush1.xpose.msra.mxu0 0.0
    %841 = vmatprep.subr.mxu0 0.0
    %842 = vmatpush1.xpose.msra.mxu0 0.0
    %843 = vmatprep.subr.mxu0 0.0
    %844 = vmatpush1.xpose.msra.mxu0 0.0
    %845 = vmatprep.subr.mxu0 0.0
    %846 = vmatpush1.xpose.msra.mxu0 0.0
    %847 = vmatprep.subr.mxu0 0.0
    %848 = vmatpush1.xpose.msra.mxu0 0.0
    %849 = vmatprep.subr.mxu0 0.0
    %850 = vmatpush1.xpose.msra.mxu0 0.0
    %851 = vmatprep.subr.mxu0 0.0
    %852 = vmatpush1.xpose.msra.mxu0 0.0
    %853 = vmatprep.subr.mxu0 0.0
    %854 = vmatpush1.xpose.msra.mxu0 0.0
    %855 = vmatprep.subr.mxu0 0.0
    %856 = vmatpush1.xpose.msra.mxu0 0.0
    %857 = vmatprep.subr.mxu0 0.0
    %858 = vmatpush1.xpose.msra.mxu0 0.0
    %859 = vmatprep.subr.mxu0 0.0
    %860 = vmatpush1.xpose.msra.mxu0 0.0
    %861 = vmatprep.subr.mxu0 0.0
    %862 = vmatpush1.xpose.msra.mxu0 0.0
    %863 = vmatprep.subr.mxu0 0.0
    %864 = vmatpush1.xpose.msra.mxu0 0.0
    %865 = vmatprep.subr.mxu0 0.0
    %866 = vmatpush1.xpose.msra.mxu0 0.0
    %867 = vmatprep.subr.mxu0 0.0
    %868 = vmatpush1.xpose.msra.mxu0 0.0
    %869 = vmatprep.subr.mxu0 0.0
    %870 = vmatpush1.xpose.msra.mxu0 0.0
    %871 = vmatprep.subr.mxu0 0.0
    %872 = vmatpush1.xpose.msra.mxu0 0.0
    %873 = vmatprep.subr.mxu0 0.0
    %874 = vmatpush1.xpose.msra.mxu0 0.0
    %875 = vmatprep.subr.mxu0 0.0
    %876 = vmatpush1.xpose.msra.mxu0 0.0
    %877 = vmatprep.subr.mxu0 0.0
    %878 = vmatpush1.xpose.msra.mxu0 0.0
    %879 = vmatprep.subr.mxu0 0.0
    %880 = vmatpush1.xpose.msra.mxu0 0.0
    %881 = vmatprep.subr.mxu0 0.0
    %882 = vmatpush1.xpose.msra.mxu0 0.0
    %883 = vmatprep.subr.mxu0 0.0
    %884 = vmatpush1.xpose.msra.mxu0 0.0
    %885 = vmatprep.subr.mxu0 0.0
    %886 = vmatpush1.xpose.msra.mxu0 0.0
    %887 = vmatprep.subr.mxu0 0.0
    %888 = vmatpush1.xpose.msra.mxu0 0.0
    %889 = vmatprep.subr.mxu0 0.0
    %890 = vmatpush1.xpose.msra.mxu0 0.0
    %891 = vmatprep.mubr.f32.mxu0 0.0
    %892 = vmatmul.mubr.f32.gmra.mrb[0].mxu0 %v311
    %v893 = vpop.f32.mrb[0].mxu0
    %v894 = vadd.f32 %v300, %v893
    %v895 = vpop.f32.mrb[0].mxu0
    %896 = vdwg.mxu0
    %v905 = vlaneseq
    %v906 = vshrl.u32 %v905, 7
    %v907 = vsub.s32 0, %v906
    %v908 = vrot.slane %v72, %v907
    %v909 = vlaneseq
    %v910 = vshrl.u32 %v909, 7
    %v911 = vsub.s32 0, %v910
    %v912 = vrot.slane %v73, %v911
    %v913 = vlaneseq
    %v914 = vshrl.u32 %v913, 7
    %v915 = vsub.s32 0, %v914
    %v916 = vrot.slane %v74, %v915
    %v917 = vlaneseq
    %v918 = vshrl.u32 %v917, 7
    %v919 = vsub.s32 0, %v918
    %v920 = vrot.slane %v75, %v919
    %v921 = vlaneseq
    %v922 = vshrl.u32 %v921, 7
    %v923 = vsub.s32 0, %v922
    %v924 = vrot.slane %v76, %v923
    %v925 = vlaneseq
    %v926 = vshrl.u32 %v925, 7
    %v927 = vsub.s32 0, %v926
    %v928 = vrot.slane %v77, %v927
    %v929 = vlaneseq
    %v930 = vshrl.u32 %v929, 7
    %v931 = vsub.s32 0, %v930
    %v932 = vrot.slane %v78, %v931
    %v933 = vlaneseq
    %v934 = vshrl.u32 %v933, 7
    %v935 = vsub.s32 0, %v934
    %v936 = vrot.slane %v79, %v935
    %v946 = vsel %vm309, %v64, 0
    %948 = vmatprep.subr.mxu0 0.0
    %949 = vmatpush1.xpose.msra.mxu0 %v946
    %950 = vmatprep.subr.mxu0 0.0
    %951 = vmatpush1.xpose.msra.mxu0 0.0
    %952 = vmatprep.subr.mxu0 0.0
    %953 = vmatpush1.xpose.msra.mxu0 0.0
    %954 = vmatprep.subr.mxu0 0.0
    %955 = vmatpush1.xpose.msra.mxu0 0.0
    %956 = vmatprep.subr.mxu0 0.0
    %957 = vmatpush1.xpose.msra.mxu0 0.0
    %958 = vmatprep.subr.mxu0 0.0
    %959 = vmatpush1.xpose.msra.mxu0 0.0
    %960 = vmatprep.subr.mxu0 0.0
    %961 = vmatpush1.xpose.msra.mxu0 0.0
    %962 = vmatprep.subr.mxu0 0.0
    %963 = vmatpush1.xpose.msra.mxu0 0.0
    %964 = vmatprep.subr.mxu0 0.0
    %965 = vmatpush1.xpose.msra.mxu0 0.0
    %966 = vmatprep.subr.mxu0 0.0
    %967 = vmatpush1.xpose.msra.mxu0 0.0
    %968 = vmatprep.subr.mxu0 0.0
    %969 = vmatpush1.xpose.msra.mxu0 0.0
    %970 = vmatprep.subr.mxu0 0.0
    %971 = vmatpush1.xpose.msra.mxu0 0.0
    %972 = vmatprep.subr.mxu0 0.0
    %973 = vmatpush1.xpose.msra.mxu0 0.0
    %974 = vmatprep.subr.mxu0 0.0
    %975 = vmatpush1.xpose.msra.mxu0 0.0
    %976 = vmatprep.subr.mxu0 0.0
    %977 = vmatpush1.xpose.msra.mxu0 0.0
    %978 = vmatprep.subr.mxu0 0.0
    %979 = vmatpush1.xpose.msra.mxu0 0.0
    %980 = vmatprep.subr.mxu0 0.0
    %981 = vmatpush1.xpose.msra.mxu0 0.0
    %982 = vmatprep.subr.mxu0 0.0
    %983 = vmatpush1.xpose.msra.mxu0 0.0
    %984 = vmatprep.subr.mxu0 0.0
    %985 = vmatpush1.xpose.msra.mxu0 0.0
    %986 = vmatprep.subr.mxu0 0.0
    %987 = vmatpush1.xpose.msra.mxu0 0.0
    %988 = vmatprep.subr.mxu0 0.0
    %989 = vmatpush1.xpose.msra.mxu0 0.0
    %990 = vmatprep.subr.mxu0 0.0
    %991 = vmatpush1.xpose.msra.mxu0 0.0
    %992 = vmatprep.subr.mxu0 0.0
    %993 = vmatpush1.xpose.msra.mxu0 0.0
    %994 = vmatprep.subr.mxu0 0.0
    %995 = vmatpush1.xpose.msra.mxu0 0.0
    %996 = vmatprep.subr.mxu0 0.0
    %997 = vmatpush1.xpose.msra.mxu0 0.0
    %998 = vmatprep.subr.mxu0 0.0
    %999 = vmatpush1.xpose.msra.mxu0 0.0
    %1000 = vmatprep.subr.mxu0 0.0
    %1001 = vmatpush1.xpose.msra.mxu0 0.0
    %1002 = vmatprep.subr.mxu0 0.0
    %1003 = vmatpush1.xpose.msra.mxu0 0.0
    %1004 = vmatprep.subr.mxu0 0.0
    %1005 = vmatpush1.xpose.msra.mxu0 0.0
    %1006 = vmatprep.subr.mxu0 0.0
    %1007 = vmatpush1.xpose.msra.mxu0 0.0
    %1008 = vmatprep.subr.mxu0 0.0
    %1009 = vmatpush1.xpose.msra.mxu0 0.0
    %1010 = vmatprep.subr.mxu0 0.0
    %1011 = vmatpush1.xpose.msra.mxu0 0.0
    %1012 = vmatprep.mubr.f32.mxu0 0.0
    %1013 = vmatmul.mubr.f32.gmra.mrb[0].mxu0 %v311
    %v1014 = vpop.f32.mrb[0].mxu0
    %v1015 = vadd.f32 %v908, %v1014
    %v1016 = vpop.f32.mrb[0].mxu0
    %1017 = vdwg.mxu0
    %v1019 = vsel %vm309, %v65, 0
    %1021 = vmatprep.subr.mxu0 0.0
    %1022 = vmatpush1.xpose.msra.mxu0 %v1019
    %1023 = vmatprep.subr.mxu0 0.0
    %1024 = vmatpush1.xpose.msra.mxu0 0.0
    %1025 = vmatprep.subr.mxu0 0.0
    %1026 = vmatpush1.xpose.msra.mxu0 0.0
    %1027 = vmatprep.subr.mxu0 0.0
    %1028 = vmatpush1.xpose.msra.mxu0 0.0
    %1029 = vmatprep.subr.mxu0 0.0
    %1030 = vmatpush1.xpose.msra.mxu0 0.0
    %1031 = vmatprep.subr.mxu0 0.0
    %1032 = vmatpush1.xpose.msra.mxu0 0.0
    %1033 = vmatprep.subr.mxu0 0.0
    %1034 = vmatpush1.xpose.msra.mxu0 0.0
    %1035 = vmatprep.subr.mxu0 0.0
    %1036 = vmatpush1.xpose.msra.mxu0 0.0
    %1037 = vmatprep.subr.mxu0 0.0
    %1038 = vmatpush1.xpose.msra.mxu0 0.0
    %1039 = vmatprep.subr.mxu0 0.0
    %1040 = vmatpush1.xpose.msra.mxu0 0.0
    %1041 = vmatprep.subr.mxu0 0.0
    %1042 = vmatpush1.xpose.msra.mxu0 0.0
    %1043 = vmatprep.subr.mxu0 0.0
    %1044 = vmatpush1.xpose.msra.mxu0 0.0
    %1045 = vmatprep.subr.mxu0 0.0
    %1046 = vmatpush1.xpose.msra.mxu0 0.0
    %1047 = vmatprep.subr.mxu0 0.0
    %1048 = vmatpush1.xpose.msra.mxu0 0.0
    %1049 = vmatprep.subr.mxu0 0.0
    %1050 = vmatpush1.xpose.msra.mxu0 0.0
    %1051 = vmatprep.subr.mxu0 0.0
    %1052 = vmatpush1.xpose.msra.mxu0 0.0
    %1053 = vmatprep.subr.mxu0 0.0
    %1054 = vmatpush1.xpose.msra.mxu0 0.0
    %1055 = vmatprep.subr.mxu0 0.0
    %1056 = vmatpush1.xpose.msra.mxu0 0.0
    %1057 = vmatprep.subr.mxu0 0.0
    %1058 = vmatpush1.xpose.msra.mxu0 0.0
    %1059 = vmatprep.subr.mxu0 0.0
    %1060 = vmatpush1.xpose.msra.mxu0 0.0
    %1061 = vmatprep.subr.mxu0 0.0
    %1062 = vmatpush1.xpose.msra.mxu0 0.0
    %1063 = vmatprep.subr.mxu0 0.0
    %1064 = vmatpush1.xpose.msra.mxu0 0.0
    %1065 = vmatprep.subr.mxu0 0.0
    %1066 = vmatpush1.xpose.msra.mxu0 0.0
    %1067 = vmatprep.subr.mxu0 0.0
    %1068 = vmatpush1.xpose.msra.mxu0 0.0
    %1069 = vmatprep.subr.mxu0 0.0
    %1070 = vmatpush1.xpose.msra.mxu0 0.0
    %1071 = vmatprep.subr.mxu0 0.0
    %1072 = vmatpush1.xpose.msra.mxu0 0.0
    %1073 = vmatprep.subr.mxu0 0.0
    %1074 = vmatpush1.xpose.msra.mxu0 0.0
    %1075 = vmatprep.subr.mxu0 0.0
    %1076 = vmatpush1.xpose.msra.mxu0 0.0
    %1077 = vmatprep.subr.mxu0 0.0
    %1078 = vmatpush1.xpose.msra.mxu0 0.0
    %1079 = vmatprep.subr.mxu0 0.0
    %1080 = vmatpush1.xpose.msra.mxu0 0.0
    %1081 = vmatprep.subr.mxu0 0.0
    %1082 = vmatpush1.xpose.msra.mxu0 0.0
    %1083 = vmatprep.subr.mxu0 0.0
    %1084 = vmatpush1.xpose.msra.mxu0 0.0
    %1085 = vmatprep.mubr.f32.mxu0 0.0
    %1086 = vmatmul.mubr.f32.gmra.mrb[0].mxu0 %v311
    %v1087 = vpop.f32.mrb[0].mxu0
    %v1088 = vadd.f32 %v912, %v1087
    %v1089 = vpop.f32.mrb[0].mxu0
    %1090 = vdwg.mxu0
    %v1092 = vsel %vm309, %v66, 0
    %1094 = vmatprep.subr.mxu0 0.0
    %1095 = vmatpush1.xpose.msra.mxu0 %v1092
    %1096 = vmatprep.subr.mxu0 0.0
    %1097 = vmatpush1.xpose.msra.mxu0 0.0
    %1098 = vmatprep.subr.mxu0 0.0
    %1099 = vmatpush1.xpose.msra.mxu0 0.0
    %1100 = vmatprep.subr.mxu0 0.0
    %1101 = vmatpush1.xpose.msra.mxu0 0.0
    %1102 = vmatprep.subr.mxu0 0.0
    %1103 = vmatpush1.xpose.msra.mxu0 0.0
    %1104 = vmatprep.subr.mxu0 0.0
    %1105 = vmatpush1.xpose.msra.mxu0 0.0
    %1106 = vmatprep.subr.mxu0 0.0
    %1107 = vmatpush1.xpose.msra.mxu0 0.0
    %1108 = vmatprep.subr.mxu0 0.0
    %1109 = vmatpush1.xpose.msra.mxu0 0.0
    %1110 = vmatprep.subr.mxu0 0.0
    %1111 = vmatpush1.xpose.msra.mxu0 0.0
    %1112 = vmatprep.subr.mxu0 0.0
    %1113 = vmatpush1.xpose.msra.mxu0 0.0
    %1114 = vmatprep.subr.mxu0 0.0
    %1115 = vmatpush1.xpose.msra.mxu0 0.0
    %1116 = vmatprep.subr.mxu0 0.0
    %1117 = vmatpush1.xpose.msra.mxu0 0.0
    %1118 = vmatprep.subr.mxu0 0.0
    %1119 = vmatpush1.xpose.msra.mxu0 0.0
    %1120 = vmatprep.subr.mxu0 0.0
    %1121 = vmatpush1.xpose.msra.mxu0 0.0
    %1122 = vmatprep.subr.mxu0 0.0
    %1123 = vmatpush1.xpose.msra.mxu0 0.0
    %1124 = vmatprep.subr.mxu0 0.0
    %1125 = vmatpush1.xpose.msra.mxu0 0.0
    %1126 = vmatprep.subr.mxu0 0.0
    %1127 = vmatpush1.xpose.msra.mxu0 0.0
    %1128 = vmatprep.subr.mxu0 0.0
    %1129 = vmatpush1.xpose.msra.mxu0 0.0
    %1130 = vmatprep.subr.mxu0 0.0
    %1131 = vmatpush1.xpose.msra.mxu0 0.0
    %1132 = vmatprep.subr.mxu0 0.0
    %1133 = vmatpush1.xpose.msra.mxu0 0.0
    %1134 = vmatprep.subr.mxu0 0.0
    %1135 = vmatpush1.xpose.msra.mxu0 0.0
    %1136 = vmatprep.subr.mxu0 0.0
    %1137 = vmatpush1.xpose.msra.mxu0 0.0
    %1138 = vmatprep.subr.mxu0 0.0
    %1139 = vmatpush1.xpose.msra.mxu0 0.0
    %1140 = vmatprep.subr.mxu0 0.0
    %1141 = vmatpush1.xpose.msra.mxu0 0.0
    %1142 = vmatprep.subr.mxu0 0.0
    %1143 = vmatpush1.xpose.msra.mxu0 0.0
    %1144 = vmatprep.subr.mxu0 0.0
    %1145 = vmatpush1.xpose.msra.mxu0 0.0
    %1146 = vmatprep.subr.mxu0 0.0
    %1147 = vmatpush1.xpose.msra.mxu0 0.0
    %1148 = vmatprep.subr.mxu0 0.0
    %1149 = vmatpush1.xpose.msra.mxu0 0.0
    %1150 = vmatprep.subr.mxu0 0.0
    %1151 = vmatpush1.xpose.msra.mxu0 0.0
    %1152 = vmatprep.subr.mxu0 0.0
    %1153 = vmatpush1.xpose.msra.mxu0 0.0
    %1154 = vmatprep.subr.mxu0 0.0
    %1155 = vmatpush1.xpose.msra.mxu0 0.0
    %1156 = vmatprep.subr.mxu0 0.0
    %1157 = vmatpush1.xpose.msra.mxu0 0.0
    %1158 = vmatprep.mubr.f32.mxu0 0.0
    %1159 = vmatmul.mubr.f32.gmra.mrb[0].mxu0 %v311
    %v1160 = vpop.f32.mrb[0].mxu0
    %v1161 = vadd.f32 %v916, %v1160
    %v1162 = vpop.f32.mrb[0].mxu0
    %1163 = vdwg.mxu0
    %v1165 = vsel %vm309, %v67, 0
    %1167 = vmatprep.subr.mxu0 0.0
    %1168 = vmatpush1.xpose.msra.mxu0 %v1165
    %1169 = vmatprep.subr.mxu0 0.0
    %1170 = vmatpush1.xpose.msra.mxu0 0.0
    %1171 = vmatprep.subr.mxu0 0.0
    %1172 = vmatpush1.xpose.msra.mxu0 0.0
    %1173 = vmatprep.subr.mxu0 0.0
    %1174 = vmatpush1.xpose.msra.mxu0 0.0
    %1175 = vmatprep.subr.mxu0 0.0
    %1176 = vmatpush1.xpose.msra.mxu0 0.0
    %1177 = vmatprep.subr.mxu0 0.0
    %1178 = vmatpush1.xpose.msra.mxu0 0.0
    %1179 = vmatprep.subr.mxu0 0.0
    %1180 = vmatpush1.xpose.msra.mxu0 0.0
    %1181 = vmatprep.subr.mxu0 0.0
    %1182 = vmatpush1.xpose.msra.mxu0 0.0
    %1183 = vmatprep.subr.mxu0 0.0
    %1184 = vmatpush1.xpose.msra.mxu0 0.0
    %1185 = vmatprep.subr.mxu0 0.0
    %1186 = vmatpush1.xpose.msra.mxu0 0.0
    %1187 = vmatprep.subr.mxu0 0.0
    %1188 = vmatpush1.xpose.msra.mxu0 0.0
    %1189 = vmatprep.subr.mxu0 0.0
    %1190 = vmatpush1.xpose.msra.mxu0 0.0
    %1191 = vmatprep.subr.mxu0 0.0
    %1192 = vmatpush1.xpose.msra.mxu0 0.0
    %1193 = vmatprep.subr.mxu0 0.0
    %1194 = vmatpush1.xpose.msra.mxu0 0.0
    %1195 = vmatprep.subr.mxu0 0.0
    %1196 = vmatpush1.xpose.msra.mxu0 0.0
    %1197 = vmatprep.subr.mxu0 0.0
    %1198 = vmatpush1.xpose.msra.mxu0 0.0
    %1199 = vmatprep.subr.mxu0 0.0
    %1200 = vmatpush1.xpose.msra.mxu0 0.0
    %1201 = vmatprep.subr.mxu0 0.0
    %1202 = vmatpush1.xpose.msra.mxu0 0.0
    %1203 = vmatprep.subr.mxu0 0.0
    %1204 = vmatpush1.xpose.msra.mxu0 0.0
    %1205 = vmatprep.subr.mxu0 0.0
    %1206 = vmatpush1.xpose.msra.mxu0 0.0
    %1207 = vmatprep.subr.mxu0 0.0
    %1208 = vmatpush1.xpose.msra.mxu0 0.0
    %1209 = vmatprep.subr.mxu0 0.0
    %1210 = vmatpush1.xpose.msra.mxu0 0.0
    %1211 = vmatprep.subr.mxu0 0.0
    %1212 = vmatpush1.xpose.msra.mxu0 0.0
    %1213 = vmatprep.subr.mxu0 0.0
    %1214 = vmatpush1.xpose.msra.mxu0 0.0
    %1215 = vmatprep.subr.mxu0 0.0
    %1216 = vmatpush1.xpose.msra.mxu0 0.0
    %1217 = vmatprep.subr.mxu0 0.0
    %1218 = vmatpush1.xpose.msra.mxu0 0.0
    %1219 = vmatprep.subr.mxu0 0.0
    %1220 = vmatpush1.xpose.msra.mxu0 0.0
    %1221 = vmatprep.subr.mxu0 0.0
    %1222 = vmatpush1.xpose.msra.mxu0 0.0
    %1223 = vmatprep.subr.mxu0 0.0
    %1224 = vmatpush1.xpose.msra.mxu0 0.0
    %1225 = vmatprep.subr.mxu0 0.0
    %1226 = vmatpush1.xpose.msra.mxu0 0.0
    %1227 = vmatprep.subr.mxu0 0.0
    %1228 = vmatpush1.xpose.msra.mxu0 0.0
    %1229 = vmatprep.subr.mxu0 0.0
    %1230 = vmatpush1.xpose.msra.mxu0 0.0
    %1231 = vmatprep.mubr.f32.mxu0 0.0
    %1232 = vmatmul.mubr.f32.gmra.mrb[0].mxu0 %v311
    %v1233 = vpop.f32.mrb[0].mxu0
    %v1234 = vadd.f32 %v920, %v1233
    %v1235 = vpop.f32.mrb[0].mxu0
    %1236 = vdwg.mxu0
    %v1238 = vsel %vm309, %v68, 0
    %1240 = vmatprep.subr.mxu0 0.0
    %1241 = vmatpush1.xpose.msra.mxu0 %v1238
    %1242 = vmatprep.subr.mxu0 0.0
    %1243 = vmatpush1.xpose.msra.mxu0 0.0
    %1244 = vmatprep.subr.mxu0 0.0
    %1245 = vmatpush1.xpose.msra.mxu0 0.0
    %1246 = vmatprep.subr.mxu0 0.0
    %1247 = vmatpush1.xpose.msra.mxu0 0.0
    %1248 = vmatprep.subr.mxu0 0.0
    %1249 = vmatpush1.xpose.msra.mxu0 0.0
    %1250 = vmatprep.subr.mxu0 0.0
    %1251 = vmatpush1.xpose.msra.mxu0 0.0
    %1252 = vmatprep.subr.mxu0 0.0
    %1253 = vmatpush1.xpose.msra.mxu0 0.0
    %1254 = vmatprep.subr.mxu0 0.0
    %1255 = vmatpush1.xpose.msra.mxu0 0.0
    %1256 = vmatprep.subr.mxu0 0.0
    %1257 = vmatpush1.xpose.msra.mxu0 0.0
    %1258 = vmatprep.subr.mxu0 0.0
    %1259 = vmatpush1.xpose.msra.mxu0 0.0
    %1260 = vmatprep.subr.mxu0 0.0
    %1261 = vmatpush1.xpose.msra.mxu0 0.0
    %1262 = vmatprep.subr.mxu0 0.0
    %1263 = vmatpush1.xpose.msra.mxu0 0.0
    %1264 = vmatprep.subr.mxu0 0.0
    %1265 = vmatpush1.xpose.msra.mxu0 0.0
    %1266 = vmatprep.subr.mxu0 0.0
    %1267 = vmatpush1.xpose.msra.mxu0 0.0
    %1268 = vmatprep.subr.mxu0 0.0
    %1269 = vmatpush1.xpose.msra.mxu0 0.0
    %1270 = vmatprep.subr.mxu0 0.0
    %1271 = vmatpush1.xpose.msra.mxu0 0.0
    %1272 = vmatprep.subr.mxu0 0.0
    %1273 = vmatpush1.xpose.msra.mxu0 0.0
    %1274 = vmatprep.subr.mxu0 0.0
    %1275 = vmatpush1.xpose.msra.mxu0 0.0
    %1276 = vmatprep.subr.mxu0 0.0
    %1277 = vmatpush1.xpose.msra.mxu0 0.0
    %1278 = vmatprep.subr.mxu0 0.0
    %1279 = vmatpush1.xpose.msra.mxu0 0.0
    %1280 = vmatprep.subr.mxu0 0.0
    %1281 = vmatpush1.xpose.msra.mxu0 0.0
    %1282 = vmatprep.subr.mxu0 0.0
    %1283 = vmatpush1.xpose.msra.mxu0 0.0
    %1284 = vmatprep.subr.mxu0 0.0
    %1285 = vmatpush1.xpose.msra.mxu0 0.0
    %1286 = vmatprep.subr.mxu0 0.0
    %1287 = vmatpush1.xpose.msra.mxu0 0.0
    %1288 = vmatprep.subr.mxu0 0.0
    %1289 = vmatpush1.xpose.msra.mxu0 0.0
    %1290 = vmatprep.subr.mxu0 0.0
    %1291 = vmatpush1.xpose.msra.mxu0 0.0
    %1292 = vmatprep.subr.mxu0 0.0
    %1293 = vmatpush1.xpose.msra.mxu0 0.0
    %1294 = vmatprep.subr.mxu0 0.0
    %1295 = vmatpush1.xpose.msra.mxu0 0.0
    %1296 = vmatprep.subr.mxu0 0.0
    %1297 = vmatpush1.xpose.msra.mxu0 0.0
    %1298 = vmatprep.subr.mxu0 0.0
    %1299 = vmatpush1.xpose.msra.mxu0 0.0
    %1300 = vmatprep.subr.mxu0 0.0
    %1301 = vmatpush1.xpose.msra.mxu0 0.0
    %1302 = vmatprep.subr.mxu0 0.0
    %1303 = vmatpush1.xpose.msra.mxu0 0.0
    %1304 = vmatprep.mubr.f32.mxu0 0.0
    %1305 = vmatmul.mubr.f32.gmra.mrb[0].mxu0 %v311
    %v1306 = vpop.f32.mrb[0].mxu0
    %v1307 = vadd.f32 %v924, %v1306
    %v1308 = vpop.f32.mrb[0].mxu0
    %1309 = vdwg.mxu0
    %v1311 = vsel %vm309, %v69, 0
    %1313 = vmatprep.subr.mxu0 0.0
    %1314 = vmatpush1.xpose.msra.mxu0 %v1311
    %1315 = vmatprep.subr.mxu0 0.0
    %1316 = vmatpush1.xpose.msra.mxu0 0.0
    %1317 = vmatprep.subr.mxu0 0.0
    %1318 = vmatpush1.xpose.msra.mxu0 0.0
    %1319 = vmatprep.subr.mxu0 0.0
    %1320 = vmatpush1.xpose.msra.mxu0 0.0
    %1321 = vmatprep.subr.mxu0 0.0
    %1322 = vmatpush1.xpose.msra.mxu0 0.0
    %1323 = vmatprep.subr.mxu0 0.0
    %1324 = vmatpush1.xpose.msra.mxu0 0.0
    %1325 = vmatprep.subr.mxu0 0.0
    %1326 = vmatpush1.xpose.msra.mxu0 0.0
    %1327 = vmatprep.subr.mxu0 0.0
    %1328 = vmatpush1.xpose.msra.mxu0 0.0
    %1329 = vmatprep.subr.mxu0 0.0
    %1330 = vmatpush1.xpose.msra.mxu0 0.0
    %1331 = vmatprep.subr.mxu0 0.0
    %1332 = vmatpush1.xpose.msra.mxu0 0.0
    %1333 = vmatprep.subr.mxu0 0.0
    %1334 = vmatpush1.xpose.msra.mxu0 0.0
    %1335 = vmatprep.subr.mxu0 0.0
    %1336 = vmatpush1.xpose.msra.mxu0 0.0
    %1337 = vmatprep.subr.mxu0 0.0
    %1338 = vmatpush1.xpose.msra.mxu0 0.0
    %1339 = vmatprep.subr.mxu0 0.0
    %1340 = vmatpush1.xpose.msra.mxu0 0.0
    %1341 = vmatprep.subr.mxu0 0.0
    %1342 = vmatpush1.xpose.msra.mxu0 0.0
    %1343 = vmatprep.subr.mxu0 0.0
    %1344 = vmatpush1.xpose.msra.mxu0 0.0
    %1345 = vmatprep.subr.mxu0 0.0
    %1346 = vmatpush1.xpose.msra.mxu0 0.0
    %1347 = vmatprep.subr.mxu0 0.0
    %1348 = vmatpush1.xpose.msra.mxu0 0.0
    %1349 = vmatprep.subr.mxu0 0.0
    %1350 = vmatpush1.xpose.msra.mxu0 0.0
    %1351 = vmatprep.subr.mxu0 0.0
    %1352 = vmatpush1.xpose.msra.mxu0 0.0
    %1353 = vmatprep.subr.mxu0 0.0
    %1354 = vmatpush1.xpose.msra.mxu0 0.0
    %1355 = vmatprep.subr.mxu0 0.0
    %1356 = vmatpush1.xpose.msra.mxu0 0.0
    %1357 = vmatprep.subr.mxu0 0.0
    %1358 = vmatpush1.xpose.msra.mxu0 0.0
    %1359 = vmatprep.subr.mxu0 0.0
    %1360 = vmatpush1.xpose.msra.mxu0 0.0
    %1361 = vmatprep.subr.mxu0 0.0
    %1362 = vmatpush1.xpose.msra.mxu0 0.0
    %1363 = vmatprep.subr.mxu0 0.0
    %1364 = vmatpush1.xpose.msra.mxu0 0.0
    %1365 = vmatprep.subr.mxu0 0.0
    %1366 = vmatpush1.xpose.msra.mxu0 0.0
    %1367 = vmatprep.subr.mxu0 0.0
    %1368 = vmatpush1.xpose.msra.mxu0 0.0
    %1369 = vmatprep.subr.mxu0 0.0
    %1370 = vmatpush1.xpose.msra.mxu0 0.0
    %1371 = vmatprep.subr.mxu0 0.0
    %1372 = vmatpush1.xpose.msra.mxu0 0.0
    %1373 = vmatprep.subr.mxu0 0.0
    %1374 = vmatpush1.xpose.msra.mxu0 0.0
    %1375 = vmatprep.subr.mxu0 0.0
    %1376 = vmatpush1.xpose.msra.mxu0 0.0
    %1377 = vmatprep.mubr.f32.mxu0 0.0
    %1378 = vmatmul.mubr.f32.gmra.mrb[0].mxu0 %v311
    %v1379 = vpop.f32.mrb[0].mxu0
    %v1380 = vadd.f32 %v928, %v1379
    %v1381 = vpop.f32.mrb[0].mxu0
    %1382 = vdwg.mxu0
    %v1384 = vsel %vm309, %v70, 0
    %1386 = vmatprep.subr.mxu0 0.0
    %1387 = vmatpush1.xpose.msra.mxu0 %v1384
    %1388 = vmatprep.subr.mxu0 0.0
    %1389 = vmatpush1.xpose.msra.mxu0 0.0
    %1390 = vmatprep.subr.mxu0 0.0
    %1391 = vmatpush1.xpose.msra.mxu0 0.0
    %1392 = vmatprep.subr.mxu0 0.0
    %1393 = vmatpush1.xpose.msra.mxu0 0.0
    %1394 = vmatprep.subr.mxu0 0.0
    %1395 = vmatpush1.xpose.msra.mxu0 0.0
    %1396 = vmatprep.subr.mxu0 0.0
    %1397 = vmatpush1.xpose.msra.mxu0 0.0
    %1398 = vmatprep.subr.mxu0 0.0
    %1399 = vmatpush1.xpose.msra.mxu0 0.0
    %1400 = vmatprep.subr.mxu0 0.0
    %1401 = vmatpush1.xpose.msra.mxu0 0.0
    %1402 = vmatprep.subr.mxu0 0.0
    %1403 = vmatpush1.xpose.msra.mxu0 0.0
    %1404 = vmatprep.subr.mxu0 0.0
    %1405 = vmatpush1.xpose.msra.mxu0 0.0
    %1406 = vmatprep.subr.mxu0 0.0
    %1407 = vmatpush1.xpose.msra.mxu0 0.0
    %1408 = vmatprep.subr.mxu0 0.0
    %1409 = vmatpush1.xpose.msra.mxu0 0.0
    %1410 = vmatprep.subr.mxu0 0.0
    %1411 = vmatpush1.xpose.msra.mxu0 0.0
    %1412 = vmatprep.subr.mxu0 0.0
    %1413 = vmatpush1.xpose.msra.mxu0 0.0
    %1414 = vmatprep.subr.mxu0 0.0
    %1415 = vmatpush1.xpose.msra.mxu0 0.0
    %1416 = vmatprep.subr.mxu0 0.0
    %1417 = vmatpush1.xpose.msra.mxu0 0.0
    %1418 = vmatprep.subr.mxu0 0.0
    %1419 = vmatpush1.xpose.msra.mxu0 0.0
    %1420 = vmatprep.subr.mxu0 0.0
    %1421 = vmatpush1.xpose.msra.mxu0 0.0
    %1422 = vmatprep.subr.mxu0 0.0
    %1423 = vmatpush1.xpose.msra.mxu0 0.0
    %1424 = vmatprep.subr.mxu0 0.0
    %1425 = vmatpush1.xpose.msra.mxu0 0.0
    %1426 = vmatprep.subr.mxu0 0.0
    %1427 = vmatpush1.xpose.msra.mxu0 0.0
    %1428 = vmatprep.subr.mxu0 0.0
    %1429 = vmatpush1.xpose.msra.mxu0 0.0
    %1430 = vmatprep.subr.mxu0 0.0
    %1431 = vmatpush1.xpose.msra.mxu0 0.0
    %1432 = vmatprep.subr.mxu0 0.0
    %1433 = vmatpush1.xpose.msra.mxu0 0.0
    %1434 = vmatprep.subr.mxu0 0.0
    %1435 = vmatpush1.xpose.msra.mxu0 0.0
    %1436 = vmatprep.subr.mxu0 0.0
    %1437 = vmatpush1.xpose.msra.mxu0 0.0
    %1438 = vmatprep.subr.mxu0 0.0
    %1439 = vmatpush1.xpose.msra.mxu0 0.0
    %1440 = vmatprep.subr.mxu0 0.0
    %1441 = vmatpush1.xpose.msra.mxu0 0.0
    %1442 = vmatprep.subr.mxu0 0.0
    %1443 = vmatpush1.xpose.msra.mxu0 0.0
    %1444 = vmatprep.subr.mxu0 0.0
    %1445 = vmatpush1.xpose.msra.mxu0 0.0
    %1446 = vmatprep.subr.mxu0 0.0
    %1447 = vmatpush1.xpose.msra.mxu0 0.0
    %1448 = vmatprep.subr.mxu0 0.0
    %1449 = vmatpush1.xpose.msra.mxu0 0.0
    %1450 = vmatprep.mubr.f32.mxu0 0.0
    %1451 = vmatmul.mubr.f32.gmra.mrb[0].mxu0 %v311
    %v1452 = vpop.f32.mrb[0].mxu0
    %v1453 = vadd.f32 %v932, %v1452
    %v1454 = vpop.f32.mrb[0].mxu0
    %1455 = vdwg.mxu0
    %v1457 = vsel %vm309, %v71, 0
    %1459 = vmatprep.subr.mxu0 0.0
    %1460 = vmatpush1.xpose.msra.mxu0 %v1457
    %1461 = vmatprep.subr.mxu0 0.0
    %1462 = vmatpush1.xpose.msra.mxu0 0.0
    %1463 = vmatprep.subr.mxu0 0.0
    %1464 = vmatpush1.xpose.msra.mxu0 0.0
    %1465 = vmatprep.subr.mxu0 0.0
    %1466 = vmatpush1.xpose.msra.mxu0 0.0
    %1467 = vmatprep.subr.mxu0 0.0
    %1468 = vmatpush1.xpose.msra.mxu0 0.0
    %1469 = vmatprep.subr.mxu0 0.0
    %1470 = vmatpush1.xpose.msra.mxu0 0.0
    %1471 = vmatprep.subr.mxu0 0.0
    %1472 = vmatpush1.xpose.msra.mxu0 0.0
    %1473 = vmatprep.subr.mxu0 0.0
    %1474 = vmatpush1.xpose.msra.mxu0 0.0
    %1475 = vmatprep.subr.mxu0 0.0
    %1476 = vmatpush1.xpose.msra.mxu0 0.0
    %1477 = vmatprep.subr.mxu0 0.0
    %1478 = vmatpush1.xpose.msra.mxu0 0.0
    %1479 = vmatprep.subr.mxu0 0.0
    %1480 = vmatpush1.xpose.msra.mxu0 0.0
    %1481 = vmatprep.subr.mxu0 0.0
    %1482 = vmatpush1.xpose.msra.mxu0 0.0
    %1483 = vmatprep.subr.mxu0 0.0
    %1484 = vmatpush1.xpose.msra.mxu0 0.0
    %1485 = vmatprep.subr.mxu0 0.0
    %1486 = vmatpush1.xpose.msra.mxu0 0.0
    %1487 = vmatprep.subr.mxu0 0.0
    %1488 = vmatpush1.xpose.msra.mxu0 0.0
    %1489 = vmatprep.subr.mxu0 0.0
    %1490 = vmatpush1.xpose.msra.mxu0 0.0
    %1491 = vmatprep.subr.mxu0 0.0
    %1492 = vmatpush1.xpose.msra.mxu0 0.0
    %1493 = vmatprep.subr.mxu0 0.0
    %1494 = vmatpush1.xpose.msra.mxu0 0.0
    %1495 = vmatprep.subr.mxu0 0.0
    %1496 = vmatpush1.xpose.msra.mxu0 0.0
    %1497 = vmatprep.subr.mxu0 0.0
    %1498 = vmatpush1.xpose.msra.mxu0 0.0
    %1499 = vmatprep.subr.mxu0 0.0
    %1500 = vmatpush1.xpose.msra.mxu0 0.0
    %1501 = vmatprep.subr.mxu0 0.0
    %1502 = vmatpush1.xpose.msra.mxu0 0.0
    %1503 = vmatprep.subr.mxu0 0.0
    %1504 = vmatpush1.xpose.msra.mxu0 0.0
    %1505 = vmatprep.subr.mxu0 0.0
    %1506 = vmatpush1.xpose.msra.mxu0 0.0
    %1507 = vmatprep.subr.mxu0 0.0
    %1508 = vmatpush1.xpose.msra.mxu0 0.0
    %1509 = vmatprep.subr.mxu0 0.0
    %1510 = vmatpush1.xpose.msra.mxu0 0.0
    %1511 = vmatprep.subr.mxu0 0.0
    %1512 = vmatpush1.xpose.msra.mxu0 0.0
    %1513 = vmatprep.subr.mxu0 0.0
    %1514 = vmatpush1.xpose.msra.mxu0 0.0
    %1515 = vmatprep.subr.mxu0 0.0
    %1516 = vmatpush1.xpose.msra.mxu0 0.0
    %1517 = vmatprep.subr.mxu0 0.0
    %1518 = vmatpush1.xpose.msra.mxu0 0.0
    %1519 = vmatprep.subr.mxu0 0.0
    %1520 = vmatpush1.xpose.msra.mxu0 0.0
    %1521 = vmatprep.subr.mxu0 0.0
    %1522 = vmatpush1.xpose.msra.mxu0 0.0
    %1523 = vmatprep.mubr.f32.mxu0 0.0
    %1524 = vmatmul.mubr.f32.gmra.mrb[0].mxu0 %v311
    %v1525 = vpop.f32.mrb[0].mxu0
    %v1526 = vadd.f32 %v936, %v1525
    %v1527 = vpop.f32.mrb[0].mxu0
    %1528 = vdwg.mxu0
    %v1537 = vlaneseq
    %v1538 = vshrl.u32 %v1537, 7
    %v1539 = vsub.s32 0, %v1538
    %v1540 = vrot.slane %v88, %v1539
    %v1541 = vlaneseq
    %v1542 = vshrl.u32 %v1541, 7
    %v1543 = vsub.s32 0, %v1542
    %v1544 = vrot.slane %v89, %v1543
    %v1545 = vlaneseq
    %v1546 = vshrl.u32 %v1545, 7
    %v1547 = vsub.s32 0, %v1546
    %v1548 = vrot.slane %v90, %v1547
    %v1549 = vlaneseq
    %v1550 = vshrl.u32 %v1549, 7
    %v1551 = vsub.s32 0, %v1550
    %v1552 = vrot.slane %v91, %v1551
    %v1553 = vlaneseq
    %v1554 = vshrl.u32 %v1553, 7
    %v1555 = vsub.s32 0, %v1554
    %v1556 = vrot.slane %v92, %v1555
    %v1557 = vlaneseq
    %v1558 = vshrl.u32 %v1557, 7
    %v1559 = vsub.s32 0, %v1558
    %v1560 = vrot.slane %v93, %v1559
    %v1561 = vlaneseq
    %v1562 = vshrl.u32 %v1561, 7
    %v1563 = vsub.s32 0, %v1562
    %v1564 = vrot.slane %v94, %v1563
    %v1565 = vlaneseq
    %v1566 = vshrl.u32 %v1565, 7
    %v1567 = vsub.s32 0, %v1566
    %v1568 = vrot.slane %v95, %v1567
    %v1578 = vsel %vm309, %v80, 0
    %1580 = vmatprep.subr.mxu0 0.0
    %1581 = vmatpush1.xpose.msra.mxu0 %v1578
    %1582 = vmatprep.subr.mxu0 0.0
    %1583 = vmatpush1.xpose.msra.mxu0 0.0
    %1584 = vmatprep.subr.mxu0 0.0
    %1585 = vmatpush1.xpose.msra.mxu0 0.0
    %1586 = vmatprep.subr.mxu0 0.0
    %1587 = vmatpush1.xpose.msra.mxu0 0.0
    %1588 = vmatprep.subr.mxu0 0.0
    %1589 = vmatpush1.xpose.msra.mxu0 0.0
    %1590 = vmatprep.subr.mxu0 0.0
    %1591 = vmatpush1.xpose.msra.mxu0 0.0
    %1592 = vmatprep.subr.mxu0 0.0
    %1593 = vmatpush1.xpose.msra.mxu0 0.0
    %1594 = vmatprep.subr.mxu0 0.0
    %1595 = vmatpush1.xpose.msra.mxu0 0.0
    %1596 = vmatprep.subr.mxu0 0.0
    %1597 = vmatpush1.xpose.msra.mxu0 0.0
    %1598 = vmatprep.subr.mxu0 0.0
    %1599 = vmatpush1.xpose.msra.mxu0 0.0
    %1600 = vmatprep.subr.mxu0 0.0
    %1601 = vmatpush1.xpose.msra.mxu0 0.0
    %1602 = vmatprep.subr.mxu0 0.0
    %1603 = vmatpush1.xpose.msra.mxu0 0.0
    %1604 = vmatprep.subr.mxu0 0.0
    %1605 = vmatpush1.xpose.msra.mxu0 0.0
    %1606 = vmatprep.subr.mxu0 0.0
    %1607 = vmatpush1.xpose.msra.mxu0 0.0
    %1608 = vmatprep.subr.mxu0 0.0
    %1609 = vmatpush1.xpose.msra.mxu0 0.0
    %1610 = vmatprep.subr.mxu0 0.0
    %1611 = vmatpush1.xpose.msra.mxu0 0.0
    %1612 = vmatprep.subr.mxu0 0.0
    %1613 = vmatpush1.xpose.msra.mxu0 0.0
    %1614 = vmatprep.subr.mxu0 0.0
    %1615 = vmatpush1.xpose.msra.mxu0 0.0
    %1616 = vmatprep.subr.mxu0 0.0
    %1617 = vmatpush1.xpose.msra.mxu0 0.0
    %1618 = vmatprep.subr.mxu0 0.0
    %1619 = vmatpush1.xpose.msra.mxu0 0.0
    %1620 = vmatprep.subr.mxu0 0.0
    %1621 = vmatpush1.xpose.msra.mxu0 0.0
    %1622 = vmatprep.subr.mxu0 0.0
    %1623 = vmatpush1.xpose.msra.mxu0 0.0
    %1624 = vmatprep.subr.mxu0 0.0
    %1625 = vmatpush1.xpose.msra.mxu0 0.0
    %1626 = vmatprep.subr.mxu0 0.0
    %1627 = vmatpush1.xpose.msra.mxu0 0.0
    %1628 = vmatprep.subr.mxu0 0.0
    %1629 = vmatpush1.xpose.msra.mxu0 0.0
    %1630 = vmatprep.subr.mxu0 0.0
    %1631 = vmatpush1.xpose.msra.mxu0 0.0
    %1632 = vmatprep.subr.mxu0 0.0
    %1633 = vmatpush1.xpose.msra.mxu0 0.0
    %1634 = vmatprep.subr.mxu0 0.0
    %1635 = vmatpush1.xpose.msra.mxu0 0.0
    %1636 = vmatprep.subr.mxu0 0.0
    %1637 = vmatpush1.xpose.msra.mxu0 0.0
    %1638 = vmatprep.subr.mxu0 0.0
    %1639 = vmatpush1.xpose.msra.mxu0 0.0
    %1640 = vmatprep.subr.mxu0 0.0
    %1641 = vmatpush1.xpose.msra.mxu0 0.0
    %1642 = vmatprep.subr.mxu0 0.0
    %1643 = vmatpush1.xpose.msra.mxu0 0.0
    %1644 = vmatprep.mubr.f32.mxu0 0.0
    %1645 = vmatmul.mubr.f32.gmra.mrb[0].mxu0 %v311
    %v1646 = vpop.f32.mrb[0].mxu0
    %v1647 = vadd.f32 %v1540, %v1646
    %v1648 = vpop.f32.mrb[0].mxu0
    %1649 = vdwg.mxu0
    %v1651 = vsel %vm309, %v81, 0
    %1653 = vmatprep.subr.mxu0 0.0
    %1654 = vmatpush1.xpose.msra.mxu0 %v1651
    %1655 = vmatprep.subr.mxu0 0.0
    %1656 = vmatpush1.xpose.msra.mxu0 0.0
    %1657 = vmatprep.subr.mxu0 0.0
    %1658 = vmatpush1.xpose.msra.mxu0 0.0
    %1659 = vmatprep.subr.mxu0 0.0
    %1660 = vmatpush1.xpose.msra.mxu0 0.0
    %1661 = vmatprep.subr.mxu0 0.0
    %1662 = vmatpush1.xpose.msra.mxu0 0.0
    %1663 = vmatprep.subr.mxu0 0.0
    %1664 = vmatpush1.xpose.msra.mxu0 0.0
    %1665 = vmatprep.subr.mxu0 0.0
    %1666 = vmatpush1.xpose.msra.mxu0 0.0
    %1667 = vmatprep.subr.mxu0 0.0
    %1668 = vmatpush1.xpose.msra.mxu0 0.0
    %1669 = vmatprep.subr.mxu0 0.0
    %1670 = vmatpush1.xpose.msra.mxu0 0.0
    %1671 = vmatprep.subr.mxu0 0.0
    %1672 = vmatpush1.xpose.msra.mxu0 0.0
    %1673 = vmatprep.subr.mxu0 0.0
    %1674 = vmatpush1.xpose.msra.mxu0 0.0
    %1675 = vmatprep.subr.mxu0 0.0
    %1676 = vmatpush1.xpose.msra.mxu0 0.0
    %1677 = vmatprep.subr.mxu0 0.0
    %1678 = vmatpush1.xpose.msra.mxu0 0.0
    %1679 = vmatprep.subr.mxu0 0.0
    %1680 = vmatpush1.xpose.msra.mxu0 0.0
    %1681 = vmatprep.subr.mxu0 0.0
    %1682 = vmatpush1.xpose.msra.mxu0 0.0
    %1683 = vmatprep.subr.mxu0 0.0
    %1684 = vmatpush1.xpose.msra.mxu0 0.0
    %1685 = vmatprep.subr.mxu0 0.0
    %1686 = vmatpush1.xpose.msra.mxu0 0.0
    %1687 = vmatprep.subr.mxu0 0.0
    %1688 = vmatpush1.xpose.msra.mxu0 0.0
    %1689 = vmatprep.subr.mxu0 0.0
    %1690 = vmatpush1.xpose.msra.mxu0 0.0
    %1691 = vmatprep.subr.mxu0 0.0
    %1692 = vmatpush1.xpose.msra.mxu0 0.0
    %1693 = vmatprep.subr.mxu0 0.0
    %1694 = vmatpush1.xpose.msra.mxu0 0.0
    %1695 = vmatprep.subr.mxu0 0.0
    %1696 = vmatpush1.xpose.msra.mxu0 0.0
    %1697 = vmatprep.subr.mxu0 0.0
    %1698 = vmatpush1.xpose.msra.mxu0 0.0
    %1699 = vmatprep.subr.mxu0 0.0
    %1700 = vmatpush1.xpose.msra.mxu0 0.0
    %1701 = vmatprep.subr.mxu0 0.0
    %1702 = vmatpush1.xpose.msra.mxu0 0.0
    %1703 = vmatprep.subr.mxu0 0.0
    %1704 = vmatpush1.xpose.msra.mxu0 0.0
    %1705 = vmatprep.subr.mxu0 0.0
    %1706 = vmatpush1.xpose.msra.mxu0 0.0
    %1707 = vmatprep.subr.mxu0 0.0
    %1708 = vmatpush1.xpose.msra.mxu0 0.0
    %1709 = vmatprep.subr.mxu0 0.0
    %1710 = vmatpush1.xpose.msra.mxu0 0.0
    %1711 = vmatprep.subr.mxu0 0.0
    %1712 = vmatpush1.xpose.msra.mxu0 0.0
    %1713 = vmatprep.subr.mxu0 0.0
    %1714 = vmatpush1.xpose.msra.mxu0 0.0
    %1715 = vmatprep.subr.mxu0 0.0
    %1716 = vmatpush1.xpose.msra.mxu0 0.0
    %1717 = vmatprep.mubr.f32.mxu0 0.0
    %1718 = vmatmul.mubr.f32.gmra.mrb[0].mxu0 %v311
    %v1719 = vpop.f32.mrb[0].mxu0
    %v1720 = vadd.f32 %v1544, %v1719
    %v1721 = vpop.f32.mrb[0].mxu0
    %1722 = vdwg.mxu0
    %v1724 = vsel %vm309, %v82, 0
    %1726 = vmatprep.subr.mxu0 0.0
    %1727 = vmatpush1.xpose.msra.mxu0 %v1724
    %1728 = vmatprep.subr.mxu0 0.0
    %1729 = vmatpush1.xpose.msra.mxu0 0.0
    %1730 = vmatprep.subr.mxu0 0.0
    %1731 = vmatpush1.xpose.msra.mxu0 0.0
    %1732 = vmatprep.subr.mxu0 0.0
    %1733 = vmatpush1.xpose.msra.mxu0 0.0
    %1734 = vmatprep.subr.mxu0 0.0
    %1735 = vmatpush1.xpose.msra.mxu0 0.0
    %1736 = vmatprep.subr.mxu0 0.0
    %1737 = vmatpush1.xpose.msra.mxu0 0.0
    %1738 = vmatprep.subr.mxu0 0.0
    %1739 = vmatpush1.xpose.msra.mxu0 0.0
    %1740 = vmatprep.subr.mxu0 0.0
    %1741 = vmatpush1.xpose.msra.mxu0 0.0
    %1742 = vmatprep.subr.mxu0 0.0
    %1743 = vmatpush1.xpose.msra.mxu0 0.0
    %1744 = vmatprep.subr.mxu0 0.0
    %1745 = vmatpush1.xpose.msra.mxu0 0.0
    %1746 = vmatprep.subr.mxu0 0.0
    %1747 = vmatpush1.xpose.msra.mxu0 0.0
    %1748 = vmatprep.subr.mxu0 0.0
    %1749 = vmatpush1.xpose.msra.mxu0 0.0
    %1750 = vmatprep.subr.mxu0 0.0
    %1751 = vmatpush1.xpose.msra.mxu0 0.0
    %1752 = vmatprep.subr.mxu0 0.0
    %1753 = vmatpush1.xpose.msra.mxu0 0.0
    %1754 = vmatprep.subr.mxu0 0.0
    %1755 = vmatpush1.xpose.msra.mxu0 0.0
    %1756 = vmatprep.subr.mxu0 0.0
    %1757 = vmatpush1.xpose.msra.mxu0 0.0
    %1758 = vmatprep.subr.mxu0 0.0
    %1759 = vmatpush1.xpose.msra.mxu0 0.0
    %1760 = vmatprep.subr.mxu0 0.0
    %1761 = vmatpush1.xpose.msra.mxu0 0.0
    %1762 = vmatprep.subr.mxu0 0.0
    %1763 = vmatpush1.xpose.msra.mxu0 0.0
    %1764 = vmatprep.subr.mxu0 0.0
    %1765 = vmatpush1.xpose.msra.mxu0 0.0
    %1766 = vmatprep.subr.mxu0 0.0
    %1767 = vmatpush1.xpose.msra.mxu0 0.0
    %1768 = vmatprep.subr.mxu0 0.0
    %1769 = vmatpush1.xpose.msra.mxu0 0.0
    %1770 = vmatprep.subr.mxu0 0.0
    %1771 = vmatpush1.xpose.msra.mxu0 0.0
    %1772 = vmatprep.subr.mxu0 0.0
    %1773 = vmatpush1.xpose.msra.mxu0 0.0
    %1774 = vmatprep.subr.mxu0 0.0
    %1775 = vmatpush1.xpose.msra.mxu0 0.0
    %1776 = vmatprep.subr.mxu0 0.0
    %1777 = vmatpush1.xpose.msra.mxu0 0.0
    %1778 = vmatprep.subr.mxu0 0.0
    %1779 = vmatpush1.xpose.msra.mxu0 0.0
    %1780 = vmatprep.subr.mxu0 0.0
    %1781 = vmatpush1.xpose.msra.mxu0 0.0
    %1782 = vmatprep.subr.mxu0 0.0
    %1783 = vmatpush1.xpose.msra.mxu0 0.0
    %1784 = vmatprep.subr.mxu0 0.0
    %1785 = vmatpush1.xpose.msra.mxu0 0.0
    %1786 = vmatprep.subr.mxu0 0.0
    %1787 = vmatpush1.xpose.msra.mxu0 0.0
    %1788 = vmatprep.subr.mxu0 0.0
    %1789 = vmatpush1.xpose.msra.mxu0 0.0
    %1790 = vmatprep.mubr.f32.mxu0 0.0
    %1791 = vmatmul.mubr.f32.gmra.mrb[0].mxu0 %v311
    %v1792 = vpop.f32.mrb[0].mxu0
    %v1793 = vadd.f32 %v1548, %v1792
    %v1794 = vpop.f32.mrb[0].mxu0
    %1795 = vdwg.mxu0
    %v1797 = vsel %vm309, %v83, 0
    %1799 = vmatprep.subr.mxu0 0.0
    %1800 = vmatpush1.xpose.msra.mxu0 %v1797
    %1801 = vmatprep.subr.mxu0 0.0
    %1802 = vmatpush1.xpose.msra.mxu0 0.0
    %1803 = vmatprep.subr.mxu0 0.0
    %1804 = vmatpush1.xpose.msra.mxu0 0.0
    %1805 = vmatprep.subr.mxu0 0.0
    %1806 = vmatpush1.xpose.msra.mxu0 0.0
    %1807 = vmatprep.subr.mxu0 0.0
    %1808 = vmatpush1.xpose.msra.mxu0 0.0
    %1809 = vmatprep.subr.mxu0 0.0
    %1810 = vmatpush1.xpose.msra.mxu0 0.0
    %1811 = vmatprep.subr.mxu0 0.0
    %1812 = vmatpush1.xpose.msra.mxu0 0.0
    %1813 = vmatprep.subr.mxu0 0.0
    %1814 = vmatpush1.xpose.msra.mxu0 0.0
    %1815 = vmatprep.subr.mxu0 0.0
    %1816 = vmatpush1.xpose.msra.mxu0 0.0
    %1817 = vmatprep.subr.mxu0 0.0
    %1818 = vmatpush1.xpose.msra.mxu0 0.0
    %1819 = vmatprep.subr.mxu0 0.0
    %1820 = vmatpush1.xpose.msra.mxu0 0.0
    %1821 = vmatprep.subr.mxu0 0.0
    %1822 = vmatpush1.xpose.msra.mxu0 0.0
    %1823 = vmatprep.subr.mxu0 0.0
    %1824 = vmatpush1.xpose.msra.mxu0 0.0
    %1825 = vmatprep.subr.mxu0 0.0
    %1826 = vmatpush1.xpose.msra.mxu0 0.0
    %1827 = vmatprep.subr.mxu0 0.0
    %1828 = vmatpush1.xpose.msra.mxu0 0.0
    %1829 = vmatprep.subr.mxu0 0.0
    %1830 = vmatpush1.xpose.msra.mxu0 0.0
    %1831 = vmatprep.subr.mxu0 0.0
    %1832 = vmatpush1.xpose.msra.mxu0 0.0
    %1833 = vmatprep.subr.mxu0 0.0
    %1834 = vmatpush1.xpose.msra.mxu0 0.0
    %1835 = vmatprep.subr.mxu0 0.0
    %1836 = vmatpush1.xpose.msra.mxu0 0.0
    %1837 = vmatprep.subr.mxu0 0.0
    %1838 = vmatpush1.xpose.msra.mxu0 0.0
    %1839 = vmatprep.subr.mxu0 0.0
    %1840 = vmatpush1.xpose.msra.mxu0 0.0
    %1841 = vmatprep.subr.mxu0 0.0
    %1842 = vmatpush1.xpose.msra.mxu0 0.0
    %1843 = vmatprep.subr.mxu0 0.0
    %1844 = vmatpush1.xpose.msra.mxu0 0.0
    %1845 = vmatprep.subr.mxu0 0.0
    %1846 = vmatpush1.xpose.msra.mxu0 0.0
    %1847 = vmatprep.subr.mxu0 0.0
    %1848 = vmatpush1.xpose.msra.mxu0 0.0
    %1849 = vmatprep.subr.mxu0 0.0
    %1850 = vmatpush1.xpose.msra.mxu0 0.0
    %1851 = vmatprep.subr.mxu0 0.0
    %1852 = vmatpush1.xpose.msra.mxu0 0.0
    %1853 = vmatprep.subr.mxu0 0.0
    %1854 = vmatpush1.xpose.msra.mxu0 0.0
    %1855 = vmatprep.subr.mxu0 0.0
    %1856 = vmatpush1.xpose.msra.mxu0 0.0
    %1857 = vmatprep.subr.mxu0 0.0
    %1858 = vmatpush1.xpose.msra.mxu0 0.0
    %1859 = vmatprep.subr.mxu0 0.0
    %1860 = vmatpush1.xpose.msra.mxu0 0.0
    %1861 = vmatprep.subr.mxu0 0.0
    %1862 = vmatpush1.xpose.msra.mxu0 0.0
    %1863 = vmatprep.mubr.f32.mxu0 0.0
    %1864 = vmatmul.mubr.f32.gmra.mrb[0].mxu0 %v311
    %v1865 = vpop.f32.mrb[0].mxu0
    %v1866 = vadd.f32 %v1552, %v1865
    %v1867 = vpop.f32.mrb[0].mxu0
    %1868 = vdwg.mxu0
    %v1870 = vsel %vm309, %v84, 0
    %1872 = vmatprep.subr.mxu0 0.0
    %1873 = vmatpush1.xpose.msra.mxu0 %v1870
    %1874 = vmatprep.subr.mxu0 0.0
    %1875 = vmatpush1.xpose.msra.mxu0 0.0
    %1876 = vmatprep.subr.mxu0 0.0
    %1877 = vmatpush1.xpose.msra.mxu0 0.0
    %1878 = vmatprep.subr.mxu0 0.0
    %1879 = vmatpush1.xpose.msra.mxu0 0.0
    %1880 = vmatprep.subr.mxu0 0.0
    %1881 = vmatpush1.xpose.msra.mxu0 0.0
    %1882 = vmatprep.subr.mxu0 0.0
    %1883 = vmatpush1.xpose.msra.mxu0 0.0
    %1884 = vmatprep.subr.mxu0 0.0
    %1885 = vmatpush1.xpose.msra.mxu0 0.0
    %1886 = vmatprep.subr.mxu0 0.0
    %1887 = vmatpush1.xpose.msra.mxu0 0.0
    %1888 = vmatprep.subr.mxu0 0.0
    %1889 = vmatpush1.xpose.msra.mxu0 0.0
    %1890 = vmatprep.subr.mxu0 0.0
    %1891 = vmatpush1.xpose.msra.mxu0 0.0
    %1892 = vmatprep.subr.mxu0 0.0
    %1893 = vmatpush1.xpose.msra.mxu0 0.0
    %1894 = vmatprep.subr.mxu0 0.0
    %1895 = vmatpush1.xpose.msra.mxu0 0.0
    %1896 = vmatprep.subr.mxu0 0.0
    %1897 = vmatpush1.xpose.msra.mxu0 0.0
    %1898 = vmatprep.subr.mxu0 0.0
    %1899 = vmatpush1.xpose.msra.mxu0 0.0
    %1900 = vmatprep.subr.mxu0 0.0
    %1901 = vmatpush1.xpose.msra.mxu0 0.0
    %1902 = vmatprep.subr.mxu0 0.0
    %1903 = vmatpush1.xpose.msra.mxu0 0.0
    %1904 = vmatprep.subr.mxu0 0.0
    %1905 = vmatpush1.xpose.msra.mxu0 0.0
    %1906 = vmatprep.subr.mxu0 0.0
    %1907 = vmatpush1.xpose.msra.mxu0 0.0
    %1908 = vmatprep.subr.mxu0 0.0
    %1909 = vmatpush1.xpose.msra.mxu0 0.0
    %1910 = vmatprep.subr.mxu0 0.0
    %1911 = vmatpush1.xpose.msra.mxu0 0.0
    %1912 = vmatprep.subr.mxu0 0.0
    %1913 = vmatpush1.xpose.msra.mxu0 0.0
    %1914 = vmatprep.subr.mxu0 0.0
    %1915 = vmatpush1.xpose.msra.mxu0 0.0
    %1916 = vmatprep.subr.mxu0 0.0
    %1917 = vmatpush1.xpose.msra.mxu0 0.0
    %1918 = vmatprep.subr.mxu0 0.0
    %1919 = vmatpush1.xpose.msra.mxu0 0.0
    %1920 = vmatprep.subr.mxu0 0.0
    %1921 = vmatpush1.xpose.msra.mxu0 0.0
    %1922 = vmatprep.subr.mxu0 0.0
    %1923 = vmatpush1.xpose.msra.mxu0 0.0
    %1924 = vmatprep.subr.mxu0 0.0
    %1925 = vmatpush1.xpose.msra.mxu0 0.0
    %1926 = vmatprep.subr.mxu0 0.0
    %1927 = vmatpush1.xpose.msra.mxu0 0.0
    %1928 = vmatprep.subr.mxu0 0.0
    %1929 = vmatpush1.xpose.msra.mxu0 0.0
    %1930 = vmatprep.subr.mxu0 0.0
    %1931 = vmatpush1.xpose.msra.mxu0 0.0
    %1932 = vmatprep.subr.mxu0 0.0
    %1933 = vmatpush1.xpose.msra.mxu0 0.0
    %1934 = vmatprep.subr.mxu0 0.0
    %1935 = vmatpush1.xpose.msra.mxu0 0.0
    %1936 = vmatprep.mubr.f32.mxu0 0.0
    %1937 = vmatmul.mubr.f32.gmra.mrb[0].mxu0 %v311
    %v1938 = vpop.f32.mrb[0].mxu0
    %v1939 = vadd.f32 %v1556, %v1938
    %v1940 = vpop.f32.mrb[0].mxu0
    %1941 = vdwg.mxu0
    %v1943 = vsel %vm309, %v85, 0
    %1945 = vmatprep.subr.mxu0 0.0
    %1946 = vmatpush1.xpose.msra.mxu0 %v1943
    %1947 = vmatprep.subr.mxu0 0.0
    %1948 = vmatpush1.xpose.msra.mxu0 0.0
    %1949 = vmatprep.subr.mxu0 0.0
    %1950 = vmatpush1.xpose.msra.mxu0 0.0
    %1951 = vmatprep.subr.mxu0 0.0
    %1952 = vmatpush1.xpose.msra.mxu0 0.0
    %1953 = vmatprep.subr.mxu0 0.0
    %1954 = vmatpush1.xpose.msra.mxu0 0.0
    %1955 = vmatprep.subr.mxu0 0.0
    %1956 = vmatpush1.xpose.msra.mxu0 0.0
    %1957 = vmatprep.subr.mxu0 0.0
    %1958 = vmatpush1.xpose.msra.mxu0 0.0
    %1959 = vmatprep.subr.mxu0 0.0
    %1960 = vmatpush1.xpose.msra.mxu0 0.0
    %1961 = vmatprep.subr.mxu0 0.0
    %1962 = vmatpush1.xpose.msra.mxu0 0.0
    %1963 = vmatprep.subr.mxu0 0.0
    %1964 = vmatpush1.xpose.msra.mxu0 0.0
    %1965 = vmatprep.subr.mxu0 0.0
    %1966 = vmatpush1.xpose.msra.mxu0 0.0
    %1967 = vmatprep.subr.mxu0 0.0
    %1968 = vmatpush1.xpose.msra.mxu0 0.0
    %1969 = vmatprep.subr.mxu0 0.0
    %1970 = vmatpush1.xpose.msra.mxu0 0.0
    %1971 = vmatprep.subr.mxu0 0.0
    %1972 = vmatpush1.xpose.msra.mxu0 0.0
    %1973 = vmatprep.subr.mxu0 0.0
    %1974 = vmatpush1.xpose.msra.mxu0 0.0
    %1975 = vmatprep.subr.mxu0 0.0
    %1976 = vmatpush1.xpose.msra.mxu0 0.0
    %1977 = vmatprep.subr.mxu0 0.0
    %1978 = vmatpush1.xpose.msra.mxu0 0.0
    %1979 = vmatprep.subr.mxu0 0.0
    %1980 = vmatpush1.xpose.msra.mxu0 0.0
    %1981 = vmatprep.subr.mxu0 0.0
    %1982 = vmatpush1.xpose.msra.mxu0 0.0
    %1983 = vmatprep.subr.mxu0 0.0
    %1984 = vmatpush1.xpose.msra.mxu0 0.0
    %1985 = vmatprep.subr.mxu0 0.0
    %1986 = vmatpush1.xpose.msra.mxu0 0.0
    %1987 = vmatprep.subr.mxu0 0.0
    %1988 = vmatpush1.xpose.msra.mxu0 0.0
    %1989 = vmatprep.subr.mxu0 0.0
    %1990 = vmatpush1.xpose.msra.mxu0 0.0
    %1991 = vmatprep.subr.mxu0 0.0
    %1992 = vmatpush1.xpose.msra.mxu0 0.0
    %1993 = vmatprep.subr.mxu0 0.0
    %1994 = vmatpush1.xpose.msra.mxu0 0.0
    %1995 = vmatprep.subr.mxu0 0.0
    %1996 = vmatpush1.xpose.msra.mxu0 0.0
    %1997 = vmatprep.subr.mxu0 0.0
    %1998 = vmatpush1.xpose.msra.mxu0 0.0
    %1999 = vmatprep.subr.mxu0 0.0
    %2000 = vmatpush1.xpose.msra.mxu0 0.0
    %2001 = vmatprep.subr.mxu0 0.0
    %2002 = vmatpush1.xpose.msra.mxu0 0.0
    %2003 = vmatprep.subr.mxu0 0.0
    %2004 = vmatpush1.xpose.msra.mxu0 0.0
    %2005 = vmatprep.subr.mxu0 0.0
    %2006 = vmatpush1.xpose.msra.mxu0 0.0
    %2007 = vmatprep.subr.mxu0 0.0
    %2008 = vmatpush1.xpose.msra.mxu0 0.0
    %2009 = vmatprep.mubr.f32.mxu0 0.0
    %2010 = vmatmul.mubr.f32.gmra.mrb[0].mxu0 %v311
    %v2011 = vpop.f32.mrb[0].mxu0
    %v2012 = vadd.f32 %v1560, %v2011
    %v2013 = vpop.f32.mrb[0].mxu0
    %2014 = vdwg.mxu0
    %v2016 = vsel %vm309, %v86, 0
    %2018 = vmatprep.subr.mxu0 0.0
    %2019 = vmatpush1.xpose.msra.mxu0 %v2016
    %2020 = vmatprep.subr.mxu0 0.0
    %2021 = vmatpush1.xpose.msra.mxu0 0.0
    %2022 = vmatprep.subr.mxu0 0.0
    %2023 = vmatpush1.xpose.msra.mxu0 0.0
    %2024 = vmatprep.subr.mxu0 0.0
    %2025 = vmatpush1.xpose.msra.mxu0 0.0
    %2026 = vmatprep.subr.mxu0 0.0
    %2027 = vmatpush1.xpose.msra.mxu0 0.0
    %2028 = vmatprep.subr.mxu0 0.0
    %2029 = vmatpush1.xpose.msra.mxu0 0.0
    %2030 = vmatprep.subr.mxu0 0.0
    %2031 = vmatpush1.xpose.msra.mxu0 0.0
    %2032 = vmatprep.subr.mxu0 0.0
    %2033 = vmatpush1.xpose.msra.mxu0 0.0
    %2034 = vmatprep.subr.mxu0 0.0
    %2035 = vmatpush1.xpose.msra.mxu0 0.0
    %2036 = vmatprep.subr.mxu0 0.0
    %2037 = vmatpush1.xpose.msra.mxu0 0.0
    %2038 = vmatprep.subr.mxu0 0.0
    %2039 = vmatpush1.xpose.msra.mxu0 0.0
    %2040 = vmatprep.subr.mxu0 0.0
    %2041 = vmatpush1.xpose.msra.mxu0 0.0
    %2042 = vmatprep.subr.mxu0 0.0
    %2043 = vmatpush1.xpose.msra.mxu0 0.0
    %2044 = vmatprep.subr.mxu0 0.0
    %2045 = vmatpush1.xpose.msra.mxu0 0.0
    %2046 = vmatprep.subr.mxu0 0.0
    %2047 = vmatpush1.xpose.msra.mxu0 0.0
    %2048 = vmatprep.subr.mxu0 0.0
    %2049 = vmatpush1.xpose.msra.mxu0 0.0
    %2050 = vmatprep.subr.mxu0 0.0
    %2051 = vmatpush1.xpose.msra.mxu0 0.0
    %2052 = vmatprep.subr.mxu0 0.0
    %2053 = vmatpush1.xpose.msra.mxu0 0.0
    %2054 = vmatprep.subr.mxu0 0.0
    %2055 = vmatpush1.xpose.msra.mxu0 0.0
    %2056 = vmatprep.subr.mxu0 0.0
    %2057 = vmatpush1.xpose.msra.mxu0 0.0
    %2058 = vmatprep.subr.mxu0 0.0
    %2059 = vmatpush1.xpose.msra.mxu0 0.0
    %2060 = vmatprep.subr.mxu0 0.0
    %2061 = vmatpush1.xpose.msra.mxu0 0.0
    %2062 = vmatprep.subr.mxu0 0.0
    %2063 = vmatpush1.xpose.msra.mxu0 0.0
    %2064 = vmatprep.subr.mxu0 0.0
    %2065 = vmatpush1.xpose.msra.mxu0 0.0
    %2066 = vmatprep.subr.mxu0 0.0
    %2067 = vmatpush1.xpose.msra.mxu0 0.0
    %2068 = vmatprep.subr.mxu0 0.0
    %2069 = vmatpush1.xpose.msra.mxu0 0.0
    %2070 = vmatprep.subr.mxu0 0.0
    %2071 = vmatpush1.xpose.msra.mxu0 0.0
    %2072 = vmatprep.subr.mxu0 0.0
    %2073 = vmatpush1.xpose.msra.mxu0 0.0
    %2074 = vmatprep.subr.mxu0 0.0
    %2075 = vmatpush1.xpose.msra.mxu0 0.0
    %2076 = vmatprep.subr.mxu0 0.0
    %2077 = vmatpush1.xpose.msra.mxu0 0.0
    %2078 = vmatprep.subr.mxu0 0.0
    %2079 = vmatpush1.xpose.msra.mxu0 0.0
    %2080 = vmatprep.subr.mxu0 0.0
    %2081 = vmatpush1.xpose.msra.mxu0 0.0
    %2082 = vmatprep.mubr.f32.mxu0 0.0
    %2083 = vmatmul.mubr.f32.gmra.mrb[0].mxu0 %v311
    %v2084 = vpop.f32.mrb[0].mxu0
    %v2085 = vadd.f32 %v1564, %v2084
    %v2086 = vpop.f32.mrb[0].mxu0
    %2087 = vdwg.mxu0
    %v2089 = vsel %vm309, %v87, 0
    %2091 = vmatprep.subr.mxu0 0.0
    %2092 = vmatpush1.xpose.msra.mxu0 %v2089
    %2093 = vmatprep.subr.mxu0 0.0
    %2094 = vmatpush1.xpose.msra.mxu0 0.0
    %2095 = vmatprep.subr.mxu0 0.0
    %2096 = vmatpush1.xpose.msra.mxu0 0.0
    %2097 = vmatprep.subr.mxu0 0.0
    %2098 = vmatpush1.xpose.msra.mxu0 0.0
    %2099 = vmatprep.subr.mxu0 0.0
    %2100 = vmatpush1.xpose.msra.mxu0 0.0
    %2101 = vmatprep.subr.mxu0 0.0
    %2102 = vmatpush1.xpose.msra.mxu0 0.0
    %2103 = vmatprep.subr.mxu0 0.0
    %2104 = vmatpush1.xpose.msra.mxu0 0.0
    %2105 = vmatprep.subr.mxu0 0.0
    %2106 = vmatpush1.xpose.msra.mxu0 0.0
    %2107 = vmatprep.subr.mxu0 0.0
    %2108 = vmatpush1.xpose.msra.mxu0 0.0
    %2109 = vmatprep.subr.mxu0 0.0
    %2110 = vmatpush1.xpose.msra.mxu0 0.0
    %2111 = vmatprep.subr.mxu0 0.0
    %2112 = vmatpush1.xpose.msra.mxu0 0.0
    %2113 = vmatprep.subr.mxu0 0.0
    %2114 = vmatpush1.xpose.msra.mxu0 0.0
    %2115 = vmatprep.subr.mxu0 0.0
    %2116 = vmatpush1.xpose.msra.mxu0 0.0
    %2117 = vmatprep.subr.mxu0 0.0
    %2118 = vmatpush1.xpose.msra.mxu0 0.0
    %2119 = vmatprep.subr.mxu0 0.0
    %2120 = vmatpush1.xpose.msra.mxu0 0.0
    %2121 = vmatprep.subr.mxu0 0.0
    %2122 = vmatpush1.xpose.msra.mxu0 0.0
    %2123 = vmatprep.subr.mxu0 0.0
    %2124 = vmatpush1.xpose.msra.mxu0 0.0
    %2125 = vmatprep.subr.mxu0 0.0
    %2126 = vmatpush1.xpose.msra.mxu0 0.0
    %2127 = vmatprep.subr.mxu0 0.0
    %2128 = vmatpush1.xpose.msra.mxu0 0.0
    %2129 = vmatprep.subr.mxu0 0.0
    %2130 = vmatpush1.xpose.msra.mxu0 0.0
    %2131 = vmatprep.subr.mxu0 0.0
    %2132 = vmatpush1.xpose.msra.mxu0 0.0
    %2133 = vmatprep.subr.mxu0 0.0
    %2134 = vmatpush1.xpose.msra.mxu0 0.0
    %2135 = vmatprep.subr.mxu0 0.0
    %2136 = vmatpush1.xpose.msra.mxu0 0.0
    %2137 = vmatprep.subr.mxu0 0.0
    %2138 = vmatpush1.xpose.msra.mxu0 0.0
    %2139 = vmatprep.subr.mxu0 0.0
    %2140 = vmatpush1.xpose.msra.mxu0 0.0
    %2141 = vmatprep.subr.mxu0 0.0
    %2142 = vmatpush1.xpose.msra.mxu0 0.0
    %2143 = vmatprep.subr.mxu0 0.0
    %2144 = vmatpush1.xpose.msra.mxu0 0.0
    %2145 = vmatprep.subr.mxu0 0.0
    %2146 = vmatpush1.xpose.msra.mxu0 0.0
    %2147 = vmatprep.subr.mxu0 0.0
    %2148 = vmatpush1.xpose.msra.mxu0 0.0
    %2149 = vmatprep.subr.mxu0 0.0
    %2150 = vmatpush1.xpose.msra.mxu0 0.0
    %2151 = vmatprep.subr.mxu0 0.0
    %2152 = vmatpush1.xpose.msra.mxu0 0.0
    %2153 = vmatprep.subr.mxu0 0.0
    %2154 = vmatpush1.xpose.msra.mxu0 0.0
    %2155 = vmatprep.mubr.f32.mxu0 0.0
    %2156 = vmatmul.mubr.f32.gmra.mrb[0].mxu0 %v311
    %v2157 = vpop.f32.mrb[0].mxu0
    %v2158 = vadd.f32 %v1568, %v2157
    %v2159 = vpop.f32.mrb[0].mxu0
    %2160 = vdwg.mxu0
    %vm2161 = vcmask 31744
    %v2163 = vsel %vm2161, %v383, 0
    %v2166 = vsel %vm2161, %v1015, 0
    %2168 = vmatprep.subr.mxu0 0.0
    %2169 = vmatpush1.xpose.msra.mxu0 %v2166
    %2170 = vmatprep.subr.mxu0 0.0
    %2171 = vmatpush1.xpose.msra.mxu0 0.0
    %2172 = vmatprep.subr.mxu0 0.0
    %2173 = vmatpush1.xpose.msra.mxu0 0.0
    %2174 = vmatprep.subr.mxu0 0.0
    %2175 = vmatpush1.xpose.msra.mxu0 0.0
    %2176 = vmatprep.subr.mxu0 0.0
    %2177 = vmatpush1.xpose.msra.mxu0 0.0
    %2178 = vmatprep.subr.mxu0 0.0
    %2179 = vmatpush1.xpose.msra.mxu0 0.0
    %2180 = vmatprep.subr.mxu0 0.0
    %2181 = vmatpush1.xpose.msra.mxu0 0.0
    %2182 = vmatprep.subr.mxu0 0.0
    %2183 = vmatpush1.xpose.msra.mxu0 0.0
    %2184 = vmatprep.subr.mxu0 0.0
    %2185 = vmatpush1.xpose.msra.mxu0 0.0
    %2186 = vmatprep.subr.mxu0 0.0
    %2187 = vmatpush1.xpose.msra.mxu0 0.0
    %2188 = vmatprep.subr.mxu0 0.0
    %2189 = vmatpush1.xpose.msra.mxu0 0.0
    %2190 = vmatprep.subr.mxu0 0.0
    %2191 = vmatpush1.xpose.msra.mxu0 0.0
    %2192 = vmatprep.subr.mxu0 0.0
    %2193 = vmatpush1.xpose.msra.mxu0 0.0
    %2194 = vmatprep.subr.mxu0 0.0
    %2195 = vmatpush1.xpose.msra.mxu0 0.0
    %2196 = vmatprep.subr.mxu0 0.0
    %2197 = vmatpush1.xpose.msra.mxu0 0.0
    %2198 = vmatprep.subr.mxu0 0.0
    %2199 = vmatpush1.xpose.msra.mxu0 0.0
    %2200 = vmatprep.subr.mxu0 0.0
    %2201 = vmatpush1.xpose.msra.mxu0 0.0
    %2202 = vmatprep.subr.mxu0 0.0
    %2203 = vmatpush1.xpose.msra.mxu0 0.0
    %2204 = vmatprep.subr.mxu0 0.0
    %2205 = vmatpush1.xpose.msra.mxu0 0.0
    %2206 = vmatprep.subr.mxu0 0.0
    %2207 = vmatpush1.xpose.msra.mxu0 0.0
    %2208 = vmatprep.subr.mxu0 0.0
    %2209 = vmatpush1.xpose.msra.mxu0 0.0
    %2210 = vmatprep.subr.mxu0 0.0
    %2211 = vmatpush1.xpose.msra.mxu0 0.0
    %2212 = vmatprep.subr.mxu0 0.0
    %2213 = vmatpush1.xpose.msra.mxu0 0.0
    %2214 = vmatprep.subr.mxu0 0.0
    %2215 = vmatpush1.xpose.msra.mxu0 0.0
    %2216 = vmatprep.subr.mxu0 0.0
    %2217 = vmatpush1.xpose.msra.mxu0 0.0
    %2218 = vmatprep.subr.mxu0 0.0
    %2219 = vmatpush1.xpose.msra.mxu0 0.0
    %2220 = vmatprep.subr.mxu0 0.0
    %2221 = vmatpush1.xpose.msra.mxu0 0.0
    %2222 = vmatprep.subr.mxu0 0.0
    %2223 = vmatpush1.xpose.msra.mxu0 0.0
    %2224 = vmatprep.subr.mxu0 0.0
    %2225 = vmatpush1.xpose.msra.mxu0 0.0
    %2226 = vmatprep.subr.mxu0 0.0
    %2227 = vmatpush1.xpose.msra.mxu0 0.0
    %2228 = vmatprep.subr.mxu0 0.0
    %2229 = vmatpush1.xpose.msra.mxu0 0.0
    %2230 = vmatprep.subr.mxu0 0.0
    %2231 = vmatpush1.xpose.msra.mxu0 0.0
    %2232 = vmatprep.mubr.f32.mxu0 0.0
    %2233 = vmatmul.mubr.f32.gmra.mrb[0].mxu0 %v2163
    %v2234 = vpop.f32.mrb[0].mxu0
    %v2235 = vadd.f32 0.0, %v2234
    %v2236 = vpop.f32.mrb[0].mxu0
    %2237 = vdwg.mxu0
    %v2239 = vsel %vm2161, %v456, 0
    %v2242 = vsel %vm2161, %v1088, 0
    %2244 = vmatprep.subr.mxu0 0.0
    %2245 = vmatpush1.xpose.msra.mxu0 %v2242
    %2246 = vmatprep.subr.mxu0 0.0
    %2247 = vmatpush1.xpose.msra.mxu0 0.0
    %2248 = vmatprep.subr.mxu0 0.0
    %2249 = vmatpush1.xpose.msra.mxu0 0.0
    %2250 = vmatprep.subr.mxu0 0.0
    %2251 = vmatpush1.xpose.msra.mxu0 0.0
    %2252 = vmatprep.subr.mxu0 0.0
    %2253 = vmatpush1.xpose.msra.mxu0 0.0
    %2254 = vmatprep.subr.mxu0 0.0
    %2255 = vmatpush1.xpose.msra.mxu0 0.0
    %2256 = vmatprep.subr.mxu0 0.0
    %2257 = vmatpush1.xpose.msra.mxu0 0.0
    %2258 = vmatprep.subr.mxu0 0.0
    %2259 = vmatpush1.xpose.msra.mxu0 0.0
    %2260 = vmatprep.subr.mxu0 0.0
    %2261 = vmatpush1.xpose.msra.mxu0 0.0
    %2262 = vmatprep.subr.mxu0 0.0
    %2263 = vmatpush1.xpose.msra.mxu0 0.0
    %2264 = vmatprep.subr.mxu0 0.0
    %2265 = vmatpush1.xpose.msra.mxu0 0.0
    %2266 = vmatprep.subr.mxu0 0.0
    %2267 = vmatpush1.xpose.msra.mxu0 0.0
    %2268 = vmatprep.subr.mxu0 0.0
    %2269 = vmatpush1.xpose.msra.mxu0 0.0
    %2270 = vmatprep.subr.mxu0 0.0
    %2271 = vmatpush1.xpose.msra.mxu0 0.0
    %2272 = vmatprep.subr.mxu0 0.0
    %2273 = vmatpush1.xpose.msra.mxu0 0.0
    %2274 = vmatprep.subr.mxu0 0.0
    %2275 = vmatpush1.xpose.msra.mxu0 0.0
    %2276 = vmatprep.subr.mxu0 0.0
    %2277 = vmatpush1.xpose.msra.mxu0 0.0
    %2278 = vmatprep.subr.mxu0 0.0
    %2279 = vmatpush1.xpose.msra.mxu0 0.0
    %2280 = vmatprep.subr.mxu0 0.0
    %2281 = vmatpush1.xpose.msra.mxu0 0.0
    %2282 = vmatprep.subr.mxu0 0.0
    %2283 = vmatpush1.xpose.msra.mxu0 0.0
    %2284 = vmatprep.subr.mxu0 0.0
    %2285 = vmatpush1.xpose.msra.mxu0 0.0
    %2286 = vmatprep.subr.mxu0 0.0
    %2287 = vmatpush1.xpose.msra.mxu0 0.0
    %2288 = vmatprep.subr.mxu0 0.0
    %2289 = vmatpush1.xpose.msra.mxu0 0.0
    %2290 = vmatprep.subr.mxu0 0.0
    %2291 = vmatpush1.xpose.msra.mxu0 0.0
    %2292 = vmatprep.subr.mxu0 0.0
    %2293 = vmatpush1.xpose.msra.mxu0 0.0
    %2294 = vmatprep.subr.mxu0 0.0
    %2295 = vmatpush1.xpose.msra.mxu0 0.0
    %2296 = vmatprep.subr.mxu0 0.0
    %2297 = vmatpush1.xpose.msra.mxu0 0.0
    %2298 = vmatprep.subr.mxu0 0.0
    %2299 = vmatpush1.xpose.msra.mxu0 0.0
    %2300 = vmatprep.subr.mxu0 0.0
    %2301 = vmatpush1.xpose.msra.mxu0 0.0
    %2302 = vmatprep.subr.mxu0 0.0
    %2303 = vmatpush1.xpose.msra.mxu0 0.0
    %2304 = vmatprep.subr.mxu0 0.0
    %2305 = vmatpush1.xpose.msra.mxu0 0.0
    %2306 = vmatprep.subr.mxu0 0.0
    %2307 = vmatpush1.xpose.msra.mxu0 0.0
    %2308 = vmatprep.mubr.f32.mxu0 0.0
    %2309 = vmatmul.mubr.f32.gmra.mrb[0].mxu0 %v2239
    %v2310 = vpop.f32.mrb[0].mxu0
    %v2311 = vadd.f32 0.0, %v2310
    %v2312 = vpop.f32.mrb[0].mxu0
    %2313 = vdwg.mxu0
    %v2315 = vsel %vm2161, %v529, 0
    %v2318 = vsel %vm2161, %v1161, 0
    %2320 = vmatprep.subr.mxu0 0.0
    %2321 = vmatpush1.xpose.msra.mxu0 %v2318
    %2322 = vmatprep.subr.mxu0 0.0
    %2323 = vmatpush1.xpose.msra.mxu0 0.0
    %2324 = vmatprep.subr.mxu0 0.0
    %2325 = vmatpush1.xpose.msra.mxu0 0.0
    %2326 = vmatprep.subr.mxu0 0.0
    %2327 = vmatpush1.xpose.msra.mxu0 0.0
    %2328 = vmatprep.subr.mxu0 0.0
    %2329 = vmatpush1.xpose.msra.mxu0 0.0
    %2330 = vmatprep.subr.mxu0 0.0
    %2331 = vmatpush1.xpose.msra.mxu0 0.0
    %2332 = vmatprep.subr.mxu0 0.0
    %2333 = vmatpush1.xpose.msra.mxu0 0.0
    %2334 = vmatprep.subr.mxu0 0.0
    %2335 = vmatpush1.xpose.msra.mxu0 0.0
    %2336 = vmatprep.subr.mxu0 0.0
    %2337 = vmatpush1.xpose.msra.mxu0 0.0
    %2338 = vmatprep.subr.mxu0 0.0
    %2339 = vmatpush1.xpose.msra.mxu0 0.0
    %2340 = vmatprep.subr.mxu0 0.0
    %2341 = vmatpush1.xpose.msra.mxu0 0.0
    %2342 = vmatprep.subr.mxu0 0.0
    %2343 = vmatpush1.xpose.msra.mxu0 0.0
    %2344 = vmatprep.subr.mxu0 0.0
    %2345 = vmatpush1.xpose.msra.mxu0 0.0
    %2346 = vmatprep.subr.mxu0 0.0
    %2347 = vmatpush1.xpose.msra.mxu0 0.0
    %2348 = vmatprep.subr.mxu0 0.0
    %2349 = vmatpush1.xpose.msra.mxu0 0.0
    %2350 = vmatprep.subr.mxu0 0.0
    %2351 = vmatpush1.xpose.msra.mxu0 0.0
    %2352 = vmatprep.subr.mxu0 0.0
    %2353 = vmatpush1.xpose.msra.mxu0 0.0
    %2354 = vmatprep.subr.mxu0 0.0
    %2355 = vmatpush1.xpose.msra.mxu0 0.0
    %2356 = vmatprep.subr.mxu0 0.0
    %2357 = vmatpush1.xpose.msra.mxu0 0.0
    %2358 = vmatprep.subr.mxu0 0.0
    %2359 = vmatpush1.xpose.msra.mxu0 0.0
    %2360 = vmatprep.subr.mxu0 0.0
    %2361 = vmatpush1.xpose.msra.mxu0 0.0
    %2362 = vmatprep.subr.mxu0 0.0
    %2363 = vmatpush1.xpose.msra.mxu0 0.0
    %2364 = vmatprep.subr.mxu0 0.0
    %2365 = vmatpush1.xpose.msra.mxu0 0.0
    %2366 = vmatprep.subr.mxu0 0.0
    %2367 = vmatpush1.xpose.msra.mxu0 0.0
    %2368 = vmatprep.subr.mxu0 0.0
    %2369 = vmatpush1.xpose.msra.mxu0 0.0
    %2370 = vmatprep.subr.mxu0 0.0
    %2371 = vmatpush1.xpose.msra.mxu0 0.0
    %2372 = vmatprep.subr.mxu0 0.0
    %2373 = vmatpush1.xpose.msra.mxu0 0.0
    %2374 = vmatprep.subr.mxu0 0.0
    %2375 = vmatpush1.xpose.msra.mxu0 0.0
    %2376 = vmatprep.subr.mxu0 0.0
    %2377 = vmatpush1.xpose.msra.mxu0 0.0
    %2378 = vmatprep.subr.mxu0 0.0
    %2379 = vmatpush1.xpose.msra.mxu0 0.0
    %2380 = vmatprep.subr.mxu0 0.0
    %2381 = vmatpush1.xpose.msra.mxu0 0.0
    %2382 = vmatprep.subr.mxu0 0.0
    %2383 = vmatpush1.xpose.msra.mxu0 0.0
    %2384 = vmatprep.mubr.f32.mxu0 0.0
    %2385 = vmatmul.mubr.f32.gmra.mrb[0].mxu0 %v2315
    %v2386 = vpop.f32.mrb[0].mxu0
    %v2387 = vadd.f32 0.0, %v2386
    %v2388 = vpop.f32.mrb[0].mxu0
    %2389 = vdwg.mxu0
    %v2391 = vsel %vm2161, %v602, 0
    %v2394 = vsel %vm2161, %v1234, 0
    %2396 = vmatprep.subr.mxu0 0.0
    %2397 = vmatpush1.xpose.msra.mxu0 %v2394
    %2398 = vmatprep.subr.mxu0 0.0
    %2399 = vmatpush1.xpose.msra.mxu0 0.0
    %2400 = vmatprep.subr.mxu0 0.0
    %2401 = vmatpush1.xpose.msra.mxu0 0.0
    %2402 = vmatprep.subr.mxu0 0.0
    %2403 = vmatpush1.xpose.msra.mxu0 0.0
    %2404 = vmatprep.subr.mxu0 0.0
    %2405 = vmatpush1.xpose.msra.mxu0 0.0
    %2406 = vmatprep.subr.mxu0 0.0
    %2407 = vmatpush1.xpose.msra.mxu0 0.0
    %2408 = vmatprep.subr.mxu0 0.0
    %2409 = vmatpush1.xpose.msra.mxu0 0.0
    %2410 = vmatprep.subr.mxu0 0.0
    %2411 = vmatpush1.xpose.msra.mxu0 0.0
    %2412 = vmatprep.subr.mxu0 0.0
    %2413 = vmatpush1.xpose.msra.mxu0 0.0
    %2414 = vmatprep.subr.mxu0 0.0
    %2415 = vmatpush1.xpose.msra.mxu0 0.0
    %2416 = vmatprep.subr.mxu0 0.0
    %2417 = vmatpush1.xpose.msra.mxu0 0.0
    %2418 = vmatprep.subr.mxu0 0.0
    %2419 = vmatpush1.xpose.msra.mxu0 0.0
    %2420 = vmatprep.subr.mxu0 0.0
    %2421 = vmatpush1.xpose.msra.mxu0 0.0
    %2422 = vmatprep.subr.mxu0 0.0
    %2423 = vmatpush1.xpose.msra.mxu0 0.0
    %2424 = vmatprep.subr.mxu0 0.0
    %2425 = vmatpush1.xpose.msra.mxu0 0.0
    %2426 = vmatprep.subr.mxu0 0.0
    %2427 = vmatpush1.xpose.msra.mxu0 0.0
    %2428 = vmatprep.subr.mxu0 0.0
    %2429 = vmatpush1.xpose.msra.mxu0 0.0
    %2430 = vmatprep.subr.mxu0 0.0
    %2431 = vmatpush1.xpose.msra.mxu0 0.0
    %2432 = vmatprep.subr.mxu0 0.0
    %2433 = vmatpush1.xpose.msra.mxu0 0.0
    %2434 = vmatprep.subr.mxu0 0.0
    %2435 = vmatpush1.xpose.msra.mxu0 0.0
    %2436 = vmatprep.subr.mxu0 0.0
    %2437 = vmatpush1.xpose.msra.mxu0 0.0
    %2438 = vmatprep.subr.mxu0 0.0
    %2439 = vmatpush1.xpose.msra.mxu0 0.0
    %2440 = vmatprep.subr.mxu0 0.0
    %2441 = vmatpush1.xpose.msra.mxu0 0.0
    %2442 = vmatprep.subr.mxu0 0.0
    %2443 = vmatpush1.xpose.msra.mxu0 0.0
    %2444 = vmatprep.subr.mxu0 0.0
    %2445 = vmatpush1.xpose.msra.mxu0 0.0
    %2446 = vmatprep.subr.mxu0 0.0
    %2447 = vmatpush1.xpose.msra.mxu0 0.0
    %2448 = vmatprep.subr.mxu0 0.0
    %2449 = vmatpush1.xpose.msra.mxu0 0.0
    %2450 = vmatprep.subr.mxu0 0.0
    %2451 = vmatpush1.xpose.msra.mxu0 0.0
    %2452 = vmatprep.subr.mxu0 0.0
    %2453 = vmatpush1.xpose.msra.mxu0 0.0
    %2454 = vmatprep.subr.mxu0 0.0
    %2455 = vmatpush1.xpose.msra.mxu0 0.0
    %2456 = vmatprep.subr.mxu0 0.0
    %2457 = vmatpush1.xpose.msra.mxu0 0.0
    %2458 = vmatprep.subr.mxu0 0.0
    %2459 = vmatpush1.xpose.msra.mxu0 0.0
    %2460 = vmatprep.mubr.f32.mxu0 0.0
    %2461 = vmatmul.mubr.f32.gmra.mrb[0].mxu0 %v2391
    %v2462 = vpop.f32.mrb[0].mxu0
    %v2463 = vadd.f32 0.0, %v2462
    %v2464 = vpop.f32.mrb[0].mxu0
    %2465 = vdwg.mxu0
    %v2467 = vsel %vm2161, %v675, 0
    %v2470 = vsel %vm2161, %v1307, 0
    %2472 = vmatprep.subr.mxu0 0.0
    %2473 = vmatpush1.xpose.msra.mxu0 %v2470
    %2474 = vmatprep.subr.mxu0 0.0
    %2475 = vmatpush1.xpose.msra.mxu0 0.0
    %2476 = vmatprep.subr.mxu0 0.0
    %2477 = vmatpush1.xpose.msra.mxu0 0.0
    %2478 = vmatprep.subr.mxu0 0.0
    %2479 = vmatpush1.xpose.msra.mxu0 0.0
    %2480 = vmatprep.subr.mxu0 0.0
    %2481 = vmatpush1.xpose.msra.mxu0 0.0
    %2482 = vmatprep.subr.mxu0 0.0
    %2483 = vmatpush1.xpose.msra.mxu0 0.0
    %2484 = vmatprep.subr.mxu0 0.0
    %2485 = vmatpush1.xpose.msra.mxu0 0.0
    %2486 = vmatprep.subr.mxu0 0.0
    %2487 = vmatpush1.xpose.msra.mxu0 0.0
    %2488 = vmatprep.subr.mxu0 0.0
    %2489 = vmatpush1.xpose.msra.mxu0 0.0
    %2490 = vmatprep.subr.mxu0 0.0
    %2491 = vmatpush1.xpose.msra.mxu0 0.0
    %2492 = vmatprep.subr.mxu0 0.0
    %2493 = vmatpush1.xpose.msra.mxu0 0.0
    %2494 = vmatprep.subr.mxu0 0.0
    %2495 = vmatpush1.xpose.msra.mxu0 0.0
    %2496 = vmatprep.subr.mxu0 0.0
    %2497 = vmatpush1.xpose.msra.mxu0 0.0
    %2498 = vmatprep.subr.mxu0 0.0
    %2499 = vmatpush1.xpose.msra.mxu0 0.0
    %2500 = vmatprep.subr.mxu0 0.0
    %2501 = vmatpush1.xpose.msra.mxu0 0.0
    %2502 = vmatprep.subr.mxu0 0.0
    %2503 = vmatpush1.xpose.msra.mxu0 0.0
    %2504 = vmatprep.subr.mxu0 0.0
    %2505 = vmatpush1.xpose.msra.mxu0 0.0
    %2506 = vmatprep.subr.mxu0 0.0
    %2507 = vmatpush1.xpose.msra.mxu0 0.0
    %2508 = vmatprep.subr.mxu0 0.0
    %2509 = vmatpush1.xpose.msra.mxu0 0.0
    %2510 = vmatprep.subr.mxu0 0.0
    %2511 = vmatpush1.xpose.msra.mxu0 0.0
    %2512 = vmatprep.subr.mxu0 0.0
    %2513 = vmatpush1.xpose.msra.mxu0 0.0
    %2514 = vmatprep.subr.mxu0 0.0
    %2515 = vmatpush1.xpose.msra.mxu0 0.0
    %2516 = vmatprep.subr.mxu0 0.0
    %2517 = vmatpush1.xpose.msra.mxu0 0.0
    %2518 = vmatprep.subr.mxu0 0.0
    %2519 = vmatpush1.xpose.msra.mxu0 0.0
    %2520 = vmatprep.subr.mxu0 0.0
    %2521 = vmatpush1.xpose.msra.mxu0 0.0
    %2522 = vmatprep.subr.mxu0 0.0
    %2523 = vmatpush1.xpose.msra.mxu0 0.0
    %2524 = vmatprep.subr.mxu0 0.0
    %2525 = vmatpush1.xpose.msra.mxu0 0.0
    %2526 = vmatprep.subr.mxu0 0.0
    %2527 = vmatpush1.xpose.msra.mxu0 0.0
    %2528 = vmatprep.subr.mxu0 0.0
    %2529 = vmatpush1.xpose.msra.mxu0 0.0
    %2530 = vmatprep.subr.mxu0 0.0
    %2531 = vmatpush1.xpose.msra.mxu0 0.0
    %2532 = vmatprep.subr.mxu0 0.0
    %2533 = vmatpush1.xpose.msra.mxu0 0.0
    %2534 = vmatprep.subr.mxu0 0.0
    %2535 = vmatpush1.xpose.msra.mxu0 0.0
    %2536 = vmatprep.mubr.f32.mxu0 0.0
    %2537 = vmatmul.mubr.f32.gmra.mrb[0].mxu0 %v2467
    %v2538 = vpop.f32.mrb[0].mxu0
    %v2539 = vadd.f32 0.0, %v2538
    %v2540 = vpop.f32.mrb[0].mxu0
    %2541 = vdwg.mxu0
    %v2543 = vsel %vm2161, %v748, 0
    %v2546 = vsel %vm2161, %v1380, 0
    %2548 = vmatprep.subr.mxu0 0.0
    %2549 = vmatpush1.xpose.msra.mxu0 %v2546
    %2550 = vmatprep.subr.mxu0 0.0
    %2551 = vmatpush1.xpose.msra.mxu0 0.0
    %2552 = vmatprep.subr.mxu0 0.0
    %2553 = vmatpush1.xpose.msra.mxu0 0.0
    %2554 = vmatprep.subr.mxu0 0.0
    %2555 = vmatpush1.xpose.msra.mxu0 0.0
    %2556 = vmatprep.subr.mxu0 0.0
    %2557 = vmatpush1.xpose.msra.mxu0 0.0
    %2558 = vmatprep.subr.mxu0 0.0
    %2559 = vmatpush1.xpose.msra.mxu0 0.0
    %2560 = vmatprep.subr.mxu0 0.0
    %2561 = vmatpush1.xpose.msra.mxu0 0.0
    %2562 = vmatprep.subr.mxu0 0.0
    %2563 = vmatpush1.xpose.msra.mxu0 0.0
    %2564 = vmatprep.subr.mxu0 0.0
    %2565 = vmatpush1.xpose.msra.mxu0 0.0
    %2566 = vmatprep.subr.mxu0 0.0
    %2567 = vmatpush1.xpose.msra.mxu0 0.0
    %2568 = vmatprep.subr.mxu0 0.0
    %2569 = vmatpush1.xpose.msra.mxu0 0.0
    %2570 = vmatprep.subr.mxu0 0.0
    %2571 = vmatpush1.xpose.msra.mxu0 0.0
    %2572 = vmatprep.subr.mxu0 0.0
    %2573 = vmatpush1.xpose.msra.mxu0 0.0
    %2574 = vmatprep.subr.mxu0 0.0
    %2575 = vmatpush1.xpose.msra.mxu0 0.0
    %2576 = vmatprep.subr.mxu0 0.0
    %2577 = vmatpush1.xpose.msra.mxu0 0.0
    %2578 = vmatprep.subr.mxu0 0.0
    %2579 = vmatpush1.xpose.msra.mxu0 0.0
    %2580 = vmatprep.subr.mxu0 0.0
    %2581 = vmatpush1.xpose.msra.mxu0 0.0
    %2582 = vmatprep.subr.mxu0 0.0
    %2583 = vmatpush1.xpose.msra.mxu0 0.0
    %2584 = vmatprep.subr.mxu0 0.0
    %2585 = vmatpush1.xpose.msra.mxu0 0.0
    %2586 = vmatprep.subr.mxu0 0.0
    %2587 = vmatpush1.xpose.msra.mxu0 0.0
    %2588 = vmatprep.subr.mxu0 0.0
    %2589 = vmatpush1.xpose.msra.mxu0 0.0
    %2590 = vmatprep.subr.mxu0 0.0
    %2591 = vmatpush1.xpose.msra.mxu0 0.0
    %2592 = vmatprep.subr.mxu0 0.0
    %2593 = vmatpush1.xpose.msra.mxu0 0.0
    %2594 = vmatprep.subr.mxu0 0.0
    %2595 = vmatpush1.xpose.msra.mxu0 0.0
    %2596 = vmatprep.subr.mxu0 0.0
    %2597 = vmatpush1.xpose.msra.mxu0 0.0
    %2598 = vmatprep.subr.mxu0 0.0
    %2599 = vmatpush1.xpose.msra.mxu0 0.0
    %2600 = vmatprep.subr.mxu0 0.0
    %2601 = vmatpush1.xpose.msra.mxu0 0.0
    %2602 = vmatprep.subr.mxu0 0.0
    %2603 = vmatpush1.xpose.msra.mxu0 0.0
    %2604 = vmatprep.subr.mxu0 0.0
    %2605 = vmatpush1.xpose.msra.mxu0 0.0
    %2606 = vmatprep.subr.mxu0 0.0
    %2607 = vmatpush1.xpose.msra.mxu0 0.0
    %2608 = vmatprep.subr.mxu0 0.0
    %2609 = vmatpush1.xpose.msra.mxu0 0.0
    %2610 = vmatprep.subr.mxu0 0.0
    %2611 = vmatpush1.xpose.msra.mxu0 0.0
    %2612 = vmatprep.mubr.f32.mxu0 0.0
    %2613 = vmatmul.mubr.f32.gmra.mrb[0].mxu0 %v2543
    %v2614 = vpop.f32.mrb[0].mxu0
    %v2615 = vadd.f32 0.0, %v2614
    %v2616 = vpop.f32.mrb[0].mxu0
    %2617 = vdwg.mxu0
    %v2619 = vsel %vm2161, %v821, 0
    %v2622 = vsel %vm2161, %v1453, 0
    %2624 = vmatprep.subr.mxu0 0.0
    %2625 = vmatpush1.xpose.msra.mxu0 %v2622
    %2626 = vmatprep.subr.mxu0 0.0
    %2627 = vmatpush1.xpose.msra.mxu0 0.0
    %2628 = vmatprep.subr.mxu0 0.0
    %2629 = vmatpush1.xpose.msra.mxu0 0.0
    %2630 = vmatprep.subr.mxu0 0.0
    %2631 = vmatpush1.xpose.msra.mxu0 0.0
    %2632 = vmatprep.subr.mxu0 0.0
    %2633 = vmatpush1.xpose.msra.mxu0 0.0
    %2634 = vmatprep.subr.mxu0 0.0
    %2635 = vmatpush1.xpose.msra.mxu0 0.0
    %2636 = vmatprep.subr.mxu0 0.0
    %2637 = vmatpush1.xpose.msra.mxu0 0.0
    %2638 = vmatprep.subr.mxu0 0.0
    %2639 = vmatpush1.xpose.msra.mxu0 0.0
    %2640 = vmatprep.subr.mxu0 0.0
    %2641 = vmatpush1.xpose.msra.mxu0 0.0
    %2642 = vmatprep.subr.mxu0 0.0
    %2643 = vmatpush1.xpose.msra.mxu0 0.0
    %2644 = vmatprep.subr.mxu0 0.0
    %2645 = vmatpush1.xpose.msra.mxu0 0.0
    %2646 = vmatprep.subr.mxu0 0.0
    %2647 = vmatpush1.xpose.msra.mxu0 0.0
    %2648 = vmatprep.subr.mxu0 0.0
    %2649 = vmatpush1.xpose.msra.mxu0 0.0
    %2650 = vmatprep.subr.mxu0 0.0
    %2651 = vmatpush1.xpose.msra.mxu0 0.0
    %2652 = vmatprep.subr.mxu0 0.0
    %2653 = vmatpush1.xpose.msra.mxu0 0.0
    %2654 = vmatprep.subr.mxu0 0.0
    %2655 = vmatpush1.xpose.msra.mxu0 0.0
    %2656 = vmatprep.subr.mxu0 0.0
    %2657 = vmatpush1.xpose.msra.mxu0 0.0
    %2658 = vmatprep.subr.mxu0 0.0
    %2659 = vmatpush1.xpose.msra.mxu0 0.0
    %2660 = vmatprep.subr.mxu0 0.0
    %2661 = vmatpush1.xpose.msra.mxu0 0.0
    %2662 = vmatprep.subr.mxu0 0.0
    %2663 = vmatpush1.xpose.msra.mxu0 0.0
    %2664 = vmatprep.subr.mxu0 0.0
    %2665 = vmatpush1.xpose.msra.mxu0 0.0
    %2666 = vmatprep.subr.mxu0 0.0
    %2667 = vmatpush1.xpose.msra.mxu0 0.0
    %2668 = vmatprep.subr.mxu0 0.0
    %2669 = vmatpush1.xpose.msra.mxu0 0.0
    %2670 = vmatprep.subr.mxu0 0.0
    %2671 = vmatpush1.xpose.msra.mxu0 0.0
    %2672 = vmatprep.subr.mxu0 0.0
    %2673 = vmatpush1.xpose.msra.mxu0 0.0
    %2674 = vmatprep.subr.mxu0 0.0
    %2675 = vmatpush1.xpose.msra.mxu0 0.0
    %2676 = vmatprep.subr.mxu0 0.0
    %2677 = vmatpush1.xpose.msra.mxu0 0.0
    %2678 = vmatprep.subr.mxu0 0.0
    %2679 = vmatpush1.xpose.msra.mxu0 0.0
    %2680 = vmatprep.subr.mxu0 0.0
    %2681 = vmatpush1.xpose.msra.mxu0 0.0
    %2682 = vmatprep.subr.mxu0 0.0
    %2683 = vmatpush1.xpose.msra.mxu0 0.0
    %2684 = vmatprep.subr.mxu0 0.0
    %2685 = vmatpush1.xpose.msra.mxu0 0.0
    %2686 = vmatprep.subr.mxu0 0.0
    %2687 = vmatpush1.xpose.msra.mxu0 0.0
    %2688 = vmatprep.mubr.f32.mxu0 0.0
    %2689 = vmatmul.mubr.f32.gmra.mrb[0].mxu0 %v2619
    %v2690 = vpop.f32.mrb[0].mxu0
    %v2691 = vadd.f32 0.0, %v2690
    %v2692 = vpop.f32.mrb[0].mxu0
    %2693 = vdwg.mxu0
    %v2695 = vsel %vm2161, %v894, 0
    %v2698 = vsel %vm2161, %v1526, 0
    %2700 = vmatprep.subr.mxu0 0.0
    %2701 = vmatpush1.xpose.msra.mxu0 %v2698
    %2702 = vmatprep.subr.mxu0 0.0
    %2703 = vmatpush1.xpose.msra.mxu0 0.0
    %2704 = vmatprep.subr.mxu0 0.0
    %2705 = vmatpush1.xpose.msra.mxu0 0.0
    %2706 = vmatprep.subr.mxu0 0.0
    %2707 = vmatpush1.xpose.msra.mxu0 0.0
    %2708 = vmatprep.subr.mxu0 0.0
    %2709 = vmatpush1.xpose.msra.mxu0 0.0
    %2710 = vmatprep.subr.mxu0 0.0
    %2711 = vmatpush1.xpose.msra.mxu0 0.0
    %2712 = vmatprep.subr.mxu0 0.0
    %2713 = vmatpush1.xpose.msra.mxu0 0.0
    %2714 = vmatprep.subr.mxu0 0.0
    %2715 = vmatpush1.xpose.msra.mxu0 0.0
    %2716 = vmatprep.subr.mxu0 0.0
    %2717 = vmatpush1.xpose.msra.mxu0 0.0
    %2718 = vmatprep.subr.mxu0 0.0
    %2719 = vmatpush1.xpose.msra.mxu0 0.0
    %2720 = vmatprep.subr.mxu0 0.0
    %2721 = vmatpush1.xpose.msra.mxu0 0.0
    %2722 = vmatprep.subr.mxu0 0.0
    %2723 = vmatpush1.xpose.msra.mxu0 0.0
    %2724 = vmatprep.subr.mxu0 0.0
    %2725 = vmatpush1.xpose.msra.mxu0 0.0
    %2726 = vmatprep.subr.mxu0 0.0
    %2727 = vmatpush1.xpose.msra.mxu0 0.0
    %2728 = vmatprep.subr.mxu0 0.0
    %2729 = vmatpush1.xpose.msra.mxu0 0.0
    %2730 = vmatprep.subr.mxu0 0.0
    %2731 = vmatpush1.xpose.msra.mxu0 0.0
    %2732 = vmatprep.subr.mxu0 0.0
    %2733 = vmatpush1.xpose.msra.mxu0 0.0
    %2734 = vmatprep.subr.mxu0 0.0
    %2735 = vmatpush1.xpose.msra.mxu0 0.0
    %2736 = vmatprep.subr.mxu0 0.0
    %2737 = vmatpush1.xpose.msra.mxu0 0.0
    %2738 = vmatprep.subr.mxu0 0.0
    %2739 = vmatpush1.xpose.msra.mxu0 0.0
    %2740 = vmatprep.subr.mxu0 0.0
    %2741 = vmatpush1.xpose.msra.mxu0 0.0
    %2742 = vmatprep.subr.mxu0 0.0
    %2743 = vmatpush1.xpose.msra.mxu0 0.0
    %2744 = vmatprep.subr.mxu0 0.0
    %2745 = vmatpush1.xpose.msra.mxu0 0.0
    %2746 = vmatprep.subr.mxu0 0.0
    %2747 = vmatpush1.xpose.msra.mxu0 0.0
    %2748 = vmatprep.subr.mxu0 0.0
    %2749 = vmatpush1.xpose.msra.mxu0 0.0
    %2750 = vmatprep.subr.mxu0 0.0
    %2751 = vmatpush1.xpose.msra.mxu0 0.0
    %2752 = vmatprep.subr.mxu0 0.0
    %2753 = vmatpush1.xpose.msra.mxu0 0.0
    %2754 = vmatprep.subr.mxu0 0.0
    %2755 = vmatpush1.xpose.msra.mxu0 0.0
    %2756 = vmatprep.subr.mxu0 0.0
    %2757 = vmatpush1.xpose.msra.mxu0 0.0
    %2758 = vmatprep.subr.mxu0 0.0
    %2759 = vmatpush1.xpose.msra.mxu0 0.0
    %2760 = vmatprep.subr.mxu0 0.0
    %2761 = vmatpush1.xpose.msra.mxu0 0.0
    %2762 = vmatprep.subr.mxu0 0.0
    %2763 = vmatpush1.xpose.msra.mxu0 0.0
    %2764 = vmatprep.mubr.f32.mxu0 0.0
    %2765 = vmatmul.mubr.f32.gmra.mrb[0].mxu0 %v2695
    %v2766 = vpop.f32.mrb[0].mxu0
    %v2767 = vadd.f32 0.0, %v2766
    %v2768 = vpop.f32.mrb[0].mxu0
    %2769 = vdwg.mxu0
    %v2770 = vmul.f32 %v2235, 0.5
    %v2771 = vmul.f32 %v2311, 0.5
    %v2772 = vmul.f32 %v2387, 0.5
    %v2773 = vmul.f32 %v2463, 0.5
    %v2774 = vmul.f32 %v2539, 0.5
    %v2775 = vmul.f32 %v2615, 0.5
    %v2776 = vmul.f32 %v2691, 0.5
    %v2777 = vmul.f32 %v2767, 0.5
    %vm2778 = vcmask 64512
    %v2779 = vsel %vm2778, %v2770, -inf
    %2780 = vmax.xlane.f32.xlu0 %v2779
    %v2781 = vpop.xlane.xlu0 %2780
    %v2782 = vsel %vm2778, %v2771, -inf
    %2783 = vmax.xlane.f32.xlu0 %v2782
    %v2784 = vpop.xlane.xlu0 %2783
    %v2785 = vsel %vm2778, %v2772, -inf
    %2786 = vmax.xlane.f32.xlu0 %v2785
    %v2787 = vpop.xlane.xlu0 %2786
    %v2788 = vsel %vm2778, %v2773, -inf
    %2789 = vmax.xlane.f32.xlu0 %v2788
    %v2790 = vpop.xlane.xlu0 %2789
    %v2791 = vsel %vm2778, %v2774, -inf
    %2792 = vmax.xlane.f32.xlu0 %v2791
    %v2793 = vpop.xlane.xlu0 %2792
    %v2794 = vsel %vm2778, %v2775, -inf
    %2795 = vmax.xlane.f32.xlu0 %v2794
    %v2796 = vpop.xlane.xlu0 %2795
    %v2797 = vsel %vm2778, %v2776, -inf
    %2798 = vmax.xlane.f32.xlu0 %v2797
    %v2799 = vpop.xlane.xlu0 %2798
    %v2800 = vsel %vm2778, %v2777, -inf
    %2801 = vmax.xlane.f32.xlu0 %v2800
    %v2802 = vpop.xlane.xlu0 %2801
    %v2803 = vsub.f32 %v2770, %v2781
    %v2804 = vsub.f32 %v2771, %v2784
    %v2805 = vsub.f32 %v2772, %v2787
    %v2806 = vsub.f32 %v2773, %v2790
    %v2807 = vsub.f32 %v2774, %v2793
    %v2808 = vsub.f32 %v2775, %v2796
    %v2809 = vsub.f32 %v2776, %v2799
    %v2810 = vsub.f32 %v2777, %v2802
    %v2811 = vmul.f32 %v2803, 1.442695
    %v2812 = vpow.pop %v2811
    %v2813 = vmul.f32 %v2804, 1.442695
    %v2814 = vpow.pop %v2813
    %v2815 = vmul.f32 %v2805, 1.442695
    %v2816 = vpow.pop %v2815
    %v2817 = vmul.f32 %v2806, 1.442695
    %v2818 = vpow.pop %v2817
    %v2819 = vmul.f32 %v2807, 1.442695
    %v2820 = vpow.pop %v2819
    %v2821 = vmul.f32 %v2808, 1.442695
    %v2822 = vpow.pop %v2821
    %v2823 = vmul.f32 %v2809, 1.442695
    %v2824 = vpow.pop %v2823
    %v2825 = vmul.f32 %v2810, 1.442695
    %v2826 = vpow.pop %v2825
    %v2827 = vsel %vm2778, %v2812, 0.0
    %2828 = vadd.xlane.f32.xlu0 %v2827
    %v2829 = vpop.xlane.xlu0 %2828
    %v2830 = vsel %vm2778, %v2814, 0.0
    %2831 = vadd.xlane.f32.xlu0 %v2830
    %v2832 = vpop.xlane.xlu0 %2831
    %v2833 = vsel %vm2778, %v2816, 0.0
    %2834 = vadd.xlane.f32.xlu0 %v2833
    %v2835 = vpop.xlane.xlu0 %2834
    %v2836 = vsel %vm2778, %v2818, 0.0
    %2837 = vadd.xlane.f32.xlu0 %v2836
    %v2838 = vpop.xlane.xlu0 %2837
    %v2839 = vsel %vm2778, %v2820, 0.0
    %2840 = vadd.xlane.f32.xlu0 %v2839
    %v2841 = vpop.xlane.xlu0 %2840
    %v2842 = vsel %vm2778, %v2822, 0.0
    %2843 = vadd.xlane.f32.xlu0 %v2842
    %v2844 = vpop.xlane.xlu0 %2843
    %v2845 = vsel %vm2778, %v2824, 0.0
    %2846 = vadd.xlane.f32.xlu0 %v2845
    %v2847 = vpop.xlane.xlu0 %2846
    %v2848 = vsel %vm2778, %v2826, 0.0
    %2849 = vadd.xlane.f32.xlu0 %v2848
    %v2850 = vpop.xlane.xlu0 %2849
    %v2851 = vrcp.pop %v2829
    %v2852 = vmul.f32 %v2812, %v2851
    %v2853 = vrcp.pop %v2832
    %v2854 = vmul.f32 %v2814, %v2853
    %v2855 = vrcp.pop %v2835
    %v2856 = vmul.f32 %v2816, %v2855
    %v2857 = vrcp.pop %v2838
    %v2858 = vmul.f32 %v2818, %v2857
    %v2859 = vrcp.pop %v2841
    %v2860 = vmul.f32 %v2820, %v2859
    %v2861 = vrcp.pop %v2844
    %v2862 = vmul.f32 %v2822, %v2861
    %v2863 = vrcp.pop %v2847
    %v2864 = vmul.f32 %v2824, %v2863
    %v2865 = vrcp.pop %v2850
    %v2866 = vmul.f32 %v2826, %v2865
    %v2868 = vsel %vm2778, %v2852, 0
    %2870 = vmatprep.subr.mxu0 0.0
    %2871 = vmatpush1.msra.mxu0 %v1647
    %2872 = vmatprep.subr.mxu0 0.0
    %2873 = vmatpush1.msra.mxu0 0.0
    %2874 = vmatprep.subr.mxu0 0.0
    %2875 = vmatpush1.msra.mxu0 0.0
    %2876 = vmatprep.subr.mxu0 0.0
    %2877 = vmatpush1.msra.mxu0 0.0
    %2878 = vmatprep.subr.mxu0 0.0
    %2879 = vmatpush1.msra.mxu0 0.0
    %2880 = vmatprep.subr.mxu0 0.0
    %2881 = vmatpush1.msra.mxu0 0.0
    %2882 = vmatprep.subr.mxu0 0.0
    %2883 = vmatpush1.msra.mxu0 0.0
    %2884 = vmatprep.subr.mxu0 0.0
    %2885 = vmatpush1.msra.mxu0 0.0
    %2886 = vmatprep.subr.mxu0 0.0
    %2887 = vmatpush1.msra.mxu0 0.0
    %2888 = vmatprep.subr.mxu0 0.0
    %2889 = vmatpush1.msra.mxu0 0.0
    %2890 = vmatprep.subr.mxu0 0.0
    %2891 = vmatpush1.msra.mxu0 0.0
    %2892 = vmatprep.subr.mxu0 0.0
    %2893 = vmatpush1.msra.mxu0 0.0
    %2894 = vmatprep.subr.mxu0 0.0
    %2895 = vmatpush1.msra.mxu0 0.0
    %2896 = vmatprep.subr.mxu0 0.0
    %2897 = vmatpush1.msra.mxu0 0.0
    %2898 = vmatprep.subr.mxu0 0.0
    %2899 = vmatpush1.msra.mxu0 0.0
    %2900 = vmatprep.subr.mxu0 0.0
    %2901 = vmatpush1.msra.mxu0 0.0
    %2902 = vmatprep.subr.mxu0 0.0
    %2903 = vmatpush1.msra.mxu0 0.0
    %2904 = vmatprep.subr.mxu0 0.0
    %2905 = vmatpush1.msra.mxu0 0.0
    %2906 = vmatprep.subr.mxu0 0.0
    %2907 = vmatpush1.msra.mxu0 0.0
    %2908 = vmatprep.subr.mxu0 0.0
    %2909 = vmatpush1.msra.mxu0 0.0
    %2910 = vmatprep.subr.mxu0 0.0
    %2911 = vmatpush1.msra.mxu0 0.0
    %2912 = vmatprep.subr.mxu0 0.0
    %2913 = vmatpush1.msra.mxu0 0.0
    %2914 = vmatprep.subr.mxu0 0.0
    %2915 = vmatpush1.msra.mxu0 0.0
    %2916 = vmatprep.subr.mxu0 0.0
    %2917 = vmatpush1.msra.mxu0 0.0
    %2918 = vmatprep.subr.mxu0 0.0
    %2919 = vmatpush1.msra.mxu0 0.0
    %2920 = vmatprep.subr.mxu0 0.0
    %2921 = vmatpush1.msra.mxu0 0.0
    %2922 = vmatprep.subr.mxu0 0.0
    %2923 = vmatpush1.msra.mxu0 0.0
    %2924 = vmatprep.subr.mxu0 0.0
    %2925 = vmatpush1.msra.mxu0 0.0
    %2926 = vmatprep.subr.mxu0 0.0
    %2927 = vmatpush1.msra.mxu0 0.0
    %2928 = vmatprep.subr.mxu0 0.0
    %2929 = vmatpush1.msra.mxu0 0.0
    %2930 = vmatprep.subr.mxu0 0.0
    %2931 = vmatpush1.msra.mxu0 0.0
    %2932 = vmatprep.subr.mxu0 0.0
    %2933 = vmatpush1.msra.mxu0 0.0
    %2934 = vmatprep.mubr.f32.mxu0 0.0
    %2935 = vmatmul.mubr.f32.gmra.mrb[0].mxu0 %v2868
    %v2936 = vpop.f32.mrb[0].mxu0
    %v2937 = vadd.f32 0.0, %v2936
    %v2938 = vpop.f32.mrb[0].mxu0
    %2939 = vdwg.mxu0
    %v2941 = vsel %vm2778, %v2854, 0
    %2943 = vmatprep.subr.mxu0 0.0
    %2944 = vmatpush1.msra.mxu0 %v1720
    %2945 = vmatprep.subr.mxu0 0.0
    %2946 = vmatpush1.msra.mxu0 0.0
    %2947 = vmatprep.subr.mxu0 0.0
    %2948 = vmatpush1.msra.mxu0 0.0
    %2949 = vmatprep.subr.mxu0 0.0
    %2950 = vmatpush1.msra.mxu0 0.0
    %2951 = vmatprep.subr.mxu0 0.0
    %2952 = vmatpush1.msra.mxu0 0.0
    %2953 = vmatprep.subr.mxu0 0.0
    %2954 = vmatpush1.msra.mxu0 0.0
    %2955 = vmatprep.subr.mxu0 0.0
    %2956 = vmatpush1.msra.mxu0 0.0
    %2957 = vmatprep.subr.mxu0 0.0
    %2958 = vmatpush1.msra.mxu0 0.0
    %2959 = vmatprep.subr.mxu0 0.0
    %2960 = vmatpush1.msra.mxu0 0.0
    %2961 = vmatprep.subr.mxu0 0.0
    %2962 = vmatpush1.msra.mxu0 0.0
    %2963 = vmatprep.subr.mxu0 0.0
    %2964 = vmatpush1.msra.mxu0 0.0
    %2965 = vmatprep.subr.mxu0 0.0
    %2966 = vmatpush1.msra.mxu0 0.0
    %2967 = vmatprep.subr.mxu0 0.0
    %2968 = vmatpush1.msra.mxu0 0.0
    %2969 = vmatprep.subr.mxu0 0.0
    %2970 = vmatpush1.msra.mxu0 0.0
    %2971 = vmatprep.subr.mxu0 0.0
    %2972 = vmatpush1.msra.mxu0 0.0
    %2973 = vmatprep.subr.mxu0 0.0
    %2974 = vmatpush1.msra.mxu0 0.0
    %2975 = vmatprep.subr.mxu0 0.0
    %2976 = vmatpush1.msra.mxu0 0.0
    %2977 = vmatprep.subr.mxu0 0.0
    %2978 = vmatpush1.msra.mxu0 0.0
    %2979 = vmatprep.subr.mxu0 0.0
    %2980 = vmatpush1.msra.mxu0 0.0
    %2981 = vmatprep.subr.mxu0 0.0
    %2982 = vmatpush1.msra.mxu0 0.0
    %2983 = vmatprep.subr.mxu0 0.0
    %2984 = vmatpush1.msra.mxu0 0.0
    %2985 = vmatprep.subr.mxu0 0.0
    %2986 = vmatpush1.msra.mxu0 0.0
    %2987 = vmatprep.subr.mxu0 0.0
    %2988 = vmatpush1.msra.mxu0 0.0
    %2989 = vmatprep.subr.mxu0 0.0
    %2990 = vmatpush1.msra.mxu0 0.0
    %2991 = vmatprep.subr.mxu0 0.0
    %2992 = vmatpush1.msra.mxu0 0.0
    %2993 = vmatprep.subr.mxu0 0.0
    %2994 = vmatpush1.msra.mxu0 0.0
    %2995 = vmatprep.subr.mxu0 0.0
    %2996 = vmatpush1.msra.mxu0 0.0
    %2997 = vmatprep.subr.mxu0 0.0
    %2998 = vmatpush1.msra.mxu0 0.0
    %2999 = vmatprep.subr.mxu0 0.0
    %3000 = vmatpush1.msra.mxu0 0.0
    %3001 = vmatprep.subr.mxu0 0.0
    %3002 = vmatpush1.msra.mxu0 0.0
    %3003 = vmatprep.subr.mxu0 0.0
    %3004 = vmatpush1.msra.mxu0 0.0
    %3005 = vmatprep.subr.mxu0 0.0
    %3006 = vmatpush1.msra.mxu0 0.0
    %3007 = vmatprep.mubr.f32.mxu0 0.0
    %3008 = vmatmul.mubr.f32.gmra.mrb[0].mxu0 %v2941
    %v3009 = vpop.f32.mrb[0].mxu0
    %v3010 = vadd.f32 0.0, %v3009
    %v3011 = vpop.f32.mrb[0].mxu0
    %3012 = vdwg.mxu0
    %v3014 = vsel %vm2778, %v2856, 0
    %3016 = vmatprep.subr.mxu0 0.0
    %3017 = vmatpush1.msra.mxu0 %v1793
    %3018 = vmatprep.subr.mxu0 0.0
    %3019 = vmatpush1.msra.mxu0 0.0
    %3020 = vmatprep.subr.mxu0 0.0
    %3021 = vmatpush1.msra.mxu0 0.0
    %3022 = vmatprep.subr.mxu0 0.0
    %3023 = vmatpush1.msra.mxu0 0.0
    %3024 = vmatprep.subr.mxu0 0.0
    %3025 = vmatpush1.msra.mxu0 0.0
    %3026 = vmatprep.subr.mxu0 0.0
    %3027 = vmatpush1.msra.mxu0 0.0
    %3028 = vmatprep.subr.mxu0 0.0
    %3029 = vmatpush1.msra.mxu0 0.0
    %3030 = vmatprep.subr.mxu0 0.0
    %3031 = vmatpush1.msra.mxu0 0.0
    %3032 = vmatprep.subr.mxu0 0.0
    %3033 = vmatpush1.msra.mxu0 0.0
    %3034 = vmatprep.subr.mxu0 0.0
    %3035 = vmatpush1.msra.mxu0 0.0
    %3036 = vmatprep.subr.mxu0 0.0
    %3037 = vmatpush1.msra.mxu0 0.0
    %3038 = vmatprep.subr.mxu0 0.0
    %3039 = vmatpush1.msra.mxu0 0.0
    %3040 = vmatprep.subr.mxu0 0.0
    %3041 = vmatpush1.msra.mxu0 0.0
    %3042 = vmatprep.subr.mxu0 0.0
    %3043 = vmatpush1.msra.mxu0 0.0
    %3044 = vmatprep.subr.mxu0 0.0
    %3045 = vmatpush1.msra.mxu0 0.0
    %3046 = vmatprep.subr.mxu0 0.0
    %3047 = vmatpush1.msra.mxu0 0.0
    %3048 = vmatprep.subr.mxu0 0.0
    %3049 = vmatpush1.msra.mxu0 0.0
    %3050 = vmatprep.subr.mxu0 0.0
    %3051 = vmatpush1.msra.mxu0 0.0
    %3052 = vmatprep.subr.mxu0 0.0
    %3053 = vmatpush1.msra.mxu0 0.0
    %3054 = vmatprep.subr.mxu0 0.0
    %3055 = vmatpush1.msra.mxu0 0.0
    %3056 = vmatprep.subr.mxu0 0.0
    %3057 = vmatpush1.msra.mxu0 0.0
    %3058 = vmatprep.subr.mxu0 0.0
    %3059 = vmatpush1.msra.mxu0 0.0
    %3060 = vmatprep.subr.mxu0 0.0
    %3061 = vmatpush1.msra.mxu0 0.0
    %3062 = vmatprep.subr.mxu0 0.0
    %3063 = vmatpush1.msra.mxu0 0.0
    %3064 = vmatprep.subr.mxu0 0.0
    %3065 = vmatpush1.msra.mxu0 0.0
    %3066 = vmatprep.subr.mxu0 0.0
    %3067 = vmatpush1.msra.mxu0 0.0
    %3068 = vmatprep.subr.mxu0 0.0
    %3069 = vmatpush1.msra.mxu0 0.0
    %3070 = vmatprep.subr.mxu0 0.0
    %3071 = vmatpush1.msra.mxu0 0.0
    %3072 = vmatprep.subr.mxu0 0.0
    %3073 = vmatpush1.msra.mxu0 0.0
    %3074 = vmatprep.subr.mxu0 0.0
    %3075 = vmatpush1.msra.mxu0 0.0
    %3076 = vmatprep.subr.mxu0 0.0
    %3077 = vmatpush1.msra.mxu0 0.0
    %3078 = vmatprep.subr.mxu0 0.0
    %3079 = vmatpush1.msra.mxu0 0.0
    %3080 = vmatprep.mubr.f32.mxu0 0.0
    %3081 = vmatmul.mubr.f32.gmra.mrb[0].mxu0 %v3014
    %v3082 = vpop.f32.mrb[0].mxu0
    %v3083 = vadd.f32 0.0, %v3082
    %v3084 = vpop.f32.mrb[0].mxu0
    %3085 = vdwg.mxu0
    %v3087 = vsel %vm2778, %v2858, 0
    %3089 = vmatprep.subr.mxu0 0.0
    %3090 = vmatpush1.msra.mxu0 %v1866
    %3091 = vmatprep.subr.mxu0 0.0
    %3092 = vmatpush1.msra.mxu0 0.0
    %3093 = vmatprep.subr.mxu0 0.0
    %3094 = vmatpush1.msra.mxu0 0.0
    %3095 = vmatprep.subr.mxu0 0.0
    %3096 = vmatpush1.msra.mxu0 0.0
    %3097 = vmatprep.subr.mxu0 0.0
    %3098 = vmatpush1.msra.mxu0 0.0
    %3099 = vmatprep.subr.mxu0 0.0
    %3100 = vmatpush1.msra.mxu0 0.0
    %3101 = vmatprep.subr.mxu0 0.0
    %3102 = vmatpush1.msra.mxu0 0.0
    %3103 = vmatprep.subr.mxu0 0.0
    %3104 = vmatpush1.msra.mxu0 0.0
    %3105 = vmatprep.subr.mxu0 0.0
    %3106 = vmatpush1.msra.mxu0 0.0
    %3107 = vmatprep.subr.mxu0 0.0
    %3108 = vmatpush1.msra.mxu0 0.0
    %3109 = vmatprep.subr.mxu0 0.0
    %3110 = vmatpush1.msra.mxu0 0.0
    %3111 = vmatprep.subr.mxu0 0.0
    %3112 = vmatpush1.msra.mxu0 0.0
    %3113 = vmatprep.subr.mxu0 0.0
    %3114 = vmatpush1.msra.mxu0 0.0
    %3115 = vmatprep.subr.mxu0 0.0
    %3116 = vmatpush1.msra.mxu0 0.0
    %3117 = vmatprep.subr.mxu0 0.0
    %3118 = vmatpush1.msra.mxu0 0.0
    %3119 = vmatprep.subr.mxu0 0.0
    %3120 = vmatpush1.msra.mxu0 0.0
    %3121 = vmatprep.subr.mxu0 0.0
    %3122 = vmatpush1.msra.mxu0 0.0
    %3123 = vmatprep.subr.mxu0 0.0
    %3124 = vmatpush1.msra.mxu0 0.0
    %3125 = vmatprep.subr.mxu0 0.0
    %3126 = vmatpush1.msra.mxu0 0.0
    %3127 = vmatprep.subr.mxu0 0.0
    %3128 = vmatpush1.msra.mxu0 0.0
    %3129 = vmatprep.subr.mxu0 0.0
    %3130 = vmatpush1.msra.mxu0 0.0
    %3131 = vmatprep.subr.mxu0 0.0
    %3132 = vmatpush1.msra.mxu0 0.0
    %3133 = vmatprep.subr.mxu0 0.0
    %3134 = vmatpush1.msra.mxu0 0.0
    %3135 = vmatprep.subr.mxu0 0.0
    %3136 = vmatpush1.msra.mxu0 0.0
    %3137 = vmatprep.subr.mxu0 0.0
    %3138 = vmatpush1.msra.mxu0 0.0
    %3139 = vmatprep.subr.mxu0 0.0
    %3140 = vmatpush1.msra.mxu0 0.0
    %3141 = vmatprep.subr.mxu0 0.0
    %3142 = vmatpush1.msra.mxu0 0.0
    %3143 = vmatprep.subr.mxu0 0.0
    %3144 = vmatpush1.msra.mxu0 0.0
    %3145 = vmatprep.subr.mxu0 0.0
    %3146 = vmatpush1.msra.mxu0 0.0
    %3147 = vmatprep.subr.mxu0 0.0
    %3148 = vmatpush1.msra.mxu0 0.0
    %3149 = vmatprep.subr.mxu0 0.0
    %3150 = vmatpush1.msra.mxu0 0.0
    %3151 = vmatprep.subr.mxu0 0.0
    %3152 = vmatpush1.msra.mxu0 0.0
    %3153 = vmatprep.mubr.f32.mxu0 0.0
    %3154 = vmatmul.mubr.f32.gmra.mrb[0].mxu0 %v3087
    %v3155 = vpop.f32.mrb[0].mxu0
    %v3156 = vadd.f32 0.0, %v3155
    %v3157 = vpop.f32.mrb[0].mxu0
    %3158 = vdwg.mxu0
    %v3160 = vsel %vm2778, %v2860, 0
    %3162 = vmatprep.subr.mxu0 0.0
    %3163 = vmatpush1.msra.mxu0 %v1939
    %3164 = vmatprep.subr.mxu0 0.0
    %3165 = vmatpush1.msra.mxu0 0.0
    %3166 = vmatprep.subr.mxu0 0.0
    %3167 = vmatpush1.msra.mxu0 0.0
    %3168 = vmatprep.subr.mxu0 0.0
    %3169 = vmatpush1.msra.mxu0 0.0
    %3170 = vmatprep.subr.mxu0 0.0
    %3171 = vmatpush1.msra.mxu0 0.0
    %3172 = vmatprep.subr.mxu0 0.0
    %3173 = vmatpush1.msra.mxu0 0.0
    %3174 = vmatprep.subr.mxu0 0.0
    %3175 = vmatpush1.msra.mxu0 0.0
    %3176 = vmatprep.subr.mxu0 0.0
    %3177 = vmatpush1.msra.mxu0 0.0
    %3178 = vmatprep.subr.mxu0 0.0
    %3179 = vmatpush1.msra.mxu0 0.0
    %3180 = vmatprep.subr.mxu0 0.0
    %3181 = vmatpush1.msra.mxu0 0.0
    %3182 = vmatprep.subr.mxu0 0.0
    %3183 = vmatpush1.msra.mxu0 0.0
    %3184 = vmatprep.subr.mxu0 0.0
    %3185 = vmatpush1.msra.mxu0 0.0
    %3186 = vmatprep.subr.mxu0 0.0
    %3187 = vmatpush1.msra.mxu0 0.0
    %3188 = vmatprep.subr.mxu0 0.0
    %3189 = vmatpush1.msra.mxu0 0.0
    %3190 = vmatprep.subr.mxu0 0.0
    %3191 = vmatpush1.msra.mxu0 0.0
    %3192 = vmatprep.subr.mxu0 0.0
    %3193 = vmatpush1.msra.mxu0 0.0
    %3194 = vmatprep.subr.mxu0 0.0
    %3195 = vmatpush1.msra.mxu0 0.0
    %3196 = vmatprep.subr.mxu0 0.0
    %3197 = vmatpush1.msra.mxu0 0.0
    %3198 = vmatprep.subr.mxu0 0.0
    %3199 = vmatpush1.msra.mxu0 0.0
    %3200 = vmatprep.subr.mxu0 0.0
    %3201 = vmatpush1.msra.mxu0 0.0
    %3202 = vmatprep.subr.mxu0 0.0
    %3203 = vmatpush1.msra.mxu0 0.0
    %3204 = vmatprep.subr.mxu0 0.0
    %3205 = vmatpush1.msra.mxu0 0.0
    %3206 = vmatprep.subr.mxu0 0.0
    %3207 = vmatpush1.msra.mxu0 0.0
    %3208 = vmatprep.subr.mxu0 0.0
    %3209 = vmatpush1.msra.mxu0 0.0
    %3210 = vmatprep.subr.mxu0 0.0
    %3211 = vmatpush1.msra.mxu0 0.0
    %3212 = vmatprep.subr.mxu0 0.0
    %3213 = vmatpush1.msra.mxu0 0.0
    %3214 = vmatprep.subr.mxu0 0.0
    %3215 = vmatpush1.msra.mxu0 0.0
    %3216 = vmatprep.subr.mxu0 0.0
    %3217 = vmatpush1.msra.mxu0 0.0
    %3218 = vmatprep.subr.mxu0 0.0
    %3219 = vmatpush1.msra.mxu0 0.0
    %3220 = vmatprep.subr.mxu0 0.0
    %3221 = vmatpush1.msra.mxu0 0.0
    %3222 = vmatprep.subr.mxu0 0.0
    %3223 = vmatpush1.msra.mxu0 0.0
    %3224 = vmatprep.subr.mxu0 0.0
    %3225 = vmatpush1.msra.mxu0 0.0
    %3226 = vmatprep.mubr.f32.mxu0 0.0
    %3227 = vmatmul.mubr.f32.gmra.mrb[0].mxu0 %v3160
    %v3228 = vpop.f32.mrb[0].mxu0
    %v3229 = vadd.f32 0.0, %v3228
    %v3230 = vpop.f32.mrb[0].mxu0
    %3231 = vdwg.mxu0
    %v3233 = vsel %vm2778, %v2862, 0
    %3235 = vmatprep.subr.mxu0 0.0
    %3236 = vmatpush1.msra.mxu0 %v2012
    %3237 = vmatprep.subr.mxu0 0.0
    %3238 = vmatpush1.msra.mxu0 0.0
    %3239 = vmatprep.subr.mxu0 0.0
    %3240 = vmatpush1.msra.mxu0 0.0
    %3241 = vmatprep.subr.mxu0 0.0
    %3242 = vmatpush1.msra.mxu0 0.0
    %3243 = vmatprep.subr.mxu0 0.0
    %3244 = vmatpush1.msra.mxu0 0.0
    %3245 = vmatprep.subr.mxu0 0.0
    %3246 = vmatpush1.msra.mxu0 0.0
    %3247 = vmatprep.subr.mxu0 0.0
    %3248 = vmatpush1.msra.mxu0 0.0
    %3249 = vmatprep.subr.mxu0 0.0
    %3250 = vmatpush1.msra.mxu0 0.0
    %3251 = vmatprep.subr.mxu0 0.0
    %3252 = vmatpush1.msra.mxu0 0.0
    %3253 = vmatprep.subr.mxu0 0.0
    %3254 = vmatpush1.msra.mxu0 0.0
    %3255 = vmatprep.subr.mxu0 0.0
    %3256 = vmatpush1.msra.mxu0 0.0
    %3257 = vmatprep.subr.mxu0 0.0
    %3258 = vmatpush1.msra.mxu0 0.0
    %3259 = vmatprep.subr.mxu0 0.0
    %3260 = vmatpush1.msra.mxu0 0.0
    %3261 = vmatprep.subr.mxu0 0.0
    %3262 = vmatpush1.msra.mxu0 0.0
    %3263 = vmatprep.subr.mxu0 0.0
    %3264 = vmatpush1.msra.mxu0 0.0
    %3265 = vmatprep.subr.mxu0 0.0
    %3266 = vmatpush1.msra.mxu0 0.0
    %3267 = vmatprep.subr.mxu0 0.0
    %3268 = vmatpush1.msra.mxu0 0.0
    %3269 = vmatprep.subr.mxu0 0.0
    %3270 = vmatpush1.msra.mxu0 0.0
    %3271 = vmatprep.subr.mxu0 0.0
    %3272 = vmatpush1.msra.mxu0 0.0
    %3273 = vmatprep.subr.mxu0 0.0
    %3274 = vmatpush1.msra.mxu0 0.0
    %3275 = vmatprep.subr.mxu0 0.0
    %3276 = vmatpush1.msra.mxu0 0.0
    %3277 = vmatprep.subr.mxu0 0.0
    %3278 = vmatpush1.msra.mxu0 0.0
    %3279 = vmatprep.subr.mxu0 0.0
    %3280 = vmatpush1.msra.mxu0 0.0
    %3281 = vmatprep.subr.mxu0 0.0
    %3282 = vmatpush1.msra.mxu0 0.0
    %3283 = vmatprep.subr.mxu0 0.0
    %3284 = vmatpush1.msra.mxu0 0.0
    %3285 = vmatprep.subr.mxu0 0.0
    %3286 = vmatpush1.msra.mxu0 0.0
    %3287 = vmatprep.subr.mxu0 0.0
    %3288 = vmatpush1.msra.mxu0 0.0
    %3289 = vmatprep.subr.mxu0 0.0
    %3290 = vmatpush1.msra.mxu0 0.0
    %3291 = vmatprep.subr.mxu0 0.0
    %3292 = vmatpush1.msra.mxu0 0.0
    %3293 = vmatprep.subr.mxu0 0.0
    %3294 = vmatpush1.msra.mxu0 0.0
    %3295 = vmatprep.subr.mxu0 0.0
    %3296 = vmatpush1.msra.mxu0 0.0
    %3297 = vmatprep.subr.mxu0 0.0
    %3298 = vmatpush1.msra.mxu0 0.0
    %3299 = vmatprep.mubr.f32.mxu0 0.0
    %3300 = vmatmul.mubr.f32.gmra.mrb[0].mxu0 %v3233
    %v3301 = vpop.f32.mrb[0].mxu0
    %v3302 = vadd.f32 0.0, %v3301
    %v3303 = vpop.f32.mrb[0].mxu0
    %3304 = vdwg.mxu0
    %v3306 = vsel %vm2778, %v2864, 0
    %3308 = vmatprep.subr.mxu0 0.0
    %3309 = vmatpush1.msra.mxu0 %v2085
    %3310 = vmatprep.subr.mxu0 0.0
    %3311 = vmatpush1.msra.mxu0 0.0
    %3312 = vmatprep.subr.mxu0 0.0
    %3313 = vmatpush1.msra.mxu0 0.0
    %3314 = vmatprep.subr.mxu0 0.0
    %3315 = vmatpush1.msra.mxu0 0.0
    %3316 = vmatprep.subr.mxu0 0.0
    %3317 = vmatpush1.msra.mxu0 0.0
    %3318 = vmatprep.subr.mxu0 0.0
    %3319 = vmatpush1.msra.mxu0 0.0
    %3320 = vmatprep.subr.mxu0 0.0
    %3321 = vmatpush1.msra.mxu0 0.0
    %3322 = vmatprep.subr.mxu0 0.0
    %3323 = vmatpush1.msra.mxu0 0.0
    %3324 = vmatprep.subr.mxu0 0.0
    %3325 = vmatpush1.msra.mxu0 0.0
    %3326 = vmatprep.subr.mxu0 0.0
    %3327 = vmatpush1.msra.mxu0 0.0
    %3328 = vmatprep.subr.mxu0 0.0
    %3329 = vmatpush1.msra.mxu0 0.0
    %3330 = vmatprep.subr.mxu0 0.0
    %3331 = vmatpush1.msra.mxu0 0.0
    %3332 = vmatprep.subr.mxu0 0.0
    %3333 = vmatpush1.msra.mxu0 0.0
    %3334 = vmatprep.subr.mxu0 0.0
    %3335 = vmatpush1.msra.mxu0 0.0
    %3336 = vmatprep.subr.mxu0 0.0
    %3337 = vmatpush1.msra.mxu0 0.0
    %3338 = vmatprep.subr.mxu0 0.0
    %3339 = vmatpush1.msra.mxu0 0.0
    %3340 = vmatprep.subr.mxu0 0.0
    %3341 = vmatpush1.msra.mxu0 0.0
    %3342 = vmatprep.subr.mxu0 0.0
    %3343 = vmatpush1.msra.mxu0 0.0
    %3344 = vmatprep.subr.mxu0 0.0
    %3345 = vmatpush1.msra.mxu0 0.0
    %3346 = vmatprep.subr.mxu0 0.0
    %3347 = vmatpush1.msra.mxu0 0.0
    %3348 = vmatprep.subr.mxu0 0.0
    %3349 = vmatpush1.msra.mxu0 0.0
    %3350 = vmatprep.subr.mxu0 0.0
    %3351 = vmatpush1.msra.mxu0 0.0
    %3352 = vmatprep.subr.mxu0 0.0
    %3353 = vmatpush1.msra.mxu0 0.0
    %3354 = vmatprep.subr.mxu0 0.0
    %3355 = vmatpush1.msra.mxu0 0.0
    %3356 = vmatprep.subr.mxu0 0.0
    %3357 = vmatpush1.msra.mxu0 0.0
    %3358 = vmatprep.subr.mxu0 0.0
    %3359 = vmatpush1.msra.mxu0 0.0
    %3360 = vmatprep.subr.mxu0 0.0
    %3361 = vmatpush1.msra.mxu0 0.0
    %3362 = vmatprep.subr.mxu0 0.0
    %3363 = vmatpush1.msra.mxu0 0.0
    %3364 = vmatprep.subr.mxu0 0.0
    %3365 = vmatpush1.msra.mxu0 0.0
    %3366 = vmatprep.subr.mxu0 0.0
    %3367 = vmatpush1.msra.mxu0 0.0
    %3368 = vmatprep.subr.mxu0 0.0
    %3369 = vmatpush1.msra.mxu0 0.0
    %3370 = vmatprep.subr.mxu0 0.0
    %3371 = vmatpush1.msra.mxu0 0.0
    %3372 = vmatprep.mubr.f32.mxu0 0.0
    %3373 = vmatmul.mubr.f32.gmra.mrb[0].mxu0 %v3306
    %v3374 = vpop.f32.mrb[0].mxu0
    %v3375 = vadd.f32 0.0, %v3374
    %v3376 = vpop.f32.mrb[0].mxu0
    %3377 = vdwg.mxu0
    %v3379 = vsel %vm2778, %v2866, 0
    %3381 = vmatprep.subr.mxu0 0.0
    %3382 = vmatpush1.msra.mxu0 %v2158
    %3383 = vmatprep.subr.mxu0 0.0
    %3384 = vmatpush1.msra.mxu0 0.0
    %3385 = vmatprep.subr.mxu0 0.0
    %3386 = vmatpush1.msra.mxu0 0.0
    %3387 = vmatprep.subr.mxu0 0.0
    %3388 = vmatpush1.msra.mxu0 0.0
    %3389 = vmatprep.subr.mxu0 0.0
    %3390 = vmatpush1.msra.mxu0 0.0
    %3391 = vmatprep.subr.mxu0 0.0
    %3392 = vmatpush1.msra.mxu0 0.0
    %3393 = vmatprep.subr.mxu0 0.0
    %3394 = vmatpush1.msra.mxu0 0.0
    %3395 = vmatprep.subr.mxu0 0.0
    %3396 = vmatpush1.msra.mxu0 0.0
    %3397 = vmatprep.subr.mxu0 0.0
    %3398 = vmatpush1.msra.mxu0 0.0
    %3399 = vmatprep.subr.mxu0 0.0
    %3400 = vmatpush1.msra.mxu0 0.0
    %3401 = vmatprep.subr.mxu0 0.0
    %3402 = vmatpush1.msra.mxu0 0.0
    %3403 = vmatprep.subr.mxu0 0.0
    %3404 = vmatpush1.msra.mxu0 0.0
    %3405 = vmatprep.subr.mxu0 0.0
    %3406 = vmatpush1.msra.mxu0 0.0
    %3407 = vmatprep.subr.mxu0 0.0
    %3408 = vmatpush1.msra.mxu0 0.0
    %3409 = vmatprep.subr.mxu0 0.0
    %3410 = vmatpush1.msra.mxu0 0.0
    %3411 = vmatprep.subr.mxu0 0.0
    %3412 = vmatpush1.msra.mxu0 0.0
    %3413 = vmatprep.subr.mxu0 0.0
    %3414 = vmatpush1.msra.mxu0 0.0
    %3415 = vmatprep.subr.mxu0 0.0
    %3416 = vmatpush1.msra.mxu0 0.0
    %3417 = vmatprep.subr.mxu0 0.0
    %3418 = vmatpush1.msra.mxu0 0.0
    %3419 = vmatprep.subr.mxu0 0.0
    %3420 = vmatpush1.msra.mxu0 0.0
    %3421 = vmatprep.subr.mxu0 0.0
    %3422 = vmatpush1.msra.mxu0 0.0
    %3423 = vmatprep.subr.mxu0 0.0
    %3424 = vmatpush1.msra.mxu0 0.0
    %3425 = vmatprep.subr.mxu0 0.0
    %3426 = vmatpush1.msra.mxu0 0.0
    %3427 = vmatprep.subr.mxu0 0.0
    %3428 = vmatpush1.msra.mxu0 0.0
    %3429 = vmatprep.subr.mxu0 0.0
    %3430 = vmatpush1.msra.mxu0 0.0
    %3431 = vmatprep.subr.mxu0 0.0
    %3432 = vmatpush1.msra.mxu0 0.0
    %3433 = vmatprep.subr.mxu0 0.0
    %3434 = vmatpush1.msra.mxu0 0.0
    %3435 = vmatprep.subr.mxu0 0.0
    %3436 = vmatpush1.msra.mxu0 0.0
    %3437 = vmatprep.subr.mxu0 0.0
    %3438 = vmatpush1.msra.mxu0 0.0
    %3439 = vmatprep.subr.mxu0 0.0
    %3440 = vmatpush1.msra.mxu0 0.0
    %3441 = vmatprep.subr.mxu0 0.0
    %3442 = vmatpush1.msra.mxu0 0.0
    %3443 = vmatprep.subr.mxu0 0.0
    %3444 = vmatpush1.msra.mxu0 0.0
    %3445 = vmatprep.mubr.f32.mxu0 0.0
    %3446 = vmatmul.mubr.f32.gmra.mrb[0].mxu0 %v3379
    %v3447 = vpop.f32.mrb[0].mxu0
    %v3448 = vadd.f32 0.0, %v3447
    %v3449 = vpop.f32.mrb[0].mxu0
    %3450 = vdwg.mxu0
    %v3452 = vsel %vm2161, %v2937, 0
    %v3455 = vsel %vm2161, %v96, 0
    %v3458 = vsel %vm2161, %v97, 0
    %v3461 = vsel %vm2161, %v98, 0
    %v3464 = vsel %vm2161, %v99, 0
    %3466 = vmatprep.subr.mxu0 0.0
    %3467 = vmatpush1.xpose.msra.mxu0 %v3455
    %3468 = vmatprep.subr.mxu0 0.0
    %3469 = vmatpush1.xpose.msra.mxu0 %v3458
    %3470 = vmatprep.subr.mxu0 0.0
    %3471 = vmatpush1.xpose.msra.mxu0 %v3461
    %3472 = vmatprep.subr.mxu0 0.0
    %3473 = vmatpush1.xpose.msra.mxu0 %v3464
    %3474 = vmatprep.subr.mxu0 0.0
    %3475 = vmatpush1.xpose.msra.mxu0 0.0
    %3476 = vmatprep.subr.mxu0 0.0
    %3477 = vmatpush1.xpose.msra.mxu0 0.0
    %3478 = vmatprep.subr.mxu0 0.0
    %3479 = vmatpush1.xpose.msra.mxu0 0.0
    %3480 = vmatprep.subr.mxu0 0.0
    %3481 = vmatpush1.xpose.msra.mxu0 0.0
    %3482 = vmatprep.subr.mxu0 0.0
    %3483 = vmatpush1.xpose.msra.mxu0 0.0
    %3484 = vmatprep.subr.mxu0 0.0
    %3485 = vmatpush1.xpose.msra.mxu0 0.0
    %3486 = vmatprep.subr.mxu0 0.0
    %3487 = vmatpush1.xpose.msra.mxu0 0.0
    %3488 = vmatprep.subr.mxu0 0.0
    %3489 = vmatpush1.xpose.msra.mxu0 0.0
    %3490 = vmatprep.subr.mxu0 0.0
    %3491 = vmatpush1.xpose.msra.mxu0 0.0
    %3492 = vmatprep.subr.mxu0 0.0
    %3493 = vmatpush1.xpose.msra.mxu0 0.0
    %3494 = vmatprep.subr.mxu0 0.0
    %3495 = vmatpush1.xpose.msra.mxu0 0.0
    %3496 = vmatprep.subr.mxu0 0.0
    %3497 = vmatpush1.xpose.msra.mxu0 0.0
    %3498 = vmatprep.subr.mxu0 0.0
    %3499 = vmatpush1.xpose.msra.mxu0 0.0
    %3500 = vmatprep.subr.mxu0 0.0
    %3501 = vmatpush1.xpose.msra.mxu0 0.0
    %3502 = vmatprep.subr.mxu0 0.0
    %3503 = vmatpush1.xpose.msra.mxu0 0.0
    %3504 = vmatprep.subr.mxu0 0.0
    %3505 = vmatpush1.xpose.msra.mxu0 0.0
    %3506 = vmatprep.subr.mxu0 0.0
    %3507 = vmatpush1.xpose.msra.mxu0 0.0
    %3508 = vmatprep.subr.mxu0 0.0
    %3509 = vmatpush1.xpose.msra.mxu0 0.0
    %3510 = vmatprep.subr.mxu0 0.0
    %3511 = vmatpush1.xpose.msra.mxu0 0.0
    %3512 = vmatprep.subr.mxu0 0.0
    %3513 = vmatpush1.xpose.msra.mxu0 0.0
    %3514 = vmatprep.subr.mxu0 0.0
    %3515 = vmatpush1.xpose.msra.mxu0 0.0
    %3516 = vmatprep.subr.mxu0 0.0
    %3517 = vmatpush1.xpose.msra.mxu0 0.0
    %3518 = vmatprep.subr.mxu0 0.0
    %3519 = vmatpush1.xpose.msra.mxu0 0.0
    %3520 = vmatprep.subr.mxu0 0.0
    %3521 = vmatpush1.xpose.msra.mxu0 0.0
    %3522 = vmatprep.subr.mxu0 0.0
    %3523 = vmatpush1.xpose.msra.mxu0 0.0
    %3524 = vmatprep.subr.mxu0 0.0
    %3525 = vmatpush1.xpose.msra.mxu0 0.0
    %3526 = vmatprep.subr.mxu0 0.0
    %3527 = vmatpush1.xpose.msra.mxu0 0.0
    %3528 = vmatprep.subr.mxu0 0.0
    %3529 = vmatpush1.xpose.msra.mxu0 0.0
    %3530 = vmatprep.mubr.f32.mxu0 0.0
    %3531 = vmatmul.mubr.f32.gmra.mrb[0].mxu0 %v3452
    %v3532 = vpop.f32.mrb[0].mxu0
    %v3533 = vadd.f32 0.0, %v3532
    %v3534 = vpop.f32.mrb[0].mxu0
    %3535 = vdwg.mxu0
    %v3537 = vsel %vm2161, %v3010, 0
    %v3540 = vsel %vm2161, %v100, 0
    %v3543 = vsel %vm2161, %v101, 0
    %v3546 = vsel %vm2161, %v102, 0
    %v3549 = vsel %vm2161, %v103, 0
    %3551 = vmatprep.subr.mxu0 0.0
    %3552 = vmatpush1.xpose.msra.mxu0 %v3540
    %3553 = vmatprep.subr.mxu0 0.0
    %3554 = vmatpush1.xpose.msra.mxu0 %v3543
    %3555 = vmatprep.subr.mxu0 0.0
    %3556 = vmatpush1.xpose.msra.mxu0 %v3546
    %3557 = vmatprep.subr.mxu0 0.0
    %3558 = vmatpush1.xpose.msra.mxu0 %v3549
    %3559 = vmatprep.subr.mxu0 0.0
    %3560 = vmatpush1.xpose.msra.mxu0 0.0
    %3561 = vmatprep.subr.mxu0 0.0
    %3562 = vmatpush1.xpose.msra.mxu0 0.0
    %3563 = vmatprep.subr.mxu0 0.0
    %3564 = vmatpush1.xpose.msra.mxu0 0.0
    %3565 = vmatprep.subr.mxu0 0.0
    %3566 = vmatpush1.xpose.msra.mxu0 0.0
    %3567 = vmatprep.subr.mxu0 0.0
    %3568 = vmatpush1.xpose.msra.mxu0 0.0
    %3569 = vmatprep.subr.mxu0 0.0
    %3570 = vmatpush1.xpose.msra.mxu0 0.0
    %3571 = vmatprep.subr.mxu0 0.0
    %3572 = vmatpush1.xpose.msra.mxu0 0.0
    %3573 = vmatprep.subr.mxu0 0.0
    %3574 = vmatpush1.xpose.msra.mxu0 0.0
    %3575 = vmatprep.subr.mxu0 0.0
    %3576 = vmatpush1.xpose.msra.mxu0 0.0
    %3577 = vmatprep.subr.mxu0 0.0
    %3578 = vmatpush1.xpose.msra.mxu0 0.0
    %3579 = vmatprep.subr.mxu0 0.0
    %3580 = vmatpush1.xpose.msra.mxu0 0.0
    %3581 = vmatprep.subr.mxu0 0.0
    %3582 = vmatpush1.xpose.msra.mxu0 0.0
    %3583 = vmatprep.subr.mxu0 0.0
    %3584 = vmatpush1.xpose.msra.mxu0 0.0
    %3585 = vmatprep.subr.mxu0 0.0
    %3586 = vmatpush1.xpose.msra.mxu0 0.0
    %3587 = vmatprep.subr.mxu0 0.0
    %3588 = vmatpush1.xpose.msra.mxu0 0.0
    %3589 = vmatprep.subr.mxu0 0.0
    %3590 = vmatpush1.xpose.msra.mxu0 0.0
    %3591 = vmatprep.subr.mxu0 0.0
    %3592 = vmatpush1.xpose.msra.mxu0 0.0
    %3593 = vmatprep.subr.mxu0 0.0
    %3594 = vmatpush1.xpose.msra.mxu0 0.0
    %3595 = vmatprep.subr.mxu0 0.0
    %3596 = vmatpush1.xpose.msra.mxu0 0.0
    %3597 = vmatprep.subr.mxu0 0.0
    %3598 = vmatpush1.xpose.msra.mxu0 0.0
    %3599 = vmatprep.subr.mxu0 0.0
    %3600 = vmatpush1.xpose.msra.mxu0 0.0
    %3601 = vmatprep.subr.mxu0 0.0
    %3602 = vmatpush1.xpose.msra.mxu0 0.0
    %3603 = vmatprep.subr.mxu0 0.0
    %3604 = vmatpush1.xpose.msra.mxu0 0.0
    %3605 = vmatprep.subr.mxu0 0.0
    %3606 = vmatpush1.xpose.msra.mxu0 0.0
    %3607 = vmatprep.subr.mxu0 0.0
    %3608 = vmatpush1.xpose.msra.mxu0 0.0
    %3609 = vmatprep.subr.mxu0 0.0
    %3610 = vmatpush1.xpose.msra.mxu0 0.0
    %3611 = vmatprep.subr.mxu0 0.0
    %3612 = vmatpush1.xpose.msra.mxu0 0.0
    %3613 = vmatprep.subr.mxu0 0.0
    %3614 = vmatpush1.xpose.msra.mxu0 0.0
    %3615 = vmatprep.mubr.f32.mxu0 0.0
    %3616 = vmatmul.mubr.f32.gmra.mrb[0].mxu0 %v3537
    %v3617 = vpop.f32.mrb[0].mxu0
    %v3618 = vadd.f32 0.0, %v3617
    %v3619 = vpop.f32.mrb[0].mxu0
    %3620 = vdwg.mxu0
    %v3622 = vsel %vm2161, %v3083, 0
    %v3625 = vsel %vm2161, %v104, 0
    %v3628 = vsel %vm2161, %v105, 0
    %v3631 = vsel %vm2161, %v106, 0
    %v3634 = vsel %vm2161, %v107, 0
    %3636 = vmatprep.subr.mxu0 0.0
    %3637 = vmatpush1.xpose.msra.mxu0 %v3625
    %3638 = vmatprep.subr.mxu0 0.0
    %3639 = vmatpush1.xpose.msra.mxu0 %v3628
    %3640 = vmatprep.subr.mxu0 0.0
    %3641 = vmatpush1.xpose.msra.mxu0 %v3631
    %3642 = vmatprep.subr.mxu0 0.0
    %3643 = vmatpush1.xpose.msra.mxu0 %v3634
    %3644 = vmatprep.subr.mxu0 0.0
    %3645 = vmatpush1.xpose.msra.mxu0 0.0
    %3646 = vmatprep.subr.mxu0 0.0
    %3647 = vmatpush1.xpose.msra.mxu0 0.0
    %3648 = vmatprep.subr.mxu0 0.0
    %3649 = vmatpush1.xpose.msra.mxu0 0.0
    %3650 = vmatprep.subr.mxu0 0.0
    %3651 = vmatpush1.xpose.msra.mxu0 0.0
    %3652 = vmatprep.subr.mxu0 0.0
    %3653 = vmatpush1.xpose.msra.mxu0 0.0
    %3654 = vmatprep.subr.mxu0 0.0
    %3655 = vmatpush1.xpose.msra.mxu0 0.0
    %3656 = vmatprep.subr.mxu0 0.0
    %3657 = vmatpush1.xpose.msra.mxu0 0.0
    %3658 = vmatprep.subr.mxu0 0.0
    %3659 = vmatpush1.xpose.msra.mxu0 0.0
    %3660 = vmatprep.subr.mxu0 0.0
    %3661 = vmatpush1.xpose.msra.mxu0 0.0
    %3662 = vmatprep.subr.mxu0 0.0
    %3663 = vmatpush1.xpose.msra.mxu0 0.0
    %3664 = vmatprep.subr.mxu0 0.0
    %3665 = vmatpush1.xpose.msra.mxu0 0.0
    %3666 = vmatprep.subr.mxu0 0.0
    %3667 = vmatpush1.xpose.msra.mxu0 0.0
    %3668 = vmatprep.subr.mxu0 0.0
    %3669 = vmatpush1.xpose.msra.mxu0 0.0
    %3670 = vmatprep.subr.mxu0 0.0
    %3671 = vmatpush1.xpose.msra.mxu0 0.0
    %3672 = vmatprep.subr.mxu0 0.0
    %3673 = vmatpush1.xpose.msra.mxu0 0.0
    %3674 = vmatprep.subr.mxu0 0.0
    %3675 = vmatpush1.xpose.msra.mxu0 0.0
    %3676 = vmatprep.subr.mxu0 0.0
    %3677 = vmatpush1.xpose.msra.mxu0 0.0
    %3678 = vmatprep.subr.mxu0 0.0
    %3679 = vmatpush1.xpose.msra.mxu0 0.0
    %3680 = vmatprep.subr.mxu0 0.0
    %3681 = vmatpush1.xpose.msra.mxu0 0.0
    %3682 = vmatprep.subr.mxu0 0.0
    %3683 = vmatpush1.xpose.msra.mxu0 0.0
    %3684 = vmatprep.subr.mxu0 0.0
    %3685 = vmatpush1.xpose.msra.mxu0 0.0
    %3686 = vmatprep.subr.mxu0 0.0
    %3687 = vmatpush1.xpose.msra.mxu0 0.0
    %3688 = vmatprep.subr.mxu0 0.0
    %3689 = vmatpush1.xpose.msra.mxu0 0.0
    %3690 = vmatprep.subr.mxu0 0.0
    %3691 = vmatpush1.xpose.msra.mxu0 0.0
    %3692 = vmatprep.subr.mxu0 0.0
    %3693 = vmatpush1.xpose.msra.mxu0 0.0
    %3694 = vmatprep.subr.mxu0 0.0
    %3695 = vmatpush1.xpose.msra.mxu0 0.0
    %3696 = vmatprep.subr.mxu0 0.0
    %3697 = vmatpush1.xpose.msra.mxu0 0.0
    %3698 = vmatprep.subr.mxu0 0.0
    %3699 = vmatpush1.xpose.msra.mxu0 0.0
    %3700 = vmatprep.mubr.f32.mxu0 0.0
    %3701 = vmatmul.mubr.f32.gmra.mrb[0].mxu0 %v3622
    %v3702 = vpop.f32.mrb[0].mxu0
    %v3703 = vadd.f32 0.0, %v3702
    %v3704 = vpop.f32.mrb[0].mxu0
    %3705 = vdwg.mxu0
    %v3707 = vsel %vm2161, %v3156, 0
    %v3710 = vsel %vm2161, %v108, 0
    %v3713 = vsel %vm2161, %v109, 0
    %v3716 = vsel %vm2161, %v110, 0
    %v3719 = vsel %vm2161, %v111, 0
    %3721 = vmatprep.subr.mxu0 0.0
    %3722 = vmatpush1.xpose.msra.mxu0 %v3710
    %3723 = vmatprep.subr.mxu0 0.0
    %3724 = vmatpush1.xpose.msra.mxu0 %v3713
    %3725 = vmatprep.subr.mxu0 0.0
    %3726 = vmatpush1.xpose.msra.mxu0 %v3716
    %3727 = vmatprep.subr.mxu0 0.0
    %3728 = vmatpush1.xpose.msra.mxu0 %v3719
    %3729 = vmatprep.subr.mxu0 0.0
    %3730 = vmatpush1.xpose.msra.mxu0 0.0
    %3731 = vmatprep.subr.mxu0 0.0
    %3732 = vmatpush1.xpose.msra.mxu0 0.0
    %3733 = vmatprep.subr.mxu0 0.0
    %3734 = vmatpush1.xpose.msra.mxu0 0.0
    %3735 = vmatprep.subr.mxu0 0.0
    %3736 = vmatpush1.xpose.msra.mxu0 0.0
    %3737 = vmatprep.subr.mxu0 0.0
    %3738 = vmatpush1.xpose.msra.mxu0 0.0
    %3739 = vmatprep.subr.mxu0 0.0
    %3740 = vmatpush1.xpose.msra.mxu0 0.0
    %3741 = vmatprep.subr.mxu0 0.0
    %3742 = vmatpush1.xpose.msra.mxu0 0.0
    %3743 = vmatprep.subr.mxu0 0.0
    %3744 = vmatpush1.xpose.msra.mxu0 0.0
    %3745 = vmatprep.subr.mxu0 0.0
    %3746 = vmatpush1.xpose.msra.mxu0 0.0
    %3747 = vmatprep.subr.mxu0 0.0
    %3748 = vmatpush1.xpose.msra.mxu0 0.0
    %3749 = vmatprep.subr.mxu0 0.0
    %3750 = vmatpush1.xpose.msra.mxu0 0.0
    %3751 = vmatprep.subr.mxu0 0.0
    %3752 = vmatpush1.xpose.msra.mxu0 0.0
    %3753 = vmatprep.subr.mxu0 0.0
    %3754 = vmatpush1.xpose.msra.mxu0 0.0
    %3755 = vmatprep.subr.mxu0 0.0
    %3756 = vmatpush1.xpose.msra.mxu0 0.0
    %3757 = vmatprep.subr.mxu0 0.0
    %3758 = vmatpush1.xpose.msra.mxu0 0.0
    %3759 = vmatprep.subr.mxu0 0.0
    %3760 = vmatpush1.xpose.msra.mxu0 0.0
    %3761 = vmatprep.subr.mxu0 0.0
    %3762 = vmatpush1.xpose.msra.mxu0 0.0
    %3763 = vmatprep.subr.mxu0 0.0
    %3764 = vmatpush1.xpose.msra.mxu0 0.0
    %3765 = vmatprep.subr.mxu0 0.0
    %3766 = vmatpush1.xpose.msra.mxu0 0.0
    %3767 = vmatprep.subr.mxu0 0.0
    %3768 = vmatpush1.xpose.msra.mxu0 0.0
    %3769 = vmatprep.subr.mxu0 0.0
    %3770 = vmatpush1.xpose.msra.mxu0 0.0
    %3771 = vmatprep.subr.mxu0 0.0
    %3772 = vmatpush1.xpose.msra.mxu0 0.0
    %3773 = vmatprep.subr.mxu0 0.0
    %3774 = vmatpush1.xpose.msra.mxu0 0.0
    %3775 = vmatprep.subr.mxu0 0.0
    %3776 = vmatpush1.xpose.msra.mxu0 0.0
    %3777 = vmatprep.subr.mxu0 0.0
    %3778 = vmatpush1.xpose.msra.mxu0 0.0
    %3779 = vmatprep.subr.mxu0 0.0
    %3780 = vmatpush1.xpose.msra.mxu0 0.0
    %3781 = vmatprep.subr.mxu0 0.0
    %3782 = vmatpush1.xpose.msra.mxu0 0.0
    %3783 = vmatprep.subr.mxu0 0.0
    %3784 = vmatpush1.xpose.msra.mxu0 0.0
    %3785 = vmatprep.mubr.f32.mxu0 0.0
    %3786 = vmatmul.mubr.f32.gmra.mrb[0].mxu0 %v3707
    %v3787 = vpop.f32.mrb[0].mxu0
    %v3788 = vadd.f32 0.0, %v3787
    %v3789 = vpop.f32.mrb[0].mxu0
    %3790 = vdwg.mxu0
    %v3792 = vsel %vm2161, %v3229, 0
    %v3795 = vsel %vm2161, %v112, 0
    %v3798 = vsel %vm2161, %v113, 0
    %v3801 = vsel %vm2161, %v114, 0
    %v3804 = vsel %vm2161, %v115, 0
    %3806 = vmatprep.subr.mxu0 0.0
    %3807 = vmatpush1.xpose.msra.mxu0 %v3795
    %3808 = vmatprep.subr.mxu0 0.0
    %3809 = vmatpush1.xpose.msra.mxu0 %v3798
    %3810 = vmatprep.subr.mxu0 0.0
    %3811 = vmatpush1.xpose.msra.mxu0 %v3801
    %3812 = vmatprep.subr.mxu0 0.0
    %3813 = vmatpush1.xpose.msra.mxu0 %v3804
    %3814 = vmatprep.subr.mxu0 0.0
    %3815 = vmatpush1.xpose.msra.mxu0 0.0
    %3816 = vmatprep.subr.mxu0 0.0
    %3817 = vmatpush1.xpose.msra.mxu0 0.0
    %3818 = vmatprep.subr.mxu0 0.0
    %3819 = vmatpush1.xpose.msra.mxu0 0.0
    %3820 = vmatprep.subr.mxu0 0.0
    %3821 = vmatpush1.xpose.msra.mxu0 0.0
    %3822 = vmatprep.subr.mxu0 0.0
    %3823 = vmatpush1.xpose.msra.mxu0 0.0
    %3824 = vmatprep.subr.mxu0 0.0
    %3825 = vmatpush1.xpose.msra.mxu0 0.0
    %3826 = vmatprep.subr.mxu0 0.0
    %3827 = vmatpush1.xpose.msra.mxu0 0.0
    %3828 = vmatprep.subr.mxu0 0.0
    %3829 = vmatpush1.xpose.msra.mxu0 0.0
    %3830 = vmatprep.subr.mxu0 0.0
    %3831 = vmatpush1.xpose.msra.mxu0 0.0
    %3832 = vmatprep.subr.mxu0 0.0
    %3833 = vmatpush1.xpose.msra.mxu0 0.0
    %3834 = vmatprep.subr.mxu0 0.0
    %3835 = vmatpush1.xpose.msra.mxu0 0.0
    %3836 = vmatprep.subr.mxu0 0.0
    %3837 = vmatpush1.xpose.msra.mxu0 0.0
    %3838 = vmatprep.subr.mxu0 0.0
    %3839 = vmatpush1.xpose.msra.mxu0 0.0
    %3840 = vmatprep.subr.mxu0 0.0
    %3841 = vmatpush1.xpose.msra.mxu0 0.0
    %3842 = vmatprep.subr.mxu0 0.0
    %3843 = vmatpush1.xpose.msra.mxu0 0.0
    %3844 = vmatprep.subr.mxu0 0.0
    %3845 = vmatpush1.xpose.msra.mxu0 0.0
    %3846 = vmatprep.subr.mxu0 0.0
    %3847 = vmatpush1.xpose.msra.mxu0 0.0
    %3848 = vmatprep.subr.mxu0 0.0
    %3849 = vmatpush1.xpose.msra.mxu0 0.0
    %3850 = vmatprep.subr.mxu0 0.0
    %3851 = vmatpush1.xpose.msra.mxu0 0.0
    %3852 = vmatprep.subr.mxu0 0.0
    %3853 = vmatpush1.xpose.msra.mxu0 0.0
    %3854 = vmatprep.subr.mxu0 0.0
    %3855 = vmatpush1.xpose.msra.mxu0 0.0
    %3856 = vmatprep.subr.mxu0 0.0
    %3857 = vmatpush1.xpose.msra.mxu0 0.0
    %3858 = vmatprep.subr.mxu0 0.0
    %3859 = vmatpush1.xpose.msra.mxu0 0.0
    %3860 = vmatprep.subr.mxu0 0.0
    %3861 = vmatpush1.xpose.msra.mxu0 0.0
    %3862 = vmatprep.subr.mxu0 0.0
    %3863 = vmatpush1.xpose.msra.mxu0 0.0
    %3864 = vmatprep.subr.mxu0 0.0
    %3865 = vmatpush1.xpose.msra.mxu0 0.0
    %3866 = vmatprep.subr.mxu0 0.0
    %3867 = vmatpush1.xpose.msra.mxu0 0.0
    %3868 = vmatprep.subr.mxu0 0.0
    %3869 = vmatpush1.xpose.msra.mxu0 0.0
    %3870 = vmatprep.mubr.f32.mxu0 0.0
    %3871 = vmatmul.mubr.f32.gmra.mrb[0].mxu0 %v3792
    %v3872 = vpop.f32.mrb[0].mxu0
    %v3873 = vadd.f32 0.0, %v3872
    %v3874 = vpop.f32.mrb[0].mxu0
    %3875 = vdwg.mxu0
    %v3877 = vsel %vm2161, %v3302, 0
    %v3880 = vsel %vm2161, %v116, 0
    %v3883 = vsel %vm2161, %v117, 0
    %v3886 = vsel %vm2161, %v118, 0
    %v3889 = vsel %vm2161, %v119, 0
    %3891 = vmatprep.subr.mxu0 0.0
    %3892 = vmatpush1.xpose.msra.mxu0 %v3880
    %3893 = vmatprep.subr.mxu0 0.0
    %3894 = vmatpush1.xpose.msra.mxu0 %v3883
    %3895 = vmatprep.subr.mxu0 0.0
    %3896 = vmatpush1.xpose.msra.mxu0 %v3886
    %3897 = vmatprep.subr.mxu0 0.0
    %3898 = vmatpush1.xpose.msra.mxu0 %v3889
    %3899 = vmatprep.subr.mxu0 0.0
    %3900 = vmatpush1.xpose.msra.mxu0 0.0
    %3901 = vmatprep.subr.mxu0 0.0
    %3902 = vmatpush1.xpose.msra.mxu0 0.0
    %3903 = vmatprep.subr.mxu0 0.0
    %3904 = vmatpush1.xpose.msra.mxu0 0.0
    %3905 = vmatprep.subr.mxu0 0.0
    %3906 = vmatpush1.xpose.msra.mxu0 0.0
    %3907 = vmatprep.subr.mxu0 0.0
    %3908 = vmatpush1.xpose.msra.mxu0 0.0
    %3909 = vmatprep.subr.mxu0 0.0
    %3910 = vmatpush1.xpose.msra.mxu0 0.0
    %3911 = vmatprep.subr.mxu0 0.0
    %3912 = vmatpush1.xpose.msra.mxu0 0.0
    %3913 = vmatprep.subr.mxu0 0.0
    %3914 = vmatpush1.xpose.msra.mxu0 0.0
    %3915 = vmatprep.subr.mxu0 0.0
    %3916 = vmatpush1.xpose.msra.mxu0 0.0
    %3917 = vmatprep.subr.mxu0 0.0
    %3918 = vmatpush1.xpose.msra.mxu0 0.0
    %3919 = vmatprep.subr.mxu0 0.0
    %3920 = vmatpush1.xpose.msra.mxu0 0.0
    %3921 = vmatprep.subr.mxu0 0.0
    %3922 = vmatpush1.xpose.msra.mxu0 0.0
    %3923 = vmatprep.subr.mxu0 0.0
    %3924 = vmatpush1.xpose.msra.mxu0 0.0
    %3925 = vmatprep.subr.mxu0 0.0
    %3926 = vmatpush1.xpose.msra.mxu0 0.0
    %3927 = vmatprep.subr.mxu0 0.0
    %3928 = vmatpush1.xpose.msra.mxu0 0.0
    %3929 = vmatprep.subr.mxu0 0.0
    %3930 = vmatpush1.xpose.msra.mxu0 0.0
    %3931 = vmatprep.subr.mxu0 0.0
    %3932 = vmatpush1.xpose.msra.mxu0 0.0
    %3933 = vmatprep.subr.mxu0 0.0
    %3934 = vmatpush1.xpose.msra.mxu0 0.0
    %3935 = vmatprep.subr.mxu0 0.0
    %3936 = vmatpush1.xpose.msra.mxu0 0.0
    %3937 = vmatprep.subr.mxu0 0.0
    %3938 = vmatpush1.xpose.msra.mxu0 0.0
    %3939 = vmatprep.subr.mxu0 0.0
    %3940 = vmatpush1.xpose.msra.mxu0 0.0
    %3941 = vmatprep.subr.mxu0 0.0
    %3942 = vmatpush1.xpose.msra.mxu0 0.0
    %3943 = vmatprep.subr.mxu0 0.0
    %3944 = vmatpush1.xpose.msra.mxu0 0.0
    %3945 = vmatprep.subr.mxu0 0.0
    %3946 = vmatpush1.xpose.msra.mxu0 0.0
    %3947 = vmatprep.subr.mxu0 0.0
    %3948 = vmatpush1.xpose.msra.mxu0 0.0
    %3949 = vmatprep.subr.mxu0 0.0
    %3950 = vmatpush1.xpose.msra.mxu0 0.0
    %3951 = vmatprep.subr.mxu0 0.0
    %3952 = vmatpush1.xpose.msra.mxu0 0.0
    %3953 = vmatprep.subr.mxu0 0.0
    %3954 = vmatpush1.xpose.msra.mxu0 0.0
    %3955 = vmatprep.mubr.f32.mxu0 0.0
    %3956 = vmatmul.mubr.f32.gmra.mrb[0].mxu0 %v3877
    %v3957 = vpop.f32.mrb[0].mxu0
    %v3958 = vadd.f32 0.0, %v3957
    %v3959 = vpop.f32.mrb[0].mxu0
    %3960 = vdwg.mxu0
    %v3962 = vsel %vm2161, %v3375, 0
    %v3965 = vsel %vm2161, %v120, 0
    %v3968 = vsel %vm2161, %v121, 0
    %v3971 = vsel %vm2161, %v122, 0
    %v3974 = vsel %vm2161, %v123, 0
    %3976 = vmatprep.subr.mxu0 0.0
    %3977 = vmatpush1.xpose.msra.mxu0 %v3965
    %3978 = vmatprep.subr.mxu0 0.0
    %3979 = vmatpush1.xpose.msra.mxu0 %v3968
    %3980 = vmatprep.subr.mxu0 0.0
    %3981 = vmatpush1.xpose.msra.mxu0 %v3971
    %3982 = vmatprep.subr.mxu0 0.0
    %3983 = vmatpush1.xpose.msra.mxu0 %v3974
    %3984 = vmatprep.subr.mxu0 0.0
    %3985 = vmatpush1.xpose.msra.mxu0 0.0
    %3986 = vmatprep.subr.mxu0 0.0
    %3987 = vmatpush1.xpose.msra.mxu0 0.0
    %3988 = vmatprep.subr.mxu0 0.0
    %3989 = vmatpush1.xpose.msra.mxu0 0.0
    %3990 = vmatprep.subr.mxu0 0.0
    %3991 = vmatpush1.xpose.msra.mxu0 0.0
    %3992 = vmatprep.subr.mxu0 0.0
    %3993 = vmatpush1.xpose.msra.mxu0 0.0
    %3994 = vmatprep.subr.mxu0 0.0
    %3995 = vmatpush1.xpose.msra.mxu0 0.0
    %3996 = vmatprep.subr.mxu0 0.0
    %3997 = vmatpush1.xpose.msra.mxu0 0.0
    %3998 = vmatprep.subr.mxu0 0.0
    %3999 = vmatpush1.xpose.msra.mxu0 0.0
    %4000 = vmatprep.subr.mxu0 0.0
    %4001 = vmatpush1.xpose.msra.mxu0 0.0
    %4002 = vmatprep.subr.mxu0 0.0
    %4003 = vmatpush1.xpose.msra.mxu0 0.0
    %4004 = vmatprep.subr.mxu0 0.0
    %4005 = vmatpush1.xpose.msra.mxu0 0.0
    %4006 = vmatprep.subr.mxu0 0.0
    %4007 = vmatpush1.xpose.msra.mxu0 0.0
    %4008 = vmatprep.subr.mxu0 0.0
    %4009 = vmatpush1.xpose.msra.mxu0 0.0
    %4010 = vmatprep.subr.mxu0 0.0
    %4011 = vmatpush1.xpose.msra.mxu0 0.0
    %4012 = vmatprep.subr.mxu0 0.0
    %4013 = vmatpush1.xpose.msra.mxu0 0.0
    %4014 = vmatprep.subr.mxu0 0.0
    %4015 = vmatpush1.xpose.msra.mxu0 0.0
    %4016 = vmatprep.subr.mxu0 0.0
    %4017 = vmatpush1.xpose.msra.mxu0 0.0
    %4018 = vmatprep.subr.mxu0 0.0
    %4019 = vmatpush1.xpose.msra.mxu0 0.0
    %4020 = vmatprep.subr.mxu0 0.0
    %4021 = vmatpush1.xpose.msra.mxu0 0.0
    %4022 = vmatprep.subr.mxu0 0.0
    %4023 = vmatpush1.xpose.msra.mxu0 0.0
    %4024 = vmatprep.subr.mxu0 0.0
    %4025 = vmatpush1.xpose.msra.mxu0 0.0
    %4026 = vmatprep.subr.mxu0 0.0
    %4027 = vmatpush1.xpose.msra.mxu0 0.0
    %4028 = vmatprep.subr.mxu0 0.0
    %4029 = vmatpush1.xpose.msra.mxu0 0.0
    %4030 = vmatprep.subr.mxu0 0.0
    %4031 = vmatpush1.xpose.msra.mxu0 0.0
    %4032 = vmatprep.subr.mxu0 0.0
    %4033 = vmatpush1.xpose.msra.mxu0 0.0
    %4034 = vmatprep.subr.mxu0 0.0
    %4035 = vmatpush1.xpose.msra.mxu0 0.0
    %4036 = vmatprep.subr.mxu0 0.0
    %4037 = vmatpush1.xpose.msra.mxu0 0.0
    %4038 = vmatprep.subr.mxu0 0.0
    %4039 = vmatpush1.xpose.msra.mxu0 0.0
    %4040 = vmatprep.mubr.f32.mxu0 0.0
    %4041 = vmatmul.mubr.f32.gmra.mrb[0].mxu0 %v3962
    %v4042 = vpop.f32.mrb[0].mxu0
    %v4043 = vadd.f32 0.0, %v4042
    %v4044 = vpop.f32.mrb[0].mxu0
    %4045 = vdwg.mxu0
    %v4047 = vsel %vm2161, %v3448, 0
    %v4050 = vsel %vm2161, %v124, 0
    %v4053 = vsel %vm2161, %v125, 0
    %v4056 = vsel %vm2161, %v126, 0
    %v4059 = vsel %vm2161, %v127, 0
    %4061 = vmatprep.subr.mxu0 0.0
    %4062 = vmatpush1.xpose.msra.mxu0 %v4050
    %4063 = vmatprep.subr.mxu0 0.0
    %4064 = vmatpush1.xpose.msra.mxu0 %v4053
    %4065 = vmatprep.subr.mxu0 0.0
    %4066 = vmatpush1.xpose.msra.mxu0 %v4056
    %4067 = vmatprep.subr.mxu0 0.0
    %4068 = vmatpush1.xpose.msra.mxu0 %v4059
    %4069 = vmatprep.subr.mxu0 0.0
    %4070 = vmatpush1.xpose.msra.mxu0 0.0
    %4071 = vmatprep.subr.mxu0 0.0
    %4072 = vmatpush1.xpose.msra.mxu0 0.0
    %4073 = vmatprep.subr.mxu0 0.0
    %4074 = vmatpush1.xpose.msra.mxu0 0.0
    %4075 = vmatprep.subr.mxu0 0.0
    %4076 = vmatpush1.xpose.msra.mxu0 0.0
    %4077 = vmatprep.subr.mxu0 0.0
    %4078 = vmatpush1.xpose.msra.mxu0 0.0
    %4079 = vmatprep.subr.mxu0 0.0
    %4080 = vmatpush1.xpose.msra.mxu0 0.0
    %4081 = vmatprep.subr.mxu0 0.0
    %4082 = vmatpush1.xpose.msra.mxu0 0.0
    %4083 = vmatprep.subr.mxu0 0.0
    %4084 = vmatpush1.xpose.msra.mxu0 0.0
    %4085 = vmatprep.subr.mxu0 0.0
    %4086 = vmatpush1.xpose.msra.mxu0 0.0
    %4087 = vmatprep.subr.mxu0 0.0
    %4088 = vmatpush1.xpose.msra.mxu0 0.0
    %4089 = vmatprep.subr.mxu0 0.0
    %4090 = vmatpush1.xpose.msra.mxu0 0.0
    %4091 = vmatprep.subr.mxu0 0.0
    %4092 = vmatpush1.xpose.msra.mxu0 0.0
    %4093 = vmatprep.subr.mxu0 0.0
    %4094 = vmatpush1.xpose.msra.mxu0 0.0
    %4095 = vmatprep.subr.mxu0 0.0
    %4096 = vmatpush1.xpose.msra.mxu0 0.0
    %4097 = vmatprep.subr.mxu0 0.0
    %4098 = vmatpush1.xpose.msra.mxu0 0.0
    %4099 = vmatprep.subr.mxu0 0.0
    %4100 = vmatpush1.xpose.msra.mxu0 0.0
    %4101 = vmatprep.subr.mxu0 0.0
    %4102 = vmatpush1.xpose.msra.mxu0 0.0
    %4103 = vmatprep.subr.mxu0 0.0
    %4104 = vmatpush1.xpose.msra.mxu0 0.0
    %4105 = vmatprep.subr.mxu0 0.0
    %4106 = vmatpush1.xpose.msra.mxu0 0.0
    %4107 = vmatprep.subr.mxu0 0.0
    %4108 = vmatpush1.xpose.msra.mxu0 0.0
    %4109 = vmatprep.subr.mxu0 0.0
    %4110 = vmatpush1.xpose.msra.mxu0 0.0
    %4111 = vmatprep.subr.mxu0 0.0
    %4112 = vmatpush1.xpose.msra.mxu0 0.0
    %4113 = vmatprep.subr.mxu0 0.0
    %4114 = vmatpush1.xpose.msra.mxu0 0.0
    %4115 = vmatprep.subr.mxu0 0.0
    %4116 = vmatpush1.xpose.msra.mxu0 0.0
    %4117 = vmatprep.subr.mxu0 0.0
    %4118 = vmatpush1.xpose.msra.mxu0 0.0
    %4119 = vmatprep.subr.mxu0 0.0
    %4120 = vmatpush1.xpose.msra.mxu0 0.0
    %4121 = vmatprep.subr.mxu0 0.0
    %4122 = vmatpush1.xpose.msra.mxu0 0.0
    %4123 = vmatprep.subr.mxu0 0.0
    %4124 = vmatpush1.xpose.msra.mxu0 0.0
    %4125 = vmatprep.mubr.f32.mxu0 0.0
    %4126 = vmatmul.mubr.f32.gmra.mrb[0].mxu0 %v4047
    %v4127 = vpop.f32.mrb[0].mxu0
    %v4128 = vadd.f32 0.0, %v4127
    %v4129 = vpop.f32.mrb[0].mxu0
    %4130 = vdwg.mxu0
    %v4131 = vsel %vm309, %v3533, 0.0
    %v4132 = vsel %vm309, %v3618, 0.0
    %v4133 = vadd.f32 %v4131, %v4132
    %v4134 = vsel %vm309, %v3703, 0.0
    %v4135 = vadd.f32 %v4133, %v4134
    %v4136 = vsel %vm309, %v3788, 0.0
    %v4137 = vadd.f32 %v4135, %v4136
    %v4138 = vsel %vm309, %v3873, 0.0
    %v4139 = vadd.f32 %v4137, %v4138
    %v4140 = vsel %vm309, %v3958, 0.0
    %v4141 = vadd.f32 %v4139, %v4140
    %v4142 = vsel %vm309, %v4043, 0.0
    %v4143 = vadd.f32 %v4141, %v4142
    %v4144 = vsel %vm309, %v4128, 0.0
    %v4145 = vadd.f32 %v4143, %v4144
    %v4147 = vlaneseq
    %v4148 = vshrl.u32 %v4147, 7
    %v4149 = vsub.s32 0, %v4148
    %v4150 = vrot.slane %v128, %v4149
    %v4152 = vadd.f32 %v4145, %v4150
    %v4153 = vadd.f32 %v260, %v4152
    %v4154 = vsel %vm309, %v4153, 0.0
    %4155 = vadd.xlane.f32.xlu0 %v4154
    %v4156 = vpop.xlane.xlu0 %4155
    %v4157 = vrcp.pop 32.0
    %v4158 = vmul.f32 %v4156, %v4157
    %v4159 = vsub.f32 %v4153, %v4158
    %v4160 = vmul.f32 %v4159, %v4159
    %v4161 = vsel %vm309, %v4160, 0.0
    %4162 = vadd.xlane.f32.xlu0 %v4161
    %v4163 = vpop.xlane.xlu0 %4162
    %v4164 = vmul.f32 %v4163, %v4157
    %v4165 = vadd.f32 %v4164, 1e-05
    %v4166 = vrsqrt.pop %v4165
    %v4167 = vmul.f32 %v4159, %v4166
    %v4169 = vlaneseq
    %v4170 = vshrl.u32 %v4169, 7
    %v4171 = vsub.s32 0, %v4170
    %v4172 = vrot.slane %v129, %v4171
    %v4174 = vmul.f32 %v4167, %v4172
    %v4176 = vlaneseq
    %v4177 = vshrl.u32 %v4176, 7
    %v4178 = vsub.s32 0, %v4177
    %v4179 = vrot.slane %v130, %v4178
    %v4181 = vadd.f32 %v4174, %v4179
    %v4183 = vlaneseq
    %v4184 = vshrl.u32 %v4183, 7
    %v4185 = vsub.s32 0, %v4184
    %v4186 = vrot.slane %v259, %v4185
    %v4187 = vlaneseq
    %v4188 = vshrl.u32 %v4187, 7
    %v4189 = vsub.s32 1, %v4188
    %v4190 = vrot.slane %v259, %v4189
    %v4191 = vlaneseq
    %v4192 = vshrl.u32 %v4191, 7
    %v4193 = vsub.s32 2, %v4192
    %v4194 = vrot.slane %v259, %v4193
    %v4195 = vlaneseq
    %v4196 = vshrl.u32 %v4195, 7
    %v4197 = vsub.s32 3, %v4196
    %v4198 = vrot.slane %v259, %v4197
    %v4199 = vlaneseq
    %v4200 = vshrl.u32 %v4199, 7
    %v4201 = vsub.s32 4, %v4200
    %v4202 = vrot.slane %v259, %v4201
    %v4203 = vlaneseq
    %v4204 = vshrl.u32 %v4203, 7
    %v4205 = vsub.s32 5, %v4204
    %v4206 = vrot.slane %v259, %v4205
    %v4207 = vlaneseq
    %v4208 = vshrl.u32 %v4207, 7
    %v4209 = vsub.s32 6, %v4208
    %v4210 = vrot.slane %v259, %v4209
    %v4211 = vlaneseq
    %v4212 = vshrl.u32 %v4211, 7
    %v4213 = vsub.s32 7, %v4212
    %v4214 = vrot.slane %v259, %v4213
    %v4224 = vsel %vm309, %v4181, 0
    %v4227 = vsel %vm309, %v131, 0
    %v4230 = vsel %vm309, %v132, 0
    %v4233 = vsel %vm309, %v133, 0
    %v4236 = vsel %vm309, %v134, 0
    %v4239 = vsel %vm309, %v135, 0
    %v4242 = vsel %vm309, %v136, 0
    %v4245 = vsel %vm309, %v137, 0
    %v4248 = vsel %vm309, %v138, 0
    %v4251 = vsel %vm309, %v139, 0
    %v4254 = vsel %vm309, %v140, 0
    %v4257 = vsel %vm309, %v141, 0
    %v4260 = vsel %vm309, %v142, 0
    %v4263 = vsel %vm309, %v143, 0
    %v4266 = vsel %vm309, %v144, 0
    %v4269 = vsel %vm309, %v145, 0
    %v4272 = vsel %vm309, %v146, 0
    %v4275 = vsel %vm309, %v147, 0
    %v4278 = vsel %vm309, %v148, 0
    %v4281 = vsel %vm309, %v149, 0
    %v4284 = vsel %vm309, %v150, 0
    %v4287 = vsel %vm309, %v151, 0
    %v4290 = vsel %vm309, %v152, 0
    %v4293 = vsel %vm309, %v153, 0
    %v4296 = vsel %vm309, %v154, 0
    %v4299 = vsel %vm309, %v155, 0
    %v4302 = vsel %vm309, %v156, 0
    %v4305 = vsel %vm309, %v157, 0
    %v4308 = vsel %vm309, %v158, 0
    %v4311 = vsel %vm309, %v159, 0
    %v4314 = vsel %vm309, %v160, 0
    %v4317 = vsel %vm309, %v161, 0
    %v4320 = vsel %vm309, %v162, 0
    %v4323 = vsel %vm309, %v163, 0
    %v4326 = vsel %vm309, %v164, 0
    %v4329 = vsel %vm309, %v165, 0
    %v4332 = vsel %vm309, %v166, 0
    %v4335 = vsel %vm309, %v167, 0
    %v4338 = vsel %vm309, %v168, 0
    %v4341 = vsel %vm309, %v169, 0
    %v4344 = vsel %vm309, %v170, 0
    %v4347 = vsel %vm309, %v171, 0
    %v4350 = vsel %vm309, %v172, 0
    %v4353 = vsel %vm309, %v173, 0
    %v4356 = vsel %vm309, %v174, 0
    %v4359 = vsel %vm309, %v175, 0
    %v4362 = vsel %vm309, %v176, 0
    %v4365 = vsel %vm309, %v177, 0
    %v4368 = vsel %vm309, %v178, 0
    %v4371 = vsel %vm309, %v179, 0
    %v4374 = vsel %vm309, %v180, 0
    %v4377 = vsel %vm309, %v181, 0
    %v4380 = vsel %vm309, %v182, 0
    %v4383 = vsel %vm309, %v183, 0
    %v4386 = vsel %vm309, %v184, 0
    %v4389 = vsel %vm309, %v185, 0
    %v4392 = vsel %vm309, %v186, 0
    %v4395 = vsel %vm309, %v187, 0
    %v4398 = vsel %vm309, %v188, 0
    %v4401 = vsel %vm309, %v189, 0
    %v4404 = vsel %vm309, %v190, 0
    %v4407 = vsel %vm309, %v191, 0
    %v4410 = vsel %vm309, %v192, 0
    %v4413 = vsel %vm309, %v193, 0
    %v4416 = vsel %vm309, %v194, 0
    %v4419 = vsel %vm309, %v195, 0
    %v4422 = vsel %vm309, %v196, 0
    %v4425 = vsel %vm309, %v197, 0
    %v4428 = vsel %vm309, %v198, 0
    %v4431 = vsel %vm309, %v199, 0
    %v4434 = vsel %vm309, %v200, 0
    %v4437 = vsel %vm309, %v201, 0
    %v4440 = vsel %vm309, %v202, 0
    %v4443 = vsel %vm309, %v203, 0
    %v4446 = vsel %vm309, %v204, 0
    %v4449 = vsel %vm309, %v205, 0
    %v4452 = vsel %vm309, %v206, 0
    %v4455 = vsel %vm309, %v207, 0
    %v4458 = vsel %vm309, %v208, 0
    %v4461 = vsel %vm309, %v209, 0
    %v4464 = vsel %vm309, %v210, 0
    %v4467 = vsel %vm309, %v211, 0
    %v4470 = vsel %vm309, %v212, 0
    %v4473 = vsel %vm309, %v213, 0
    %v4476 = vsel %vm309, %v214, 0
    %v4479 = vsel %vm309, %v215, 0
    %v4482 = vsel %vm309, %v216, 0
    %v4485 = vsel %vm309, %v217, 0
    %v4488 = vsel %vm309, %v218, 0
    %v4491 = vsel %vm309, %v219, 0
    %v4494 = vsel %vm309, %v220, 0
    %v4497 = vsel %vm309, %v221, 0
    %v4500 = vsel %vm309, %v222, 0
    %v4503 = vsel %vm309, %v223, 0
    %v4506 = vsel %vm309, %v224, 0
    %v4509 = vsel %vm309, %v225, 0
    %v4512 = vsel %vm309, %v226, 0
    %v4515 = vsel %vm309, %v227, 0
    %v4518 = vsel %vm309, %v228, 0
    %v4521 = vsel %vm309, %v229, 0
    %v4524 = vsel %vm309, %v230, 0
    %v4527 = vsel %vm309, %v231, 0
    %v4530 = vsel %vm309, %v232, 0
    %v4533 = vsel %vm309, %v233, 0
    %v4536 = vsel %vm309, %v234, 0
    %v4539 = vsel %vm309, %v235, 0
    %v4542 = vsel %vm309, %v236, 0
    %v4545 = vsel %vm309, %v237, 0
    %v4548 = vsel %vm309, %v238, 0
    %v4551 = vsel %vm309, %v239, 0
    %v4554 = vsel %vm309, %v240, 0
    %v4557 = vsel %vm309, %v241, 0
    %v4560 = vsel %vm309, %v242, 0
    %v4563 = vsel %vm309, %v243, 0
    %v4566 = vsel %vm309, %v244, 0
    %v4569 = vsel %vm309, %v245, 0
    %v4572 = vsel %vm309, %v246, 0
    %v4575 = vsel %vm309, %v247, 0
    %v4578 = vsel %vm309, %v248, 0
    %v4581 = vsel %vm309, %v249, 0
    %v4584 = vsel %vm309, %v250, 0
    %v4587 = vsel %vm309, %v251, 0
    %v4590 = vsel %vm309, %v252, 0
    %v4593 = vsel %vm309, %v253, 0
    %v4596 = vsel %vm309, %v254, 0
    %v4599 = vsel %vm309, %v255, 0
    %v4602 = vsel %vm309, %v256, 0
    %v4605 = vsel %vm309, %v257, 0
    %v4608 = vsel %vm309, %v258, 0
    %4610 = vmatprep.subr.mxu0 0.0
    %4611 = vmatpush1.xpose.msra.mxu0 %v4227
    %4612 = vmatprep.subr.mxu0 0.0
    %4613 = vmatpush1.xpose.msra.mxu0 %v4230
    %4614 = vmatprep.subr.mxu0 0.0
    %4615 = vmatpush1.xpose.msra.mxu0 %v4233
    %4616 = vmatprep.subr.mxu0 0.0
    %4617 = vmatpush1.xpose.msra.mxu0 %v4236
    %4618 = vmatprep.subr.mxu0 0.0
    %4619 = vmatpush1.xpose.msra.mxu0 %v4239
    %4620 = vmatprep.subr.mxu0 0.0
    %4621 = vmatpush1.xpose.msra.mxu0 %v4242
    %4622 = vmatprep.subr.mxu0 0.0
    %4623 = vmatpush1.xpose.msra.mxu0 %v4245
    %4624 = vmatprep.subr.mxu0 0.0
    %4625 = vmatpush1.xpose.msra.mxu0 %v4248
    %4626 = vmatprep.subr.mxu0 0.0
    %4627 = vmatpush1.xpose.msra.mxu0 %v4251
    %4628 = vmatprep.subr.mxu0 0.0
    %4629 = vmatpush1.xpose.msra.mxu0 %v4254
    %4630 = vmatprep.subr.mxu0 0.0
    %4631 = vmatpush1.xpose.msra.mxu0 %v4257
    %4632 = vmatprep.subr.mxu0 0.0
    %4633 = vmatpush1.xpose.msra.mxu0 %v4260
    %4634 = vmatprep.subr.mxu0 0.0
    %4635 = vmatpush1.xpose.msra.mxu0 %v4263
    %4636 = vmatprep.subr.mxu0 0.0
    %4637 = vmatpush1.xpose.msra.mxu0 %v4266
    %4638 = vmatprep.subr.mxu0 0.0
    %4639 = vmatpush1.xpose.msra.mxu0 %v4269
    %4640 = vmatprep.subr.mxu0 0.0
    %4641 = vmatpush1.xpose.msra.mxu0 %v4272
    %4642 = vmatprep.subr.mxu0 0.0
    %4643 = vmatpush1.xpose.msra.mxu0 %v4275
    %4644 = vmatprep.subr.mxu0 0.0
    %4645 = vmatpush1.xpose.msra.mxu0 %v4278
    %4646 = vmatprep.subr.mxu0 0.0
    %4647 = vmatpush1.xpose.msra.mxu0 %v4281
    %4648 = vmatprep.subr.mxu0 0.0
    %4649 = vmatpush1.xpose.msra.mxu0 %v4284
    %4650 = vmatprep.subr.mxu0 0.0
    %4651 = vmatpush1.xpose.msra.mxu0 %v4287
    %4652 = vmatprep.subr.mxu0 0.0
    %4653 = vmatpush1.xpose.msra.mxu0 %v4290
    %4654 = vmatprep.subr.mxu0 0.0
    %4655 = vmatpush1.xpose.msra.mxu0 %v4293
    %4656 = vmatprep.subr.mxu0 0.0
    %4657 = vmatpush1.xpose.msra.mxu0 %v4296
    %4658 = vmatprep.subr.mxu0 0.0
    %4659 = vmatpush1.xpose.msra.mxu0 %v4299
    %4660 = vmatprep.subr.mxu0 0.0
    %4661 = vmatpush1.xpose.msra.mxu0 %v4302
    %4662 = vmatprep.subr.mxu0 0.0
    %4663 = vmatpush1.xpose.msra.mxu0 %v4305
    %4664 = vmatprep.subr.mxu0 0.0
    %4665 = vmatpush1.xpose.msra.mxu0 %v4308
    %4666 = vmatprep.subr.mxu0 0.0
    %4667 = vmatpush1.xpose.msra.mxu0 %v4311
    %4668 = vmatprep.subr.mxu0 0.0
    %4669 = vmatpush1.xpose.msra.mxu0 %v4314
    %4670 = vmatprep.subr.mxu0 0.0
    %4671 = vmatpush1.xpose.msra.mxu0 %v4317
    %4672 = vmatprep.subr.mxu0 0.0
    %4673 = vmatpush1.xpose.msra.mxu0 %v4320
    %4674 = vmatprep.mubr.f32.mxu0 0.0
    %4675 = vmatmul.mubr.f32.gmra.mrb[0].mxu0 %v4224
    %v4676 = vpop.f32.mrb[0].mxu0
    %v4677 = vadd.f32 %v4186, %v4676
    %v4678 = vpop.f32.mrb[0].mxu0
    %v4679 = vadd.f32 %v4190, %v4678
    %4680 = vdwg.mxu0
    %4681 = vmatprep.subr.mxu0 0.0
    %4682 = vmatpush1.xpose.msra.mxu0 %v4323
    %4683 = vmatprep.subr.mxu0 0.0
    %4684 = vmatpush1.xpose.msra.mxu0 %v4326
    %4685 = vmatprep.subr.mxu0 0.0
    %4686 = vmatpush1.xpose.msra.mxu0 %v4329
    %4687 = vmatprep.subr.mxu0 0.0
    %4688 = vmatpush1.xpose.msra.mxu0 %v4332
    %4689 = vmatprep.subr.mxu0 0.0
    %4690 = vmatpush1.xpose.msra.mxu0 %v4335
    %4691 = vmatprep.subr.mxu0 0.0
    %4692 = vmatpush1.xpose.msra.mxu0 %v4338
    %4693 = vmatprep.subr.mxu0 0.0
    %4694 = vmatpush1.xpose.msra.mxu0 %v4341
    %4695 = vmatprep.subr.mxu0 0.0
    %4696 = vmatpush1.xpose.msra.mxu0 %v4344
    %4697 = vmatprep.subr.mxu0 0.0
    %4698 = vmatpush1.xpose.msra.mxu0 %v4347
    %4699 = vmatprep.subr.mxu0 0.0
    %4700 = vmatpush1.xpose.msra.mxu0 %v4350
    %4701 = vmatprep.subr.mxu0 0.0
    %4702 = vmatpush1.xpose.msra.mxu0 %v4353
    %4703 = vmatprep.subr.mxu0 0.0
    %4704 = vmatpush1.xpose.msra.mxu0 %v4356
    %4705 = vmatprep.subr.mxu0 0.0
    %4706 = vmatpush1.xpose.msra.mxu0 %v4359
    %4707 = vmatprep.subr.mxu0 0.0
    %4708 = vmatpush1.xpose.msra.mxu0 %v4362
    %4709 = vmatprep.subr.mxu0 0.0
    %4710 = vmatpush1.xpose.msra.mxu0 %v4365
    %4711 = vmatprep.subr.mxu0 0.0
    %4712 = vmatpush1.xpose.msra.mxu0 %v4368
    %4713 = vmatprep.subr.mxu0 0.0
    %4714 = vmatpush1.xpose.msra.mxu0 %v4371
    %4715 = vmatprep.subr.mxu0 0.0
    %4716 = vmatpush1.xpose.msra.mxu0 %v4374
    %4717 = vmatprep.subr.mxu0 0.0
    %4718 = vmatpush1.xpose.msra.mxu0 %v4377
    %4719 = vmatprep.subr.mxu0 0.0
    %4720 = vmatpush1.xpose.msra.mxu0 %v4380
    %4721 = vmatprep.subr.mxu0 0.0
    %4722 = vmatpush1.xpose.msra.mxu0 %v4383
    %4723 = vmatprep.subr.mxu0 0.0
    %4724 = vmatpush1.xpose.msra.mxu0 %v4386
    %4725 = vmatprep.subr.mxu0 0.0
    %4726 = vmatpush1.xpose.msra.mxu0 %v4389
    %4727 = vmatprep.subr.mxu0 0.0
    %4728 = vmatpush1.xpose.msra.mxu0 %v4392
    %4729 = vmatprep.subr.mxu0 0.0
    %4730 = vmatpush1.xpose.msra.mxu0 %v4395
    %4731 = vmatprep.subr.mxu0 0.0
    %4732 = vmatpush1.xpose.msra.mxu0 %v4398
    %4733 = vmatprep.subr.mxu0 0.0
    %4734 = vmatpush1.xpose.msra.mxu0 %v4401
    %4735 = vmatprep.subr.mxu0 0.0
    %4736 = vmatpush1.xpose.msra.mxu0 %v4404
    %4737 = vmatprep.subr.mxu0 0.0
    %4738 = vmatpush1.xpose.msra.mxu0 %v4407
    %4739 = vmatprep.subr.mxu0 0.0
    %4740 = vmatpush1.xpose.msra.mxu0 %v4410
    %4741 = vmatprep.subr.mxu0 0.0
    %4742 = vmatpush1.xpose.msra.mxu0 %v4413
    %4743 = vmatprep.subr.mxu0 0.0
    %4744 = vmatpush1.xpose.msra.mxu0 %v4416
    %4745 = vmatprep.mubr.f32.mxu0 0.0
    %4746 = vmatmul.mubr.f32.gmra.mrb[0].mxu0 %v4224
    %v4747 = vpop.f32.mrb[0].mxu0
    %v4748 = vadd.f32 %v4194, %v4747
    %v4749 = vpop.f32.mrb[0].mxu0
    %v4750 = vadd.f32 %v4198, %v4749
    %4751 = vdwg.mxu0
    %4752 = vmatprep.subr.mxu0 0.0
    %4753 = vmatpush1.xpose.msra.mxu0 %v4419
    %4754 = vmatprep.subr.mxu0 0.0
    %4755 = vmatpush1.xpose.msra.mxu0 %v4422
    %4756 = vmatprep.subr.mxu0 0.0
    %4757 = vmatpush1.xpose.msra.mxu0 %v4425
    %4758 = vmatprep.subr.mxu0 0.0
    %4759 = vmatpush1.xpose.msra.mxu0 %v4428
    %4760 = vmatprep.subr.mxu0 0.0
    %4761 = vmatpush1.xpose.msra.mxu0 %v4431
    %4762 = vmatprep.subr.mxu0 0.0
    %4763 = vmatpush1.xpose.msra.mxu0 %v4434
    %4764 = vmatprep.subr.mxu0 0.0
    %4765 = vmatpush1.xpose.msra.mxu0 %v4437
    %4766 = vmatprep.subr.mxu0 0.0
    %4767 = vmatpush1.xpose.msra.mxu0 %v4440
    %4768 = vmatprep.subr.mxu0 0.0
    %4769 = vmatpush1.xpose.msra.mxu0 %v4443
    %4770 = vmatprep.subr.mxu0 0.0
    %4771 = vmatpush1.xpose.msra.mxu0 %v4446
    %4772 = vmatprep.subr.mxu0 0.0
    %4773 = vmatpush1.xpose.msra.mxu0 %v4449
    %4774 = vmatprep.subr.mxu0 0.0
    %4775 = vmatpush1.xpose.msra.mxu0 %v4452
    %4776 = vmatprep.subr.mxu0 0.0
    %4777 = vmatpush1.xpose.msra.mxu0 %v4455
    %4778 = vmatprep.subr.mxu0 0.0
    %4779 = vmatpush1.xpose.msra.mxu0 %v4458
    %4780 = vmatprep.subr.mxu0 0.0
    %4781 = vmatpush1.xpose.msra.mxu0 %v4461
    %4782 = vmatprep.subr.mxu0 0.0
    %4783 = vmatpush1.xpose.msra.mxu0 %v4464
    %4784 = vmatprep.subr.mxu0 0.0
    %4785 = vmatpush1.xpose.msra.mxu0 %v4467
    %4786 = vmatprep.subr.mxu0 0.0
    %4787 = vmatpush1.xpose.msra.mxu0 %v4470
    %4788 = vmatprep.subr.mxu0 0.0
    %4789 = vmatpush1.xpose.msra.mxu0 %v4473
    %4790 = vmatprep.subr.mxu0 0.0
    %4791 = vmatpush1.xpose.msra.mxu0 %v4476
    %4792 = vmatprep.subr.mxu0 0.0
    %4793 = vmatpush1.xpose.msra.mxu0 %v4479
    %4794 = vmatprep.subr.mxu0 0.0
    %4795 = vmatpush1.xpose.msra.mxu0 %v4482
    %4796 = vmatprep.subr.mxu0 0.0
    %4797 = vmatpush1.xpose.msra.mxu0 %v4485
    %4798 = vmatprep.subr.mxu0 0.0
    %4799 = vmatpush1.xpose.msra.mxu0 %v4488
    %4800 = vmatprep.subr.mxu0 0.0
    %4801 = vmatpush1.xpose.msra.mxu0 %v4491
    %4802 = vmatprep.subr.mxu0 0.0
    %4803 = vmatpush1.xpose.msra.mxu0 %v4494
    %4804 = vmatprep.subr.mxu0 0.0
    %4805 = vmatpush1.xpose.msra.mxu0 %v4497
    %4806 = vmatprep.subr.mxu0 0.0
    %4807 = vmatpush1.xpose.msra.mxu0 %v4500
    %4808 = vmatprep.subr.mxu0 0.0
    %4809 = vmatpush1.xpose.msra.mxu0 %v4503
    %4810 = vmatprep.subr.mxu0 0.0
    %4811 = vmatpush1.xpose.msra.mxu0 %v4506
    %4812 = vmatprep.subr.mxu0 0.0
    %4813 = vmatpush1.xpose.msra.mxu0 %v4509
    %4814 = vmatprep.subr.mxu0 0.0
    %4815 = vmatpush1.xpose.msra.mxu0 %v4512
    %4816 = vmatprep.mubr.f32.mxu0 0.0
    %4817 = vmatmul.mubr.f32.gmra.mrb[0].mxu0 %v4224
    %v4818 = vpop.f32.mrb[0].mxu0
    %v4819 = vadd.f32 %v4202, %v4818
    %v4820 = vpop.f32.mrb[0].mxu0
    %v4821 = vadd.f32 %v4206, %v4820
    %4822 = vdwg.mxu0
    %4823 = vmatprep.subr.mxu0 0.0
    %4824 = vmatpush1.xpose.msra.mxu0 %v4515
    %4825 = vmatprep.subr.mxu0 0.0
    %4826 = vmatpush1.xpose.msra.mxu0 %v4518
    %4827 = vmatprep.subr.mxu0 0.0
    %4828 = vmatpush1.xpose.msra.mxu0 %v4521
    %4829 = vmatprep.subr.mxu0 0.0
    %4830 = vmatpush1.xpose.msra.mxu0 %v4524
    %4831 = vmatprep.subr.mxu0 0.0
    %4832 = vmatpush1.xpose.msra.mxu0 %v4527
    %4833 = vmatprep.subr.mxu0 0.0
    %4834 = vmatpush1.xpose.msra.mxu0 %v4530
    %4835 = vmatprep.subr.mxu0 0.0
    %4836 = vmatpush1.xpose.msra.mxu0 %v4533
    %4837 = vmatprep.subr.mxu0 0.0
    %4838 = vmatpush1.xpose.msra.mxu0 %v4536
    %4839 = vmatprep.subr.mxu0 0.0
    %4840 = vmatpush1.xpose.msra.mxu0 %v4539
    %4841 = vmatprep.subr.mxu0 0.0
    %4842 = vmatpush1.xpose.msra.mxu0 %v4542
    %4843 = vmatprep.subr.mxu0 0.0
    %4844 = vmatpush1.xpose.msra.mxu0 %v4545
    %4845 = vmatprep.subr.mxu0 0.0
    %4846 = vmatpush1.xpose.msra.mxu0 %v4548
    %4847 = vmatprep.subr.mxu0 0.0
    %4848 = vmatpush1.xpose.msra.mxu0 %v4551
    %4849 = vmatprep.subr.mxu0 0.0
    %4850 = vmatpush1.xpose.msra.mxu0 %v4554
    %4851 = vmatprep.subr.mxu0 0.0
    %4852 = vmatpush1.xpose.msra.mxu0 %v4557
    %4853 = vmatprep.subr.mxu0 0.0
    %4854 = vmatpush1.xpose.msra.mxu0 %v4560
    %4855 = vmatprep.subr.mxu0 0.0
    %4856 = vmatpush1.xpose.msra.mxu0 %v4563
    %4857 = vmatprep.subr.mxu0 0.0
    %4858 = vmatpush1.xpose.msra.mxu0 %v4566
    %4859 = vmatprep.subr.mxu0 0.0
    %4860 = vmatpush1.xpose.msra.mxu0 %v4569
    %4861 = vmatprep.subr.mxu0 0.0
    %4862 = vmatpush1.xpose.msra.mxu0 %v4572
    %4863 = vmatprep.subr.mxu0 0.0
    %4864 = vmatpush1.xpose.msra.mxu0 %v4575
    %4865 = vmatprep.subr.mxu0 0.0
    %4866 = vmatpush1.xpose.msra.mxu0 %v4578
    %4867 = vmatprep.subr.mxu0 0.0
    %4868 = vmatpush1.xpose.msra.mxu0 %v4581
    %4869 = vmatprep.subr.mxu0 0.0
    %4870 = vmatpush1.xpose.msra.mxu0 %v4584
    %4871 = vmatprep.subr.mxu0 0.0
    %4872 = vmatpush1.xpose.msra.mxu0 %v4587
    %4873 = vmatprep.subr.mxu0 0.0
    %4874 = vmatpush1.xpose.msra.mxu0 %v4590
    %4875 = vmatprep.subr.mxu0 0.0
    %4876 = vmatpush1.xpose.msra.mxu0 %v4593
    %4877 = vmatprep.subr.mxu0 0.0
    %4878 = vmatpush1.xpose.msra.mxu0 %v4596
    %4879 = vmatprep.subr.mxu0 0.0
    %4880 = vmatpush1.xpose.msra.mxu0 %v4599
    %4881 = vmatprep.subr.mxu0 0.0
    %4882 = vmatpush1.xpose.msra.mxu0 %v4602
    %4883 = vmatprep.subr.mxu0 0.0
    %4884 = vmatpush1.xpose.msra.mxu0 %v4605
    %4885 = vmatprep.subr.mxu0 0.0
    %4886 = vmatpush1.xpose.msra.mxu0 %v4608
    %4887 = vmatprep.mubr.f32.mxu0 0.0
    %4888 = vmatmul.mubr.f32.gmra.mrb[0].mxu0 %v4224
    %v4889 = vpop.f32.mrb[0].mxu0
    %v4890 = vadd.f32 %v4210, %v4889
    %v4891 = vpop.f32.mrb[0].mxu0
    %v4892 = vadd.f32 %v4214, %v4891
    %4893 = vdwg.mxu0
    %4894 = vst.msk [vmem:[#allocation2] sm:$0xff] %vm309, %v4181
    %4895 = vst [vmem:[#allocation4] sm:$0xff] %v4677
    %4896 = vst [vmem:[#allocation4 + $0x8] sm:$0xff] %v4679
    %4897 = vst [vmem:[#allocation4 + $0x10] sm:$0xff] %v4748
    %4898 = vst [vmem:[#allocation4 + $0x18] sm:$0xff] %v4750
    %4899 = vst [vmem:[#allocation4 + $0x20] sm:$0xff] %v4819
    %4900 = vst [vmem:[#allocation4 + $0x28] sm:$0xff] %v4821
    %4901 = vst [vmem:[#allocation4 + $0x30] sm:$0xff] %v4890
    %4902 = vst [vmem:[#allocation4 + $0x38] sm:$0xff] %v4892
    %s4903 = scalar_lea.vmem %s0, 8
    %v4904 = vld [vmem:[%s4903] sm:$0xff]
    %v4906 = vsel %vm309, %v4904, 0
    %4908 = vmatprep.subr.mxu0 0.0
    %4909 = vmatpush1.xpose.msra.mxu0 %v314
    %4910 = vmatprep.subr.mxu0 0.0
    %4911 = vmatpush1.xpose.msra.mxu0 0.0
    %4912 = vmatprep.subr.mxu0 0.0
    %4913 = vmatpush1.xpose.msra.mxu0 0.0
    %4914 = vmatprep.subr.mxu0 0.0
    %4915 = vmatpush1.xpose.msra.mxu0 0.0
    %4916 = vmatprep.subr.mxu0 0.0
    %4917 = vmatpush1.xpose.msra.mxu0 0.0
    %4918 = vmatprep.subr.mxu0 0.0
    %4919 = vmatpush1.xpose.msra.mxu0 0.0
    %4920 = vmatprep.subr.mxu0 0.0
    %4921 = vmatpush1.xpose.msra.mxu0 0.0
    %4922 = vmatprep.subr.mxu0 0.0
    %4923 = vmatpush1.xpose.msra.mxu0 0.0
    %4924 = vmatprep.subr.mxu0 0.0
    %4925 = vmatpush1.xpose.msra.mxu0 0.0
    %4926 = vmatprep.subr.mxu0 0.0
    %4927 = vmatpush1.xpose.msra.mxu0 0.0
    %4928 = vmatprep.subr.mxu0 0.0
    %4929 = vmatpush1.xpose.msra.mxu0 0.0
    %4930 = vmatprep.subr.mxu0 0.0
    %4931 = vmatpush1.xpose.msra.mxu0 0.0
    %4932 = vmatprep.subr.mxu0 0.0
    %4933 = vmatpush1.xpose.msra.mxu0 0.0
    %4934 = vmatprep.subr.mxu0 0.0
    %4935 = vmatpush1.xpose.msra.mxu0 0.0
    %4936 = vmatprep.subr.mxu0 0.0
    %4937 = vmatpush1.xpose.msra.mxu0 0.0
    %4938 = vmatprep.subr.mxu0 0.0
    %4939 = vmatpush1.xpose.msra.mxu0 0.0
    %4940 = vmatprep.subr.mxu0 0.0
    %4941 = vmatpush1.xpose.msra.mxu0 0.0
    %4942 = vmatprep.subr.mxu0 0.0
    %4943 = vmatpush1.xpose.msra.mxu0 0.0
    %4944 = vmatprep.subr.mxu0 0.0
    %4945 = vmatpush1.xpose.msra.mxu0 0.0
    %4946 = vmatprep.subr.mxu0 0.0
    %4947 = vmatpush1.xpose.msra.mxu0 0.0
    %4948 = vmatprep.subr.mxu0 0.0
    %4949 = vmatpush1.xpose.msra.mxu0 0.0
    %4950 = vmatprep.subr.mxu0 0.0
    %4951 = vmatpush1.xpose.msra.mxu0 0.0
    %4952 = vmatprep.subr.mxu0 0.0
    %4953 = vmatpush1.xpose.msra.mxu0 0.0
    %4954 = vmatprep.subr.mxu0 0.0
    %4955 = vmatpush1.xpose.msra.mxu0 0.0
    %4956 = vmatprep.subr.mxu0 0.0
    %4957 = vmatpush1.xpose.msra.mxu0 0.0
    %4958 = vmatprep.subr.mxu0 0.0
    %4959 = vmatpush1.xpose.msra.mxu0 0.0
    %4960 = vmatprep.subr.mxu0 0.0
    %4961 = vmatpush1.xpose.msra.mxu0 0.0
    %4962 = vmatprep.subr.mxu0 0.0
    %4963 = vmatpush1.xpose.msra.mxu0 0.0
    %4964 = vmatprep.subr.mxu0 0.0
    %4965 = vmatpush1.xpose.msra.mxu0 0.0
    %4966 = vmatprep.subr.mxu0 0.0
    %4967 = vmatpush1.xpose.msra.mxu0 0.0
    %4968 = vmatprep.subr.mxu0 0.0
    %4969 = vmatpush1.xpose.msra.mxu0 0.0
    %4970 = vmatprep.subr.mxu0 0.0
    %4971 = vmatpush1.xpose.msra.mxu0 0.0
    %4972 = vmatprep.mubr.f32.mxu0 0.0
    %4973 = vmatmul.mubr.f32.gmra.mrb[0].mxu0 %v4906
    %v4974 = vpop.f32.mrb[0].mxu0
    %v4975 = vadd.f32 %v272, %v4974
    %v4976 = vpop.f32.mrb[0].mxu0
    %4977 = vdwg.mxu0
    %4978 = vmatprep.subr.mxu0 0.0
    %4979 = vmatpush1.xpose.msra.mxu0 %v387
    %4980 = vmatprep.subr.mxu0 0.0
    %4981 = vmatpush1.xpose.msra.mxu0 0.0
    %4982 = vmatprep.subr.mxu0 0.0
    %4983 = vmatpush1.xpose.msra.mxu0 0.0
    %4984 = vmatprep.subr.mxu0 0.0
    %4985 = vmatpush1.xpose.msra.mxu0 0.0
    %4986 = vmatprep.subr.mxu0 0.0
    %4987 = vmatpush1.xpose.msra.mxu0 0.0
    %4988 = vmatprep.subr.mxu0 0.0
    %4989 = vmatpush1.xpose.msra.mxu0 0.0
    %4990 = vmatprep.subr.mxu0 0.0
    %4991 = vmatpush1.xpose.msra.mxu0 0.0
    %4992 = vmatprep.subr.mxu0 0.0
    %4993 = vmatpush1.xpose.msra.mxu0 0.0
    %4994 = vmatprep.subr.mxu0 0.0
    %4995 = vmatpush1.xpose.msra.mxu0 0.0
    %4996 = vmatprep.subr.mxu0 0.0
    %4997 = vmatpush1.xpose.msra.mxu0 0.0
    %4998 = vmatprep.subr.mxu0 0.0
    %4999 = vmatpush1.xpose.msra.mxu0 0.0
    %5000 = vmatprep.subr.mxu0 0.0
    %5001 = vmatpush1.xpose.msra.mxu0 0.0
    %5002 = vmatprep.subr.mxu0 0.0
    %5003 = vmatpush1.xpose.msra.mxu0 0.0
    %5004 = vmatprep.subr.mxu0 0.0
    %5005 = vmatpush1.xpose.msra.mxu0 0.0
    %5006 = vmatprep.subr.mxu0 0.0
    %5007 = vmatpush1.xpose.msra.mxu0 0.0
    %5008 = vmatprep.subr.mxu0 0.0
    %5009 = vmatpush1.xpose.msra.mxu0 0.0
    %5010 = vmatprep.subr.mxu0 0.0
    %5011 = vmatpush1.xpose.msra.mxu0 0.0
    %5012 = vmatprep.subr.mxu0 0.0
    %5013 = vmatpush1.xpose.msra.mxu0 0.0
    %5014 = vmatprep.subr.mxu0 0.0
    %5015 = vmatpush1.xpose.msra.mxu0 0.0
    %5016 = vmatprep.subr.mxu0 0.0
    %5017 = vmatpush1.xpose.msra.mxu0 0.0
    %5018 = vmatprep.subr.mxu0 0.0
    %5019 = vmatpush1.xpose.msra.mxu0 0.0
    %5020 = vmatprep.subr.mxu0 0.0
    %5021 = vmatpush1.xpose.msra.mxu0 0.0
    %5022 = vmatprep.subr.mxu0 0.0
    %5023 = vmatpush1.xpose.msra.mxu0 0.0
    %5024 = vmatprep.subr.mxu0 0.0
    %5025 = vmatpush1.xpose.msra.mxu0 0.0
    %5026 = vmatprep.subr.mxu0 0.0
    %5027 = vmatpush1.xpose.msra.mxu0 0.0
    %5028 = vmatprep.subr.mxu0 0.0
    %5029 = vmatpush1.xpose.msra.mxu0 0.0
    %5030 = vmatprep.subr.mxu0 0.0
    %5031 = vmatpush1.xpose.msra.mxu0 0.0
    %5032 = vmatprep.subr.mxu0 0.0
    %5033 = vmatpush1.xpose.msra.mxu0 0.0
    %5034 = vmatprep.subr.mxu0 0.0
    %5035 = vmatpush1.xpose.msra.mxu0 0.0
    %5036 = vmatprep.subr.mxu0 0.0
    %5037 = vmatpush1.xpose.msra.mxu0 0.0
    %5038 = vmatprep.subr.mxu0 0.0
    %5039 = vmatpush1.xpose.msra.mxu0 0.0
    %5040 = vmatprep.subr.mxu0 0.0
    %5041 = vmatpush1.xpose.msra.mxu0 0.0
    %5042 = vmatprep.mubr.f32.mxu0 0.0
    %5043 = vmatmul.mubr.f32.gmra.mrb[0].mxu0 %v4906
    %v5044 = vpop.f32.mrb[0].mxu0
    %v5045 = vadd.f32 %v276, %v5044
    %v5046 = vpop.f32.mrb[0].mxu0
    %5047 = vdwg.mxu0
    %5048 = vmatprep.subr.mxu0 0.0
    %5049 = vmatpush1.xpose.msra.mxu0 %v460
    %5050 = vmatprep.subr.mxu0 0.0
    %5051 = vmatpush1.xpose.msra.mxu0 0.0
    %5052 = vmatprep.subr.mxu0 0.0
    %5053 = vmatpush1.xpose.msra.mxu0 0.0
    %5054 = vmatprep.subr.mxu0 0.0
    %5055 = vmatpush1.xpose.msra.mxu0 0.0
    %5056 = vmatprep.subr.mxu0 0.0
    %5057 = vmatpush1.xpose.msra.mxu0 0.0
    %5058 = vmatprep.subr.mxu0 0.0
    %5059 = vmatpush1.xpose.msra.mxu0 0.0
    %5060 = vmatprep.subr.mxu0 0.0
    %5061 = vmatpush1.xpose.msra.mxu0 0.0
    %5062 = vmatprep.subr.mxu0 0.0
    %5063 = vmatpush1.xpose.msra.mxu0 0.0
    %5064 = vmatprep.subr.mxu0 0.0
    %5065 = vmatpush1.xpose.msra.mxu0 0.0
    %5066 = vmatprep.subr.mxu0 0.0
    %5067 = vmatpush1.xpose.msra.mxu0 0.0
    %5068 = vmatprep.subr.mxu0 0.0
    %5069 = vmatpush1.xpose.msra.mxu0 0.0
    %5070 = vmatprep.subr.mxu0 0.0
    %5071 = vmatpush1.xpose.msra.mxu0 0.0
    %5072 = vmatprep.subr.mxu0 0.0
    %5073 = vmatpush1.xpose.msra.mxu0 0.0
    %5074 = vmatprep.subr.mxu0 0.0
    %5075 = vmatpush1.xpose.msra.mxu0 0.0
    %5076 = vmatprep.subr.mxu0 0.0
    %5077 = vmatpush1.xpose.msra.mxu0 0.0
    %5078 = vmatprep.subr.mxu0 0.0
    %5079 = vmatpush1.xpose.msra.mxu0 0.0
    %5080 = vmatprep.subr.mxu0 0.0
    %5081 = vmatpush1.xpose.msra.mxu0 0.0
    %5082 = vmatprep.subr.mxu0 0.0
    %5083 = vmatpush1.xpose.msra.mxu0 0.0
    %5084 = vmatprep.subr.mxu0 0.0
    %5085 = vmatpush1.xpose.msra.mxu0 0.0
    %5086 = vmatprep.subr.mxu0 0.0
    %5087 = vmatpush1.xpose.msra.mxu0 0.0
    %5088 = vmatprep.subr.mxu0 0.0
    %5089 = vmatpush1.xpose.msra.mxu0 0.0
    %5090 = vmatprep.subr.mxu0 0.0
    %5091 = vmatpush1.xpose.msra.mxu0 0.0
    %5092 = vmatprep.subr.mxu0 0.0
    %5093 = vmatpush1.xpose.msra.mxu0 0.0
    %5094 = vmatprep.subr.mxu0 0.0
    %5095 = vmatpush1.xpose.msra.mxu0 0.0
    %5096 = vmatprep.subr.mxu0 0.0
    %5097 = vmatpush1.xpose.msra.mxu0 0.0
    %5098 = vmatprep.subr.mxu0 0.0
    %5099 = vmatpush1.xpose.msra.mxu0 0.0
    %5100 = vmatprep.subr.mxu0 0.0
    %5101 = vmatpush1.xpose.msra.mxu0 0.0
    %5102 = vmatprep.subr.mxu0 0.0
    %5103 = vmatpush1.xpose.msra.mxu0 0.0
    %5104 = vmatprep.subr.mxu0 0.0
    %5105 = vmatpush1.xpose.msra.mxu0 0.0
    %5106 = vmatprep.subr.mxu0 0.0
    %5107 = vmatpush1.xpose.msra.mxu0 0.0
    %5108 = vmatprep.subr.mxu0 0.0
    %5109 = vmatpush1.xpose.msra.mxu0 0.0
    %5110 = vmatprep.subr.mxu0 0.0
    %5111 = vmatpush1.xpose.msra.mxu0 0.0
    %5112 = vmatprep.mubr.f32.mxu0 0.0
    %5113 = vmatmul.mubr.f32.gmra.mrb[0].mxu0 %v4906
    %v5114 = vpop.f32.mrb[0].mxu0
    %v5115 = vadd.f32 %v280, %v5114
    %v5116 = vpop.f32.mrb[0].mxu0
    %5117 = vdwg.mxu0
    %5118 = vmatprep.subr.mxu0 0.0
    %5119 = vmatpush1.xpose.msra.mxu0 %v533
    %5120 = vmatprep.subr.mxu0 0.0
    %5121 = vmatpush1.xpose.msra.mxu0 0.0
    %5122 = vmatprep.subr.mxu0 0.0
    %5123 = vmatpush1.xpose.msra.mxu0 0.0
    %5124 = vmatprep.subr.mxu0 0.0
    %5125 = vmatpush1.xpose.msra.mxu0 0.0
    %5126 = vmatprep.subr.mxu0 0.0
    %5127 = vmatpush1.xpose.msra.mxu0 0.0
    %5128 = vmatprep.subr.mxu0 0.0
    %5129 = vmatpush1.xpose.msra.mxu0 0.0
    %5130 = vmatprep.subr.mxu0 0.0
    %5131 = vmatpush1.xpose.msra.mxu0 0.0
    %5132 = vmatprep.subr.mxu0 0.0
    %5133 = vmatpush1.xpose.msra.mxu0 0.0
    %5134 = vmatprep.subr.mxu0 0.0
    %5135 = vmatpush1.xpose.msra.mxu0 0.0
    %5136 = vmatprep.subr.mxu0 0.0
    %5137 = vmatpush1.xpose.msra.mxu0 0.0
    %5138 = vmatprep.subr.mxu0 0.0
    %5139 = vmatpush1.xpose.msra.mxu0 0.0
    %5140 = vmatprep.subr.mxu0 0.0
    %5141 = vmatpush1.xpose.msra.mxu0 0.0
    %5142 = vmatprep.subr.mxu0 0.0
    %5143 = vmatpush1.xpose.msra.mxu0 0.0
    %5144 = vmatprep.subr.mxu0 0.0
    %5145 = vmatpush1.xpose.msra.mxu0 0.0
    %5146 = vmatprep.subr.mxu0 0.0
    %5147 = vmatpush1.xpose.msra.mxu0 0.0
    %5148 = vmatprep.subr.mxu0 0.0
    %5149 = vmatpush1.xpose.msra.mxu0 0.0
    %5150 = vmatprep.subr.mxu0 0.0
    %5151 = vmatpush1.xpose.msra.mxu0 0.0
    %5152 = vmatprep.subr.mxu0 0.0
    %5153 = vmatpush1.xpose.msra.mxu0 0.0
    %5154 = vmatprep.subr.mxu0 0.0
    %5155 = vmatpush1.xpose.msra.mxu0 0.0
    %5156 = vmatprep.subr.mxu0 0.0
    %5157 = vmatpush1.xpose.msra.mxu0 0.0
    %5158 = vmatprep.subr.mxu0 0.0
    %5159 = vmatpush1.xpose.msra.mxu0 0.0
    %5160 = vmatprep.subr.mxu0 0.0
    %5161 = vmatpush1.xpose.msra.mxu0 0.0
    %5162 = vmatprep.subr.mxu0 0.0
    %5163 = vmatpush1.xpose.msra.mxu0 0.0
    %5164 = vmatprep.subr.mxu0 0.0
    %5165 = vmatpush1.xpose.msra.mxu0 0.0
    %5166 = vmatprep.subr.mxu0 0.0
    %5167 = vmatpush1.xpose.msra.mxu0 0.0
    %5168 = vmatprep.subr.mxu0 0.0
    %5169 = vmatpush1.xpose.msra.mxu0 0.0
    %5170 = vmatprep.subr.mxu0 0.0
    %5171 = vmatpush1.xpose.msra.mxu0 0.0
    %5172 = vmatprep.subr.mxu0 0.0
    %5173 = vmatpush1.xpose.msra.mxu0 0.0
    %5174 = vmatprep.subr.mxu0 0.0
    %5175 = vmatpush1.xpose.msra.mxu0 0.0
    %5176 = vmatprep.subr.mxu0 0.0
    %5177 = vmatpush1.xpose.msra.mxu0 0.0
    %5178 = vmatprep.subr.mxu0 0.0
    %5179 = vmatpush1.xpose.msra.mxu0 0.0
    %5180 = vmatprep.subr.mxu0 0.0
    %5181 = vmatpush1.xpose.msra.mxu0 0.0
    %5182 = vmatprep.mubr.f32.mxu0 0.0
    %5183 = vmatmul.mubr.f32.gmra.mrb[0].mxu0 %v4906
    %v5184 = vpop.f32.mrb[0].mxu0
    %v5185 = vadd.f32 %v284, %v5184
    %v5186 = vpop.f32.mrb[0].mxu0
    %5187 = vdwg.mxu0
    %5188 = vmatprep.subr.mxu0 0.0
    %5189 = vmatpush1.xpose.msra.mxu0 %v606
    %5190 = vmatprep.subr.mxu0 0.0
    %5191 = vmatpush1.xpose.msra.mxu0 0.0
    %5192 = vmatprep.subr.mxu0 0.0
    %5193 = vmatpush1.xpose.msra.mxu0 0.0
    %5194 = vmatprep.subr.mxu0 0.0
    %5195 = vmatpush1.xpose.msra.mxu0 0.0
    %5196 = vmatprep.subr.mxu0 0.0
    %5197 = vmatpush1.xpose.msra.mxu0 0.0
    %5198 = vmatprep.subr.mxu0 0.0
    %5199 = vmatpush1.xpose.msra.mxu0 0.0
    %5200 = vmatprep.subr.mxu0 0.0
    %5201 = vmatpush1.xpose.msra.mxu0 0.0
    %5202 = vmatprep.subr.mxu0 0.0
    %5203 = vmatpush1.xpose.msra.mxu0 0.0
    %5204 = vmatprep.subr.mxu0 0.0
    %5205 = vmatpush1.xpose.msra.mxu0 0.0
    %5206 = vmatprep.subr.mxu0 0.0
    %5207 = vmatpush1.xpose.msra.mxu0 0.0
    %5208 = vmatprep.subr.mxu0 0.0
    %5209 = vmatpush1.xpose.msra.mxu0 0.0
    %5210 = vmatprep.subr.mxu0 0.0
    %5211 = vmatpush1.xpose.msra.mxu0 0.0
    %5212 = vmatprep.subr.mxu0 0.0
    %5213 = vmatpush1.xpose.msra.mxu0 0.0
    %5214 = vmatprep.subr.mxu0 0.0
    %5215 = vmatpush1.xpose.msra.mxu0 0.0
    %5216 = vmatprep.subr.mxu0 0.0
    %5217 = vmatpush1.xpose.msra.mxu0 0.0
    %5218 = vmatprep.subr.mxu0 0.0
    %5219 = vmatpush1.xpose.msra.mxu0 0.0
    %5220 = vmatprep.subr.mxu0 0.0
    %5221 = vmatpush1.xpose.msra.mxu0 0.0
    %5222 = vmatprep.subr.mxu0 0.0
    %5223 = vmatpush1.xpose.msra.mxu0 0.0
    %5224 = vmatprep.subr.mxu0 0.0
    %5225 = vmatpush1.xpose.msra.mxu0 0.0
    %5226 = vmatprep.subr.mxu0 0.0
    %5227 = vmatpush1.xpose.msra.mxu0 0.0
    %5228 = vmatprep.subr.mxu0 0.0
    %5229 = vmatpush1.xpose.msra.mxu0 0.0
    %5230 = vmatprep.subr.mxu0 0.0
    %5231 = vmatpush1.xpose.msra.mxu0 0.0
    %5232 = vmatprep.subr.mxu0 0.0
    %5233 = vmatpush1.xpose.msra.mxu0 0.0
    %5234 = vmatprep.subr.mxu0 0.0
    %5235 = vmatpush1.xpose.msra.mxu0 0.0
    %5236 = vmatprep.subr.mxu0 0.0
    %5237 = vmatpush1.xpose.msra.mxu0 0.0
    %5238 = vmatprep.subr.mxu0 0.0
    %5239 = vmatpush1.xpose.msra.mxu0 0.0
    %5240 = vmatprep.subr.mxu0 0.0
    %5241 = vmatpush1.xpose.msra.mxu0 0.0
    %5242 = vmatprep.subr.mxu0 0.0
    %5243 = vmatpush1.xpose.msra.mxu0 0.0
    %5244 = vmatprep.subr.mxu0 0.0
    %5245 = vmatpush1.xpose.msra.mxu0 0.0
    %5246 = vmatprep.subr.mxu0 0.0
    %5247 = vmatpush1.xpose.msra.mxu0 0.0
    %5248 = vmatprep.subr.mxu0 0.0
    %5249 = vmatpush1.xpose.msra.mxu0 0.0
    %5250 = vmatprep.subr.mxu0 0.0
    %5251 = vmatpush1.xpose.msra.mxu0 0.0
    %5252 = vmatprep.mubr.f32.mxu0 0.0
    %5253 = vmatmul.mubr.f32.gmra.mrb[0].mxu0 %v4906
    %v5254 = vpop.f32.mrb[0].mxu0
    %v5255 = vadd.f32 %v288, %v5254
    %v5256 = vpop.f32.mrb[0].mxu0
    %5257 = vdwg.mxu0
    %5258 = vmatprep.subr.mxu0 0.0
    %5259 = vmatpush1.xpose.msra.mxu0 %v679
    %5260 = vmatprep.subr.mxu0 0.0
    %5261 = vmatpush1.xpose.msra.mxu0 0.0
    %5262 = vmatprep.subr.mxu0 0.0
    %5263 = vmatpush1.xpose.msra.mxu0 0.0
    %5264 = vmatprep.subr.mxu0 0.0
    %5265 = vmatpush1.xpose.msra.mxu0 0.0
    %5266 = vmatprep.subr.mxu0 0.0
    %5267 = vmatpush1.xpose.msra.mxu0 0.0
    %5268 = vmatprep.subr.mxu0 0.0
    %5269 = vmatpush1.xpose.msra.mxu0 0.0
    %5270 = vmatprep.subr.mxu0 0.0
    %5271 = vmatpush1.xpose.msra.mxu0 0.0
    %5272 = vmatprep.subr.mxu0 0.0
    %5273 = vmatpush1.xpose.msra.mxu0 0.0
    %5274 = vmatprep.subr.mxu0 0.0
    %5275 = vmatpush1.xpose.msra.mxu0 0.0
    %5276 = vmatprep.subr.mxu0 0.0
    %5277 = vmatpush1.xpose.msra.mxu0 0.0
    %5278 = vmatprep.subr.mxu0 0.0
    %5279 = vmatpush1.xpose.msra.mxu0 0.0
    %5280 = vmatprep.subr.mxu0 0.0
    %5281 = vmatpush1.xpose.msra.mxu0 0.0
    %5282 = vmatprep.subr.mxu0 0.0
    %5283 = vmatpush1.xpose.msra.mxu0 0.0
    %5284 = vmatprep.subr.mxu0 0.0
    %5285 = vmatpush1.xpose.msra.mxu0 0.0
    %5286 = vmatprep.subr.mxu0 0.0
    %5287 = vmatpush1.xpose.msra.mxu0 0.0
    %5288 = vmatprep.subr.mxu0 0.0
    %5289 = vmatpush1.xpose.msra.mxu0 0.0
    %5290 = vmatprep.subr.mxu0 0.0
    %5291 = vmatpush1.xpose.msra.mxu0 0.0
    %5292 = vmatprep.subr.mxu0 0.0
    %5293 = vmatpush1.xpose.msra.mxu0 0.0
    %5294 = vmatprep.subr.mxu0 0.0
    %5295 = vmatpush1.xpose.msra.mxu0 0.0
    %5296 = vmatprep.subr.mxu0 0.0
    %5297 = vmatpush1.xpose.msra.mxu0 0.0
    %5298 = vmatprep.subr.mxu0 0.0
    %5299 = vmatpush1.xpose.msra.mxu0 0.0
    %5300 = vmatprep.subr.mxu0 0.0
    %5301 = vmatpush1.xpose.msra.mxu0 0.0
    %5302 = vmatprep.subr.mxu0 0.0
    %5303 = vmatpush1.xpose.msra.mxu0 0.0
    %5304 = vmatprep.subr.mxu0 0.0
    %5305 = vmatpush1.xpose.msra.mxu0 0.0
    %5306 = vmatprep.subr.mxu0 0.0
    %5307 = vmatpush1.xpose.msra.mxu0 0.0
    %5308 = vmatprep.subr.mxu0 0.0
    %5309 = vmatpush1.xpose.msra.mxu0 0.0
    %5310 = vmatprep.subr.mxu0 0.0
    %5311 = vmatpush1.xpose.msra.mxu0 0.0
    %5312 = vmatprep.subr.mxu0 0.0
    %5313 = vmatpush1.xpose.msra.mxu0 0.0
    %5314 = vmatprep.subr.mxu0 0.0
    %5315 = vmatpush1.xpose.msra.mxu0 0.0
    %5316 = vmatprep.subr.mxu0 0.0
    %5317 = vmatpush1.xpose.msra.mxu0 0.0
    %5318 = vmatprep.subr.mxu0 0.0
    %5319 = vmatpush1.xpose.msra.mxu0 0.0
    %5320 = vmatprep.subr.mxu0 0.0
    %5321 = vmatpush1.xpose.msra.mxu0 0.0
    %5322 = vmatprep.mubr.f32.mxu0 0.0
    %5323 = vmatmul.mubr.f32.gmra.mrb[0].mxu0 %v4906
    %v5324 = vpop.f32.mrb[0].mxu0
    %v5325 = vadd.f32 %v292, %v5324
    %v5326 = vpop.f32.mrb[0].mxu0
    %5327 = vdwg.mxu0
    %5328 = vmatprep.subr.mxu0 0.0
    %5329 = vmatpush1.xpose.msra.mxu0 %v752
    %5330 = vmatprep.subr.mxu0 0.0
    %5331 = vmatpush1.xpose.msra.mxu0 0.0
    %5332 = vmatprep.subr.mxu0 0.0
    %5333 = vmatpush1.xpose.msra.mxu0 0.0
    %5334 = vmatprep.subr.mxu0 0.0
    %5335 = vmatpush1.xpose.msra.mxu0 0.0
    %5336 = vmatprep.subr.mxu0 0.0
    %5337 = vmatpush1.xpose.msra.mxu0 0.0
    %5338 = vmatprep.subr.mxu0 0.0
    %5339 = vmatpush1.xpose.msra.mxu0 0.0
    %5340 = vmatprep.subr.mxu0 0.0
    %5341 = vmatpush1.xpose.msra.mxu0 0.0
    %5342 = vmatprep.subr.mxu0 0.0
    %5343 = vmatpush1.xpose.msra.mxu0 0.0
    %5344 = vmatprep.subr.mxu0 0.0
    %5345 = vmatpush1.xpose.msra.mxu0 0.0
    %5346 = vmatprep.subr.mxu0 0.0
    %5347 = vmatpush1.xpose.msra.mxu0 0.0
    %5348 = vmatprep.subr.mxu0 0.0
    %5349 = vmatpush1.xpose.msra.mxu0 0.0
    %5350 = vmatprep.subr.mxu0 0.0
    %5351 = vmatpush1.xpose.msra.mxu0 0.0
    %5352 = vmatprep.subr.mxu0 0.0
    %5353 = vmatpush1.xpose.msra.mxu0 0.0
    %5354 = vmatprep.subr.mxu0 0.0
    %5355 = vmatpush1.xpose.msra.mxu0 0.0
    %5356 = vmatprep.subr.mxu0 0.0
    %5357 = vmatpush1.xpose.msra.mxu0 0.0
    %5358 = vmatprep.subr.mxu0 0.0
    %5359 = vmatpush1.xpose.msra.mxu0 0.0
    %5360 = vmatprep.subr.mxu0 0.0
    %5361 = vmatpush1.xpose.msra.mxu0 0.0
    %5362 = vmatprep.subr.mxu0 0.0
    %5363 = vmatpush1.xpose.msra.mxu0 0.0
    %5364 = vmatprep.subr.mxu0 0.0
    %5365 = vmatpush1.xpose.msra.mxu0 0.0
    %5366 = vmatprep.subr.mxu0 0.0
    %5367 = vmatpush1.xpose.msra.mxu0 0.0
    %5368 = vmatprep.subr.mxu0 0.0
    %5369 = vmatpush1.xpose.msra.mxu0 0.0
    %5370 = vmatprep.subr.mxu0 0.0
    %5371 = vmatpush1.xpose.msra.mxu0 0.0
    %5372 = vmatprep.subr.mxu0 0.0
    %5373 = vmatpush1.xpose.msra.mxu0 0.0
    %5374 = vmatprep.subr.mxu0 0.0
    %5375 = vmatpush1.xpose.msra.mxu0 0.0
    %5376 = vmatprep.subr.mxu0 0.0
    %5377 = vmatpush1.xpose.msra.mxu0 0.0
    %5378 = vmatprep.subr.mxu0 0.0
    %5379 = vmatpush1.xpose.msra.mxu0 0.0
    %5380 = vmatprep.subr.mxu0 0.0
    %5381 = vmatpush1.xpose.msra.mxu0 0.0
    %5382 = vmatprep.subr.mxu0 0.0
    %5383 = vmatpush1.xpose.msra.mxu0 0.0
    %5384 = vmatprep.subr.mxu0 0.0
    %5385 = vmatpush1.xpose.msra.mxu0 0.0
    %5386 = vmatprep.subr.mxu0 0.0
    %5387 = vmatpush1.xpose.msra.mxu0 0.0
    %5388 = vmatprep.subr.mxu0 0.0
    %5389 = vmatpush1.xpose.msra.mxu0 0.0
    %5390 = vmatprep.subr.mxu0 0.0
    %5391 = vmatpush1.xpose.msra.mxu0 0.0
    %5392 = vmatprep.mubr.f32.mxu0 0.0
    %5393 = vmatmul.mubr.f32.gmra.mrb[0].mxu0 %v4906
    %v5394 = vpop.f32.mrb[0].mxu0
    %v5395 = vadd.f32 %v296, %v5394
    %v5396 = vpop.f32.mrb[0].mxu0
    %5397 = vdwg.mxu0
    %5398 = vmatprep.subr.mxu0 0.0
    %5399 = vmatpush1.xpose.msra.mxu0 %v825
    %5400 = vmatprep.subr.mxu0 0.0
    %5401 = vmatpush1.xpose.msra.mxu0 0.0
    %5402 = vmatprep.subr.mxu0 0.0
    %5403 = vmatpush1.xpose.msra.mxu0 0.0
    %5404 = vmatprep.subr.mxu0 0.0
    %5405 = vmatpush1.xpose.msra.mxu0 0.0
    %5406 = vmatprep.subr.mxu0 0.0
    %5407 = vmatpush1.xpose.msra.mxu0 0.0
    %5408 = vmatprep.subr.mxu0 0.0
    %5409 = vmatpush1.xpose.msra.mxu0 0.0
    %5410 = vmatprep.subr.mxu0 0.0
    %5411 = vmatpush1.xpose.msra.mxu0 0.0
    %5412 = vmatprep.subr.mxu0 0.0
    %5413 = vmatpush1.xpose.msra.mxu0 0.0
    %5414 = vmatprep.subr.mxu0 0.0
    %5415 = vmatpush1.xpose.msra.mxu0 0.0
    %5416 = vmatprep.subr.mxu0 0.0
    %5417 = vmatpush1.xpose.msra.mxu0 0.0
    %5418 = vmatprep.subr.mxu0 0.0
    %5419 = vmatpush1.xpose.msra.mxu0 0.0
    %5420 = vmatprep.subr.mxu0 0.0
    %5421 = vmatpush1.xpose.msra.mxu0 0.0
    %5422 = vmatprep.subr.mxu0 0.0
    %5423 = vmatpush1.xpose.msra.mxu0 0.0
    %5424 = vmatprep.subr.mxu0 0.0
    %5425 = vmatpush1.xpose.msra.mxu0 0.0
    %5426 = vmatprep.subr.mxu0 0.0
    %5427 = vmatpush1.xpose.msra.mxu0 0.0
    %5428 = vmatprep.subr.mxu0 0.0
    %5429 = vmatpush1.xpose.msra.mxu0 0.0
    %5430 = vmatprep.subr.mxu0 0.0
    %5431 = vmatpush1.xpose.msra.mxu0 0.0
    %5432 = vmatprep.subr.mxu0 0.0
    %5433 = vmatpush1.xpose.msra.mxu0 0.0
    %5434 = vmatprep.subr.mxu0 0.0
    %5435 = vmatpush1.xpose.msra.mxu0 0.0
    %5436 = vmatprep.subr.mxu0 0.0
    %5437 = vmatpush1.xpose.msra.mxu0 0.0
    %5438 = vmatprep.subr.mxu0 0.0
    %5439 = vmatpush1.xpose.msra.mxu0 0.0
    %5440 = vmatprep.subr.mxu0 0.0
    %5441 = vmatpush1.xpose.msra.mxu0 0.0
    %5442 = vmatprep.subr.mxu0 0.0
    %5443 = vmatpush1.xpose.msra.mxu0 0.0
    %5444 = vmatprep.subr.mxu0 0.0
    %5445 = vmatpush1.xpose.msra.mxu0 0.0
    %5446 = vmatprep.subr.mxu0 0.0
    %5447 = vmatpush1.xpose.msra.mxu0 0.0
    %5448 = vmatprep.subr.mxu0 0.0
    %5449 = vmatpush1.xpose.msra.mxu0 0.0
    %5450 = vmatprep.subr.mxu0 0.0
    %5451 = vmatpush1.xpose.msra.mxu0 0.0
    %5452 = vmatprep.subr.mxu0 0.0
    %5453 = vmatpush1.xpose.msra.mxu0 0.0
    %5454 = vmatprep.subr.mxu0 0.0
    %5455 = vmatpush1.xpose.msra.mxu0 0.0
    %5456 = vmatprep.subr.mxu0 0.0
    %5457 = vmatpush1.xpose.msra.mxu0 0.0
    %5458 = vmatprep.subr.mxu0 0.0
    %5459 = vmatpush1.xpose.msra.mxu0 0.0
    %5460 = vmatprep.subr.mxu0 0.0
    %5461 = vmatpush1.xpose.msra.mxu0 0.0
    %5462 = vmatprep.mubr.f32.mxu0 0.0
    %5463 = vmatmul.mubr.f32.gmra.mrb[0].mxu0 %v4906
    %v5464 = vpop.f32.mrb[0].mxu0
    %v5465 = vadd.f32 %v300, %v5464
    %v5466 = vpop.f32.mrb[0].mxu0
    %5467 = vdwg.mxu0
    %5468 = vmatprep.subr.mxu0 0.0
    %5469 = vmatpush1.xpose.msra.mxu0 %v946
    %5470 = vmatprep.subr.mxu0 0.0
    %5471 = vmatpush1.xpose.msra.mxu0 0.0
    %5472 = vmatprep.subr.mxu0 0.0
    %5473 = vmatpush1.xpose.msra.mxu0 0.0
    %5474 = vmatprep.subr.mxu0 0.0
    %5475 = vmatpush1.xpose.msra.mxu0 0.0
    %5476 = vmatprep.subr.mxu0 0.0
    %5477 = vmatpush1.xpose.msra.mxu0 0.0
    %5478 = vmatprep.subr.mxu0 0.0
    %5479 = vmatpush1.xpose.msra.mxu0 0.0
    %5480 = vmatprep.subr.mxu0 0.0
    %5481 = vmatpush1.xpose.msra.mxu0 0.0
    %5482 = vmatprep.subr.mxu0 0.0
    %5483 = vmatpush1.xpose.msra.mxu0 0.0
    %5484 = vmatprep.subr.mxu0 0.0
    %5485 = vmatpush1.xpose.msra.mxu0 0.0
    %5486 = vmatprep.subr.mxu0 0.0
    %5487 = vmatpush1.xpose.msra.mxu0 0.0
    %5488 = vmatprep.subr.mxu0 0.0
    %5489 = vmatpush1.xpose.msra.mxu0 0.0
    %5490 = vmatprep.subr.mxu0 0.0
    %5491 = vmatpush1.xpose.msra.mxu0 0.0
    %5492 = vmatprep.subr.mxu0 0.0
    %5493 = vmatpush1.xpose.msra.mxu0 0.0
    %5494 = vmatprep.subr.mxu0 0.0
    %5495 = vmatpush1.xpose.msra.mxu0 0.0
    %5496 = vmatprep.subr.mxu0 0.0
    %5497 = vmatpush1.xpose.msra.mxu0 0.0
    %5498 = vmatprep.subr.mxu0 0.0
    %5499 = vmatpush1.xpose.msra.mxu0 0.0
    %5500 = vmatprep.subr.mxu0 0.0
    %5501 = vmatpush1.xpose.msra.mxu0 0.0
    %5502 = vmatprep.subr.mxu0 0.0
    %5503 = vmatpush1.xpose.msra.mxu0 0.0
    %5504 = vmatprep.subr.mxu0 0.0
    %5505 = vmatpush1.xpose.msra.mxu0 0.0
    %5506 = vmatprep.subr.mxu0 0.0
    %5507 = vmatpush1.xpose.msra.mxu0 0.0
    %5508 = vmatprep.subr.mxu0 0.0
    %5509 = vmatpush1.xpose.msra.mxu0 0.0
    %5510 = vmatprep.subr.mxu0 0.0
    %5511 = vmatpush1.xpose.msra.mxu0 0.0
    %5512 = vmatprep.subr.mxu0 0.0
    %5513 = vmatpush1.xpose.msra.mxu0 0.0
    %5514 = vmatprep.subr.mxu0 0.0
    %5515 = vmatpush1.xpose.msra.mxu0 0.0
    %5516 = vmatprep.subr.mxu0 0.0
    %5517 = vmatpush1.xpose.msra.mxu0 0.0
    %5518 = vmatprep.subr.mxu0 0.0
    %5519 = vmatpush1.xpose.msra.mxu0 0.0
    %5520 = vmatprep.subr.mxu0 0.0
    %5521 = vmatpush1.xpose.msra.mxu0 0.0
    %5522 = vmatprep.subr.mxu0 0.0
    %5523 = vmatpush1.xpose.msra.mxu0 0.0
    %5524 = vmatprep.subr.mxu0 0.0
    %5525 = vmatpush1.xpose.msra.mxu0 0.0
    %5526 = vmatprep.subr.mxu0 0.0
    %5527 = vmatpush1.xpose.msra.mxu0 0.0
    %5528 = vmatprep.subr.mxu0 0.0
    %5529 = vmatpush1.xpose.msra.mxu0 0.0
    %5530 = vmatprep.subr.mxu0 0.0
    %5531 = vmatpush1.xpose.msra.mxu0 0.0
    %5532 = vmatprep.mubr.f32.mxu0 0.0
    %5533 = vmatmul.mubr.f32.gmra.mrb[0].mxu0 %v4906
    %v5534 = vpop.f32.mrb[0].mxu0
    %v5535 = vadd.f32 %v908, %v5534
    %v5536 = vpop.f32.mrb[0].mxu0
    %5537 = vdwg.mxu0
    %5538 = vmatprep.subr.mxu0 0.0
    %5539 = vmatpush1.xpose.msra.mxu0 %v1019
    %5540 = vmatprep.subr.mxu0 0.0
    %5541 = vmatpush1.xpose.msra.mxu0 0.0
    %5542 = vmatprep.subr.mxu0 0.0
    %5543 = vmatpush1.xpose.msra.mxu0 0.0
    %5544 = vmatprep.subr.mxu0 0.0
    %5545 = vmatpush1.xpose.msra.mxu0 0.0
    %5546 = vmatprep.subr.mxu0 0.0
    %5547 = vmatpush1.xpose.msra.mxu0 0.0
    %5548 = vmatprep.subr.mxu0 0.0
    %5549 = vmatpush1.xpose.msra.mxu0 0.0
    %5550 = vmatprep.subr.mxu0 0.0
    %5551 = vmatpush1.xpose.msra.mxu0 0.0
    %5552 = vmatprep.subr.mxu0 0.0
    %5553 = vmatpush1.xpose.msra.mxu0 0.0
    %5554 = vmatprep.subr.mxu0 0.0
    %5555 = vmatpush1.xpose.msra.mxu0 0.0
    %5556 = vmatprep.subr.mxu0 0.0
    %5557 = vmatpush1.xpose.msra.mxu0 0.0
    %5558 = vmatprep.subr.mxu0 0.0
    %5559 = vmatpush1.xpose.msra.mxu0 0.0
    %5560 = vmatprep.subr.mxu0 0.0
    %5561 = vmatpush1.xpose.msra.mxu0 0.0
    %5562 = vmatprep.subr.mxu0 0.0
    %5563 = vmatpush1.xpose.msra.mxu0 0.0
    %5564 = vmatprep.subr.mxu0 0.0
    %5565 = vmatpush1.xpose.msra.mxu0 0.0
    %5566 = vmatprep.subr.mxu0 0.0
    %5567 = vmatpush1.xpose.msra.mxu0 0.0
    %5568 = vmatprep.subr.mxu0 0.0
    %5569 = vmatpush1.xpose.msra.mxu0 0.0
    %5570 = vmatprep.subr.mxu0 0.0
    %5571 = vmatpush1.xpose.msra.mxu0 0.0
    %5572 = vmatprep.subr.mxu0 0.0
    %5573 = vmatpush1.xpose.msra.mxu0 0.0
    %5574 = vmatprep.subr.mxu0 0.0
    %5575 = vmatpush1.xpose.msra.mxu0 0.0
    %5576 = vmatprep.subr.mxu0 0.0
    %5577 = vmatpush1.xpose.msra.mxu0 0.0
    %5578 = vmatprep.subr.mxu0 0.0
    %5579 = vmatpush1.xpose.msra.mxu0 0.0
    %5580 = vmatprep.subr.mxu0 0.0
    %5581 = vmatpush1.xpose.msra.mxu0 0.0
    %5582 = vmatprep.subr.mxu0 0.0
    %5583 = vmatpush1.xpose.msra.mxu0 0.0
    %5584 = vmatprep.subr.mxu0 0.0
    %5585 = vmatpush1.xpose.msra.mxu0 0.0
    %5586 = vmatprep.subr.mxu0 0.0
    %5587 = vmatpush1.xpose.msra.mxu0 0.0
    %5588 = vmatprep.subr.mxu0 0.0
    %5589 = vmatpush1.xpose.msra.mxu0 0.0
    %5590 = vmatprep.subr.mxu0 0.0
    %5591 = vmatpush1.xpose.msra.mxu0 0.0
    %5592 = vmatprep.subr.mxu0 0.0
    %5593 = vmatpush1.xpose.msra.mxu0 0.0
    %5594 = vmatprep.subr.mxu0 0.0
    %5595 = vmatpush1.xpose.msra.mxu0 0.0
    %5596 = vmatprep.subr.mxu0 0.0
    %5597 = vmatpush1.xpose.msra.mxu0 0.0
    %5598 = vmatprep.subr.mxu0 0.0
    %5599 = vmatpush1.xpose.msra.mxu0 0.0
    %5600 = vmatprep.subr.mxu0 0.0
    %5601 = vmatpush1.xpose.msra.mxu0 0.0
    %5602 = vmatprep.mubr.f32.mxu0 0.0
    %5603 = vmatmul.mubr.f32.gmra.mrb[0].mxu0 %v4906
    %v5604 = vpop.f32.mrb[0].mxu0
    %v5605 = vadd.f32 %v912, %v5604
    %v5606 = vpop.f32.mrb[0].mxu0
    %5607 = vdwg.mxu0
    %5608 = vmatprep.subr.mxu0 0.0
    %5609 = vmatpush1.xpose.msra.mxu0 %v1092
    %5610 = vmatprep.subr.mxu0 0.0
    %5611 = vmatpush1.xpose.msra.mxu0 0.0
    %5612 = vmatprep.subr.mxu0 0.0
    %5613 = vmatpush1.xpose.msra.mxu0 0.0
    %5614 = vmatprep.subr.mxu0 0.0
    %5615 = vmatpush1.xpose.msra.mxu0 0.0
    %5616 = vmatprep.subr.mxu0 0.0
    %5617 = vmatpush1.xpose.msra.mxu0 0.0
    %5618 = vmatprep.subr.mxu0 0.0
    %5619 = vmatpush1.xpose.msra.mxu0 0.0
    %5620 = vmatprep.subr.mxu0 0.0
    %5621 = vmatpush1.xpose.msra.mxu0 0.0
    %5622 = vmatprep.subr.mxu0 0.0
    %5623 = vmatpush1.xpose.msra.mxu0 0.0
    %5624 = vmatprep.subr.mxu0 0.0
    %5625 = vmatpush1.xpose.msra.mxu0 0.0
    %5626 = vmatprep.subr.mxu0 0.0
    %5627 = vmatpush1.xpose.msra.mxu0 0.0
    %5628 = vmatprep.subr.mxu0 0.0
    %5629 = vmatpush1.xpose.msra.mxu0 0.0
    %5630 = vmatprep.subr.mxu0 0.0
    %5631 = vmatpush1.xpose.msra.mxu0 0.0
    %5632 = vmatprep.subr.mxu0 0.0
    %5633 = vmatpush1.xpose.msra.mxu0 0.0
    %5634 = vmatprep.subr.mxu0 0.0
    %5635 = vmatpush1.xpose.msra.mxu0 0.0
    %5636 = vmatprep.subr.mxu0 0.0
    %5637 = vmatpush1.xpose.msra.mxu0 0.0
    %5638 = vmatprep.subr.mxu0 0.0
    %5639 = vmatpush1.xpose.msra.mxu0 0.0
    %5640 = vmatprep.subr.mxu0 0.0
    %5641 = vmatpush1.xpose.msra.mxu0 0.0
    %5642 = vmatprep.subr.mxu0 0.0
    %5643 = vmatpush1.xpose.msra.mxu0 0.0
    %5644 = vmatprep.subr.mxu0 0.0
    %5645 = vmatpush1.xpose.msra.mxu0 0.0
    %5646 = vmatprep.subr.mxu0 0.0
    %5647 = vmatpush1.xpose.msra.mxu0 0.0
    %5648 = vmatprep.subr.mxu0 0.0
    %5649 = vmatpush1.xpose.msra.mxu0 0.0
    %5650 = vmatprep.subr.mxu0 0.0
    %5651 = vmatpush1.xpose.msra.mxu0 0.0
    %5652 = vmatprep.subr.mxu0 0.0
    %5653 = vmatpush1.xpose.msra.mxu0 0.0
    %5654 = vmatprep.subr.mxu0 0.0
    %5655 = vmatpush1.xpose.msra.mxu0 0.0
    %5656 = vmatprep.subr.mxu0 0.0
    %5657 = vmatpush1.xpose.msra.mxu0 0.0
    %5658 = vmatprep.subr.mxu0 0.0
    %5659 = vmatpush1.xpose.msra.mxu0 0.0
    %5660 = vmatprep.subr.mxu0 0.0
    %5661 = vmatpush1.xpose.msra.mxu0 0.0
    %5662 = vmatprep.subr.mxu0 0.0
    %5663 = vmatpush1.xpose.msra.mxu0 0.0
    %5664 = vmatprep.subr.mxu0 0.0
    %5665 = vmatpush1.xpose.msra.mxu0 0.0
    %5666 = vmatprep.subr.mxu0 0.0
    %5667 = vmatpush1.xpose.msra.mxu0 0.0
    %5668 = vmatprep.subr.mxu0 0.0
    %5669 = vmatpush1.xpose.msra.mxu0 0.0
    %5670 = vmatprep.subr.mxu0 0.0
    %5671 = vmatpush1.xpose.msra.mxu0 0.0
    %5672 = vmatprep.mubr.f32.mxu0 0.0
    %5673 = vmatmul.mubr.f32.gmra.mrb[0].mxu0 %v4906
    %v5674 = vpop.f32.mrb[0].mxu0
    %v5675 = vadd.f32 %v916, %v5674
    %v5676 = vpop.f32.mrb[0].mxu0
    %5677 = vdwg.mxu0
    %5678 = vmatprep.subr.mxu0 0.0
    %5679 = vmatpush1.xpose.msra.mxu0 %v1165
    %5680 = vmatprep.subr.mxu0 0.0
    %5681 = vmatpush1.xpose.msra.mxu0 0.0
    %5682 = vmatprep.subr.mxu0 0.0
    %5683 = vmatpush1.xpose.msra.mxu0 0.0
    %5684 = vmatprep.subr.mxu0 0.0
    %5685 = vmatpush1.xpose.msra.mxu0 0.0
    %5686 = vmatprep.subr.mxu0 0.0
    %5687 = vmatpush1.xpose.msra.mxu0 0.0
    %5688 = vmatprep.subr.mxu0 0.0
    %5689 = vmatpush1.xpose.msra.mxu0 0.0
    %5690 = vmatprep.subr.mxu0 0.0
    %5691 = vmatpush1.xpose.msra.mxu0 0.0
    %5692 = vmatprep.subr.mxu0 0.0
    %5693 = vmatpush1.xpose.msra.mxu0 0.0
    %5694 = vmatprep.subr.mxu0 0.0
    %5695 = vmatpush1.xpose.msra.mxu0 0.0
    %5696 = vmatprep.subr.mxu0 0.0
    %5697 = vmatpush1.xpose.msra.mxu0 0.0
    %5698 = vmatprep.subr.mxu0 0.0
    %5699 = vmatpush1.xpose.msra.mxu0 0.0
    %5700 = vmatprep.subr.mxu0 0.0
    %5701 = vmatpush1.xpose.msra.mxu0 0.0
    %5702 = vmatprep.subr.mxu0 0.0
    %5703 = vmatpush1.xpose.msra.mxu0 0.0
    %5704 = vmatprep.subr.mxu0 0.0
    %5705 = vmatpush1.xpose.msra.mxu0 0.0
    %5706 = vmatprep.subr.mxu0 0.0
    %5707 = vmatpush1.xpose.msra.mxu0 0.0
    %5708 = vmatprep.subr.mxu0 0.0
    %5709 = vmatpush1.xpose.msra.mxu0 0.0
    %5710 = vmatprep.subr.mxu0 0.0
    %5711 = vmatpush1.xpose.msra.mxu0 0.0
    %5712 = vmatprep.subr.mxu0 0.0
    %5713 = vmatpush1.xpose.msra.mxu0 0.0
    %5714 = vmatprep.subr.mxu0 0.0
    %5715 = vmatpush1.xpose.msra.mxu0 0.0
    %5716 = vmatprep.subr.mxu0 0.0
    %5717 = vmatpush1.xpose.msra.mxu0 0.0
    %5718 = vmatprep.subr.mxu0 0.0
    %5719 = vmatpush1.xpose.msra.mxu0 0.0
    %5720 = vmatprep.subr.mxu0 0.0
    %5721 = vmatpush1.xpose.msra.mxu0 0.0
    %5722 = vmatprep.subr.mxu0 0.0
    %5723 = vmatpush1.xpose.msra.mxu0 0.0
    %5724 = vmatprep.subr.mxu0 0.0
    %5725 = vmatpush1.xpose.msra.mxu0 0.0
    %5726 = vmatprep.subr.mxu0 0.0
    %5727 = vmatpush1.xpose.msra.mxu0 0.0
    %5728 = vmatprep.subr.mxu0 0.0
    %5729 = vmatpush1.xpose.msra.mxu0 0.0
    %5730 = vmatprep.subr.mxu0 0.0
    %5731 = vmatpush1.xpose.msra.mxu0 0.0
    %5732 = vmatprep.subr.mxu0 0.0
    %5733 = vmatpush1.xpose.msra.mxu0 0.0
    %5734 = vmatprep.subr.mxu0 0.0
    %5735 = vmatpush1.xpose.msra.mxu0 0.0
    %5736 = vmatprep.subr.mxu0 0.0
    %5737 = vmatpush1.xpose.msra.mxu0 0.0
    %5738 = vmatprep.subr.mxu0 0.0
    %5739 = vmatpush1.xpose.msra.mxu0 0.0
    %5740 = vmatprep.subr.mxu0 0.0
    %5741 = vmatpush1.xpose.msra.mxu0 0.0
    %5742 = vmatprep.mubr.f32.mxu0 0.0
    %5743 = vmatmul.mubr.f32.gmra.mrb[0].mxu0 %v4906
    %v5744 = vpop.f32.mrb[0].mxu0
    %v5745 = vadd.f32 %v920, %v5744
    %v5746 = vpop.f32.mrb[0].mxu0
    %5747 = vdwg.mxu0
    %5748 = vmatprep.subr.mxu0 0.0
    %5749 = vmatpush1.xpose.msra.mxu0 %v1238
    %5750 = vmatprep.subr.mxu0 0.0
    %5751 = vmatpush1.xpose.msra.mxu0 0.0
    %5752 = vmatprep.subr.mxu0 0.0
    %5753 = vmatpush1.xpose.msra.mxu0 0.0
    %5754 = vmatprep.subr.mxu0 0.0
    %5755 = vmatpush1.xpose.msra.mxu0 0.0
    %5756 = vmatprep.subr.mxu0 0.0
    %5757 = vmatpush1.xpose.msra.mxu0 0.0
    %5758 = vmatprep.subr.mxu0 0.0
    %5759 = vmatpush1.xpose.msra.mxu0 0.0
    %5760 = vmatprep.subr.mxu0 0.0
    %5761 = vmatpush1.xpose.msra.mxu0 0.0
    %5762 = vmatprep.subr.mxu0 0.0
    %5763 = vmatpush1.xpose.msra.mxu0 0.0
    %5764 = vmatprep.subr.mxu0 0.0
    %5765 = vmatpush1.xpose.msra.mxu0 0.0
    %5766 = vmatprep.subr.mxu0 0.0
    %5767 = vmatpush1.xpose.msra.mxu0 0.0
    %5768 = vmatprep.subr.mxu0 0.0
    %5769 = vmatpush1.xpose.msra.mxu0 0.0
    %5770 = vmatprep.subr.mxu0 0.0
    %5771 = vmatpush1.xpose.msra.mxu0 0.0
    %5772 = vmatprep.subr.mxu0 0.0
    %5773 = vmatpush1.xpose.msra.mxu0 0.0
    %5774 = vmatprep.subr.mxu0 0.0
    %5775 = vmatpush1.xpose.msra.mxu0 0.0
    %5776 = vmatprep.subr.mxu0 0.0
    %5777 = vmatpush1.xpose.msra.mxu0 0.0
    %5778 = vmatprep.subr.mxu0 0.0
    %5779 = vmatpush1.xpose.msra.mxu0 0.0
    %5780 = vmatprep.subr.mxu0 0.0
    %5781 = vmatpush1.xpose.msra.mxu0 0.0
    %5782 = vmatprep.subr.mxu0 0.0
    %5783 = vmatpush1.xpose.msra.mxu0 0.0
    %5784 = vmatprep.subr.mxu0 0.0
    %5785 = vmatpush1.xpose.msra.mxu0 0.0
    %5786 = vmatprep.subr.mxu0 0.0
    %5787 = vmatpush1.xpose.msra.mxu0 0.0
    %5788 = vmatprep.subr.mxu0 0.0
    %5789 = vmatpush1.xpose.msra.mxu0 0.0
    %5790 = vmatprep.subr.mxu0 0.0
    %5791 = vmatpush1.xpose.msra.mxu0 0.0
    %5792 = vmatprep.subr.mxu0 0.0
    %5793 = vmatpush1.xpose.msra.mxu0 0.0
    %5794 = vmatprep.subr.mxu0 0.0
    %5795 = vmatpush1.xpose.msra.mxu0 0.0
    %5796 = vmatprep.subr.mxu0 0.0
    %5797 = vmatpush1.xpose.msra.mxu0 0.0
    %5798 = vmatprep.subr.mxu0 0.0
    %5799 = vmatpush1.xpose.msra.mxu0 0.0
    %5800 = vmatprep.subr.mxu0 0.0
    %5801 = vmatpush1.xpose.msra.mxu0 0.0
    %5802 = vmatprep.subr.mxu0 0.0
    %5803 = vmatpush1.xpose.msra.mxu0 0.0
    %5804 = vmatprep.subr.mxu0 0.0
    %5805 = vmatpush1.xpose.msra.mxu0 0.0
    %5806 = vmatprep.subr.mxu0 0.0
    %5807 = vmatpush1.xpose.msra.mxu0 0.0
    %5808 = vmatprep.subr.mxu0 0.0
    %5809 = vmatpush1.xpose.msra.mxu0 0.0
    %5810 = vmatprep.subr.mxu0 0.0
    %5811 = vmatpush1.xpose.msra.mxu0 0.0
    %5812 = vmatprep.mubr.f32.mxu0 0.0
    %5813 = vmatmul.mubr.f32.gmra.mrb[0].mxu0 %v4906
    %v5814 = vpop.f32.mrb[0].mxu0
    %v5815 = vadd.f32 %v924, %v5814
    %v5816 = vpop.f32.mrb[0].mxu0
    %5817 = vdwg.mxu0
    %5818 = vmatprep.subr.mxu0 0.0
    %5819 = vmatpush1.xpose.msra.mxu0 %v1311
    %5820 = vmatprep.subr.mxu0 0.0
    %5821 = vmatpush1.xpose.msra.mxu0 0.0
    %5822 = vmatprep.subr.mxu0 0.0
    %5823 = vmatpush1.xpose.msra.mxu0 0.0
    %5824 = vmatprep.subr.mxu0 0.0
    %5825 = vmatpush1.xpose.msra.mxu0 0.0
    %5826 = vmatprep.subr.mxu0 0.0
    %5827 = vmatpush1.xpose.msra.mxu0 0.0
    %5828 = vmatprep.subr.mxu0 0.0
    %5829 = vmatpush1.xpose.msra.mxu0 0.0
    %5830 = vmatprep.subr.mxu0 0.0
    %5831 = vmatpush1.xpose.msra.mxu0 0.0
    %5832 = vmatprep.subr.mxu0 0.0
    %5833 = vmatpush1.xpose.msra.mxu0 0.0
    %5834 = vmatprep.subr.mxu0 0.0
    %5835 = vmatpush1.xpose.msra.mxu0 0.0
    %5836 = vmatprep.subr.mxu0 0.0
    %5837 = vmatpush1.xpose.msra.mxu0 0.0
    %5838 = vmatprep.subr.mxu0 0.0
    %5839 = vmatpush1.xpose.msra.mxu0 0.0
    %5840 = vmatprep.subr.mxu0 0.0
    %5841 = vmatpush1.xpose.msra.mxu0 0.0
    %5842 = vmatprep.subr.mxu0 0.0
    %5843 = vmatpush1.xpose.msra.mxu0 0.0
    %5844 = vmatprep.subr.mxu0 0.0
    %5845 = vmatpush1.xpose.msra.mxu0 0.0
    %5846 = vmatprep.subr.mxu0 0.0
    %5847 = vmatpush1.xpose.msra.mxu0 0.0
    %5848 = vmatprep.subr.mxu0 0.0
    %5849 = vmatpush1.xpose.msra.mxu0 0.0
    %5850 = vmatprep.subr.mxu0 0.0
    %5851 = vmatpush1.xpose.msra.mxu0 0.0
    %5852 = vmatprep.subr.mxu0 0.0
    %5853 = vmatpush1.xpose.msra.mxu0 0.0
    %5854 = vmatprep.subr.mxu0 0.0
    %5855 = vmatpush1.xpose.msra.mxu0 0.0
    %5856 = vmatprep.subr.mxu0 0.0
    %5857 = vmatpush1.xpose.msra.mxu0 0.0
    %5858 = vmatprep.subr.mxu0 0.0
    %5859 = vmatpush1.xpose.msra.mxu0 0.0
    %5860 = vmatprep.subr.mxu0 0.0
    %5861 = vmatpush1.xpose.msra.mxu0 0.0
    %5862 = vmatprep.subr.mxu0 0.0
    %5863 = vmatpush1.xpose.msra.mxu0 0.0
    %5864 = vmatprep.subr.mxu0 0.0
    %5865 = vmatpush1.xpose.msra.mxu0 0.0
    %5866 = vmatprep.subr.mxu0 0.0
    %5867 = vmatpush1.xpose.msra.mxu0 0.0
    %5868 = vmatprep.subr.mxu0 0.0
    %5869 = vmatpush1.xpose.msra.mxu0 0.0
    %5870 = vmatprep.subr.mxu0 0.0
    %5871 = vmatpush1.xpose.msra.mxu0 0.0
    %5872 = vmatprep.subr.mxu0 0.0
    %5873 = vmatpush1.xpose.msra.mxu0 0.0
    %5874 = vmatprep.subr.mxu0 0.0
    %5875 = vmatpush1.xpose.msra.mxu0 0.0
    %5876 = vmatprep.subr.mxu0 0.0
    %5877 = vmatpush1.xpose.msra.mxu0 0.0
    %5878 = vmatprep.subr.mxu0 0.0
    %5879 = vmatpush1.xpose.msra.mxu0 0.0
    %5880 = vmatprep.subr.mxu0 0.0
    %5881 = vmatpush1.xpose.msra.mxu0 0.0
    %5882 = vmatprep.mubr.f32.mxu0 0.0
    %5883 = vmatmul.mubr.f32.gmra.mrb[0].mxu0 %v4906
    %v5884 = vpop.f32.mrb[0].mxu0
    %v5885 = vadd.f32 %v928, %v5884
    %v5886 = vpop.f32.mrb[0].mxu0
    %5887 = vdwg.mxu0
    %5888 = vmatprep.subr.mxu0 0.0
    %5889 = vmatpush1.xpose.msra.mxu0 %v1384
    %5890 = vmatprep.subr.mxu0 0.0
    %5891 = vmatpush1.xpose.msra.mxu0 0.0
    %5892 = vmatprep.subr.mxu0 0.0
    %5893 = vmatpush1.xpose.msra.mxu0 0.0
    %5894 = vmatprep.subr.mxu0 0.0
    %5895 = vmatpush1.xpose.msra.mxu0 0.0
    %5896 = vmatprep.subr.mxu0 0.0
    %5897 = vmatpush1.xpose.msra.mxu0 0.0
    %5898 = vmatprep.subr.mxu0 0.0
    %5899 = vmatpush1.xpose.msra.mxu0 0.0
    %5900 = vmatprep.subr.mxu0 0.0
    %5901 = vmatpush1.xpose.msra.mxu0 0.0
    %5902 = vmatprep.subr.mxu0 0.0
    %5903 = vmatpush1.xpose.msra.mxu0 0.0
    %5904 = vmatprep.subr.mxu0 0.0
    %5905 = vmatpush1.xpose.msra.mxu0 0.0
    %5906 = vmatprep.subr.mxu0 0.0
    %5907 = vmatpush1.xpose.msra.mxu0 0.0
    %5908 = vmatprep.subr.mxu0 0.0
    %5909 = vmatpush1.xpose.msra.mxu0 0.0
    %5910 = vmatprep.subr.mxu0 0.0
    %5911 = vmatpush1.xpose.msra.mxu0 0.0
    %5912 = vmatprep.subr.mxu0 0.0
    %5913 = vmatpush1.xpose.msra.mxu0 0.0
    %5914 = vmatprep.subr.mxu0 0.0
    %5915 = vmatpush1.xpose.msra.mxu0 0.0
    %5916 = vmatprep.subr.mxu0 0.0
    %5917 = vmatpush1.xpose.msra.mxu0 0.0
    %5918 = vmatprep.subr.mxu0 0.0
    %5919 = vmatpush1.xpose.msra.mxu0 0.0
    %5920 = vmatprep.subr.mxu0 0.0
    %5921 = vmatpush1.xpose.msra.mxu0 0.0
    %5922 = vmatprep.subr.mxu0 0.0
    %5923 = vmatpush1.xpose.msra.mxu0 0.0
    %5924 = vmatprep.subr.mxu0 0.0
    %5925 = vmatpush1.xpose.msra.mxu0 0.0
    %5926 = vmatprep.subr.mxu0 0.0
    %5927 = vmatpush1.xpose.msra.mxu0 0.0
    %5928 = vmatprep.subr.mxu0 0.0
    %5929 = vmatpush1.xpose.msra.mxu0 0.0
    %5930 = vmatprep.subr.mxu0 0.0
    %5931 = vmatpush1.xpose.msra.mxu0 0.0
    %5932 = vmatprep.subr.mxu0 0.0
    %5933 = vmatpush1.xpose.msra.mxu0 0.0
    %5934 = vmatprep.subr.mxu0 0.0
    %5935 = vmatpush1.xpose.msra.mxu0 0.0
    %5936 = vmatprep.subr.mxu0 0.0
    %5937 = vmatpush1.xpose.msra.mxu0 0.0
    %5938 = vmatprep.subr.mxu0 0.0
    %5939 = vmatpush1.xpose.msra.mxu0 0.0
    %5940 = vmatprep.subr.mxu0 0.0
    %5941 = vmatpush1.xpose.msra.mxu0 0.0
    %5942 = vmatprep.subr.mxu0 0.0
    %5943 = vmatpush1.xpose.msra.mxu0 0.0
    %5944 = vmatprep.subr.mxu0 0.0
    %5945 = vmatpush1.xpose.msra.mxu0 0.0
    %5946 = vmatprep.subr.mxu0 0.0
    %5947 = vmatpush1.xpose.msra.mxu0 0.0
    %5948 = vmatprep.subr.mxu0 0.0
    %5949 = vmatpush1.xpose.msra.mxu0 0.0
    %5950 = vmatprep.subr.mxu0 0.0
    %5951 = vmatpush1.xpose.msra.mxu0 0.0
    %5952 = vmatprep.mubr.f32.mxu0 0.0
    %5953 = vmatmul.mubr.f32.gmra.mrb[0].mxu0 %v4906
    %v5954 = vpop.f32.mrb[0].mxu0
    %v5955 = vadd.f32 %v932, %v5954
    %v5956 = vpop.f32.mrb[0].mxu0
    %5957 = vdwg.mxu0
    %5958 = vmatprep.subr.mxu0 0.0
    %5959 = vmatpush1.xpose.msra.mxu0 %v1457
    %5960 = vmatprep.subr.mxu0 0.0
    %5961 = vmatpush1.xpose.msra.mxu0 0.0
    %5962 = vmatprep.subr.mxu0 0.0
    %5963 = vmatpush1.xpose.msra.mxu0 0.0
    %5964 = vmatprep.subr.mxu0 0.0
    %5965 = vmatpush1.xpose.msra.mxu0 0.0
    %5966 = vmatprep.subr.mxu0 0.0
    %5967 = vmatpush1.xpose.msra.mxu0 0.0
    %5968 = vmatprep.subr.mxu0 0.0
    %5969 = vmatpush1.xpose.msra.mxu0 0.0
    %5970 = vmatprep.subr.mxu0 0.0
    %5971 = vmatpush1.xpose.msra.mxu0 0.0
    %5972 = vmatprep.subr.mxu0 0.0
    %5973 = vmatpush1.xpose.msra.mxu0 0.0
    %5974 = vmatprep.subr.mxu0 0.0
    %5975 = vmatpush1.xpose.msra.mxu0 0.0
    %5976 = vmatprep.subr.mxu0 0.0
    %5977 = vmatpush1.xpose.msra.mxu0 0.0
    %5978 = vmatprep.subr.mxu0 0.0
    %5979 = vmatpush1.xpose.msra.mxu0 0.0
    %5980 = vmatprep.subr.mxu0 0.0
    %5981 = vmatpush1.xpose.msra.mxu0 0.0
    %5982 = vmatprep.subr.mxu0 0.0
    %5983 = vmatpush1.xpose.msra.mxu0 0.0
    %5984 = vmatprep.subr.mxu0 0.0
    %5985 = vmatpush1.xpose.msra.mxu0 0.0
    %5986 = vmatprep.subr.mxu0 0.0
    %5987 = vmatpush1.xpose.msra.mxu0 0.0
    %5988 = vmatprep.subr.mxu0 0.0
    %5989 = vmatpush1.xpose.msra.mxu0 0.0
    %5990 = vmatprep.subr.mxu0 0.0
    %5991 = vmatpush1.xpose.msra.mxu0 0.0
    %5992 = vmatprep.subr.mxu0 0.0
    %5993 = vmatpush1.xpose.msra.mxu0 0.0
    %5994 = vmatprep.subr.mxu0 0.0
    %5995 = vmatpush1.xpose.msra.mxu0 0.0
    %5996 = vmatprep.subr.mxu0 0.0
    %5997 = vmatpush1.xpose.msra.mxu0 0.0
    %5998 = vmatprep.subr.mxu0 0.0
    %5999 = vmatpush1.xpose.msra.mxu0 0.0
    %6000 = vmatprep.subr.mxu0 0.0
    %6001 = vmatpush1.xpose.msra.mxu0 0.0
    %6002 = vmatprep.subr.mxu0 0.0
    %6003 = vmatpush1.xpose.msra.mxu0 0.0
    %6004 = vmatprep.subr.mxu0 0.0
    %6005 = vmatpush1.xpose.msra.mxu0 0.0
    %6006 = vmatprep.subr.mxu0 0.0
    %6007 = vmatpush1.xpose.msra.mxu0 0.0
    %6008 = vmatprep.subr.mxu0 0.0
    %6009 = vmatpush1.xpose.msra.mxu0 0.0
    %6010 = vmatprep.subr.mxu0 0.0
    %6011 = vmatpush1.xpose.msra.mxu0 0.0
    %6012 = vmatprep.subr.mxu0 0.0
    %6013 = vmatpush1.xpose.msra.mxu0 0.0
    %6014 = vmatprep.subr.mxu0 0.0
    %6015 = vmatpush1.xpose.msra.mxu0 0.0
    %6016 = vmatprep.subr.mxu0 0.0
    %6017 = vmatpush1.xpose.msra.mxu0 0.0
    %6018 = vmatprep.subr.mxu0 0.0
    %6019 = vmatpush1.xpose.msra.mxu0 0.0
    %6020 = vmatprep.subr.mxu0 0.0
    %6021 = vmatpush1.xpose.msra.mxu0 0.0
    %6022 = vmatprep.mubr.f32.mxu0 0.0
    %6023 = vmatmul.mubr.f32.gmra.mrb[0].mxu0 %v4906
    %v6024 = vpop.f32.mrb[0].mxu0
    %v6025 = vadd.f32 %v936, %v6024
    %v6026 = vpop.f32.mrb[0].mxu0
    %6027 = vdwg.mxu0
    %6028 = vmatprep.subr.mxu0 0.0
    %6029 = vmatpush1.xpose.msra.mxu0 %v1578
    %6030 = vmatprep.subr.mxu0 0.0
    %6031 = vmatpush1.xpose.msra.mxu0 0.0
    %6032 = vmatprep.subr.mxu0 0.0
    %6033 = vmatpush1.xpose.msra.mxu0 0.0
    %6034 = vmatprep.subr.mxu0 0.0
    %6035 = vmatpush1.xpose.msra.mxu0 0.0
    %6036 = vmatprep.subr.mxu0 0.0
    %6037 = vmatpush1.xpose.msra.mxu0 0.0
    %6038 = vmatprep.subr.mxu0 0.0
    %6039 = vmatpush1.xpose.msra.mxu0 0.0
    %6040 = vmatprep.subr.mxu0 0.0
    %6041 = vmatpush1.xpose.msra.mxu0 0.0
    %6042 = vmatprep.subr.mxu0 0.0
    %6043 = vmatpush1.xpose.msra.mxu0 0.0
    %6044 = vmatprep.subr.mxu0 0.0
    %6045 = vmatpush1.xpose.msra.mxu0 0.0
    %6046 = vmatprep.subr.mxu0 0.0
    %6047 = vmatpush1.xpose.msra.mxu0 0.0
    %6048 = vmatprep.subr.mxu0 0.0
    %6049 = vmatpush1.xpose.msra.mxu0 0.0
    %6050 = vmatprep.subr.mxu0 0.0
    %6051 = vmatpush1.xpose.msra.mxu0 0.0
    %6052 = vmatprep.subr.mxu0 0.0
    %6053 = vmatpush1.xpose.msra.mxu0 0.0
    %6054 = vmatprep.subr.mxu0 0.0
    %6055 = vmatpush1.xpose.msra.mxu0 0.0
    %6056 = vmatprep.subr.mxu0 0.0
    %6057 = vmatpush1.xpose.msra.mxu0 0.0
    %6058 = vmatprep.subr.mxu0 0.0
    %6059 = vmatpush1.xpose.msra.mxu0 0.0
    %6060 = vmatprep.subr.mxu0 0.0
    %6061 = vmatpush1.xpose.msra.mxu0 0.0
    %6062 = vmatprep.subr.mxu0 0.0
    %6063 = vmatpush1.xpose.msra.mxu0 0.0
    %6064 = vmatprep.subr.mxu0 0.0
    %6065 = vmatpush1.xpose.msra.mxu0 0.0
    %6066 = vmatprep.subr.mxu0 0.0
    %6067 = vmatpush1.xpose.msra.mxu0 0.0
    %6068 = vmatprep.subr.mxu0 0.0
    %6069 = vmatpush1.xpose.msra.mxu0 0.0
    %6070 = vmatprep.subr.mxu0 0.0
    %6071 = vmatpush1.xpose.msra.mxu0 0.0
    %6072 = vmatprep.subr.mxu0 0.0
    %6073 = vmatpush1.xpose.msra.mxu0 0.0
    %6074 = vmatprep.subr.mxu0 0.0
    %6075 = vmatpush1.xpose.msra.mxu0 0.0
    %6076 = vmatprep.subr.mxu0 0.0
    %6077 = vmatpush1.xpose.msra.mxu0 0.0
    %6078 = vmatprep.subr.mxu0 0.0
    %6079 = vmatpush1.xpose.msra.mxu0 0.0
    %6080 = vmatprep.subr.mxu0 0.0
    %6081 = vmatpush1.xpose.msra.mxu0 0.0
    %6082 = vmatprep.subr.mxu0 0.0
    %6083 = vmatpush1.xpose.msra.mxu0 0.0
    %6084 = vmatprep.subr.mxu0 0.0
    %6085 = vmatpush1.xpose.msra.mxu0 0.0
    %6086 = vmatprep.subr.mxu0 0.0
    %6087 = vmatpush1.xpose.msra.mxu0 0.0
    %6088 = vmatprep.subr.mxu0 0.0
    %6089 = vmatpush1.xpose.msra.mxu0 0.0
    %6090 = vmatprep.subr.mxu0 0.0
    %6091 = vmatpush1.xpose.msra.mxu0 0.0
    %6092 = vmatprep.mubr.f32.mxu0 0.0
    %6093 = vmatmul.mubr.f32.gmra.mrb[0].mxu0 %v4906
    %v6094 = vpop.f32.mrb[0].mxu0
    %v6095 = vadd.f32 %v1540, %v6094
    %v6096 = vpop.f32.mrb[0].mxu0
    %6097 = vdwg.mxu0
    %6098 = vmatprep.subr.mxu0 0.0
    %6099 = vmatpush1.xpose.msra.mxu0 %v1651
    %6100 = vmatprep.subr.mxu0 0.0
    %6101 = vmatpush1.xpose.msra.mxu0 0.0
    %6102 = vmatprep.subr.mxu0 0.0
    %6103 = vmatpush1.xpose.msra.mxu0 0.0
    %6104 = vmatprep.subr.mxu0 0.0
    %6105 = vmatpush1.xpose.msra.mxu0 0.0
    %6106 = vmatprep.subr.mxu0 0.0
    %6107 = vmatpush1.xpose.msra.mxu0 0.0
    %6108 = vmatprep.subr.mxu0 0.0
    %6109 = vmatpush1.xpose.msra.mxu0 0.0
    %6110 = vmatprep.subr.mxu0 0.0
    %6111 = vmatpush1.xpose.msra.mxu0 0.0
    %6112 = vmatprep.subr.mxu0 0.0
    %6113 = vmatpush1.xpose.msra.mxu0 0.0
    %6114 = vmatprep.subr.mxu0 0.0
    %6115 = vmatpush1.xpose.msra.mxu0 0.0
    %6116 = vmatprep.subr.mxu0 0.0
    %6117 = vmatpush1.xpose.msra.mxu0 0.0
    %6118 = vmatprep.subr.mxu0 0.0
    %6119 = vmatpush1.xpose.msra.mxu0 0.0
    %6120 = vmatprep.subr.mxu0 0.0
    %6121 = vmatpush1.xpose.msra.mxu0 0.0
    %6122 = vmatprep.subr.mxu0 0.0
    %6123 = vmatpush1.xpose.msra.mxu0 0.0
    %6124 = vmatprep.subr.mxu0 0.0
    %6125 = vmatpush1.xpose.msra.mxu0 0.0
    %6126 = vmatprep.subr.mxu0 0.0
    %6127 = vmatpush1.xpose.msra.mxu0 0.0
    %6128 = vmatprep.subr.mxu0 0.0
    %6129 = vmatpush1.xpose.msra.mxu0 0.0
    %6130 = vmatprep.subr.mxu0 0.0
    %6131 = vmatpush1.xpose.msra.mxu0 0.0
    %6132 = vmatprep.subr.mxu0 0.0
    %6133 = vmatpush1.xpose.msra.mxu0 0.0
    %6134 = vmatprep.subr.mxu0 0.0
    %6135 = vmatpush1.xpose.msra.mxu0 0.0
    %6136 = vmatprep.subr.mxu0 0.0
    %6137 = vmatpush1.xpose.msra.mxu0 0.0
    %6138 = vmatprep.subr.mxu0 0.0
    %6139 = vmatpush1.xpose.msra.mxu0 0.0
    %6140 = vmatprep.subr.mxu0 0.0
    %6141 = vmatpush1.xpose.msra.mxu0 0.0
    %6142 = vmatprep.subr.mxu0 0.0
    %6143 = vmatpush1.xpose.msra.mxu0 0.0
    %6144 = vmatprep.subr.mxu0 0.0
    %6145 = vmatpush1.xpose.msra.mxu0 0.0
    %6146 = vmatprep.subr.mxu0 0.0
    %6147 = vmatpush1.xpose.msra.mxu0 0.0
    %6148 = vmatprep.subr.mxu0 0.0
    %6149 = vmatpush1.xpose.msra.mxu0 0.0
    %6150 = vmatprep.subr.mxu0 0.0
    %6151 = vmatpush1.xpose.msra.mxu0 0.0
    %6152 = vmatprep.subr.mxu0 0.0
    %6153 = vmatpush1.xpose.msra.mxu0 0.0
    %6154 = vmatprep.subr.mxu0 0.0
    %6155 = vmatpush1.xpose.msra.mxu0 0.0
    %6156 = vmatprep.subr.mxu0 0.0
    %6157 = vmatpush1.xpose.msra.mxu0 0.0
    %6158 = vmatprep.subr.mxu0 0.0
    %6159 = vmatpush1.xpose.msra.mxu0 0.0
    %6160 = vmatprep.subr.mxu0 0.0
    %6161 = vmatpush1.xpose.msra.mxu0 0.0
    %6162 = vmatprep.mubr.f32.mxu0 0.0
    %6163 = vmatmul.mubr.f32.gmra.mrb[0].mxu0 %v4906
    %v6164 = vpop.f32.mrb[0].mxu0
    %v6165 = vadd.f32 %v1544, %v6164
    %v6166 = vpop.f32.mrb[0].mxu0
    %6167 = vdwg.mxu0
    %6168 = vmatprep.subr.mxu0 0.0
    %6169 = vmatpush1.xpose.msra.mxu0 %v1724
    %6170 = vmatprep.subr.mxu0 0.0
    %6171 = vmatpush1.xpose.msra.mxu0 0.0
    %6172 = vmatprep.subr.mxu0 0.0
    %6173 = vmatpush1.xpose.msra.mxu0 0.0
    %6174 = vmatprep.subr.mxu0 0.0
    %6175 = vmatpush1.xpose.msra.mxu0 0.0
    %6176 = vmatprep.subr.mxu0 0.0
    %6177 = vmatpush1.xpose.msra.mxu0 0.0
    %6178 = vmatprep.subr.mxu0 0.0
    %6179 = vmatpush1.xpose.msra.mxu0 0.0
    %6180 = vmatprep.subr.mxu0 0.0
    %6181 = vmatpush1.xpose.msra.mxu0 0.0
    %6182 = vmatprep.subr.mxu0 0.0
    %6183 = vmatpush1.xpose.msra.mxu0 0.0
    %6184 = vmatprep.subr.mxu0 0.0
    %6185 = vmatpush1.xpose.msra.mxu0 0.0
    %6186 = vmatprep.subr.mxu0 0.0
    %6187 = vmatpush1.xpose.msra.mxu0 0.0
    %6188 = vmatprep.subr.mxu0 0.0
    %6189 = vmatpush1.xpose.msra.mxu0 0.0
    %6190 = vmatprep.subr.mxu0 0.0
    %6191 = vmatpush1.xpose.msra.mxu0 0.0
    %6192 = vmatprep.subr.mxu0 0.0
    %6193 = vmatpush1.xpose.msra.mxu0 0.0
    %6194 = vmatprep.subr.mxu0 0.0
    %6195 = vmatpush1.xpose.msra.mxu0 0.0
    %6196 = vmatprep.subr.mxu0 0.0
    %6197 = vmatpush1.xpose.msra.mxu0 0.0
    %6198 = vmatprep.subr.mxu0 0.0
    %6199 = vmatpush1.xpose.msra.mxu0 0.0
    %6200 = vmatprep.subr.mxu0 0.0
    %6201 = vmatpush1.xpose.msra.mxu0 0.0
    %6202 = vmatprep.subr.mxu0 0.0
    %6203 = vmatpush1.xpose.msra.mxu0 0.0
    %6204 = vmatprep.subr.mxu0 0.0
    %6205 = vmatpush1.xpose.msra.mxu0 0.0
    %6206 = vmatprep.subr.mxu0 0.0
    %6207 = vmatpush1.xpose.msra.mxu0 0.0
    %6208 = vmatprep.subr.mxu0 0.0
    %6209 = vmatpush1.xpose.msra.mxu0 0.0
    %6210 = vmatprep.subr.mxu0 0.0
    %6211 = vmatpush1.xpose.msra.mxu0 0.0
    %6212 = vmatprep.subr.mxu0 0.0
    %6213 = vmatpush1.xpose.msra.mxu0 0.0
    %6214 = vmatprep.subr.mxu0 0.0
    %6215 = vmatpush1.xpose.msra.mxu0 0.0
    %6216 = vmatprep.subr.mxu0 0.0
    %6217 = vmatpush1.xpose.msra.mxu0 0.0
    %6218 = vmatprep.subr.mxu0 0.0
    %6219 = vmatpush1.xpose.msra.mxu0 0.0
    %6220 = vmatprep.subr.mxu0 0.0
    %6221 = vmatpush1.xpose.msra.mxu0 0.0
    %6222 = vmatprep.subr.mxu0 0.0
    %6223 = vmatpush1.xpose.msra.mxu0 0.0
    %6224 = vmatprep.subr.mxu0 0.0
    %6225 = vmatpush1.xpose.msra.mxu0 0.0
    %6226 = vmatprep.subr.mxu0 0.0
    %6227 = vmatpush1.xpose.msra.mxu0 0.0
    %6228 = vmatprep.subr.mxu0 0.0
    %6229 = vmatpush1.xpose.msra.mxu0 0.0
    %6230 = vmatprep.subr.mxu0 0.0
    %6231 = vmatpush1.xpose.msra.mxu0 0.0
    %6232 = vmatprep.mubr.f32.mxu0 0.0
    %6233 = vmatmul.mubr.f32.gmra.mrb[0].mxu0 %v4906
    %v6234 = vpop.f32.mrb[0].mxu0
    %v6235 = vadd.f32 %v1548, %v6234
    %v6236 = vpop.f32.mrb[0].mxu0
    %6237 = vdwg.mxu0
    %6238 = vmatprep.subr.mxu0 0.0
    %6239 = vmatpush1.xpose.msra.mxu0 %v1797
    %6240 = vmatprep.subr.mxu0 0.0
    %6241 = vmatpush1.xpose.msra.mxu0 0.0
    %6242 = vmatprep.subr.mxu0 0.0
    %6243 = vmatpush1.xpose.msra.mxu0 0.0
    %6244 = vmatprep.subr.mxu0 0.0
    %6245 = vmatpush1.xpose.msra.mxu0 0.0
    %6246 = vmatprep.subr.mxu0 0.0
    %6247 = vmatpush1.xpose.msra.mxu0 0.0
    %6248 = vmatprep.subr.mxu0 0.0
    %6249 = vmatpush1.xpose.msra.mxu0 0.0
    %6250 = vmatprep.subr.mxu0 0.0
    %6251 = vmatpush1.xpose.msra.mxu0 0.0
    %6252 = vmatprep.subr.mxu0 0.0
    %6253 = vmatpush1.xpose.msra.mxu0 0.0
    %6254 = vmatprep.subr.mxu0 0.0
    %6255 = vmatpush1.xpose.msra.mxu0 0.0
    %6256 = vmatprep.subr.mxu0 0.0
    %6257 = vmatpush1.xpose.msra.mxu0 0.0
    %6258 = vmatprep.subr.mxu0 0.0
    %6259 = vmatpush1.xpose.msra.mxu0 0.0
    %6260 = vmatprep.subr.mxu0 0.0
    %6261 = vmatpush1.xpose.msra.mxu0 0.0
    %6262 = vmatprep.subr.mxu0 0.0
    %6263 = vmatpush1.xpose.msra.mxu0 0.0
    %6264 = vmatprep.subr.mxu0 0.0
    %6265 = vmatpush1.xpose.msra.mxu0 0.0
    %6266 = vmatprep.subr.mxu0 0.0
    %6267 = vmatpush1.xpose.msra.mxu0 0.0
    %6268 = vmatprep.subr.mxu0 0.0
    %6269 = vmatpush1.xpose.msra.mxu0 0.0
    %6270 = vmatprep.subr.mxu0 0.0
    %6271 = vmatpush1.xpose.msra.mxu0 0.0
    %6272 = vmatprep.subr.mxu0 0.0
    %6273 = vmatpush1.xpose.msra.mxu0 0.0
    %6274 = vmatprep.subr.mxu0 0.0
    %6275 = vmatpush1.xpose.msra.mxu0 0.0
    %6276 = vmatprep.subr.mxu0 0.0
    %6277 = vmatpush1.xpose.msra.mxu0 0.0
    %6278 = vmatprep.subr.mxu0 0.0
    %6279 = vmatpush1.xpose.msra.mxu0 0.0
    %6280 = vmatprep.subr.mxu0 0.0
    %6281 = vmatpush1.xpose.msra.mxu0 0.0
    %6282 = vmatprep.subr.mxu0 0.0
    %6283 = vmatpush1.xpose.msra.mxu0 0.0
    %6284 = vmatprep.subr.mxu0 0.0
    %6285 = vmatpush1.xpose.msra.mxu0 0.0
    %6286 = vmatprep.subr.mxu0 0.0
    %6287 = vmatpush1.xpose.msra.mxu0 0.0
    %6288 = vmatprep.subr.mxu0 0.0
    %6289 = vmatpush1.xpose.msra.mxu0 0.0
    %6290 = vmatprep.subr.mxu0 0.0
    %6291 = vmatpush1.xpose.msra.mxu0 0.0
    %6292 = vmatprep.subr.mxu0 0.0
    %6293 = vmatpush1.xpose.msra.mxu0 0.0
    %6294 = vmatprep.subr.mxu0 0.0
    %6295 = vmatpush1.xpose.msra.mxu0 0.0
    %6296 = vmatprep.subr.mxu0 0.0
    %6297 = vmatpush1.xpose.msra.mxu0 0.0
    %6298 = vmatprep.subr.mxu0 0.0
    %6299 = vmatpush1.xpose.msra.mxu0 0.0
    %6300 = vmatprep.subr.mxu0 0.0
    %6301 = vmatpush1.xpose.msra.mxu0 0.0
    %6302 = vmatprep.mubr.f32.mxu0 0.0
    %6303 = vmatmul.mubr.f32.gmra.mrb[0].mxu0 %v4906
    %v6304 = vpop.f32.mrb[0].mxu0
    %v6305 = vadd.f32 %v1552, %v6304
    %v6306 = vpop.f32.mrb[0].mxu0
    %6307 = vdwg.mxu0
    %6308 = vmatprep.subr.mxu0 0.0
    %6309 = vmatpush1.xpose.msra.mxu0 %v1870
    %6310 = vmatprep.subr.mxu0 0.0
    %6311 = vmatpush1.xpose.msra.mxu0 0.0
    %6312 = vmatprep.subr.mxu0 0.0
    %6313 = vmatpush1.xpose.msra.mxu0 0.0
    %6314 = vmatprep.subr.mxu0 0.0
    %6315 = vmatpush1.xpose.msra.mxu0 0.0
    %6316 = vmatprep.subr.mxu0 0.0
    %6317 = vmatpush1.xpose.msra.mxu0 0.0
    %6318 = vmatprep.subr.mxu0 0.0
    %6319 = vmatpush1.xpose.msra.mxu0 0.0
    %6320 = vmatprep.subr.mxu0 0.0
    %6321 = vmatpush1.xpose.msra.mxu0 0.0
    %6322 = vmatprep.subr.mxu0 0.0
    %6323 = vmatpush1.xpose.msra.mxu0 0.0
    %6324 = vmatprep.subr.mxu0 0.0
    %6325 = vmatpush1.xpose.msra.mxu0 0.0
    %6326 = vmatprep.subr.mxu0 0.0
    %6327 = vmatpush1.xpose.msra.mxu0 0.0
    %6328 = vmatprep.subr.mxu0 0.0
    %6329 = vmatpush1.xpose.msra.mxu0 0.0
    %6330 = vmatprep.subr.mxu0 0.0
    %6331 = vmatpush1.xpose.msra.mxu0 0.0
    %6332 = vmatprep.subr.mxu0 0.0
    %6333 = vmatpush1.xpose.msra.mxu0 0.0
    %6334 = vmatprep.subr.mxu0 0.0
    %6335 = vmatpush1.xpose.msra.mxu0 0.0
    %6336 = vmatprep.subr.mxu0 0.0
    %6337 = vmatpush1.xpose.msra.mxu0 0.0
    %6338 = vmatprep.subr.mxu0 0.0
    %6339 = vmatpush1.xpose.msra.mxu0 0.0
    %6340 = vmatprep.subr.mxu0 0.0
    %6341 = vmatpush1.xpose.msra.mxu0 0.0
    %6342 = vmatprep.subr.mxu0 0.0
    %6343 = vmatpush1.xpose.msra.mxu0 0.0
    %6344 = vmatprep.subr.mxu0 0.0
    %6345 = vmatpush1.xpose.msra.mxu0 0.0
    %6346 = vmatprep.subr.mxu0 0.0
    %6347 = vmatpush1.xpose.msra.mxu0 0.0
    %6348 = vmatprep.subr.mxu0 0.0
    %6349 = vmatpush1.xpose.msra.mxu0 0.0
    %6350 = vmatprep.subr.mxu0 0.0
    %6351 = vmatpush1.xpose.msra.mxu0 0.0
    %6352 = vmatprep.subr.mxu0 0.0
    %6353 = vmatpush1.xpose.msra.mxu0 0.0
    %6354 = vmatprep.subr.mxu0 0.0
    %6355 = vmatpush1.xpose.msra.mxu0 0.0
    %6356 = vmatprep.subr.mxu0 0.0
    %6357 = vmatpush1.xpose.msra.mxu0 0.0
    %6358 = vmatprep.subr.mxu0 0.0
    %6359 = vmatpush1.xpose.msra.mxu0 0.0
    %6360 = vmatprep.subr.mxu0 0.0
    %6361 = vmatpush1.xpose.msra.mxu0 0.0
    %6362 = vmatprep.subr.mxu0 0.0
    %6363 = vmatpush1.xpose.msra.mxu0 0.0
    %6364 = vmatprep.subr.mxu0 0.0
    %6365 = vmatpush1.xpose.msra.mxu0 0.0
    %6366 = vmatprep.subr.mxu0 0.0
    %6367 = vmatpush1.xpose.msra.mxu0 0.0
    %6368 = vmatprep.subr.mxu0 0.0
    %6369 = vmatpush1.xpose.msra.mxu0 0.0
    %6370 = vmatprep.subr.mxu0 0.0
    %6371 = vmatpush1.xpose.msra.mxu0 0.0
    %6372 = vmatprep.mubr.f32.mxu0 0.0
    %6373 = vmatmul.mubr.f32.gmra.mrb[0].mxu0 %v4906
    %v6374 = vpop.f32.mrb[0].mxu0
    %v6375 = vadd.f32 %v1556, %v6374
    %v6376 = vpop.f32.mrb[0].mxu0
    %6377 = vdwg.mxu0
    %6378 = vmatprep.subr.mxu0 0.0
    %6379 = vmatpush1.xpose.msra.mxu0 %v1943
    %6380 = vmatprep.subr.mxu0 0.0
    %6381 = vmatpush1.xpose.msra.mxu0 0.0
    %6382 = vmatprep.subr.mxu0 0.0
    %6383 = vmatpush1.xpose.msra.mxu0 0.0
    %6384 = vmatprep.subr.mxu0 0.0
    %6385 = vmatpush1.xpose.msra.mxu0 0.0
    %6386 = vmatprep.subr.mxu0 0.0
    %6387 = vmatpush1.xpose.msra.mxu0 0.0
    %6388 = vmatprep.subr.mxu0 0.0
    %6389 = vmatpush1.xpose.msra.mxu0 0.0
    %6390 = vmatprep.subr.mxu0 0.0
    %6391 = vmatpush1.xpose.msra.mxu0 0.0
    %6392 = vmatprep.subr.mxu0 0.0
    %6393 = vmatpush1.xpose.msra.mxu0 0.0
    %6394 = vmatprep.subr.mxu0 0.0
    %6395 = vmatpush1.xpose.msra.mxu0 0.0
    %6396 = vmatprep.subr.mxu0 0.0
    %6397 = vmatpush1.xpose.msra.mxu0 0.0
    %6398 = vmatprep.subr.mxu0 0.0
    %6399 = vmatpush1.xpose.msra.mxu0 0.0
    %6400 = vmatprep.subr.mxu0 0.0
    %6401 = vmatpush1.xpose.msra.mxu0 0.0
    %6402 = vmatprep.subr.mxu0 0.0
    %6403 = vmatpush1.xpose.msra.mxu0 0.0
    %6404 = vmatprep.subr.mxu0 0.0
    %6405 = vmatpush1.xpose.msra.mxu0 0.0
    %6406 = vmatprep.subr.mxu0 0.0
    %6407 = vmatpush1.xpose.msra.mxu0 0.0
    %6408 = vmatprep.subr.mxu0 0.0
    %6409 = vmatpush1.xpose.msra.mxu0 0.0
    %6410 = vmatprep.subr.mxu0 0.0
    %6411 = vmatpush1.xpose.msra.mxu0 0.0
    %6412 = vmatprep.subr.mxu0 0.0
    %6413 = vmatpush1.xpose.msra.mxu0 0.0
    %6414 = vmatprep.subr.mxu0 0.0
    %6415 = vmatpush1.xpose.msra.mxu0 0.0
    %6416 = vmatprep.subr.mxu0 0.0
    %6417 = vmatpush1.xpose.msra.mxu0 0.0
    %6418 = vmatprep.subr.mxu0 0.0
    %6419 = vmatpush1.xpose.msra.mxu0 0.0
    %6420 = vmatprep.subr.mxu0 0.0
    %6421 = vmatpush1.xpose.msra.mxu0 0.0
    %6422 = vmatprep.subr.mxu0 0.0
    %6423 = vmatpush1.xpose.msra.mxu0 0.0
    %6424 = vmatprep.subr.mxu0 0.0
    %6425 = vmatpush1.xpose.msra.mxu0 0.0
    %6426 = vmatprep.subr.mxu0 0.0
    %6427 = vmatpush1.xpose.msra.mxu0 0.0
    %6428 = vmatprep.subr.mxu0 0.0
    %6429 = vmatpush1.xpose.msra.mxu0 0.0
    %6430 = vmatprep.subr.mxu0 0.0
    %6431 = vmatpush1.xpose.msra.mxu0 0.0
    %6432 = vmatprep.subr.mxu0 0.0
    %6433 = vmatpush1.xpose.msra.mxu0 0.0
    %6434 = vmatprep.subr.mxu0 0.0
    %6435 = vmatpush1.xpose.msra.mxu0 0.0
    %6436 = vmatprep.subr.mxu0 0.0
    %6437 = vmatpush1.xpose.msra.mxu0 0.0
    %6438 = vmatprep.subr.mxu0 0.0
    %6439 = vmatpush1.xpose.msra.mxu0 0.0
    %6440 = vmatprep.subr.mxu0 0.0
    %6441 = vmatpush1.xpose.msra.mxu0 0.0
    %6442 = vmatprep.mubr.f32.mxu0 0.0
    %6443 = vmatmul.mubr.f32.gmra.mrb[0].mxu0 %v4906
    %v6444 = vpop.f32.mrb[0].mxu0
    %v6445 = vadd.f32 %v1560, %v6444
    %v6446 = vpop.f32.mrb[0].mxu0
    %6447 = vdwg.mxu0
    %6448 = vmatprep.subr.mxu0 0.0
    %6449 = vmatpush1.xpose.msra.mxu0 %v2016
    %6450 = vmatprep.subr.mxu0 0.0
    %6451 = vmatpush1.xpose.msra.mxu0 0.0
    %6452 = vmatprep.subr.mxu0 0.0
    %6453 = vmatpush1.xpose.msra.mxu0 0.0
    %6454 = vmatprep.subr.mxu0 0.0
    %6455 = vmatpush1.xpose.msra.mxu0 0.0
    %6456 = vmatprep.subr.mxu0 0.0
    %6457 = vmatpush1.xpose.msra.mxu0 0.0
    %6458 = vmatprep.subr.mxu0 0.0
    %6459 = vmatpush1.xpose.msra.mxu0 0.0
    %6460 = vmatprep.subr.mxu0 0.0
    %6461 = vmatpush1.xpose.msra.mxu0 0.0
    %6462 = vmatprep.subr.mxu0 0.0
    %6463 = vmatpush1.xpose.msra.mxu0 0.0
    %6464 = vmatprep.subr.mxu0 0.0
    %6465 = vmatpush1.xpose.msra.mxu0 0.0
    %6466 = vmatprep.subr.mxu0 0.0
    %6467 = vmatpush1.xpose.msra.mxu0 0.0
    %6468 = vmatprep.subr.mxu0 0.0
    %6469 = vmatpush1.xpose.msra.mxu0 0.0
    %6470 = vmatprep.subr.mxu0 0.0
    %6471 = vmatpush1.xpose.msra.mxu0 0.0
    %6472 = vmatprep.subr.mxu0 0.0
    %6473 = vmatpush1.xpose.msra.mxu0 0.0
    %6474 = vmatprep.subr.mxu0 0.0
    %6475 = vmatpush1.xpose.msra.mxu0 0.0
    %6476 = vmatprep.subr.mxu0 0.0
    %6477 = vmatpush1.xpose.msra.mxu0 0.0
    %6478 = vmatprep.subr.mxu0 0.0
    %6479 = vmatpush1.xpose.msra.mxu0 0.0
    %6480 = vmatprep.subr.mxu0 0.0
    %6481 = vmatpush1.xpose.msra.mxu0 0.0
    %6482 = vmatprep.subr.mxu0 0.0
    %6483 = vmatpush1.xpose.msra.mxu0 0.0
    %6484 = vmatprep.subr.mxu0 0.0
    %6485 = vmatpush1.xpose.msra.mxu0 0.0
    %6486 = vmatprep.subr.mxu0 0.0
    %6487 = vmatpush1.xpose.msra.mxu0 0.0
    %6488 = vmatprep.subr.mxu0 0.0
    %6489 = vmatpush1.xpose.msra.mxu0 0.0
    %6490 = vmatprep.subr.mxu0 0.0
    %6491 = vmatpush1.xpose.msra.mxu0 0.0
    %6492 = vmatprep.subr.mxu0 0.0
    %6493 = vmatpush1.xpose.msra.mxu0 0.0
    %6494 = vmatprep.subr.mxu0 0.0
    %6495 = vmatpush1.xpose.msra.mxu0 0.0
    %6496 = vmatprep.subr.mxu0 0.0
    %6497 = vmatpush1.xpose.msra.mxu0 0.0
    %6498 = vmatprep.subr.mxu0 0.0
    %6499 = vmatpush1.xpose.msra.mxu0 0.0
    %6500 = vmatprep.subr.mxu0 0.0
    %6501 = vmatpush1.xpose.msra.mxu0 0.0
    %6502 = vmatprep.subr.mxu0 0.0
    %6503 = vmatpush1.xpose.msra.mxu0 0.0
    %6504 = vmatprep.subr.mxu0 0.0
    %6505 = vmatpush1.xpose.msra.mxu0 0.0
    %6506 = vmatprep.subr.mxu0 0.0
    %6507 = vmatpush1.xpose.msra.mxu0 0.0
    %6508 = vmatprep.subr.mxu0 0.0
    %6509 = vmatpush1.xpose.msra.mxu0 0.0
    %6510 = vmatprep.subr.mxu0 0.0
    %6511 = vmatpush1.xpose.msra.mxu0 0.0
    %6512 = vmatprep.mubr.f32.mxu0 0.0
    %6513 = vmatmul.mubr.f32.gmra.mrb[0].mxu0 %v4906
    %v6514 = vpop.f32.mrb[0].mxu0
    %v6515 = vadd.f32 %v1564, %v6514
    %v6516 = vpop.f32.mrb[0].mxu0
    %6517 = vdwg.mxu0
    %6518 = vmatprep.subr.mxu0 0.0
    %6519 = vmatpush1.xpose.msra.mxu0 %v2089
    %6520 = vmatprep.subr.mxu0 0.0
    %6521 = vmatpush1.xpose.msra.mxu0 0.0
    %6522 = vmatprep.subr.mxu0 0.0
    %6523 = vmatpush1.xpose.msra.mxu0 0.0
    %6524 = vmatprep.subr.mxu0 0.0
    %6525 = vmatpush1.xpose.msra.mxu0 0.0
    %6526 = vmatprep.subr.mxu0 0.0
    %6527 = vmatpush1.xpose.msra.mxu0 0.0
    %6528 = vmatprep.subr.mxu0 0.0
    %6529 = vmatpush1.xpose.msra.mxu0 0.0
    %6530 = vmatprep.subr.mxu0 0.0
    %6531 = vmatpush1.xpose.msra.mxu0 0.0
    %6532 = vmatprep.subr.mxu0 0.0
    %6533 = vmatpush1.xpose.msra.mxu0 0.0
    %6534 = vmatprep.subr.mxu0 0.0
    %6535 = vmatpush1.xpose.msra.mxu0 0.0
    %6536 = vmatprep.subr.mxu0 0.0
    %6537 = vmatpush1.xpose.msra.mxu0 0.0
    %6538 = vmatprep.subr.mxu0 0.0
    %6539 = vmatpush1.xpose.msra.mxu0 0.0
    %6540 = vmatprep.subr.mxu0 0.0
    %6541 = vmatpush1.xpose.msra.mxu0 0.0
    %6542 = vmatprep.subr.mxu0 0.0
    %6543 = vmatpush1.xpose.msra.mxu0 0.0
    %6544 = vmatprep.subr.mxu0 0.0
    %6545 = vmatpush1.xpose.msra.mxu0 0.0
    %6546 = vmatprep.subr.mxu0 0.0
    %6547 = vmatpush1.xpose.msra.mxu0 0.0
    %6548 = vmatprep.subr.mxu0 0.0
    %6549 = vmatpush1.xpose.msra.mxu0 0.0
    %6550 = vmatprep.subr.mxu0 0.0
    %6551 = vmatpush1.xpose.msra.mxu0 0.0
    %6552 = vmatprep.subr.mxu0 0.0
    %6553 = vmatpush1.xpose.msra.mxu0 0.0
    %6554 = vmatprep.subr.mxu0 0.0
    %6555 = vmatpush1.xpose.msra.mxu0 0.0
    %6556 = vmatprep.subr.mxu0 0.0
    %6557 = vmatpush1.xpose.msra.mxu0 0.0
    %6558 = vmatprep.subr.mxu0 0.0
    %6559 = vmatpush1.xpose.msra.mxu0 0.0
    %6560 = vmatprep.subr.mxu0 0.0
    %6561 = vmatpush1.xpose.msra.mxu0 0.0
    %6562 = vmatprep.subr.mxu0 0.0
    %6563 = vmatpush1.xpose.msra.mxu0 0.0
    %6564 = vmatprep.subr.mxu0 0.0
    %6565 = vmatpush1.xpose.msra.mxu0 0.0
    %6566 = vmatprep.subr.mxu0 0.0
    %6567 = vmatpush1.xpose.msra.mxu0 0.0
    %6568 = vmatprep.subr.mxu0 0.0
    %6569 = vmatpush1.xpose.msra.mxu0 0.0
    %6570 = vmatprep.subr.mxu0 0.0
    %6571 = vmatpush1.xpose.msra.mxu0 0.0
    %6572 = vmatprep.subr.mxu0 0.0
    %6573 = vmatpush1.xpose.msra.mxu0 0.0
    %6574 = vmatprep.subr.mxu0 0.0
    %6575 = vmatpush1.xpose.msra.mxu0 0.0
    %6576 = vmatprep.subr.mxu0 0.0
    %6577 = vmatpush1.xpose.msra.mxu0 0.0
    %6578 = vmatprep.subr.mxu0 0.0
    %6579 = vmatpush1.xpose.msra.mxu0 0.0
    %6580 = vmatprep.subr.mxu0 0.0
    %6581 = vmatpush1.xpose.msra.mxu0 0.0
    %6582 = vmatprep.mubr.f32.mxu0 0.0
    %6583 = vmatmul.mubr.f32.gmra.mrb[0].mxu0 %v4906
    %v6584 = vpop.f32.mrb[0].mxu0
    %v6585 = vadd.f32 %v1568, %v6584
    %v6586 = vpop.f32.mrb[0].mxu0
    %6587 = vdwg.mxu0
    %v6589 = vsel %vm2161, %v4975, 0
    %v6592 = vsel %vm2161, %v5535, 0
    %6594 = vmatprep.subr.mxu0 0.0
    %6595 = vmatpush1.xpose.msra.mxu0 %v6592
    %6596 = vmatprep.subr.mxu0 0.0
    %6597 = vmatpush1.xpose.msra.mxu0 0.0
    %6598 = vmatprep.subr.mxu0 0.0
    %6599 = vmatpush1.xpose.msra.mxu0 0.0
    %6600 = vmatprep.subr.mxu0 0.0
    %6601 = vmatpush1.xpose.msra.mxu0 0.0
    %6602 = vmatprep.subr.mxu0 0.0
    %6603 = vmatpush1.xpose.msra.mxu0 0.0
    %6604 = vmatprep.subr.mxu0 0.0
    %6605 = vmatpush1.xpose.msra.mxu0 0.0
    %6606 = vmatprep.subr.mxu0 0.0
    %6607 = vmatpush1.xpose.msra.mxu0 0.0
    %6608 = vmatprep.subr.mxu0 0.0
    %6609 = vmatpush1.xpose.msra.mxu0 0.0
    %6610 = vmatprep.subr.mxu0 0.0
    %6611 = vmatpush1.xpose.msra.mxu0 0.0
    %6612 = vmatprep.subr.mxu0 0.0
    %6613 = vmatpush1.xpose.msra.mxu0 0.0
    %6614 = vmatprep.subr.mxu0 0.0
    %6615 = vmatpush1.xpose.msra.mxu0 0.0
    %6616 = vmatprep.subr.mxu0 0.0
    %6617 = vmatpush1.xpose.msra.mxu0 0.0
    %6618 = vmatprep.subr.mxu0 0.0
    %6619 = vmatpush1.xpose.msra.mxu0 0.0
    %6620 = vmatprep.subr.mxu0 0.0
    %6621 = vmatpush1.xpose.msra.mxu0 0.0
    %6622 = vmatprep.subr.mxu0 0.0
    %6623 = vmatpush1.xpose.msra.mxu0 0.0
    %6624 = vmatprep.subr.mxu0 0.0
    %6625 = vmatpush1.xpose.msra.mxu0 0.0
    %6626 = vmatprep.subr.mxu0 0.0
    %6627 = vmatpush1.xpose.msra.mxu0 0.0
    %6628 = vmatprep.subr.mxu0 0.0
    %6629 = vmatpush1.xpose.msra.mxu0 0.0
    %6630 = vmatprep.subr.mxu0 0.0
    %6631 = vmatpush1.xpose.msra.mxu0 0.0
    %6632 = vmatprep.subr.mxu0 0.0
    %6633 = vmatpush1.xpose.msra.mxu0 0.0
    %6634 = vmatprep.subr.mxu0 0.0
    %6635 = vmatpush1.xpose.msra.mxu0 0.0
    %6636 = vmatprep.subr.mxu0 0.0
    %6637 = vmatpush1.xpose.msra.mxu0 0.0
    %6638 = vmatprep.subr.mxu0 0.0
    %6639 = vmatpush1.xpose.msra.mxu0 0.0
    %6640 = vmatprep.subr.mxu0 0.0
    %6641 = vmatpush1.xpose.msra.mxu0 0.0
    %6642 = vmatprep.subr.mxu0 0.0
    %6643 = vmatpush1.xpose.msra.mxu0 0.0
    %6644 = vmatprep.subr.mxu0 0.0
    %6645 = vmatpush1.xpose.msra.mxu0 0.0
    %6646 = vmatprep.subr.mxu0 0.0
    %6647 = vmatpush1.xpose.msra.mxu0 0.0
    %6648 = vmatprep.subr.mxu0 0.0
    %6649 = vmatpush1.xpose.msra.mxu0 0.0
    %6650 = vmatprep.subr.mxu0 0.0
    %6651 = vmatpush1.xpose.msra.mxu0 0.0
    %6652 = vmatprep.subr.mxu0 0.0
    %6653 = vmatpush1.xpose.msra.mxu0 0.0
    %6654 = vmatprep.subr.mxu0 0.0
    %6655 = vmatpush1.xpose.msra.mxu0 0.0
    %6656 = vmatprep.subr.mxu0 0.0
    %6657 = vmatpush1.xpose.msra.mxu0 0.0
    %6658 = vmatprep.mubr.f32.mxu0 0.0
    %6659 = vmatmul.mubr.f32.gmra.mrb[0].mxu0 %v6589
    %v6660 = vpop.f32.mrb[0].mxu0
    %v6661 = vadd.f32 0.0, %v6660
    %v6662 = vpop.f32.mrb[0].mxu0
    %6663 = vdwg.mxu0
    %v6665 = vsel %vm2161, %v5045, 0
    %v6668 = vsel %vm2161, %v5605, 0
    %6670 = vmatprep.subr.mxu0 0.0
    %6671 = vmatpush1.xpose.msra.mxu0 %v6668
    %6672 = vmatprep.subr.mxu0 0.0
    %6673 = vmatpush1.xpose.msra.mxu0 0.0
    %6674 = vmatprep.subr.mxu0 0.0
    %6675 = vmatpush1.xpose.msra.mxu0 0.0
    %6676 = vmatprep.subr.mxu0 0.0
    %6677 = vmatpush1.xpose.msra.mxu0 0.0
    %6678 = vmatprep.subr.mxu0 0.0
    %6679 = vmatpush1.xpose.msra.mxu0 0.0
    %6680 = vmatprep.subr.mxu0 0.0
    %6681 = vmatpush1.xpose.msra.mxu0 0.0
    %6682 = vmatprep.subr.mxu0 0.0
    %6683 = vmatpush1.xpose.msra.mxu0 0.0
    %6684 = vmatprep.subr.mxu0 0.0
    %6685 = vmatpush1.xpose.msra.mxu0 0.0
    %6686 = vmatprep.subr.mxu0 0.0
    %6687 = vmatpush1.xpose.msra.mxu0 0.0
    %6688 = vmatprep.subr.mxu0 0.0
    %6689 = vmatpush1.xpose.msra.mxu0 0.0
    %6690 = vmatprep.subr.mxu0 0.0
    %6691 = vmatpush1.xpose.msra.mxu0 0.0
    %6692 = vmatprep.subr.mxu0 0.0
    %6693 = vmatpush1.xpose.msra.mxu0 0.0
    %6694 = vmatprep.subr.mxu0 0.0
    %6695 = vmatpush1.xpose.msra.mxu0 0.0
    %6696 = vmatprep.subr.mxu0 0.0
    %6697 = vmatpush1.xpose.msra.mxu0 0.0
    %6698 = vmatprep.subr.mxu0 0.0
    %6699 = vmatpush1.xpose.msra.mxu0 0.0
    %6700 = vmatprep.subr.mxu0 0.0
    %6701 = vmatpush1.xpose.msra.mxu0 0.0
    %6702 = vmatprep.subr.mxu0 0.0
    %6703 = vmatpush1.xpose.msra.mxu0 0.0
    %6704 = vmatprep.subr.mxu0 0.0
    %6705 = vmatpush1.xpose.msra.mxu0 0.0
    %6706 = vmatprep.subr.mxu0 0.0
    %6707 = vmatpush1.xpose.msra.mxu0 0.0
    %6708 = vmatprep.subr.mxu0 0.0
    %6709 = vmatpush1.xpose.msra.mxu0 0.0
    %6710 = vmatprep.subr.mxu0 0.0
    %6711 = vmatpush1.xpose.msra.mxu0 0.0
    %6712 = vmatprep.subr.mxu0 0.0
    %6713 = vmatpush1.xpose.msra.mxu0 0.0
    %6714 = vmatprep.subr.mxu0 0.0
    %6715 = vmatpush1.xpose.msra.mxu0 0.0
    %6716 = vmatprep.subr.mxu0 0.0
    %6717 = vmatpush1.xpose.msra.mxu0 0.0
    %6718 = vmatprep.subr.mxu0 0.0
    %6719 = vmatpush1.xpose.msra.mxu0 0.0
    %6720 = vmatprep.subr.mxu0 0.0
    %6721 = vmatpush1.xpose.msra.mxu0 0.0
    %6722 = vmatprep.subr.mxu0 0.0
    %6723 = vmatpush1.xpose.msra.mxu0 0.0
    %6724 = vmatprep.subr.mxu0 0.0
    %6725 = vmatpush1.xpose.msra.mxu0 0.0
    %6726 = vmatprep.subr.mxu0 0.0
    %6727 = vmatpush1.xpose.msra.mxu0 0.0
    %6728 = vmatprep.subr.mxu0 0.0
    %6729 = vmatpush1.xpose.msra.mxu0 0.0
    %6730 = vmatprep.subr.mxu0 0.0
    %6731 = vmatpush1.xpose.msra.mxu0 0.0
    %6732 = vmatprep.subr.mxu0 0.0
    %6733 = vmatpush1.xpose.msra.mxu0 0.0
    %6734 = vmatprep.mubr.f32.mxu0 0.0
    %6735 = vmatmul.mubr.f32.gmra.mrb[0].mxu0 %v6665
    %v6736 = vpop.f32.mrb[0].mxu0
    %v6737 = vadd.f32 0.0, %v6736
    %v6738 = vpop.f32.mrb[0].mxu0
    %6739 = vdwg.mxu0
    %v6741 = vsel %vm2161, %v5115, 0
    %v6744 = vsel %vm2161, %v5675, 0
    %6746 = vmatprep.subr.mxu0 0.0
    %6747 = vmatpush1.xpose.msra.mxu0 %v6744
    %6748 = vmatprep.subr.mxu0 0.0
    %6749 = vmatpush1.xpose.msra.mxu0 0.0
    %6750 = vmatprep.subr.mxu0 0.0
    %6751 = vmatpush1.xpose.msra.mxu0 0.0
    %6752 = vmatprep.subr.mxu0 0.0
    %6753 = vmatpush1.xpose.msra.mxu0 0.0
    %6754 = vmatprep.subr.mxu0 0.0
    %6755 = vmatpush1.xpose.msra.mxu0 0.0
    %6756 = vmatprep.subr.mxu0 0.0
    %6757 = vmatpush1.xpose.msra.mxu0 0.0
    %6758 = vmatprep.subr.mxu0 0.0
    %6759 = vmatpush1.xpose.msra.mxu0 0.0
    %6760 = vmatprep.subr.mxu0 0.0
    %6761 = vmatpush1.xpose.msra.mxu0 0.0
    %6762 = vmatprep.subr.mxu0 0.0
    %6763 = vmatpush1.xpose.msra.mxu0 0.0
    %6764 = vmatprep.subr.mxu0 0.0
    %6765 = vmatpush1.xpose.msra.mxu0 0.0
    %6766 = vmatprep.subr.mxu0 0.0
    %6767 = vmatpush1.xpose.msra.mxu0 0.0
    %6768 = vmatprep.subr.mxu0 0.0
    %6769 = vmatpush1.xpose.msra.mxu0 0.0
    %6770 = vmatprep.subr.mxu0 0.0
    %6771 = vmatpush1.xpose.msra.mxu0 0.0
    %6772 = vmatprep.subr.mxu0 0.0
    %6773 = vmatpush1.xpose.msra.mxu0 0.0
    %6774 = vmatprep.subr.mxu0 0.0
    %6775 = vmatpush1.xpose.msra.mxu0 0.0
    %6776 = vmatprep.subr.mxu0 0.0
    %6777 = vmatpush1.xpose.msra.mxu0 0.0
    %6778 = vmatprep.subr.mxu0 0.0
    %6779 = vmatpush1.xpose.msra.mxu0 0.0
    %6780 = vmatprep.subr.mxu0 0.0
    %6781 = vmatpush1.xpose.msra.mxu0 0.0
    %6782 = vmatprep.subr.mxu0 0.0
    %6783 = vmatpush1.xpose.msra.mxu0 0.0
    %6784 = vmatprep.subr.mxu0 0.0
    %6785 = vmatpush1.xpose.msra.mxu0 0.0
    %6786 = vmatprep.subr.mxu0 0.0
    %6787 = vmatpush1.xpose.msra.mxu0 0.0
    %6788 = vmatprep.subr.mxu0 0.0
    %6789 = vmatpush1.xpose.msra.mxu0 0.0
    %6790 = vmatprep.subr.mxu0 0.0
    %6791 = vmatpush1.xpose.msra.mxu0 0.0
    %6792 = vmatprep.subr.mxu0 0.0
    %6793 = vmatpush1.xpose.msra.mxu0 0.0
    %6794 = vmatprep.subr.mxu0 0.0
    %6795 = vmatpush1.xpose.msra.mxu0 0.0
    %6796 = vmatprep.subr.mxu0 0.0
    %6797 = vmatpush1.xpose.msra.mxu0 0.0
    %6798 = vmatprep.subr.mxu0 0.0
    %6799 = vmatpush1.xpose.msra.mxu0 0.0
    %6800 = vmatprep.subr.mxu0 0.0
    %6801 = vmatpush1.xpose.msra.mxu0 0.0
    %6802 = vmatprep.subr.mxu0 0.0
    %6803 = vmatpush1.xpose.msra.mxu0 0.0
    %6804 = vmatprep.subr.mxu0 0.0
    %6805 = vmatpush1.xpose.msra.mxu0 0.0
    %6806 = vmatprep.subr.mxu0 0.0
    %6807 = vmatpush1.xpose.msra.mxu0 0.0
    %6808 = vmatprep.subr.mxu0 0.0
    %6809 = vmatpush1.xpose.msra.mxu0 0.0
    %6810 = vmatprep.mubr.f32.mxu0 0.0
    %6811 = vmatmul.mubr.f32.gmra.mrb[0].mxu0 %v6741
    %v6812 = vpop.f32.mrb[0].mxu0
    %v6813 = vadd.f32 0.0, %v6812
    %v6814 = vpop.f32.mrb[0].mxu0
    %6815 = vdwg.mxu0
    %v6817 = vsel %vm2161, %v5185, 0
    %v6820 = vsel %vm2161, %v5745, 0
    %6822 = vmatprep.subr.mxu0 0.0
    %6823 = vmatpush1.xpose.msra.mxu0 %v6820
    %6824 = vmatprep.subr.mxu0 0.0
    %6825 = vmatpush1.xpose.msra.mxu0 0.0
    %6826 = vmatprep.subr.mxu0 0.0
    %6827 = vmatpush1.xpose.msra.mxu0 0.0
    %6828 = vmatprep.subr.mxu0 0.0
    %6829 = vmatpush1.xpose.msra.mxu0 0.0
    %6830 = vmatprep.subr.mxu0 0.0
    %6831 = vmatpush1.xpose.msra.mxu0 0.0
    %6832 = vmatprep.subr.mxu0 0.0
    %6833 = vmatpush1.xpose.msra.mxu0 0.0
    %6834 = vmatprep.subr.mxu0 0.0
    %6835 = vmatpush1.xpose.msra.mxu0 0.0
    %6836 = vmatprep.subr.mxu0 0.0
    %6837 = vmatpush1.xpose.msra.mxu0 0.0
    %6838 = vmatprep.subr.mxu0 0.0
    %6839 = vmatpush1.xpose.msra.mxu0 0.0
    %6840 = vmatprep.subr.mxu0 0.0
    %6841 = vmatpush1.xpose.msra.mxu0 0.0
    %6842 = vmatprep.subr.mxu0 0.0
    %6843 = vmatpush1.xpose.msra.mxu0 0.0
    %6844 = vmatprep.subr.mxu0 0.0
    %6845 = vmatpush1.xpose.msra.mxu0 0.0
    %6846 = vmatprep.subr.mxu0 0.0
    %6847 = vmatpush1.xpose.msra.mxu0 0.0
    %6848 = vmatprep.subr.mxu0 0.0
    %6849 = vmatpush1.xpose.msra.mxu0 0.0
    %6850 = vmatprep.subr.mxu0 0.0
    %6851 = vmatpush1.xpose.msra.mxu0 0.0
    %6852 = vmatprep.subr.mxu0 0.0
    %6853 = vmatpush1.xpose.msra.mxu0 0.0
    %6854 = vmatprep.subr.mxu0 0.0
    %6855 = vmatpush1.xpose.msra.mxu0 0.0
    %6856 = vmatprep.subr.mxu0 0.0
    %6857 = vmatpush1.xpose.msra.mxu0 0.0
    %6858 = vmatprep.subr.mxu0 0.0
    %6859 = vmatpush1.xpose.msra.mxu0 0.0
    %6860 = vmatprep.subr.mxu0 0.0
    %6861 = vmatpush1.xpose.msra.mxu0 0.0
    %6862 = vmatprep.subr.mxu0 0.0
    %6863 = vmatpush1.xpose.msra.mxu0 0.0
    %6864 = vmatprep.subr.mxu0 0.0
    %6865 = vmatpush1.xpose.msra.mxu0 0.0
    %6866 = vmatprep.subr.mxu0 0.0
    %6867 = vmatpush1.xpose.msra.mxu0 0.0
    %6868 = vmatprep.subr.mxu0 0.0
    %6869 = vmatpush1.xpose.msra.mxu0 0.0
    %6870 = vmatprep.subr.mxu0 0.0
    %6871 = vmatpush1.xpose.msra.mxu0 0.0
    %6872 = vmatprep.subr.mxu0 0.0
    %6873 = vmatpush1.xpose.msra.mxu0 0.0
    %6874 = vmatprep.subr.mxu0 0.0
    %6875 = vmatpush1.xpose.msra.mxu0 0.0
    %6876 = vmatprep.subr.mxu0 0.0
    %6877 = vmatpush1.xpose.msra.mxu0 0.0
    %6878 = vmatprep.subr.mxu0 0.0
    %6879 = vmatpush1.xpose.msra.mxu0 0.0
    %6880 = vmatprep.subr.mxu0 0.0
    %6881 = vmatpush1.xpose.msra.mxu0 0.0
    %6882 = vmatprep.subr.mxu0 0.0
    %6883 = vmatpush1.xpose.msra.mxu0 0.0
    %6884 = vmatprep.subr.mxu0 0.0
    %6885 = vmatpush1.xpose.msra.mxu0 0.0
    %6886 = vmatprep.mubr.f32.mxu0 0.0
    %6887 = vmatmul.mubr.f32.gmra.mrb[0].mxu0 %v6817
    %v6888 = vpop.f32.mrb[0].mxu0
    %v6889 = vadd.f32 0.0, %v6888
    %v6890 = vpop.f32.mrb[0].mxu0
    %6891 = vdwg.mxu0
    %v6893 = vsel %vm2161, %v5255, 0
    %v6896 = vsel %vm2161, %v5815, 0
    %6898 = vmatprep.subr.mxu0 0.0
    %6899 = vmatpush1.xpose.msra.mxu0 %v6896
    %6900 = vmatprep.subr.mxu0 0.0
    %6901 = vmatpush1.xpose.msra.mxu0 0.0
    %6902 = vmatprep.subr.mxu0 0.0
    %6903 = vmatpush1.xpose.msra.mxu0 0.0
    %6904 = vmatprep.subr.mxu0 0.0
    %6905 = vmatpush1.xpose.msra.mxu0 0.0
    %6906 = vmatprep.subr.mxu0 0.0
    %6907 = vmatpush1.xpose.msra.mxu0 0.0
    %6908 = vmatprep.subr.mxu0 0.0
    %6909 = vmatpush1.xpose.msra.mxu0 0.0
    %6910 = vmatprep.subr.mxu0 0.0
    %6911 = vmatpush1.xpose.msra.mxu0 0.0
    %6912 = vmatprep.subr.mxu0 0.0
    %6913 = vmatpush1.xpose.msra.mxu0 0.0
    %6914 = vmatprep.subr.mxu0 0.0
    %6915 = vmatpush1.xpose.msra.mxu0 0.0
    %6916 = vmatprep.subr.mxu0 0.0
    %6917 = vmatpush1.xpose.msra.mxu0 0.0
    %6918 = vmatprep.subr.mxu0 0.0
    %6919 = vmatpush1.xpose.msra.mxu0 0.0
    %6920 = vmatprep.subr.mxu0 0.0
    %6921 = vmatpush1.xpose.msra.mxu0 0.0
    %6922 = vmatprep.subr.mxu0 0.0
    %6923 = vmatpush1.xpose.msra.mxu0 0.0
    %6924 = vmatprep.subr.mxu0 0.0
    %6925 = vmatpush1.xpose.msra.mxu0 0.0
    %6926 = vmatprep.subr.mxu0 0.0
    %6927 = vmatpush1.xpose.msra.mxu0 0.0
    %6928 = vmatprep.subr.mxu0 0.0
    %6929 = vmatpush1.xpose.msra.mxu0 0.0
    %6930 = vmatprep.subr.mxu0 0.0
    %6931 = vmatpush1.xpose.msra.mxu0 0.0
    %6932 = vmatprep.subr.mxu0 0.0
    %6933 = vmatpush1.xpose.msra.mxu0 0.0
    %6934 = vmatprep.subr.mxu0 0.0
    %6935 = vmatpush1.xpose.msra.mxu0 0.0
    %6936 = vmatprep.subr.mxu0 0.0
    %6937 = vmatpush1.xpose.msra.mxu0 0.0
    %6938 = vmatprep.subr.mxu0 0.0
    %6939 = vmatpush1.xpose.msra.mxu0 0.0
    %6940 = vmatprep.subr.mxu0 0.0
    %6941 = vmatpush1.xpose.msra.mxu0 0.0
    %6942 = vmatprep.subr.mxu0 0.0
    %6943 = vmatpush1.xpose.msra.mxu0 0.0
    %6944 = vmatprep.subr.mxu0 0.0
    %6945 = vmatpush1.xpose.msra.mxu0 0.0
    %6946 = vmatprep.subr.mxu0 0.0
    %6947 = vmatpush1.xpose.msra.mxu0 0.0
    %6948 = vmatprep.subr.mxu0 0.0
    %6949 = vmatpush1.xpose.msra.mxu0 0.0
    %6950 = vmatprep.subr.mxu0 0.0
    %6951 = vmatpush1.xpose.msra.mxu0 0.0
    %6952 = vmatprep.subr.mxu0 0.0
    %6953 = vmatpush1.xpose.msra.mxu0 0.0
    %6954 = vmatprep.subr.mxu0 0.0
    %6955 = vmatpush1.xpose.msra.mxu0 0.0
    %6956 = vmatprep.subr.mxu0 0.0
    %6957 = vmatpush1.xpose.msra.mxu0 0.0
    %6958 = vmatprep.subr.mxu0 0.0
    %6959 = vmatpush1.xpose.msra.mxu0 0.0
    %6960 = vmatprep.subr.mxu0 0.0
    %6961 = vmatpush1.xpose.msra.mxu0 0.0
    %6962 = vmatprep.mubr.f32.mxu0 0.0
    %6963 = vmatmul.mubr.f32.gmra.mrb[0].mxu0 %v6893
    %v6964 = vpop.f32.mrb[0].mxu0
    %v6965 = vadd.f32 0.0, %v6964
    %v6966 = vpop.f32.mrb[0].mxu0
    %6967 = vdwg.mxu0
    %v6969 = vsel %vm2161, %v5325, 0
    %v6972 = vsel %vm2161, %v5885, 0
    %6974 = vmatprep.subr.mxu0 0.0
    %6975 = vmatpush1.xpose.msra.mxu0 %v6972
    %6976 = vmatprep.subr.mxu0 0.0
    %6977 = vmatpush1.xpose.msra.mxu0 0.0
    %6978 = vmatprep.subr.mxu0 0.0
    %6979 = vmatpush1.xpose.msra.mxu0 0.0
    %6980 = vmatprep.subr.mxu0 0.0
    %6981 = vmatpush1.xpose.msra.mxu0 0.0
    %6982 = vmatprep.subr.mxu0 0.0
    %6983 = vmatpush1.xpose.msra.mxu0 0.0
    %6984 = vmatprep.subr.mxu0 0.0
    %6985 = vmatpush1.xpose.msra.mxu0 0.0
    %6986 = vmatprep.subr.mxu0 0.0
    %6987 = vmatpush1.xpose.msra.mxu0 0.0
    %6988 = vmatprep.subr.mxu0 0.0
    %6989 = vmatpush1.xpose.msra.mxu0 0.0
    %6990 = vmatprep.subr.mxu0 0.0
    %6991 = vmatpush1.xpose.msra.mxu0 0.0
    %6992 = vmatprep.subr.mxu0 0.0
    %6993 = vmatpush1.xpose.msra.mxu0 0.0
    %6994 = vmatprep.subr.mxu0 0.0
    %6995 = vmatpush1.xpose.msra.mxu0 0.0
    %6996 = vmatprep.subr.mxu0 0.0
    %6997 = vmatpush1.xpose.msra.mxu0 0.0
    %6998 = vmatprep.subr.mxu0 0.0
    %6999 = vmatpush1.xpose.msra.mxu0 0.0
    %7000 = vmatprep.subr.mxu0 0.0
    %7001 = vmatpush1.xpose.msra.mxu0 0.0
    %7002 = vmatprep.subr.mxu0 0.0
    %7003 = vmatpush1.xpose.msra.mxu0 0.0
    %7004 = vmatprep.subr.mxu0 0.0
    %7005 = vmatpush1.xpose.msra.mxu0 0.0
    %7006 = vmatprep.subr.mxu0 0.0
    %7007 = vmatpush1.xpose.msra.mxu0 0.0
    %7008 = vmatprep.subr.mxu0 0.0
    %7009 = vmatpush1.xpose.msra.mxu0 0.0
    %7010 = vmatprep.subr.mxu0 0.0
    %7011 = vmatpush1.xpose.msra.mxu0 0.0
    %7012 = vmatprep.subr.mxu0 0.0
    %7013 = vmatpush1.xpose.msra.mxu0 0.0
    %7014 = vmatprep.subr.mxu0 0.0
    %7015 = vmatpush1.xpose.msra.mxu0 0.0
    %7016 = vmatprep.subr.mxu0 0.0
    %7017 = vmatpush1.xpose.msra.mxu0 0.0
    %7018 = vmatprep.subr.mxu0 0.0
    %7019 = vmatpush1.xpose.msra.mxu0 0.0
    %7020 = vmatprep.subr.mxu0 0.0
    %7021 = vmatpush1.xpose.msra.mxu0 0.0
    %7022 = vmatprep.subr.mxu0 0.0
    %7023 = vmatpush1.xpose.msra.mxu0 0.0
    %7024 = vmatprep.subr.mxu0 0.0
    %7025 = vmatpush1.xpose.msra.mxu0 0.0
    %7026 = vmatprep.subr.mxu0 0.0
    %7027 = vmatpush1.xpose.msra.mxu0 0.0
    %7028 = vmatprep.subr.mxu0 0.0
    %7029 = vmatpush1.xpose.msra.mxu0 0.0
    %7030 = vmatprep.subr.mxu0 0.0
    %7031 = vmatpush1.xpose.msra.mxu0 0.0
    %7032 = vmatprep.subr.mxu0 0.0
    %7033 = vmatpush1.xpose.msra.mxu0 0.0
    %7034 = vmatprep.subr.mxu0 0.0
    %7035 = vmatpush1.xpose.msra.mxu0 0.0
    %7036 = vmatprep.subr.mxu0 0.0
    %7037 = vmatpush1.xpose.msra.mxu0 0.0
    %7038 = vmatprep.mubr.f32.mxu0 0.0
    %7039 = vmatmul.mubr.f32.gmra.mrb[0].mxu0 %v6969
    %v7040 = vpop.f32.mrb[0].mxu0
    %v7041 = vadd.f32 0.0, %v7040
    %v7042 = vpop.f32.mrb[0].mxu0
    %7043 = vdwg.mxu0
    %v7045 = vsel %vm2161, %v5395, 0
    %v7048 = vsel %vm2161, %v5955, 0
    %7050 = vmatprep.subr.mxu0 0.0
    %7051 = vmatpush1.xpose.msra.mxu0 %v7048
    %7052 = vmatprep.subr.mxu0 0.0
    %7053 = vmatpush1.xpose.msra.mxu0 0.0
    %7054 = vmatprep.subr.mxu0 0.0
    %7055 = vmatpush1.xpose.msra.mxu0 0.0
    %7056 = vmatprep.subr.mxu0 0.0
    %7057 = vmatpush1.xpose.msra.mxu0 0.0
    %7058 = vmatprep.subr.mxu0 0.0
    %7059 = vmatpush1.xpose.msra.mxu0 0.0
    %7060 = vmatprep.subr.mxu0 0.0
    %7061 = vmatpush1.xpose.msra.mxu0 0.0
    %7062 = vmatprep.subr.mxu0 0.0
    %7063 = vmatpush1.xpose.msra.mxu0 0.0
    %7064 = vmatprep.subr.mxu0 0.0
    %7065 = vmatpush1.xpose.msra.mxu0 0.0
    %7066 = vmatprep.subr.mxu0 0.0
    %7067 = vmatpush1.xpose.msra.mxu0 0.0
    %7068 = vmatprep.subr.mxu0 0.0
    %7069 = vmatpush1.xpose.msra.mxu0 0.0
    %7070 = vmatprep.subr.mxu0 0.0
    %7071 = vmatpush1.xpose.msra.mxu0 0.0
    %7072 = vmatprep.subr.mxu0 0.0
    %7073 = vmatpush1.xpose.msra.mxu0 0.0
    %7074 = vmatprep.subr.mxu0 0.0
    %7075 = vmatpush1.xpose.msra.mxu0 0.0
    %7076 = vmatprep.subr.mxu0 0.0
    %7077 = vmatpush1.xpose.msra.mxu0 0.0
    %7078 = vmatprep.subr.mxu0 0.0
    %7079 = vmatpush1.xpose.msra.mxu0 0.0
    %7080 = vmatprep.subr.mxu0 0.0
    %7081 = vmatpush1.xpose.msra.mxu0 0.0
    %7082 = vmatprep.subr.mxu0 0.0
    %7083 = vmatpush1.xpose.msra.mxu0 0.0
    %7084 = vmatprep.subr.mxu0 0.0
    %7085 = vmatpush1.xpose.msra.mxu0 0.0
    %7086 = vmatprep.subr.mxu0 0.0
    %7087 = vmatpush1.xpose.msra.mxu0 0.0
    %7088 = vmatprep.subr.mxu0 0.0
    %7089 = vmatpush1.xpose.msra.mxu0 0.0
    %7090 = vmatprep.subr.mxu0 0.0
    %7091 = vmatpush1.xpose.msra.mxu0 0.0
    %7092 = vmatprep.subr.mxu0 0.0
    %7093 = vmatpush1.xpose.msra.mxu0 0.0
    %7094 = vmatprep.subr.mxu0 0.0
    %7095 = vmatpush1.xpose.msra.mxu0 0.0
    %7096 = vmatprep.subr.mxu0 0.0
    %7097 = vmatpush1.xpose.msra.mxu0 0.0
    %7098 = vmatprep.subr.mxu0 0.0
    %7099 = vmatpush1.xpose.msra.mxu0 0.0
    %7100 = vmatprep.subr.mxu0 0.0
    %7101 = vmatpush1.xpose.msra.mxu0 0.0
    %7102 = vmatprep.subr.mxu0 0.0
    %7103 = vmatpush1.xpose.msra.mxu0 0.0
    %7104 = vmatprep.subr.mxu0 0.0
    %7105 = vmatpush1.xpose.msra.mxu0 0.0
    %7106 = vmatprep.subr.mxu0 0.0
    %7107 = vmatpush1.xpose.msra.mxu0 0.0
    %7108 = vmatprep.subr.mxu0 0.0
    %7109 = vmatpush1.xpose.msra.mxu0 0.0
    %7110 = vmatprep.subr.mxu0 0.0
    %7111 = vmatpush1.xpose.msra.mxu0 0.0
    %7112 = vmatprep.subr.mxu0 0.0
    %7113 = vmatpush1.xpose.msra.mxu0 0.0
    %7114 = vmatprep.mubr.f32.mxu0 0.0
    %7115 = vmatmul.mubr.f32.gmra.mrb[0].mxu0 %v7045
    %v7116 = vpop.f32.mrb[0].mxu0
    %v7117 = vadd.f32 0.0, %v7116
    %v7118 = vpop.f32.mrb[0].mxu0
    %7119 = vdwg.mxu0
    %v7121 = vsel %vm2161, %v5465, 0
    %v7124 = vsel %vm2161, %v6025, 0
    %7126 = vmatprep.subr.mxu0 0.0
    %7127 = vmatpush1.xpose.msra.mxu0 %v7124
    %7128 = vmatprep.subr.mxu0 0.0
    %7129 = vmatpush1.xpose.msra.mxu0 0.0
    %7130 = vmatprep.subr.mxu0 0.0
    %7131 = vmatpush1.xpose.msra.mxu0 0.0
    %7132 = vmatprep.subr.mxu0 0.0
    %7133 = vmatpush1.xpose.msra.mxu0 0.0
    %7134 = vmatprep.subr.mxu0 0.0
    %7135 = vmatpush1.xpose.msra.mxu0 0.0
    %7136 = vmatprep.subr.mxu0 0.0
    %7137 = vmatpush1.xpose.msra.mxu0 0.0
    %7138 = vmatprep.subr.mxu0 0.0
    %7139 = vmatpush1.xpose.msra.mxu0 0.0
    %7140 = vmatprep.subr.mxu0 0.0
    %7141 = vmatpush1.xpose.msra.mxu0 0.0
    %7142 = vmatprep.subr.mxu0 0.0
    %7143 = vmatpush1.xpose.msra.mxu0 0.0
    %7144 = vmatprep.subr.mxu0 0.0
    %7145 = vmatpush1.xpose.msra.mxu0 0.0
    %7146 = vmatprep.subr.mxu0 0.0
    %7147 = vmatpush1.xpose.msra.mxu0 0.0
    %7148 = vmatprep.subr.mxu0 0.0
    %7149 = vmatpush1.xpose.msra.mxu0 0.0
    %7150 = vmatprep.subr.mxu0 0.0
    %7151 = vmatpush1.xpose.msra.mxu0 0.0
    %7152 = vmatprep.subr.mxu0 0.0
    %7153 = vmatpush1.xpose.msra.mxu0 0.0
    %7154 = vmatprep.subr.mxu0 0.0
    %7155 = vmatpush1.xpose.msra.mxu0 0.0
    %7156 = vmatprep.subr.mxu0 0.0
    %7157 = vmatpush1.xpose.msra.mxu0 0.0
    %7158 = vmatprep.subr.mxu0 0.0
    %7159 = vmatpush1.xpose.msra.mxu0 0.0
    %7160 = vmatprep.subr.mxu0 0.0
    %7161 = vmatpush1.xpose.msra.mxu0 0.0
    %7162 = vmatprep.subr.mxu0 0.0
    %7163 = vmatpush1.xpose.msra.mxu0 0.0
    %7164 = vmatprep.subr.mxu0 0.0
    %7165 = vmatpush1.xpose.msra.mxu0 0.0
    %7166 = vmatprep.subr.mxu0 0.0
    %7167 = vmatpush1.xpose.msra.mxu0 0.0
    %7168 = vmatprep.subr.mxu0 0.0
    %7169 = vmatpush1.xpose.msra.mxu0 0.0
    %7170 = vmatprep.subr.mxu0 0.0
    %7171 = vmatpush1.xpose.msra.mxu0 0.0
    %7172 = vmatprep.subr.mxu0 0.0
    %7173 = vmatpush1.xpose.msra.mxu0 0.0
    %7174 = vmatprep.subr.mxu0 0.0
    %7175 = vmatpush1.xpose.msra.mxu0 0.0
    %7176 = vmatprep.subr.mxu0 0.0
    %7177 = vmatpush1.xpose.msra.mxu0 0.0
    %7178 = vmatprep.subr.mxu0 0.0
    %7179 = vmatpush1.xpose.msra.mxu0 0.0
    %7180 = vmatprep.subr.mxu0 0.0
    %7181 = vmatpush1.xpose.msra.mxu0 0.0
    %7182 = vmatprep.subr.mxu0 0.0
    %7183 = vmatpush1.xpose.msra.mxu0 0.0
    %7184 = vmatprep.subr.mxu0 0.0
    %7185 = vmatpush1.xpose.msra.mxu0 0.0
    %7186 = vmatprep.subr.mxu0 0.0
    %7187 = vmatpush1.xpose.msra.mxu0 0.0
    %7188 = vmatprep.subr.mxu0 0.0
    %7189 = vmatpush1.xpose.msra.mxu0 0.0
    %7190 = vmatprep.mubr.f32.mxu0 0.0
    %7191 = vmatmul.mubr.f32.gmra.mrb[0].mxu0 %v7121
    %v7192 = vpop.f32.mrb[0].mxu0
    %v7193 = vadd.f32 0.0, %v7192
    %v7194 = vpop.f32.mrb[0].mxu0
    %7195 = vdwg.mxu0
    %v7196 = vmul.f32 %v6661, 0.5
    %v7197 = vmul.f32 %v6737, 0.5
    %v7198 = vmul.f32 %v6813, 0.5
    %v7199 = vmul.f32 %v6889, 0.5
    %v7200 = vmul.f32 %v6965, 0.5
    %v7201 = vmul.f32 %v7041, 0.5
    %v7202 = vmul.f32 %v7117, 0.5
    %v7203 = vmul.f32 %v7193, 0.5
    %v7204 = vsel %vm2778, %v7196, -inf
    %7205 = vmax.xlane.f32.xlu0 %v7204
    %v7206 = vpop.xlane.xlu0 %7205
    %v7207 = vsel %vm2778, %v7197, -inf
    %7208 = vmax.xlane.f32.xlu0 %v7207
    %v7209 = vpop.xlane.xlu0 %7208
    %v7210 = vsel %vm2778, %v7198, -inf
    %7211 = vmax.xlane.f32.xlu0 %v7210
    %v7212 = vpop.xlane.xlu0 %7211
    %v7213 = vsel %vm2778, %v7199, -inf
    %7214 = vmax.xlane.f32.xlu0 %v7213
    %v7215 = vpop.xlane.xlu0 %7214
    %v7216 = vsel %vm2778, %v7200, -inf
    %7217 = vmax.xlane.f32.xlu0 %v7216
    %v7218 = vpop.xlane.xlu0 %7217
    %v7219 = vsel %vm2778, %v7201, -inf
    %7220 = vmax.xlane.f32.xlu0 %v7219
    %v7221 = vpop.xlane.xlu0 %7220
    %v7222 = vsel %vm2778, %v7202, -inf
    %7223 = vmax.xlane.f32.xlu0 %v7222
    %v7224 = vpop.xlane.xlu0 %7223
    %v7225 = vsel %vm2778, %v7203, -inf
    %7226 = vmax.xlane.f32.xlu0 %v7225
    %v7227 = vpop.xlane.xlu0 %7226
    %v7228 = vsub.f32 %v7196, %v7206
    %v7229 = vsub.f32 %v7197, %v7209
    %v7230 = vsub.f32 %v7198, %v7212
    %v7231 = vsub.f32 %v7199, %v7215
    %v7232 = vsub.f32 %v7200, %v7218
    %v7233 = vsub.f32 %v7201, %v7221
    %v7234 = vsub.f32 %v7202, %v7224
    %v7235 = vsub.f32 %v7203, %v7227
    %v7236 = vmul.f32 %v7228, 1.442695
    %v7237 = vpow.pop %v7236
    %v7238 = vmul.f32 %v7229, 1.442695
    %v7239 = vpow.pop %v7238
    %v7240 = vmul.f32 %v7230, 1.442695
    %v7241 = vpow.pop %v7240
    %v7242 = vmul.f32 %v7231, 1.442695
    %v7243 = vpow.pop %v7242
    %v7244 = vmul.f32 %v7232, 1.442695
    %v7245 = vpow.pop %v7244
    %v7246 = vmul.f32 %v7233, 1.442695
    %v7247 = vpow.pop %v7246
    %v7248 = vmul.f32 %v7234, 1.442695
    %v7249 = vpow.pop %v7248
    %v7250 = vmul.f32 %v7235, 1.442695
    %v7251 = vpow.pop %v7250
    %v7252 = vsel %vm2778, %v7237, 0.0
    %7253 = vadd.xlane.f32.xlu0 %v7252
    %v7254 = vpop.xlane.xlu0 %7253
    %v7255 = vsel %vm2778, %v7239, 0.0
    %7256 = vadd.xlane.f32.xlu0 %v7255
    %v7257 = vpop.xlane.xlu0 %7256
    %v7258 = vsel %vm2778, %v7241, 0.0
    %7259 = vadd.xlane.f32.xlu0 %v7258
    %v7260 = vpop.xlane.xlu0 %7259
    %v7261 = vsel %vm2778, %v7243, 0.0
    %7262 = vadd.xlane.f32.xlu0 %v7261
    %v7263 = vpop.xlane.xlu0 %7262
    %v7264 = vsel %vm2778, %v7245, 0.0
    %7265 = vadd.xlane.f32.xlu0 %v7264
    %v7266 = vpop.xlane.xlu0 %7265
    %v7267 = vsel %vm2778, %v7247, 0.0
    %7268 = vadd.xlane.f32.xlu0 %v7267
    %v7269 = vpop.xlane.xlu0 %7268
    %v7270 = vsel %vm2778, %v7249, 0.0
    %7271 = vadd.xlane.f32.xlu0 %v7270
    %v7272 = vpop.xlane.xlu0 %7271
    %v7273 = vsel %vm2778, %v7251, 0.0
    %7274 = vadd.xlane.f32.xlu0 %v7273
    %v7275 = vpop.xlane.xlu0 %7274
    %v7276 = vrcp.pop %v7254
    %v7277 = vmul.f32 %v7237, %v7276
    %v7278 = vrcp.pop %v7257
    %v7279 = vmul.f32 %v7239, %v7278
    %v7280 = vrcp.pop %v7260
    %v7281 = vmul.f32 %v7241, %v7280
    %v7282 = vrcp.pop %v7263
    %v7283 = vmul.f32 %v7243, %v7282
    %v7284 = vrcp.pop %v7266
    %v7285 = vmul.f32 %v7245, %v7284
    %v7286 = vrcp.pop %v7269
    %v7287 = vmul.f32 %v7247, %v7286
    %v7288 = vrcp.pop %v7272
    %v7289 = vmul.f32 %v7249, %v7288
    %v7290 = vrcp.pop %v7275
    %v7291 = vmul.f32 %v7251, %v7290
    %v7293 = vsel %vm2778, %v7277, 0
    %7295 = vmatprep.subr.mxu0 0.0
    %7296 = vmatpush1.msra.mxu0 %v6095
    %7297 = vmatprep.subr.mxu0 0.0
    %7298 = vmatpush1.msra.mxu0 0.0
    %7299 = vmatprep.subr.mxu0 0.0
    %7300 = vmatpush1.msra.mxu0 0.0
    %7301 = vmatprep.subr.mxu0 0.0
    %7302 = vmatpush1.msra.mxu0 0.0
    %7303 = vmatprep.subr.mxu0 0.0
    %7304 = vmatpush1.msra.mxu0 0.0
    %7305 = vmatprep.subr.mxu0 0.0
    %7306 = vmatpush1.msra.mxu0 0.0
    %7307 = vmatprep.subr.mxu0 0.0
    %7308 = vmatpush1.msra.mxu0 0.0
    %7309 = vmatprep.subr.mxu0 0.0
    %7310 = vmatpush1.msra.mxu0 0.0
    %7311 = vmatprep.subr.mxu0 0.0
    %7312 = vmatpush1.msra.mxu0 0.0
    %7313 = vmatprep.subr.mxu0 0.0
    %7314 = vmatpush1.msra.mxu0 0.0
    %7315 = vmatprep.subr.mxu0 0.0
    %7316 = vmatpush1.msra.mxu0 0.0
    %7317 = vmatprep.subr.mxu0 0.0
    %7318 = vmatpush1.msra.mxu0 0.0
    %7319 = vmatprep.subr.mxu0 0.0
    %7320 = vmatpush1.msra.mxu0 0.0
    %7321 = vmatprep.subr.mxu0 0.0
    %7322 = vmatpush1.msra.mxu0 0.0
    %7323 = vmatprep.subr.mxu0 0.0
    %7324 = vmatpush1.msra.mxu0 0.0
    %7325 = vmatprep.subr.mxu0 0.0
    %7326 = vmatpush1.msra.mxu0 0.0
    %7327 = vmatprep.subr.mxu0 0.0
    %7328 = vmatpush1.msra.mxu0 0.0
    %7329 = vmatprep.subr.mxu0 0.0
    %7330 = vmatpush1.msra.mxu0 0.0
    %7331 = vmatprep.subr.mxu0 0.0
    %7332 = vmatpush1.msra.mxu0 0.0
    %7333 = vmatprep.subr.mxu0 0.0
    %7334 = vmatpush1.msra.mxu0 0.0
    %7335 = vmatprep.subr.mxu0 0.0
    %7336 = vmatpush1.msra.mxu0 0.0
    %7337 = vmatprep.subr.mxu0 0.0
    %7338 = vmatpush1.msra.mxu0 0.0
    %7339 = vmatprep.subr.mxu0 0.0
    %7340 = vmatpush1.msra.mxu0 0.0
    %7341 = vmatprep.subr.mxu0 0.0
    %7342 = vmatpush1.msra.mxu0 0.0
    %7343 = vmatprep.subr.mxu0 0.0
    %7344 = vmatpush1.msra.mxu0 0.0
    %7345 = vmatprep.subr.mxu0 0.0
    %7346 = vmatpush1.msra.mxu0 0.0
    %7347 = vmatprep.subr.mxu0 0.0
    %7348 = vmatpush1.msra.mxu0 0.0
    %7349 = vmatprep.subr.mxu0 0.0
    %7350 = vmatpush1.msra.mxu0 0.0
    %7351 = vmatprep.subr.mxu0 0.0
    %7352 = vmatpush1.msra.mxu0 0.0
    %7353 = vmatprep.subr.mxu0 0.0
    %7354 = vmatpush1.msra.mxu0 0.0
    %7355 = vmatprep.subr.mxu0 0.0
    %7356 = vmatpush1.msra.mxu0 0.0
    %7357 = vmatprep.subr.mxu0 0.0
    %7358 = vmatpush1.msra.mxu0 0.0
    %7359 = vmatprep.mubr.f32.mxu0 0.0
    %7360 = vmatmul.mubr.f32.gmra.mrb[0].mxu0 %v7293
    %v7361 = vpop.f32.mrb[0].mxu0
    %v7362 = vadd.f32 0.0, %v7361
    %v7363 = vpop.f32.mrb[0].mxu0
    %7364 = vdwg.mxu0
    %v7366 = vsel %vm2778, %v7279, 0
    %7368 = vmatprep.subr.mxu0 0.0
    %7369 = vmatpush1.msra.mxu0 %v6165
    %7370 = vmatprep.subr.mxu0 0.0
    %7371 = vmatpush1.msra.mxu0 0.0
    %7372 = vmatprep.subr.mxu0 0.0
    %7373 = vmatpush1.msra.mxu0 0.0
    %7374 = vmatprep.subr.mxu0 0.0
    %7375 = vmatpush1.msra.mxu0 0.0
    %7376 = vmatprep.subr.mxu0 0.0
    %7377 = vmatpush1.msra.mxu0 0.0
    %7378 = vmatprep.subr.mxu0 0.0
    %7379 = vmatpush1.msra.mxu0 0.0
    %7380 = vmatprep.subr.mxu0 0.0
    %7381 = vmatpush1.msra.mxu0 0.0
    %7382 = vmatprep.subr.mxu0 0.0
    %7383 = vmatpush1.msra.mxu0 0.0
    %7384 = vmatprep.subr.mxu0 0.0
    %7385 = vmatpush1.msra.mxu0 0.0
    %7386 = vmatprep.subr.mxu0 0.0
    %7387 = vmatpush1.msra.mxu0 0.0
    %7388 = vmatprep.subr.mxu0 0.0
    %7389 = vmatpush1.msra.mxu0 0.0
    %7390 = vmatprep.subr.mxu0 0.0
    %7391 = vmatpush1.msra.mxu0 0.0
    %7392 = vmatprep.subr.mxu0 0.0
    %7393 = vmatpush1.msra.mxu0 0.0
    %7394 = vmatprep.subr.mxu0 0.0
    %7395 = vmatpush1.msra.mxu0 0.0
    %7396 = vmatprep.subr.mxu0 0.0
    %7397 = vmatpush1.msra.mxu0 0.0
    %7398 = vmatprep.subr.mxu0 0.0
    %7399 = vmatpush1.msra.mxu0 0.0
    %7400 = vmatprep.subr.mxu0 0.0
    %7401 = vmatpush1.msra.mxu0 0.0
    %7402 = vmatprep.subr.mxu0 0.0
    %7403 = vmatpush1.msra.mxu0 0.0
    %7404 = vmatprep.subr.mxu0 0.0
    %7405 = vmatpush1.msra.mxu0 0.0
    %7406 = vmatprep.subr.mxu0 0.0
    %7407 = vmatpush1.msra.mxu0 0.0
    %7408 = vmatprep.subr.mxu0 0.0
    %7409 = vmatpush1.msra.mxu0 0.0
    %7410 = vmatprep.subr.mxu0 0.0
    %7411 = vmatpush1.msra.mxu0 0.0
    %7412 = vmatprep.subr.mxu0 0.0
    %7413 = vmatpush1.msra.mxu0 0.0
    %7414 = vmatprep.subr.mxu0 0.0
    %7415 = vmatpush1.msra.mxu0 0.0
    %7416 = vmatprep.subr.mxu0 0.0
    %7417 = vmatpush1.msra.mxu0 0.0
    %7418 = vmatprep.subr.mxu0 0.0
    %7419 = vmatpush1.msra.mxu0 0.0
    %7420 = vmatprep.subr.mxu0 0.0
    %7421 = vmatpush1.msra.mxu0 0.0
    %7422 = vmatprep.subr.mxu0 0.0
    %7423 = vmatpush1.msra.mxu0 0.0
    %7424 = vmatprep.subr.mxu0 0.0
    %7425 = vmatpush1.msra.mxu0 0.0
    %7426 = vmatprep.subr.mxu0 0.0
    %7427 = vmatpush1.msra.mxu0 0.0
    %7428 = vmatprep.subr.mxu0 0.0
    %7429 = vmatpush1.msra.mxu0 0.0
    %7430 = vmatprep.subr.mxu0 0.0
    %7431 = vmatpush1.msra.mxu0 0.0
    %7432 = vmatprep.mubr.f32.mxu0 0.0
    %7433 = vmatmul.mubr.f32.gmra.mrb[0].mxu0 %v7366
    %v7434 = vpop.f32.mrb[0].mxu0
    %v7435 = vadd.f32 0.0, %v7434
    %v7436 = vpop.f32.mrb[0].mxu0
    %7437 = vdwg.mxu0
    %v7439 = vsel %vm2778, %v7281, 0
    %7441 = vmatprep.subr.mxu0 0.0
    %7442 = vmatpush1.msra.mxu0 %v6235
    %7443 = vmatprep.subr.mxu0 0.0
    %7444 = vmatpush1.msra.mxu0 0.0
    %7445 = vmatprep.subr.mxu0 0.0
    %7446 = vmatpush1.msra.mxu0 0.0
    %7447 = vmatprep.subr.mxu0 0.0
    %7448 = vmatpush1.msra.mxu0 0.0
    %7449 = vmatprep.subr.mxu0 0.0
    %7450 = vmatpush1.msra.mxu0 0.0
    %7451 = vmatprep.subr.mxu0 0.0
    %7452 = vmatpush1.msra.mxu0 0.0
    %7453 = vmatprep.subr.mxu0 0.0
    %7454 = vmatpush1.msra.mxu0 0.0
    %7455 = vmatprep.subr.mxu0 0.0
    %7456 = vmatpush1.msra.mxu0 0.0
    %7457 = vmatprep.subr.mxu0 0.0
    %7458 = vmatpush1.msra.mxu0 0.0
    %7459 = vmatprep.subr.mxu0 0.0
    %7460 = vmatpush1.msra.mxu0 0.0
    %7461 = vmatprep.subr.mxu0 0.0
    %7462 = vmatpush1.msra.mxu0 0.0
    %7463 = vmatprep.subr.mxu0 0.0
    %7464 = vmatpush1.msra.mxu0 0.0
    %7465 = vmatprep.subr.mxu0 0.0
    %7466 = vmatpush1.msra.mxu0 0.0
    %7467 = vmatprep.subr.mxu0 0.0
    %7468 = vmatpush1.msra.mxu0 0.0
    %7469 = vmatprep.subr.mxu0 0.0
    %7470 = vmatpush1.msra.mxu0 0.0
    %7471 = vmatprep.subr.mxu0 0.0
    %7472 = vmatpush1.msra.mxu0 0.0
    %7473 = vmatprep.subr.mxu0 0.0
    %7474 = vmatpush1.msra.mxu0 0.0
    %7475 = vmatprep.subr.mxu0 0.0
    %7476 = vmatpush1.msra.mxu0 0.0
    %7477 = vmatprep.subr.mxu0 0.0
    %7478 = vmatpush1.msra.mxu0 0.0
    %7479 = vmatprep.subr.mxu0 0.0
    %7480 = vmatpush1.msra.mxu0 0.0
    %7481 = vmatprep.subr.mxu0 0.0
    %7482 = vmatpush1.msra.mxu0 0.0
    %7483 = vmatprep.subr.mxu0 0.0
    %7484 = vmatpush1.msra.mxu0 0.0
    %7485 = vmatprep.subr.mxu0 0.0
    %7486 = vmatpush1.msra.mxu0 0.0
    %7487 = vmatprep.subr.mxu0 0.0
    %7488 = vmatpush1.msra.mxu0 0.0
    %7489 = vmatprep.subr.mxu0 0.0
    %7490 = vmatpush1.msra.mxu0 0.0
    %7491 = vmatprep.subr.mxu0 0.0
    %7492 = vmatpush1.msra.mxu0 0.0
    %7493 = vmatprep.subr.mxu0 0.0
    %7494 = vmatpush1.msra.mxu0 0.0
    %7495 = vmatprep.subr.mxu0 0.0
    %7496 = vmatpush1.msra.mxu0 0.0
    %7497 = vmatprep.subr.mxu0 0.0
    %7498 = vmatpush1.msra.mxu0 0.0
    %7499 = vmatprep.subr.mxu0 0.0
    %7500 = vmatpush1.msra.mxu0 0.0
    %7501 = vmatprep.subr.mxu0 0.0
    %7502 = vmatpush1.msra.mxu0 0.0
    %7503 = vmatprep.subr.mxu0 0.0
    %7504 = vmatpush1.msra.mxu0 0.0
    %7505 = vmatprep.mubr.f32.mxu0 0.0
    %7506 = vmatmul.mubr.f32.gmra.mrb[0].mxu0 %v7439
    %v7507 = vpop.f32.mrb[0].mxu0
    %v7508 = vadd.f32 0.0, %v7507
    %v7509 = vpop.f32.mrb[0].mxu0
    %7510 = vdwg.mxu0
    %v7512 = vsel %vm2778, %v7283, 0
    %7514 = vmatprep.subr.mxu0 0.0
    %7515 = vmatpush1.msra.mxu0 %v6305
    %7516 = vmatprep.subr.mxu0 0.0
    %7517 = vmatpush1.msra.mxu0 0.0
    %7518 = vmatprep.subr.mxu0 0.0
    %7519 = vmatpush1.msra.mxu0 0.0
    %7520 = vmatprep.subr.mxu0 0.0
    %7521 = vmatpush1.msra.mxu0 0.0
    %7522 = vmatprep.subr.mxu0 0.0
    %7523 = vmatpush1.msra.mxu0 0.0
    %7524 = vmatprep.subr.mxu0 0.0
    %7525 = vmatpush1.msra.mxu0 0.0
    %7526 = vmatprep.subr.mxu0 0.0
    %7527 = vmatpush1.msra.mxu0 0.0
    %7528 = vmatprep.subr.mxu0 0.0
    %7529 = vmatpush1.msra.mxu0 0.0
    %7530 = vmatprep.subr.mxu0 0.0
    %7531 = vmatpush1.msra.mxu0 0.0
    %7532 = vmatprep.subr.mxu0 0.0
    %7533 = vmatpush1.msra.mxu0 0.0
    %7534 = vmatprep.subr.mxu0 0.0
    %7535 = vmatpush1.msra.mxu0 0.0
    %7536 = vmatprep.subr.mxu0 0.0
    %7537 = vmatpush1.msra.mxu0 0.0
    %7538 = vmatprep.subr.mxu0 0.0
    %7539 = vmatpush1.msra.mxu0 0.0
    %7540 = vmatprep.subr.mxu0 0.0
    %7541 = vmatpush1.msra.mxu0 0.0
    %7542 = vmatprep.subr.mxu0 0.0
    %7543 = vmatpush1.msra.mxu0 0.0
    %7544 = vmatprep.subr.mxu0 0.0
    %7545 = vmatpush1.msra.mxu0 0.0
    %7546 = vmatprep.subr.mxu0 0.0
    %7547 = vmatpush1.msra.mxu0 0.0
    %7548 = vmatprep.subr.mxu0 0.0
    %7549 = vmatpush1.msra.mxu0 0.0
    %7550 = vmatprep.subr.mxu0 0.0
    %7551 = vmatpush1.msra.mxu0 0.0
    %7552 = vmatprep.subr.mxu0 0.0
    %7553 = vmatpush1.msra.mxu0 0.0
    %7554 = vmatprep.subr.mxu0 0.0
    %7555 = vmatpush1.msra.mxu0 0.0
    %7556 = vmatprep.subr.mxu0 0.0
    %7557 = vmatpush1.msra.mxu0 0.0
    %7558 = vmatprep.subr.mxu0 0.0
    %7559 = vmatpush1.msra.mxu0 0.0
    %7560 = vmatprep.subr.mxu0 0.0
    %7561 = vmatpush1.msra.mxu0 0.0
    %7562 = vmatprep.subr.mxu0 0.0
    %7563 = vmatpush1.msra.mxu0 0.0
    %7564 = vmatprep.subr.mxu0 0.0
    %7565 = vmatpush1.msra.mxu0 0.0
    %7566 = vmatprep.subr.mxu0 0.0
    %7567 = vmatpush1.msra.mxu0 0.0
    %7568 = vmatprep.subr.mxu0 0.0
    %7569 = vmatpush1.msra.mxu0 0.0
    %7570 = vmatprep.subr.mxu0 0.0
    %7571 = vmatpush1.msra.mxu0 0.0
    %7572 = vmatprep.subr.mxu0 0.0
    %7573 = vmatpush1.msra.mxu0 0.0
    %7574 = vmatprep.subr.mxu0 0.0
    %7575 = vmatpush1.msra.mxu0 0.0
    %7576 = vmatprep.subr.mxu0 0.0
    %7577 = vmatpush1.msra.mxu0 0.0
    %7578 = vmatprep.mubr.f32.mxu0 0.0
    %7579 = vmatmul.mubr.f32.gmra.mrb[0].mxu0 %v7512
    %v7580 = vpop.f32.mrb[0].mxu0
    %v7581 = vadd.f32 0.0, %v7580
    %v7582 = vpop.f32.mrb[0].mxu0
    %7583 = vdwg.mxu0
    %v7585 = vsel %vm2778, %v7285, 0
    %7587 = vmatprep.subr.mxu0 0.0
    %7588 = vmatpush1.msra.mxu0 %v6375
    %7589 = vmatprep.subr.mxu0 0.0
    %7590 = vmatpush1.msra.mxu0 0.0
    %7591 = vmatprep.subr.mxu0 0.0
    %7592 = vmatpush1.msra.mxu0 0.0
    %7593 = vmatprep.subr.mxu0 0.0
    %7594 = vmatpush1.msra.mxu0 0.0
    %7595 = vmatprep.subr.mxu0 0.0
    %7596 = vmatpush1.msra.mxu0 0.0
    %7597 = vmatprep.subr.mxu0 0.0
    %7598 = vmatpush1.msra.mxu0 0.0
    %7599 = vmatprep.subr.mxu0 0.0
    %7600 = vmatpush1.msra.mxu0 0.0
    %7601 = vmatprep.subr.mxu0 0.0
    %7602 = vmatpush1.msra.mxu0 0.0
    %7603 = vmatprep.subr.mxu0 0.0
    %7604 = vmatpush1.msra.mxu0 0.0
    %7605 = vmatprep.subr.mxu0 0.0
    %7606 = vmatpush1.msra.mxu0 0.0
    %7607 = vmatprep.subr.mxu0 0.0
    %7608 = vmatpush1.msra.mxu0 0.0
    %7609 = vmatprep.subr.mxu0 0.0
    %7610 = vmatpush1.msra.mxu0 0.0
    %7611 = vmatprep.subr.mxu0 0.0
    %7612 = vmatpush1.msra.mxu0 0.0
    %7613 = vmatprep.subr.mxu0 0.0
    %7614 = vmatpush1.msra.mxu0 0.0
    %7615 = vmatprep.subr.mxu0 0.0
    %7616 = vmatpush1.msra.mxu0 0.0
    %7617 = vmatprep.subr.mxu0 0.0
    %7618 = vmatpush1.msra.mxu0 0.0
    %7619 = vmatprep.subr.mxu0 0.0
    %7620 = vmatpush1.msra.mxu0 0.0
    %7621 = vmatprep.subr.mxu0 0.0
    %7622 = vmatpush1.msra.mxu0 0.0
    %7623 = vmatprep.subr.mxu0 0.0
    %7624 = vmatpush1.msra.mxu0 0.0
    %7625 = vmatprep.subr.mxu0 0.0
    %7626 = vmatpush1.msra.mxu0 0.0
    %7627 = vmatprep.subr.mxu0 0.0
    %7628 = vmatpush1.msra.mxu0 0.0
    %7629 = vmatprep.subr.mxu0 0.0
    %7630 = vmatpush1.msra.mxu0 0.0
    %7631 = vmatprep.subr.mxu0 0.0
    %7632 = vmatpush1.msra.mxu0 0.0
    %7633 = vmatprep.subr.mxu0 0.0
    %7634 = vmatpush1.msra.mxu0 0.0
    %7635 = vmatprep.subr.mxu0 0.0
    %7636 = vmatpush1.msra.mxu0 0.0
    %7637 = vmatprep.subr.mxu0 0.0
    %7638 = vmatpush1.msra.mxu0 0.0
    %7639 = vmatprep.subr.mxu0 0.0
    %7640 = vmatpush1.msra.mxu0 0.0
    %7641 = vmatprep.subr.mxu0 0.0
    %7642 = vmatpush1.msra.mxu0 0.0
    %7643 = vmatprep.subr.mxu0 0.0
    %7644 = vmatpush1.msra.mxu0 0.0
    %7645 = vmatprep.subr.mxu0 0.0
    %7646 = vmatpush1.msra.mxu0 0.0
    %7647 = vmatprep.subr.mxu0 0.0
    %7648 = vmatpush1.msra.mxu0 0.0
    %7649 = vmatprep.subr.mxu0 0.0
    %7650 = vmatpush1.msra.mxu0 0.0
    %7651 = vmatprep.mubr.f32.mxu0 0.0
    %7652 = vmatmul.mubr.f32.gmra.mrb[0].mxu0 %v7585
    %v7653 = vpop.f32.mrb[0].mxu0
    %v7654 = vadd.f32 0.0, %v7653
    %v7655 = vpop.f32.mrb[0].mxu0
    %7656 = vdwg.mxu0
    %v7658 = vsel %vm2778, %v7287, 0
    %7660 = vmatprep.subr.mxu0 0.0
    %7661 = vmatpush1.msra.mxu0 %v6445
    %7662 = vmatprep.subr.mxu0 0.0
    %7663 = vmatpush1.msra.mxu0 0.0
    %7664 = vmatprep.subr.mxu0 0.0
    %7665 = vmatpush1.msra.mxu0 0.0
    %7666 = vmatprep.subr.mxu0 0.0
    %7667 = vmatpush1.msra.mxu0 0.0
    %7668 = vmatprep.subr.mxu0 0.0
    %7669 = vmatpush1.msra.mxu0 0.0
    %7670 = vmatprep.subr.mxu0 0.0
    %7671 = vmatpush1.msra.mxu0 0.0
    %7672 = vmatprep.subr.mxu0 0.0
    %7673 = vmatpush1.msra.mxu0 0.0
    %7674 = vmatprep.subr.mxu0 0.0
    %7675 = vmatpush1.msra.mxu0 0.0
    %7676 = vmatprep.subr.mxu0 0.0
    %7677 = vmatpush1.msra.mxu0 0.0
    %7678 = vmatprep.subr.mxu0 0.0
    %7679 = vmatpush1.msra.mxu0 0.0
    %7680 = vmatprep.subr.mxu0 0.0
    %7681 = vmatpush1.msra.mxu0 0.0
    %7682 = vmatprep.subr.mxu0 0.0
    %7683 = vmatpush1.msra.mxu0 0.0
    %7684 = vmatprep.subr.mxu0 0.0
    %7685 = vmatpush1.msra.mxu0 0.0
    %7686 = vmatprep.subr.mxu0 0.0
    %7687 = vmatpush1.msra.mxu0 0.0
    %7688 = vmatprep.subr.mxu0 0.0
    %7689 = vmatpush1.msra.mxu0 0.0
    %7690 = vmatprep.subr.mxu0 0.0
    %7691 = vmatpush1.msra.mxu0 0.0
    %7692 = vmatprep.subr.mxu0 0.0
    %7693 = vmatpush1.msra.mxu0 0.0
    %7694 = vmatprep.subr.mxu0 0.0
    %7695 = vmatpush1.msra.mxu0 0.0
    %7696 = vmatprep.subr.mxu0 0.0
    %7697 = vmatpush1.msra.mxu0 0.0
    %7698 = vmatprep.subr.mxu0 0.0
    %7699 = vmatpush1.msra.mxu0 0.0
    %7700 = vmatprep.subr.mxu0 0.0
    %7701 = vmatpush1.msra.mxu0 0.0
    %7702 = vmatprep.subr.mxu0 0.0
    %7703 = vmatpush1.msra.mxu0 0.0
    %7704 = vmatprep.subr.mxu0 0.0
    %7705 = vmatpush1.msra.mxu0 0.0
    %7706 = vmatprep.subr.mxu0 0.0
    %7707 = vmatpush1.msra.mxu0 0.0
    %7708 = vmatprep.subr.mxu0 0.0
    %7709 = vmatpush1.msra.mxu0 0.0
    %7710 = vmatprep.subr.mxu0 0.0
    %7711 = vmatpush1.msra.mxu0 0.0
    %7712 = vmatprep.subr.mxu0 0.0
    %7713 = vmatpush1.msra.mxu0 0.0
    %7714 = vmatprep.subr.mxu0 0.0
    %7715 = vmatpush1.msra.mxu0 0.0
    %7716 = vmatprep.subr.mxu0 0.0
    %7717 = vmatpush1.msra.mxu0 0.0
    %7718 = vmatprep.subr.mxu0 0.0
    %7719 = vmatpush1.msra.mxu0 0.0
    %7720 = vmatprep.subr.mxu0 0.0
    %7721 = vmatpush1.msra.mxu0 0.0
    %7722 = vmatprep.subr.mxu0 0.0
    %7723 = vmatpush1.msra.mxu0 0.0
    %7724 = vmatprep.mubr.f32.mxu0 0.0
    %7725 = vmatmul.mubr.f32.gmra.mrb[0].mxu0 %v7658
    %v7726 = vpop.f32.mrb[0].mxu0
    %v7727 = vadd.f32 0.0, %v7726
    %v7728 = vpop.f32.mrb[0].mxu0
    %7729 = vdwg.mxu0
    %v7731 = vsel %vm2778, %v7289, 0
    %7733 = vmatprep.subr.mxu0 0.0
    %7734 = vmatpush1.msra.mxu0 %v6515
    %7735 = vmatprep.subr.mxu0 0.0
    %7736 = vmatpush1.msra.mxu0 0.0
    %7737 = vmatprep.subr.mxu0 0.0
    %7738 = vmatpush1.msra.mxu0 0.0
    %7739 = vmatprep.subr.mxu0 0.0
    %7740 = vmatpush1.msra.mxu0 0.0
    %7741 = vmatprep.subr.mxu0 0.0
    %7742 = vmatpush1.msra.mxu0 0.0
    %7743 = vmatprep.subr.mxu0 0.0
    %7744 = vmatpush1.msra.mxu0 0.0
    %7745 = vmatprep.subr.mxu0 0.0
    %7746 = vmatpush1.msra.mxu0 0.0
    %7747 = vmatprep.subr.mxu0 0.0
    %7748 = vmatpush1.msra.mxu0 0.0
    %7749 = vmatprep.subr.mxu0 0.0
    %7750 = vmatpush1.msra.mxu0 0.0
    %7751 = vmatprep.subr.mxu0 0.0
    %7752 = vmatpush1.msra.mxu0 0.0
    %7753 = vmatprep.subr.mxu0 0.0
    %7754 = vmatpush1.msra.mxu0 0.0
    %7755 = vmatprep.subr.mxu0 0.0
    %7756 = vmatpush1.msra.mxu0 0.0
    %7757 = vmatprep.subr.mxu0 0.0
    %7758 = vmatpush1.msra.mxu0 0.0
    %7759 = vmatprep.subr.mxu0 0.0
    %7760 = vmatpush1.msra.mxu0 0.0
    %7761 = vmatprep.subr.mxu0 0.0
    %7762 = vmatpush1.msra.mxu0 0.0
    %7763 = vmatprep.subr.mxu0 0.0
    %7764 = vmatpush1.msra.mxu0 0.0
    %7765 = vmatprep.subr.mxu0 0.0
    %7766 = vmatpush1.msra.mxu0 0.0
    %7767 = vmatprep.subr.mxu0 0.0
    %7768 = vmatpush1.msra.mxu0 0.0
    %7769 = vmatprep.subr.mxu0 0.0
    %7770 = vmatpush1.msra.mxu0 0.0
    %7771 = vmatprep.subr.mxu0 0.0
    %7772 = vmatpush1.msra.mxu0 0.0
    %7773 = vmatprep.subr.mxu0 0.0
    %7774 = vmatpush1.msra.mxu0 0.0
    %7775 = vmatprep.subr.mxu0 0.0
    %7776 = vmatpush1.msra.mxu0 0.0
    %7777 = vmatprep.subr.mxu0 0.0
    %7778 = vmatpush1.msra.mxu0 0.0
    %7779 = vmatprep.subr.mxu0 0.0
    %7780 = vmatpush1.msra.mxu0 0.0
    %7781 = vmatprep.subr.mxu0 0.0
    %7782 = vmatpush1.msra.mxu0 0.0
    %7783 = vmatprep.subr.mxu0 0.0
    %7784 = vmatpush1.msra.mxu0 0.0
    %7785 = vmatprep.subr.mxu0 0.0
    %7786 = vmatpush1.msra.mxu0 0.0
    %7787 = vmatprep.subr.mxu0 0.0
    %7788 = vmatpush1.msra.mxu0 0.0
    %7789 = vmatprep.subr.mxu0 0.0
    %7790 = vmatpush1.msra.mxu0 0.0
    %7791 = vmatprep.subr.mxu0 0.0
    %7792 = vmatpush1.msra.mxu0 0.0
    %7793 = vmatprep.subr.mxu0 0.0
    %7794 = vmatpush1.msra.mxu0 0.0
    %7795 = vmatprep.subr.mxu0 0.0
    %7796 = vmatpush1.msra.mxu0 0.0
    %7797 = vmatprep.mubr.f32.mxu0 0.0
    %7798 = vmatmul.mubr.f32.gmra.mrb[0].mxu0 %v7731
    %v7799 = vpop.f32.mrb[0].mxu0
    %v7800 = vadd.f32 0.0, %v7799
    %v7801 = vpop.f32.mrb[0].mxu0
    %7802 = vdwg.mxu0
    %v7804 = vsel %vm2778, %v7291, 0
    %7806 = vmatprep.subr.mxu0 0.0
    %7807 = vmatpush1.msra.mxu0 %v6585
    %7808 = vmatprep.subr.mxu0 0.0
    %7809 = vmatpush1.msra.mxu0 0.0
    %7810 = vmatprep.subr.mxu0 0.0
    %7811 = vmatpush1.msra.mxu0 0.0
    %7812 = vmatprep.subr.mxu0 0.0
    %7813 = vmatpush1.msra.mxu0 0.0
    %7814 = vmatprep.subr.mxu0 0.0
    %7815 = vmatpush1.msra.mxu0 0.0
    %7816 = vmatprep.subr.mxu0 0.0
    %7817 = vmatpush1.msra.mxu0 0.0
    %7818 = vmatprep.subr.mxu0 0.0
    %7819 = vmatpush1.msra.mxu0 0.0
    %7820 = vmatprep.subr.mxu0 0.0
    %7821 = vmatpush1.msra.mxu0 0.0
    %7822 = vmatprep.subr.mxu0 0.0
    %7823 = vmatpush1.msra.mxu0 0.0
    %7824 = vmatprep.subr.mxu0 0.0
    %7825 = vmatpush1.msra.mxu0 0.0
    %7826 = vmatprep.subr.mxu0 0.0
    %7827 = vmatpush1.msra.mxu0 0.0
    %7828 = vmatprep.subr.mxu0 0.0
    %7829 = vmatpush1.msra.mxu0 0.0
    %7830 = vmatprep.subr.mxu0 0.0
    %7831 = vmatpush1.msra.mxu0 0.0
    %7832 = vmatprep.subr.mxu0 0.0
    %7833 = vmatpush1.msra.mxu0 0.0
    %7834 = vmatprep.subr.mxu0 0.0
    %7835 = vmatpush1.msra.mxu0 0.0
    %7836 = vmatprep.subr.mxu0 0.0
    %7837 = vmatpush1.msra.mxu0 0.0
    %7838 = vmatprep.subr.mxu0 0.0
    %7839 = vmatpush1.msra.mxu0 0.0
    %7840 = vmatprep.subr.mxu0 0.0
    %7841 = vmatpush1.msra.mxu0 0.0
    %7842 = vmatprep.subr.mxu0 0.0
    %7843 = vmatpush1.msra.mxu0 0.0
    %7844 = vmatprep.subr.mxu0 0.0
    %7845 = vmatpush1.msra.mxu0 0.0
    %7846 = vmatprep.subr.mxu0 0.0
    %7847 = vmatpush1.msra.mxu0 0.0
    %7848 = vmatprep.subr.mxu0 0.0
    %7849 = vmatpush1.msra.mxu0 0.0
    %7850 = vmatprep.subr.mxu0 0.0
    %7851 = vmatpush1.msra.mxu0 0.0
    %7852 = vmatprep.subr.mxu0 0.0
    %7853 = vmatpush1.msra.mxu0 0.0
    %7854 = vmatprep.subr.mxu0 0.0
    %7855 = vmatpush1.msra.mxu0 0.0
    %7856 = vmatprep.subr.mxu0 0.0
    %7857 = vmatpush1.msra.mxu0 0.0
    %7858 = vmatprep.subr.mxu0 0.0
    %7859 = vmatpush1.msra.mxu0 0.0
    %7860 = vmatprep.subr.mxu0 0.0
    %7861 = vmatpush1.msra.mxu0 0.0
    %7862 = vmatprep.subr.mxu0 0.0
    %7863 = vmatpush1.msra.mxu0 0.0
    %7864 = vmatprep.subr.mxu0 0.0
    %7865 = vmatpush1.msra.mxu0 0.0
    %7866 = vmatprep.subr.mxu0 0.0
    %7867 = vmatpush1.msra.mxu0 0.0
    %7868 = vmatprep.subr.mxu0 0.0
    %7869 = vmatpush1.msra.mxu0 0.0
    %7870 = vmatprep.mubr.f32.mxu0 0.0
    %7871 = vmatmul.mubr.f32.gmra.mrb[0].mxu0 %v7804
    %v7872 = vpop.f32.mrb[0].mxu0
    %v7873 = vadd.f32 0.0, %v7872
    %v7874 = vpop.f32.mrb[0].mxu0
    %7875 = vdwg.mxu0
    %v7877 = vsel %vm2161, %v7362, 0
    %7879 = vmatprep.subr.mxu0 0.0
    %7880 = vmatpush1.xpose.msra.mxu0 %v3455
    %7881 = vmatprep.subr.mxu0 0.0
    %7882 = vmatpush1.xpose.msra.mxu0 %v3458
    %7883 = vmatprep.subr.mxu0 0.0
    %7884 = vmatpush1.xpose.msra.mxu0 %v3461
    %7885 = vmatprep.subr.mxu0 0.0
    %7886 = vmatpush1.xpose.msra.mxu0 %v3464
    %7887 = vmatprep.subr.mxu0 0.0
    %7888 = vmatpush1.xpose.msra.mxu0 0.0
    %7889 = vmatprep.subr.mxu0 0.0
    %7890 = vmatpush1.xpose.msra.mxu0 0.0
    %7891 = vmatprep.subr.mxu0 0.0
    %7892 = vmatpush1.xpose.msra.mxu0 0.0
    %7893 = vmatprep.subr.mxu0 0.0
    %7894 = vmatpush1.xpose.msra.mxu0 0.0
    %7895 = vmatprep.subr.mxu0 0.0
    %7896 = vmatpush1.xpose.msra.mxu0 0.0
    %7897 = vmatprep.subr.mxu0 0.0
    %7898 = vmatpush1.xpose.msra.mxu0 0.0
    %7899 = vmatprep.subr.mxu0 0.0
    %7900 = vmatpush1.xpose.msra.mxu0 0.0
    %7901 = vmatprep.subr.mxu0 0.0
    %7902 = vmatpush1.xpose.msra.mxu0 0.0
    %7903 = vmatprep.subr.mxu0 0.0
    %7904 = vmatpush1.xpose.msra.mxu0 0.0
    %7905 = vmatprep.subr.mxu0 0.0
    %7906 = vmatpush1.xpose.msra.mxu0 0.0
    %7907 = vmatprep.subr.mxu0 0.0
    %7908 = vmatpush1.xpose.msra.mxu0 0.0
    %7909 = vmatprep.subr.mxu0 0.0
    %7910 = vmatpush1.xpose.msra.mxu0 0.0
    %7911 = vmatprep.subr.mxu0 0.0
    %7912 = vmatpush1.xpose.msra.mxu0 0.0
    %7913 = vmatprep.subr.mxu0 0.0
    %7914 = vmatpush1.xpose.msra.mxu0 0.0
    %7915 = vmatprep.subr.mxu0 0.0
    %7916 = vmatpush1.xpose.msra.mxu0 0.0
    %7917 = vmatprep.subr.mxu0 0.0
    %7918 = vmatpush1.xpose.msra.mxu0 0.0
    %7919 = vmatprep.subr.mxu0 0.0
    %7920 = vmatpush1.xpose.msra.mxu0 0.0
    %7921 = vmatprep.subr.mxu0 0.0
    %7922 = vmatpush1.xpose.msra.mxu0 0.0
    %7923 = vmatprep.subr.mxu0 0.0
    %7924 = vmatpush1.xpose.msra.mxu0 0.0
    %7925 = vmatprep.subr.mxu0 0.0
    %7926 = vmatpush1.xpose.msra.mxu0 0.0
    %7927 = vmatprep.subr.mxu0 0.0
    %7928 = vmatpush1.xpose.msra.mxu0 0.0
    %7929 = vmatprep.subr.mxu0 0.0
    %7930 = vmatpush1.xpose.msra.mxu0 0.0
    %7931 = vmatprep.subr.mxu0 0.0
    %7932 = vmatpush1.xpose.msra.mxu0 0.0
    %7933 = vmatprep.subr.mxu0 0.0
    %7934 = vmatpush1.xpose.msra.mxu0 0.0
    %7935 = vmatprep.subr.mxu0 0.0
    %7936 = vmatpush1.xpose.msra.mxu0 0.0
    %7937 = vmatprep.subr.mxu0 0.0
    %7938 = vmatpush1.xpose.msra.mxu0 0.0
    %7939 = vmatprep.subr.mxu0 0.0
    %7940 = vmatpush1.xpose.msra.mxu0 0.0
    %7941 = vmatprep.subr.mxu0 0.0
    %7942 = vmatpush1.xpose.msra.mxu0 0.0
    %7943 = vmatprep.mubr.f32.mxu0 0.0
    %7944 = vmatmul.mubr.f32.gmra.mrb[0].mxu0 %v7877
    %v7945 = vpop.f32.mrb[0].mxu0
    %v7946 = vadd.f32 0.0, %v7945
    %v7947 = vpop.f32.mrb[0].mxu0
    %7948 = vdwg.mxu0
    %v7950 = vsel %vm2161, %v7435, 0
    %7952 = vmatprep.subr.mxu0 0.0
    %7953 = vmatpush1.xpose.msra.mxu0 %v3540
    %7954 = vmatprep.subr.mxu0 0.0
    %7955 = vmatpush1.xpose.msra.mxu0 %v3543
    %7956 = vmatprep.subr.mxu0 0.0
    %7957 = vmatpush1.xpose.msra.mxu0 %v3546
    %7958 = vmatprep.subr.mxu0 0.0
    %7959 = vmatpush1.xpose.msra.mxu0 %v3549
    %7960 = vmatprep.subr.mxu0 0.0
    %7961 = vmatpush1.xpose.msra.mxu0 0.0
    %7962 = vmatprep.subr.mxu0 0.0
    %7963 = vmatpush1.xpose.msra.mxu0 0.0
    %7964 = vmatprep.subr.mxu0 0.0
    %7965 = vmatpush1.xpose.msra.mxu0 0.0
    %7966 = vmatprep.subr.mxu0 0.0
    %7967 = vmatpush1.xpose.msra.mxu0 0.0
    %7968 = vmatprep.subr.mxu0 0.0
    %7969 = vmatpush1.xpose.msra.mxu0 0.0
    %7970 = vmatprep.subr.mxu0 0.0
    %7971 = vmatpush1.xpose.msra.mxu0 0.0
    %7972 = vmatprep.subr.mxu0 0.0
    %7973 = vmatpush1.xpose.msra.mxu0 0.0
    %7974 = vmatprep.subr.mxu0 0.0
    %7975 = vmatpush1.xpose.msra.mxu0 0.0
    %7976 = vmatprep.subr.mxu0 0.0
    %7977 = vmatpush1.xpose.msra.mxu0 0.0
    %7978 = vmatprep.subr.mxu0 0.0
    %7979 = vmatpush1.xpose.msra.mxu0 0.0
    %7980 = vmatprep.subr.mxu0 0.0
    %7981 = vmatpush1.xpose.msra.mxu0 0.0
    %7982 = vmatprep.subr.mxu0 0.0
    %7983 = vmatpush1.xpose.msra.mxu0 0.0
    %7984 = vmatprep.subr.mxu0 0.0
    %7985 = vmatpush1.xpose.msra.mxu0 0.0
    %7986 = vmatprep.subr.mxu0 0.0
    %7987 = vmatpush1.xpose.msra.mxu0 0.0
    %7988 = vmatprep.subr.mxu0 0.0
    %7989 = vmatpush1.xpose.msra.mxu0 0.0
    %7990 = vmatprep.subr.mxu0 0.0
    %7991 = vmatpush1.xpose.msra.mxu0 0.0
    %7992 = vmatprep.subr.mxu0 0.0
    %7993 = vmatpush1.xpose.msra.mxu0 0.0
    %7994 = vmatprep.subr.mxu0 0.0
    %7995 = vmatpush1.xpose.msra.mxu0 0.0
    %7996 = vmatprep.subr.mxu0 0.0
    %7997 = vmatpush1.xpose.msra.mxu0 0.0
    %7998 = vmatprep.subr.mxu0 0.0
    %7999 = vmatpush1.xpose.msra.mxu0 0.0
    %8000 = vmatprep.subr.mxu0 0.0
    %8001 = vmatpush1.xpose.msra.mxu0 0.0
    %8002 = vmatprep.subr.mxu0 0.0
    %8003 = vmatpush1.xpose.msra.mxu0 0.0
    %8004 = vmatprep.subr.mxu0 0.0
    %8005 = vmatpush1.xpose.msra.mxu0 0.0
    %8006 = vmatprep.subr.mxu0 0.0
    %8007 = vmatpush1.xpose.msra.mxu0 0.0
    %8008 = vmatprep.subr.mxu0 0.0
    %8009 = vmatpush1.xpose.msra.mxu0 0.0
    %8010 = vmatprep.subr.mxu0 0.0
    %8011 = vmatpush1.xpose.msra.mxu0 0.0
    %8012 = vmatprep.subr.mxu0 0.0
    %8013 = vmatpush1.xpose.msra.mxu0 0.0
    %8014 = vmatprep.subr.mxu0 0.0
    %8015 = vmatpush1.xpose.msra.mxu0 0.0
    %8016 = vmatprep.mubr.f32.mxu0 0.0
    %8017 = vmatmul.mubr.f32.gmra.mrb[0].mxu0 %v7950
    %v8018 = vpop.f32.mrb[0].mxu0
    %v8019 = vadd.f32 0.0, %v8018
    %v8020 = vpop.f32.mrb[0].mxu0
    %8021 = vdwg.mxu0
    %v8023 = vsel %vm2161, %v7508, 0
    %8025 = vmatprep.subr.mxu0 0.0
    %8026 = vmatpush1.xpose.msra.mxu0 %v3625
    %8027 = vmatprep.subr.mxu0 0.0
    %8028 = vmatpush1.xpose.msra.mxu0 %v3628
    %8029 = vmatprep.subr.mxu0 0.0
    %8030 = vmatpush1.xpose.msra.mxu0 %v3631
    %8031 = vmatprep.subr.mxu0 0.0
    %8032 = vmatpush1.xpose.msra.mxu0 %v3634
    %8033 = vmatprep.subr.mxu0 0.0
    %8034 = vmatpush1.xpose.msra.mxu0 0.0
    %8035 = vmatprep.subr.mxu0 0.0
    %8036 = vmatpush1.xpose.msra.mxu0 0.0
    %8037 = vmatprep.subr.mxu0 0.0
    %8038 = vmatpush1.xpose.msra.mxu0 0.0
    %8039 = vmatprep.subr.mxu0 0.0
    %8040 = vmatpush1.xpose.msra.mxu0 0.0
    %8041 = vmatprep.subr.mxu0 0.0
    %8042 = vmatpush1.xpose.msra.mxu0 0.0
    %8043 = vmatprep.subr.mxu0 0.0
    %8044 = vmatpush1.xpose.msra.mxu0 0.0
    %8045 = vmatprep.subr.mxu0 0.0
    %8046 = vmatpush1.xpose.msra.mxu0 0.0
    %8047 = vmatprep.subr.mxu0 0.0
    %8048 = vmatpush1.xpose.msra.mxu0 0.0
    %8049 = vmatprep.subr.mxu0 0.0
    %8050 = vmatpush1.xpose.msra.mxu0 0.0
    %8051 = vmatprep.subr.mxu0 0.0
    %8052 = vmatpush1.xpose.msra.mxu0 0.0
    %8053 = vmatprep.subr.mxu0 0.0
    %8054 = vmatpush1.xpose.msra.mxu0 0.0
    %8055 = vmatprep.subr.mxu0 0.0
    %8056 = vmatpush1.xpose.msra.mxu0 0.0
    %8057 = vmatprep.subr.mxu0 0.0
    %8058 = vmatpush1.xpose.msra.mxu0 0.0
    %8059 = vmatprep.subr.mxu0 0.0
    %8060 = vmatpush1.xpose.msra.mxu0 0.0
    %8061 = vmatprep.subr.mxu0 0.0
    %8062 = vmatpush1.xpose.msra.mxu0 0.0
    %8063 = vmatprep.subr.mxu0 0.0
    %8064 = vmatpush1.xpose.msra.mxu0 0.0
    %8065 = vmatprep.subr.mxu0 0.0
    %8066 = vmatpush1.xpose.msra.mxu0 0.0
    %8067 = vmatprep.subr.mxu0 0.0
    %8068 = vmatpush1.xpose.msra.mxu0 0.0
    %8069 = vmatprep.subr.mxu0 0.0
    %8070 = vmatpush1.xpose.msra.mxu0 0.0
    %8071 = vmatprep.subr.mxu0 0.0
    %8072 = vmatpush1.xpose.msra.mxu0 0.0
    %8073 = vmatprep.subr.mxu0 0.0
    %8074 = vmatpush1.xpose.msra.mxu0 0.0
    %8075 = vmatprep.subr.mxu0 0.0
    %8076 = vmatpush1.xpose.msra.mxu0 0.0
    %8077 = vmatprep.subr.mxu0 0.0
    %8078 = vmatpush1.xpose.msra.mxu0 0.0
    %8079 = vmatprep.subr.mxu0 0.0
    %8080 = vmatpush1.xpose.msra.mxu0 0.0
    %8081 = vmatprep.subr.mxu0 0.0
    %8082 = vmatpush1.xpose.msra.mxu0 0.0
    %8083 = vmatprep.subr.mxu0 0.0
    %8084 = vmatpush1.xpose.msra.mxu0 0.0
    %8085 = vmatprep.subr.mxu0 0.0
    %8086 = vmatpush1.xpose.msra.mxu0 0.0
    %8087 = vmatprep.subr.mxu0 0.0
    %8088 = vmatpush1.xpose.msra.mxu0 0.0
    %8089 = vmatprep.mubr.f32.mxu0 0.0
    %8090 = vmatmul.mubr.f32.gmra.mrb[0].mxu0 %v8023
    %v8091 = vpop.f32.mrb[0].mxu0
    %v8092 = vadd.f32 0.0, %v8091
    %v8093 = vpop.f32.mrb[0].mxu0
    %8094 = vdwg.mxu0
    %v8096 = vsel %vm2161, %v7581, 0
    %8098 = vmatprep.subr.mxu0 0.0
    %8099 = vmatpush1.xpose.msra.mxu0 %v3710
    %8100 = vmatprep.subr.mxu0 0.0
    %8101 = vmatpush1.xpose.msra.mxu0 %v3713
    %8102 = vmatprep.subr.mxu0 0.0
    %8103 = vmatpush1.xpose.msra.mxu0 %v3716
    %8104 = vmatprep.subr.mxu0 0.0
    %8105 = vmatpush1.xpose.msra.mxu0 %v3719
    %8106 = vmatprep.subr.mxu0 0.0
    %8107 = vmatpush1.xpose.msra.mxu0 0.0
    %8108 = vmatprep.subr.mxu0 0.0
    %8109 = vmatpush1.xpose.msra.mxu0 0.0
    %8110 = vmatprep.subr.mxu0 0.0
    %8111 = vmatpush1.xpose.msra.mxu0 0.0
    %8112 = vmatprep.subr.mxu0 0.0
    %8113 = vmatpush1.xpose.msra.mxu0 0.0
    %8114 = vmatprep.subr.mxu0 0.0
    %8115 = vmatpush1.xpose.msra.mxu0 0.0
    %8116 = vmatprep.subr.mxu0 0.0
    %8117 = vmatpush1.xpose.msra.mxu0 0.0
    %8118 = vmatprep.subr.mxu0 0.0
    %8119 = vmatpush1.xpose.msra.mxu0 0.0
    %8120 = vmatprep.subr.mxu0 0.0
    %8121 = vmatpush1.xpose.msra.mxu0 0.0
    %8122 = vmatprep.subr.mxu0 0.0
    %8123 = vmatpush1.xpose.msra.mxu0 0.0
    %8124 = vmatprep.subr.mxu0 0.0
    %8125 = vmatpush1.xpose.msra.mxu0 0.0
    %8126 = vmatprep.subr.mxu0 0.0
    %8127 = vmatpush1.xpose.msra.mxu0 0.0
    %8128 = vmatprep.subr.mxu0 0.0
    %8129 = vmatpush1.xpose.msra.mxu0 0.0
    %8130 = vmatprep.subr.mxu0 0.0
    %8131 = vmatpush1.xpose.msra.mxu0 0.0
    %8132 = vmatprep.subr.mxu0 0.0
    %8133 = vmatpush1.xpose.msra.mxu0 0.0
    %8134 = vmatprep.subr.mxu0 0.0
    %8135 = vmatpush1.xpose.msra.mxu0 0.0
    %8136 = vmatprep.subr.mxu0 0.0
    %8137 = vmatpush1.xpose.msra.mxu0 0.0
    %8138 = vmatprep.subr.mxu0 0.0
    %8139 = vmatpush1.xpose.msra.mxu0 0.0
    %8140 = vmatprep.subr.mxu0 0.0
    %8141 = vmatpush1.xpose.msra.mxu0 0.0
    %8142 = vmatprep.subr.mxu0 0.0
    %8143 = vmatpush1.xpose.msra.mxu0 0.0
    %8144 = vmatprep.subr.mxu0 0.0
    %8145 = vmatpush1.xpose.msra.mxu0 0.0
    %8146 = vmatprep.subr.mxu0 0.0
    %8147 = vmatpush1.xpose.msra.mxu0 0.0
    %8148 = vmatprep.subr.mxu0 0.0
    %8149 = vmatpush1.xpose.msra.mxu0 0.0
    %8150 = vmatprep.subr.mxu0 0.0
    %8151 = vmatpush1.xpose.msra.mxu0 0.0
    %8152 = vmatprep.subr.mxu0 0.0
    %8153 = vmatpush1.xpose.msra.mxu0 0.0
    %8154 = vmatprep.subr.mxu0 0.0
    %8155 = vmatpush1.xpose.msra.mxu0 0.0
    %8156 = vmatprep.subr.mxu0 0.0
    %8157 = vmatpush1.xpose.msra.mxu0 0.0
    %8158 = vmatprep.subr.mxu0 0.0
    %8159 = vmatpush1.xpose.msra.mxu0 0.0
    %8160 = vmatprep.subr.mxu0 0.0
    %8161 = vmatpush1.xpose.msra.mxu0 0.0
    %8162 = vmatprep.mubr.f32.mxu0 0.0
    %8163 = vmatmul.mubr.f32.gmra.mrb[0].mxu0 %v8096
    %v8164 = vpop.f32.mrb[0].mxu0
    %v8165 = vadd.f32 0.0, %v8164
    %v8166 = vpop.f32.mrb[0].mxu0
    %8167 = vdwg.mxu0
    %v8169 = vsel %vm2161, %v7654, 0
    %8171 = vmatprep.subr.mxu0 0.0
    %8172 = vmatpush1.xpose.msra.mxu0 %v3795
    %8173 = vmatprep.subr.mxu0 0.0
    %8174 = vmatpush1.xpose.msra.mxu0 %v3798
    %8175 = vmatprep.subr.mxu0 0.0
    %8176 = vmatpush1.xpose.msra.mxu0 %v3801
    %8177 = vmatprep.subr.mxu0 0.0
    %8178 = vmatpush1.xpose.msra.mxu0 %v3804
    %8179 = vmatprep.subr.mxu0 0.0
    %8180 = vmatpush1.xpose.msra.mxu0 0.0
    %8181 = vmatprep.subr.mxu0 0.0
    %8182 = vmatpush1.xpose.msra.mxu0 0.0
    %8183 = vmatprep.subr.mxu0 0.0
    %8184 = vmatpush1.xpose.msra.mxu0 0.0
    %8185 = vmatprep.subr.mxu0 0.0
    %8186 = vmatpush1.xpose.msra.mxu0 0.0
    %8187 = vmatprep.subr.mxu0 0.0
    %8188 = vmatpush1.xpose.msra.mxu0 0.0
    %8189 = vmatprep.subr.mxu0 0.0
    %8190 = vmatpush1.xpose.msra.mxu0 0.0
    %8191 = vmatprep.subr.mxu0 0.0
    %8192 = vmatpush1.xpose.msra.mxu0 0.0
    %8193 = vmatprep.subr.mxu0 0.0
    %8194 = vmatpush1.xpose.msra.mxu0 0.0
    %8195 = vmatprep.subr.mxu0 0.0
    %8196 = vmatpush1.xpose.msra.mxu0 0.0
    %8197 = vmatprep.subr.mxu0 0.0
    %8198 = vmatpush1.xpose.msra.mxu0 0.0
    %8199 = vmatprep.subr.mxu0 0.0
    %8200 = vmatpush1.xpose.msra.mxu0 0.0
    %8201 = vmatprep.subr.mxu0 0.0
    %8202 = vmatpush1.xpose.msra.mxu0 0.0
    %8203 = vmatprep.subr.mxu0 0.0
    %8204 = vmatpush1.xpose.msra.mxu0 0.0
    %8205 = vmatprep.subr.mxu0 0.0
    %8206 = vmatpush1.xpose.msra.mxu0 0.0
    %8207 = vmatprep.subr.mxu0 0.0
    %8208 = vmatpush1.xpose.msra.mxu0 0.0
    %8209 = vmatprep.subr.mxu0 0.0
    %8210 = vmatpush1.xpose.msra.mxu0 0.0
    %8211 = vmatprep.subr.mxu0 0.0
    %8212 = vmatpush1.xpose.msra.mxu0 0.0
    %8213 = vmatprep.subr.mxu0 0.0
    %8214 = vmatpush1.xpose.msra.mxu0 0.0
    %8215 = vmatprep.subr.mxu0 0.0
    %8216 = vmatpush1.xpose.msra.mxu0 0.0
    %8217 = vmatprep.subr.mxu0 0.0
    %8218 = vmatpush1.xpose.msra.mxu0 0.0
    %8219 = vmatprep.subr.mxu0 0.0
    %8220 = vmatpush1.xpose.msra.mxu0 0.0
    %8221 = vmatprep.subr.mxu0 0.0
    %8222 = vmatpush1.xpose.msra.mxu0 0.0
    %8223 = vmatprep.subr.mxu0 0.0
    %8224 = vmatpush1.xpose.msra.mxu0 0.0
    %8225 = vmatprep.subr.mxu0 0.0
    %8226 = vmatpush1.xpose.msra.mxu0 0.0
    %8227 = vmatprep.subr.mxu0 0.0
    %8228 = vmatpush1.xpose.msra.mxu0 0.0
    %8229 = vmatprep.subr.mxu0 0.0
    %8230 = vmatpush1.xpose.msra.mxu0 0.0
    %8231 = vmatprep.subr.mxu0 0.0
    %8232 = vmatpush1.xpose.msra.mxu0 0.0
    %8233 = vmatprep.subr.mxu0 0.0
    %8234 = vmatpush1.xpose.msra.mxu0 0.0
    %8235 = vmatprep.mubr.f32.mxu0 0.0
    %8236 = vmatmul.mubr.f32.gmra.mrb[0].mxu0 %v8169
    %v8237 = vpop.f32.mrb[0].mxu0
    %v8238 = vadd.f32 0.0, %v8237
    %v8239 = vpop.f32.mrb[0].mxu0
    %8240 = vdwg.mxu0
    %v8242 = vsel %vm2161, %v7727, 0
    %8244 = vmatprep.subr.mxu0 0.0
    %8245 = vmatpush1.xpose.msra.mxu0 %v3880
    %8246 = vmatprep.subr.mxu0 0.0
    %8247 = vmatpush1.xpose.msra.mxu0 %v3883
    %8248 = vmatprep.subr.mxu0 0.0
    %8249 = vmatpush1.xpose.msra.mxu0 %v3886
    %8250 = vmatprep.subr.mxu0 0.0
    %8251 = vmatpush1.xpose.msra.mxu0 %v3889
    %8252 = vmatprep.subr.mxu0 0.0
    %8253 = vmatpush1.xpose.msra.mxu0 0.0
    %8254 = vmatprep.subr.mxu0 0.0
    %8255 = vmatpush1.xpose.msra.mxu0 0.0
    %8256 = vmatprep.subr.mxu0 0.0
    %8257 = vmatpush1.xpose.msra.mxu0 0.0
    %8258 = vmatprep.subr.mxu0 0.0
    %8259 = vmatpush1.xpose.msra.mxu0 0.0
    %8260 = vmatprep.subr.mxu0 0.0
    %8261 = vmatpush1.xpose.msra.mxu0 0.0
    %8262 = vmatprep.subr.mxu0 0.0
    %8263 = vmatpush1.xpose.msra.mxu0 0.0
    %8264 = vmatprep.subr.mxu0 0.0
    %8265 = vmatpush1.xpose.msra.mxu0 0.0
    %8266 = vmatprep.subr.mxu0 0.0
    %8267 = vmatpush1.xpose.msra.mxu0 0.0
    %8268 = vmatprep.subr.mxu0 0.0
    %8269 = vmatpush1.xpose.msra.mxu0 0.0
    %8270 = vmatprep.subr.mxu0 0.0
    %8271 = vmatpush1.xpose.msra.mxu0 0.0
    %8272 = vmatprep.subr.mxu0 0.0
    %8273 = vmatpush1.xpose.msra.mxu0 0.0
    %8274 = vmatprep.subr.mxu0 0.0
    %8275 = vmatpush1.xpose.msra.mxu0 0.0
    %8276 = vmatprep.subr.mxu0 0.0
    %8277 = vmatpush1.xpose.msra.mxu0 0.0
    %8278 = vmatprep.subr.mxu0 0.0
    %8279 = vmatpush1.xpose.msra.mxu0 0.0
    %8280 = vmatprep.subr.mxu0 0.0
    %8281 = vmatpush1.xpose.msra.mxu0 0.0
    %8282 = vmatprep.subr.mxu0 0.0
    %8283 = vmatpush1.xpose.msra.mxu0 0.0
    %8284 = vmatprep.subr.mxu0 0.0
    %8285 = vmatpush1.xpose.msra.mxu0 0.0
    %8286 = vmatprep.subr.mxu0 0.0
    %8287 = vmatpush1.xpose.msra.mxu0 0.0
    %8288 = vmatprep.subr.mxu0 0.0
    %8289 = vmatpush1.xpose.msra.mxu0 0.0
    %8290 = vmatprep.subr.mxu0 0.0
    %8291 = vmatpush1.xpose.msra.mxu0 0.0
    %8292 = vmatprep.subr.mxu0 0.0
    %8293 = vmatpush1.xpose.msra.mxu0 0.0
    %8294 = vmatprep.subr.mxu0 0.0
    %8295 = vmatpush1.xpose.msra.mxu0 0.0
    %8296 = vmatprep.subr.mxu0 0.0
    %8297 = vmatpush1.xpose.msra.mxu0 0.0
    %8298 = vmatprep.subr.mxu0 0.0
    %8299 = vmatpush1.xpose.msra.mxu0 0.0
    %8300 = vmatprep.subr.mxu0 0.0
    %8301 = vmatpush1.xpose.msra.mxu0 0.0
    %8302 = vmatprep.subr.mxu0 0.0
    %8303 = vmatpush1.xpose.msra.mxu0 0.0
    %8304 = vmatprep.subr.mxu0 0.0
    %8305 = vmatpush1.xpose.msra.mxu0 0.0
    %8306 = vmatprep.subr.mxu0 0.0
    %8307 = vmatpush1.xpose.msra.mxu0 0.0
    %8308 = vmatprep.mubr.f32.mxu0 0.0
    %8309 = vmatmul.mubr.f32.gmra.mrb[0].mxu0 %v8242
    %v8310 = vpop.f32.mrb[0].mxu0
    %v8311 = vadd.f32 0.0, %v8310
    %v8312 = vpop.f32.mrb[0].mxu0
    %8313 = vdwg.mxu0
    %v8315 = vsel %vm2161, %v7800, 0
    %8317 = vmatprep.subr.mxu0 0.0
    %8318 = vmatpush1.xpose.msra.mxu0 %v3965
    %8319 = vmatprep.subr.mxu0 0.0
    %8320 = vmatpush1.xpose.msra.mxu0 %v3968
    %8321 = vmatprep.subr.mxu0 0.0
    %8322 = vmatpush1.xpose.msra.mxu0 %v3971
    %8323 = vmatprep.subr.mxu0 0.0
    %8324 = vmatpush1.xpose.msra.mxu0 %v3974
    %8325 = vmatprep.subr.mxu0 0.0
    %8326 = vmatpush1.xpose.msra.mxu0 0.0
    %8327 = vmatprep.subr.mxu0 0.0
    %8328 = vmatpush1.xpose.msra.mxu0 0.0
    %8329 = vmatprep.subr.mxu0 0.0
    %8330 = vmatpush1.xpose.msra.mxu0 0.0
    %8331 = vmatprep.subr.mxu0 0.0
    %8332 = vmatpush1.xpose.msra.mxu0 0.0
    %8333 = vmatprep.subr.mxu0 0.0
    %8334 = vmatpush1.xpose.msra.mxu0 0.0
    %8335 = vmatprep.subr.mxu0 0.0
    %8336 = vmatpush1.xpose.msra.mxu0 0.0
    %8337 = vmatprep.subr.mxu0 0.0
    %8338 = vmatpush1.xpose.msra.mxu0 0.0
    %8339 = vmatprep.subr.mxu0 0.0
    %8340 = vmatpush1.xpose.msra.mxu0 0.0
    %8341 = vmatprep.subr.mxu0 0.0
    %8342 = vmatpush1.xpose.msra.mxu0 0.0
    %8343 = vmatprep.subr.mxu0 0.0
    %8344 = vmatpush1.xpose.msra.mxu0 0.0
    %8345 = vmatprep.subr.mxu0 0.0
    %8346 = vmatpush1.xpose.msra.mxu0 0.0
    %8347 = vmatprep.subr.mxu0 0.0
    %8348 = vmatpush1.xpose.msra.mxu0 0.0
    %8349 = vmatprep.subr.mxu0 0.0
    %8350 = vmatpush1.xpose.msra.mxu0 0.0
    %8351 = vmatprep.subr.mxu0 0.0
    %8352 = vmatpush1.xpose.msra.mxu0 0.0
    %8353 = vmatprep.subr.mxu0 0.0
    %8354 = vmatpush1.xpose.msra.mxu0 0.0
    %8355 = vmatprep.subr.mxu0 0.0
    %8356 = vmatpush1.xpose.msra.mxu0 0.0
    %8357 = vmatprep.subr.mxu0 0.0
    %8358 = vmatpush1.xpose.msra.mxu0 0.0
    %8359 = vmatprep.subr.mxu0 0.0
    %8360 = vmatpush1.xpose.msra.mxu0 0.0
    %8361 = vmatprep.subr.mxu0 0.0
    %8362 = vmatpush1.xpose.msra.mxu0 0.0
    %8363 = vmatprep.subr.mxu0 0.0
    %8364 = vmatpush1.xpose.msra.mxu0 0.0
    %8365 = vmatprep.subr.mxu0 0.0
    %8366 = vmatpush1.xpose.msra.mxu0 0.0
    %8367 = vmatprep.subr.mxu0 0.0
    %8368 = vmatpush1.xpose.msra.mxu0 0.0
    %8369 = vmatprep.subr.mxu0 0.0
    %8370 = vmatpush1.xpose.msra.mxu0 0.0
    %8371 = vmatprep.subr.mxu0 0.0
    %8372 = vmatpush1.xpose.msra.mxu0 0.0
    %8373 = vmatprep.subr.mxu0 0.0
    %8374 = vmatpush1.xpose.msra.mxu0 0.0
    %8375 = vmatprep.subr.mxu0 0.0
    %8376 = vmatpush1.xpose.msra.mxu0 0.0
    %8377 = vmatprep.subr.mxu0 0.0
    %8378 = vmatpush1.xpose.msra.mxu0 0.0
    %8379 = vmatprep.subr.mxu0 0.0
    %8380 = vmatpush1.xpose.msra.mxu0 0.0
    %8381 = vmatprep.mubr.f32.mxu0 0.0
    %8382 = vmatmul.mubr.f32.gmra.mrb[0].mxu0 %v8315
    %v8383 = vpop.f32.mrb[0].mxu0
    %v8384 = vadd.f32 0.0, %v8383
    %v8385 = vpop.f32.mrb[0].mxu0
    %8386 = vdwg.mxu0
    %v8388 = vsel %vm2161, %v7873, 0
    %8390 = vmatprep.subr.mxu0 0.0
    %8391 = vmatpush1.xpose.msra.mxu0 %v4050
    %8392 = vmatprep.subr.mxu0 0.0
    %8393 = vmatpush1.xpose.msra.mxu0 %v4053
    %8394 = vmatprep.subr.mxu0 0.0
    %8395 = vmatpush1.xpose.msra.mxu0 %v4056
    %8396 = vmatprep.subr.mxu0 0.0
    %8397 = vmatpush1.xpose.msra.mxu0 %v4059
    %8398 = vmatprep.subr.mxu0 0.0
    %8399 = vmatpush1.xpose.msra.mxu0 0.0
    %8400 = vmatprep.subr.mxu0 0.0
    %8401 = vmatpush1.xpose.msra.mxu0 0.0
    %8402 = vmatprep.subr.mxu0 0.0
    %8403 = vmatpush1.xpose.msra.mxu0 0.0
    %8404 = vmatprep.subr.mxu0 0.0
    %8405 = vmatpush1.xpose.msra.mxu0 0.0
    %8406 = vmatprep.subr.mxu0 0.0
    %8407 = vmatpush1.xpose.msra.mxu0 0.0
    %8408 = vmatprep.subr.mxu0 0.0
    %8409 = vmatpush1.xpose.msra.mxu0 0.0
    %8410 = vmatprep.subr.mxu0 0.0
    %8411 = vmatpush1.xpose.msra.mxu0 0.0
    %8412 = vmatprep.subr.mxu0 0.0
    %8413 = vmatpush1.xpose.msra.mxu0 0.0
    %8414 = vmatprep.subr.mxu0 0.0
    %8415 = vmatpush1.xpose.msra.mxu0 0.0
    %8416 = vmatprep.subr.mxu0 0.0
    %8417 = vmatpush1.xpose.msra.mxu0 0.0
    %8418 = vmatprep.subr.mxu0 0.0
    %8419 = vmatpush1.xpose.msra.mxu0 0.0
    %8420 = vmatprep.subr.mxu0 0.0
    %8421 = vmatpush1.xpose.msra.mxu0 0.0
    %8422 = vmatprep.subr.mxu0 0.0
    %8423 = vmatpush1.xpose.msra.mxu0 0.0
    %8424 = vmatprep.subr.mxu0 0.0
    %8425 = vmatpush1.xpose.msra.mxu0 0.0
    %8426 = vmatprep.subr.mxu0 0.0
    %8427 = vmatpush1.xpose.msra.mxu0 0.0
    %8428 = vmatprep.subr.mxu0 0.0
    %8429 = vmatpush1.xpose.msra.mxu0 0.0
    %8430 = vmatprep.subr.mxu0 0.0
    %8431 = vmatpush1.xpose.msra.mxu0 0.0
    %8432 = vmatprep.subr.mxu0 0.0
    %8433 = vmatpush1.xpose.msra.mxu0 0.0
    %8434 = vmatprep.subr.mxu0 0.0
    %8435 = vmatpush1.xpose.msra.mxu0 0.0
    %8436 = vmatprep.subr.mxu0 0.0
    %8437 = vmatpush1.xpose.msra.mxu0 0.0
    %8438 = vmatprep.subr.mxu0 0.0
    %8439 = vmatpush1.xpose.msra.mxu0 0.0
    %8440 = vmatprep.subr.mxu0 0.0
    %8441 = vmatpush1.xpose.msra.mxu0 0.0
    %8442 = vmatprep.subr.mxu0 0.0
    %8443 = vmatpush1.xpose.msra.mxu0 0.0
    %8444 = vmatprep.subr.mxu0 0.0
    %8445 = vmatpush1.xpose.msra.mxu0 0.0
    %8446 = vmatprep.subr.mxu0 0.0
    %8447 = vmatpush1.xpose.msra.mxu0 0.0
    %8448 = vmatprep.subr.mxu0 0.0
    %8449 = vmatpush1.xpose.msra.mxu0 0.0
    %8450 = vmatprep.subr.mxu0 0.0
    %8451 = vmatpush1.xpose.msra.mxu0 0.0
    %8452 = vmatprep.subr.mxu0 0.0
    %8453 = vmatpush1.xpose.msra.mxu0 0.0
    %8454 = vmatprep.mubr.f32.mxu0 0.0
    %8455 = vmatmul.mubr.f32.gmra.mrb[0].mxu0 %v8388
    %v8456 = vpop.f32.mrb[0].mxu0
    %v8457 = vadd.f32 0.0, %v8456
    %v8458 = vpop.f32.mrb[0].mxu0
    %8459 = vdwg.mxu0
    %v8460 = vsel %vm309, %v7946, 0.0
    %v8461 = vsel %vm309, %v8019, 0.0
    %v8462 = vadd.f32 %v8460, %v8461
    %v8463 = vsel %vm309, %v8092, 0.0
    %v8464 = vadd.f32 %v8462, %v8463
    %v8465 = vsel %vm309, %v8165, 0.0
    %v8466 = vadd.f32 %v8464, %v8465
    %v8467 = vsel %vm309, %v8238, 0.0
    %v8468 = vadd.f32 %v8466, %v8467
    %v8469 = vsel %vm309, %v8311, 0.0
    %v8470 = vadd.f32 %v8468, %v8469
    %v8471 = vsel %vm309, %v8384, 0.0
    %v8472 = vadd.f32 %v8470, %v8471
    %v8473 = vsel %vm309, %v8457, 0.0
    %v8474 = vadd.f32 %v8472, %v8473
    %v8475 = vadd.f32 %v8474, %v4150
    %v8476 = vadd.f32 %v4904, %v8475
    %v8477 = vsel %vm309, %v8476, 0.0
    %8478 = vadd.xlane.f32.xlu0 %v8477
    %v8479 = vpop.xlane.xlu0 %8478
    %v8480 = vmul.f32 %v8479, %v4157
    %v8481 = vsub.f32 %v8476, %v8480
    %v8482 = vmul.f32 %v8481, %v8481
    %v8483 = vsel %vm309, %v8482, 0.0
    %8484 = vadd.xlane.f32.xlu0 %v8483
    %v8485 = vpop.xlane.xlu0 %8484
    %v8486 = vmul.f32 %v8485, %v4157
    %v8487 = vadd.f32 %v8486, 1e-05
    %v8488 = vrsqrt.pop %v8487
    %v8489 = vmul.f32 %v8481, %v8488
    %v8490 = vmul.f32 %v8489, %v4172
    %v8491 = vadd.f32 %v8490, %v4179
    %v8493 = vsel %vm309, %v8491, 0
    %8495 = vmatprep.subr.mxu0 0.0
    %8496 = vmatpush1.xpose.msra.mxu0 %v4227
    %8497 = vmatprep.subr.mxu0 0.0
    %8498 = vmatpush1.xpose.msra.mxu0 %v4230
    %8499 = vmatprep.subr.mxu0 0.0
    %8500 = vmatpush1.xpose.msra.mxu0 %v4233
    %8501 = vmatprep.subr.mxu0 0.0
    %8502 = vmatpush1.xpose.msra.mxu0 %v4236
    %8503 = vmatprep.subr.mxu0 0.0
    %8504 = vmatpush1.xpose.msra.mxu0 %v4239
    %8505 = vmatprep.subr.mxu0 0.0
    %8506 = vmatpush1.xpose.msra.mxu0 %v4242
    %8507 = vmatprep.subr.mxu0 0.0
    %8508 = vmatpush1.xpose.msra.mxu0 %v4245
    %8509 = vmatprep.subr.mxu0 0.0
    %8510 = vmatpush1.xpose.msra.mxu0 %v4248
    %8511 = vmatprep.subr.mxu0 0.0
    %8512 = vmatpush1.xpose.msra.mxu0 %v4251
    %8513 = vmatprep.subr.mxu0 0.0
    %8514 = vmatpush1.xpose.msra.mxu0 %v4254
    %8515 = vmatprep.subr.mxu0 0.0
    %8516 = vmatpush1.xpose.msra.mxu0 %v4257
    %8517 = vmatprep.subr.mxu0 0.0
    %8518 = vmatpush1.xpose.msra.mxu0 %v4260
    %8519 = vmatprep.subr.mxu0 0.0
    %8520 = vmatpush1.xpose.msra.mxu0 %v4263
    %8521 = vmatprep.subr.mxu0 0.0
    %8522 = vmatpush1.xpose.msra.mxu0 %v4266
    %8523 = vmatprep.subr.mxu0 0.0
    %8524 = vmatpush1.xpose.msra.mxu0 %v4269
    %8525 = vmatprep.subr.mxu0 0.0
    %8526 = vmatpush1.xpose.msra.mxu0 %v4272
    %8527 = vmatprep.subr.mxu0 0.0
    %8528 = vmatpush1.xpose.msra.mxu0 %v4275
    %8529 = vmatprep.subr.mxu0 0.0
    %8530 = vmatpush1.xpose.msra.mxu0 %v4278
    %8531 = vmatprep.subr.mxu0 0.0
    %8532 = vmatpush1.xpose.msra.mxu0 %v4281
    %8533 = vmatprep.subr.mxu0 0.0
    %8534 = vmatpush1.xpose.msra.mxu0 %v4284
    %8535 = vmatprep.subr.mxu0 0.0
    %8536 = vmatpush1.xpose.msra.mxu0 %v4287
    %8537 = vmatprep.subr.mxu0 0.0
    %8538 = vmatpush1.xpose.msra.mxu0 %v4290
    %8539 = vmatprep.subr.mxu0 0.0
    %8540 = vmatpush1.xpose.msra.mxu0 %v4293
    %8541 = vmatprep.subr.mxu0 0.0
    %8542 = vmatpush1.xpose.msra.mxu0 %v4296
    %8543 = vmatprep.subr.mxu0 0.0
    %8544 = vmatpush1.xpose.msra.mxu0 %v4299
    %8545 = vmatprep.subr.mxu0 0.0
    %8546 = vmatpush1.xpose.msra.mxu0 %v4302
    %8547 = vmatprep.subr.mxu0 0.0
    %8548 = vmatpush1.xpose.msra.mxu0 %v4305
    %8549 = vmatprep.subr.mxu0 0.0
    %8550 = vmatpush1.xpose.msra.mxu0 %v4308
    %8551 = vmatprep.subr.mxu0 0.0
    %8552 = vmatpush1.xpose.msra.mxu0 %v4311
    %8553 = vmatprep.subr.mxu0 0.0
    %8554 = vmatpush1.xpose.msra.mxu0 %v4314
    %8555 = vmatprep.subr.mxu0 0.0
    %8556 = vmatpush1.xpose.msra.mxu0 %v4317
    %8557 = vmatprep.subr.mxu0 0.0
    %8558 = vmatpush1.xpose.msra.mxu0 %v4320
    %8559 = vmatprep.mubr.f32.mxu0 0.0
    %8560 = vmatmul.mubr.f32.gmra.mrb[0].mxu0 %v8493
    %v8561 = vpop.f32.mrb[0].mxu0
    %v8562 = vadd.f32 %v4186, %v8561
    %v8563 = vpop.f32.mrb[0].mxu0
    %v8564 = vadd.f32 %v4190, %v8563
    %8565 = vdwg.mxu0
    %8566 = vmatprep.subr.mxu0 0.0
    %8567 = vmatpush1.xpose.msra.mxu0 %v4323
    %8568 = vmatprep.subr.mxu0 0.0
    %8569 = vmatpush1.xpose.msra.mxu0 %v4326
    %8570 = vmatprep.subr.mxu0 0.0
    %8571 = vmatpush1.xpose.msra.mxu0 %v4329
    %8572 = vmatprep.subr.mxu0 0.0
    %8573 = vmatpush1.xpose.msra.mxu0 %v4332
    %8574 = vmatprep.subr.mxu0 0.0
    %8575 = vmatpush1.xpose.msra.mxu0 %v4335
    %8576 = vmatprep.subr.mxu0 0.0
    %8577 = vmatpush1.xpose.msra.mxu0 %v4338
    %8578 = vmatprep.subr.mxu0 0.0
    %8579 = vmatpush1.xpose.msra.mxu0 %v4341
    %8580 = vmatprep.subr.mxu0 0.0
    %8581 = vmatpush1.xpose.msra.mxu0 %v4344
    %8582 = vmatprep.subr.mxu0 0.0
    %8583 = vmatpush1.xpose.msra.mxu0 %v4347
    %8584 = vmatprep.subr.mxu0 0.0
    %8585 = vmatpush1.xpose.msra.mxu0 %v4350
    %8586 = vmatprep.subr.mxu0 0.0
    %8587 = vmatpush1.xpose.msra.mxu0 %v4353
    %8588 = vmatprep.subr.mxu0 0.0
    %8589 = vmatpush1.xpose.msra.mxu0 %v4356
    %8590 = vmatprep.subr.mxu0 0.0
    %8591 = vmatpush1.xpose.msra.mxu0 %v4359
    %8592 = vmatprep.subr.mxu0 0.0
    %8593 = vmatpush1.xpose.msra.mxu0 %v4362
    %8594 = vmatprep.subr.mxu0 0.0
    %8595 = vmatpush1.xpose.msra.mxu0 %v4365
    %8596 = vmatprep.subr.mxu0 0.0
    %8597 = vmatpush1.xpose.msra.mxu0 %v4368
    %8598 = vmatprep.subr.mxu0 0.0
    %8599 = vmatpush1.xpose.msra.mxu0 %v4371
    %8600 = vmatprep.subr.mxu0 0.0
    %8601 = vmatpush1.xpose.msra.mxu0 %v4374
    %8602 = vmatprep.subr.mxu0 0.0
    %8603 = vmatpush1.xpose.msra.mxu0 %v4377
    %8604 = vmatprep.subr.mxu0 0.0
    %8605 = vmatpush1.xpose.msra.mxu0 %v4380
    %8606 = vmatprep.subr.mxu0 0.0
    %8607 = vmatpush1.xpose.msra.mxu0 %v4383
    %8608 = vmatprep.subr.mxu0 0.0
    %8609 = vmatpush1.xpose.msra.mxu0 %v4386
    %8610 = vmatprep.subr.mxu0 0.0
    %8611 = vmatpush1.xpose.msra.mxu0 %v4389
    %8612 = vmatprep.subr.mxu0 0.0
    %8613 = vmatpush1.xpose.msra.mxu0 %v4392
    %8614 = vmatprep.subr.mxu0 0.0
    %8615 = vmatpush1.xpose.msra.mxu0 %v4395
    %8616 = vmatprep.subr.mxu0 0.0
    %8617 = vmatpush1.xpose.msra.mxu0 %v4398
    %8618 = vmatprep.subr.mxu0 0.0
    %8619 = vmatpush1.xpose.msra.mxu0 %v4401
    %8620 = vmatprep.subr.mxu0 0.0
    %8621 = vmatpush1.xpose.msra.mxu0 %v4404
    %8622 = vmatprep.subr.mxu0 0.0
    %8623 = vmatpush1.xpose.msra.mxu0 %v4407
    %8624 = vmatprep.subr.mxu0 0.0
    %8625 = vmatpush1.xpose.msra.mxu0 %v4410
    %8626 = vmatprep.subr.mxu0 0.0
    %8627 = vmatpush1.xpose.msra.mxu0 %v4413
    %8628 = vmatprep.subr.mxu0 0.0
    %8629 = vmatpush1.xpose.msra.mxu0 %v4416
    %8630 = vmatprep.mubr.f32.mxu0 0.0
    %8631 = vmatmul.mubr.f32.gmra.mrb[0].mxu0 %v8493
    %v8632 = vpop.f32.mrb[0].mxu0
    %v8633 = vadd.f32 %v4194, %v8632
    %v8634 = vpop.f32.mrb[0].mxu0
    %v8635 = vadd.f32 %v4198, %v8634
    %8636 = vdwg.mxu0
    %8637 = vmatprep.subr.mxu0 0.0
    %8638 = vmatpush1.xpose.msra.mxu0 %v4419
    %8639 = vmatprep.subr.mxu0 0.0
    %8640 = vmatpush1.xpose.msra.mxu0 %v4422
    %8641 = vmatprep.subr.mxu0 0.0
    %8642 = vmatpush1.xpose.msra.mxu0 %v4425
    %8643 = vmatprep.subr.mxu0 0.0
    %8644 = vmatpush1.xpose.msra.mxu0 %v4428
    %8645 = vmatprep.subr.mxu0 0.0
    %8646 = vmatpush1.xpose.msra.mxu0 %v4431
    %8647 = vmatprep.subr.mxu0 0.0
    %8648 = vmatpush1.xpose.msra.mxu0 %v4434
    %8649 = vmatprep.subr.mxu0 0.0
    %8650 = vmatpush1.xpose.msra.mxu0 %v4437
    %8651 = vmatprep.subr.mxu0 0.0
    %8652 = vmatpush1.xpose.msra.mxu0 %v4440
    %8653 = vmatprep.subr.mxu0 0.0
    %8654 = vmatpush1.xpose.msra.mxu0 %v4443
    %8655 = vmatprep.subr.mxu0 0.0
    %8656 = vmatpush1.xpose.msra.mxu0 %v4446
    %8657 = vmatprep.subr.mxu0 0.0
    %8658 = vmatpush1.xpose.msra.mxu0 %v4449
    %8659 = vmatprep.subr.mxu0 0.0
    %8660 = vmatpush1.xpose.msra.mxu0 %v4452
    %8661 = vmatprep.subr.mxu0 0.0
    %8662 = vmatpush1.xpose.msra.mxu0 %v4455
    %8663 = vmatprep.subr.mxu0 0.0
    %8664 = vmatpush1.xpose.msra.mxu0 %v4458
    %8665 = vmatprep.subr.mxu0 0.0
    %8666 = vmatpush1.xpose.msra.mxu0 %v4461
    %8667 = vmatprep.subr.mxu0 0.0
    %8668 = vmatpush1.xpose.msra.mxu0 %v4464
    %8669 = vmatprep.subr.mxu0 0.0
    %8670 = vmatpush1.xpose.msra.mxu0 %v4467
    %8671 = vmatprep.subr.mxu0 0.0
    %8672 = vmatpush1.xpose.msra.mxu0 %v4470
    %8673 = vmatprep.subr.mxu0 0.0
    %8674 = vmatpush1.xpose.msra.mxu0 %v4473
    %8675 = vmatprep.subr.mxu0 0.0
    %8676 = vmatpush1.xpose.msra.mxu0 %v4476
    %8677 = vmatprep.subr.mxu0 0.0
    %8678 = vmatpush1.xpose.msra.mxu0 %v4479
    %8679 = vmatprep.subr.mxu0 0.0
    %8680 = vmatpush1.xpose.msra.mxu0 %v4482
    %8681 = vmatprep.subr.mxu0 0.0
    %8682 = vmatpush1.xpose.msra.mxu0 %v4485
    %8683 = vmatprep.subr.mxu0 0.0
    %8684 = vmatpush1.xpose.msra.mxu0 %v4488
    %8685 = vmatprep.subr.mxu0 0.0
    %8686 = vmatpush1.xpose.msra.mxu0 %v4491
    %8687 = vmatprep.subr.mxu0 0.0
    %8688 = vmatpush1.xpose.msra.mxu0 %v4494
    %8689 = vmatprep.subr.mxu0 0.0
    %8690 = vmatpush1.xpose.msra.mxu0 %v4497
    %8691 = vmatprep.subr.mxu0 0.0
    %8692 = vmatpush1.xpose.msra.mxu0 %v4500
    %8693 = vmatprep.subr.mxu0 0.0
    %8694 = vmatpush1.xpose.msra.mxu0 %v4503
    %8695 = vmatprep.subr.mxu0 0.0
    %8696 = vmatpush1.xpose.msra.mxu0 %v4506
    %8697 = vmatprep.subr.mxu0 0.0
    %8698 = vmatpush1.xpose.msra.mxu0 %v4509
    %8699 = vmatprep.subr.mxu0 0.0
    %8700 = vmatpush1.xpose.msra.mxu0 %v4512
    %8701 = vmatprep.mubr.f32.mxu0 0.0
    %8702 = vmatmul.mubr.f32.gmra.mrb[0].mxu0 %v8493
    %v8703 = vpop.f32.mrb[0].mxu0
    %v8704 = vadd.f32 %v4202, %v8703
    %v8705 = vpop.f32.mrb[0].mxu0
    %v8706 = vadd.f32 %v4206, %v8705
    %8707 = vdwg.mxu0
    %8708 = vmatprep.subr.mxu0 0.0
    %8709 = vmatpush1.xpose.msra.mxu0 %v4515
    %8710 = vmatprep.subr.mxu0 0.0
    %8711 = vmatpush1.xpose.msra.mxu0 %v4518
    %8712 = vmatprep.subr.mxu0 0.0
    %8713 = vmatpush1.xpose.msra.mxu0 %v4521
    %8714 = vmatprep.subr.mxu0 0.0
    %8715 = vmatpush1.xpose.msra.mxu0 %v4524
    %8716 = vmatprep.subr.mxu0 0.0
    %8717 = vmatpush1.xpose.msra.mxu0 %v4527
    %8718 = vmatprep.subr.mxu0 0.0
    %8719 = vmatpush1.xpose.msra.mxu0 %v4530
    %8720 = vmatprep.subr.mxu0 0.0
    %8721 = vmatpush1.xpose.msra.mxu0 %v4533
    %8722 = vmatprep.subr.mxu0 0.0
    %8723 = vmatpush1.xpose.msra.mxu0 %v4536
    %8724 = vmatprep.subr.mxu0 0.0
    %8725 = vmatpush1.xpose.msra.mxu0 %v4539
    %8726 = vmatprep.subr.mxu0 0.0
    %8727 = vmatpush1.xpose.msra.mxu0 %v4542
    %8728 = vmatprep.subr.mxu0 0.0
    %8729 = vmatpush1.xpose.msra.mxu0 %v4545
    %8730 = vmatprep.subr.mxu0 0.0
    %8731 = vmatpush1.xpose.msra.mxu0 %v4548
    %8732 = vmatprep.subr.mxu0 0.0
    %8733 = vmatpush1.xpose.msra.mxu0 %v4551
    %8734 = vmatprep.subr.mxu0 0.0
    %8735 = vmatpush1.xpose.msra.mxu0 %v4554
    %8736 = vmatprep.subr.mxu0 0.0
    %8737 = vmatpush1.xpose.msra.mxu0 %v4557
    %8738 = vmatprep.subr.mxu0 0.0
    %8739 = vmatpush1.xpose.msra.mxu0 %v4560
    %8740 = vmatprep.subr.mxu0 0.0
    %8741 = vmatpush1.xpose.msra.mxu0 %v4563
    %8742 = vmatprep.subr.mxu0 0.0
    %8743 = vmatpush1.xpose.msra.mxu0 %v4566
    %8744 = vmatprep.subr.mxu0 0.0
    %8745 = vmatpush1.xpose.msra.mxu0 %v4569
    %8746 = vmatprep.subr.mxu0 0.0
    %8747 = vmatpush1.xpose.msra.mxu0 %v4572
    %8748 = vmatprep.subr.mxu0 0.0
    %8749 = vmatpush1.xpose.msra.mxu0 %v4575
    %8750 = vmatprep.subr.mxu0 0.0
    %8751 = vmatpush1.xpose.msra.mxu0 %v4578
    %8752 = vmatprep.subr.mxu0 0.0
    %8753 = vmatpush1.xpose.msra.mxu0 %v4581
    %8754 = vmatprep.subr.mxu0 0.0
    %8755 = vmatpush1.xpose.msra.mxu0 %v4584
    %8756 = vmatprep.subr.mxu0 0.0
    %8757 = vmatpush1.xpose.msra.mxu0 %v4587
    %8758 = vmatprep.subr.mxu0 0.0
    %8759 = vmatpush1.xpose.msra.mxu0 %v4590
    %8760 = vmatprep.subr.mxu0 0.0
    %8761 = vmatpush1.xpose.msra.mxu0 %v4593
    %8762 = vmatprep.subr.mxu0 0.0
    %8763 = vmatpush1.xpose.msra.mxu0 %v4596
    %8764 = vmatprep.subr.mxu0 0.0
    %8765 = vmatpush1.xpose.msra.mxu0 %v4599
    %8766 = vmatprep.subr.mxu0 0.0
    %8767 = vmatpush1.xpose.msra.mxu0 %v4602
    %8768 = vmatprep.subr.mxu0 0.0
    %8769 = vmatpush1.xpose.msra.mxu0 %v4605
    %8770 = vmatprep.subr.mxu0 0.0
    %8771 = vmatpush1.xpose.msra.mxu0 %v4608
    %8772 = vmatprep.mubr.f32.mxu0 0.0
    %8773 = vmatmul.mubr.f32.gmra.mrb[0].mxu0 %v8493
    %v8774 = vpop.f32.mrb[0].mxu0
    %v8775 = vadd.f32 %v4210, %v8774
    %v8776 = vpop.f32.mrb[0].mxu0
    %v8777 = vadd.f32 %v4214, %v8776
    %8778 = vdwg.mxu0
    %8779 = vst.msk [vmem:[#allocation2 + $0x8] sm:$0xff] %vm309, %v8491
    %8780 = vst [vmem:[#allocation4 + $0x40] sm:$0xff] %v8562
    %8781 = vst [vmem:[#allocation4 + $0x48] sm:$0xff] %v8564
    %8782 = vst [vmem:[#allocation4 + $0x50] sm:$0xff] %v8633
    %8783 = vst [vmem:[#allocation4 + $0x58] sm:$0xff] %v8635
    %8784 = vst [vmem:[#allocation4 + $0x60] sm:$0xff] %v8704
    %8785 = vst [vmem:[#allocation4 + $0x68] sm:$0xff] %v8706
    %8786 = vst [vmem:[#allocation4 + $0x70] sm:$0xff] %v8775
    %8787 = vst [vmem:[#allocation4 + $0x78] sm:$0xff] %v8777
    // Predicated region
    $region54: #{tpu_custom_call.1} parent=1 // pred_check
      _
    $region55: #{tpu_custom_call.1} parent=1 // pred_check_branch
      %8789 = sbr.rel (0) target = $region57
    $region56: #{tpu_custom_call.1} parent=1 // pred_region
      %s8791 = ssub.s32 256, 256
      %8792 = vsyncadd [#allocation3], %s8791
      %s8793 = sshll.u32 [#allocation2], 4
      %s8794 = int_to_ptr.vmem [resolvable:$true] %s8793
      %8799 = dma.vmem_to_hbm [thread:$0]  %s8794, 256, %s13, [#allocation3], 128, 128, 8
    $region57: #{tpu_custom_call.1} parent=1 // pred_fallthru
      _
    // Predicated region
    $region58: #{tpu_custom_call.1} parent=1 // pred_check
      _
    $region59: #{tpu_custom_call.1} parent=1 // pred_check_branch
      %8801 = sbr.rel (0) target = $region61
    $region60: #{tpu_custom_call.1} parent=1 // pred_region
      %s8803 = ssub.s32 2048, 2048
      %8804 = vsyncadd [#allocation5], %s8803
      %s8805 = sshll.u32 [#allocation4], 4
      %s8806 = int_to_ptr.vmem [resolvable:$true] %s8805
      %8811 = dma.vmem_to_hbm [thread:$0]  %s8806, 2048, %s14, [#allocation5], 1024, 1024, 64
    $region61: #{tpu_custom_call.1} parent=1 // pred_fallthru
      _
    // Predicated region
    $region62: #{tpu_custom_call.1} parent=1 // pred_check
      _
    $region63: #{tpu_custom_call.1} parent=1 // pred_check_branch
      %8813 = sbr.rel (0) target = $region65
    $region64: #{tpu_custom_call.1} parent=1 // pred_region
      %8814 = dma.done [#allocation3], 256
    $region65: #{tpu_custom_call.1} parent=1 // pred_fallthru
      _
    // Predicated region
    $region66: #{tpu_custom_call.1} parent=1 // pred_check
      _
    $region67: #{tpu_custom_call.1} parent=1 // pred_check_branch
      %8816 = sbr.rel (0) target = $region69
    $region68: #{tpu_custom_call.1} parent=1 // pred_region
      %8817 = dma.done [#allocation5], 2048
    $region69: #{tpu_custom_call.1} parent=1 // pred_fallthru
      _
    %8818 = vsyncpa [#allocation3], 1
    %8819 = vsyncpa [#allocation5], 1

</llo_original>
